<compile_context>
chip_gen: v7x
topology: tpu7x:2x2x1
jax: 0.10.0
libtpu: 0.0.40
codegen_flags: <defaults>
</compile_context>

<pallas_src>
import functools
import numpy as np
import jax
import jax.numpy as jnp
from jax.experimental import pallas as pl
from jax.experimental.pallas import tpu as pltpu

LSTM_DIM = 32
N_MFCC = 60
VIDEO_FEAT = 64
NUM_CLASSES = 2
GRID_SIZE = 5
K_ORDER = 3
GK = GRID_SIZE + K_ORDER                                    # 8
KAN_R = 4.0 * GRID_SIZE * GRID_SIZE / ((K_ORDER + 1) ** 2)  # 6.25
CNN_OC = 8

VID_C, VID_H, VID_W = 3, 16, 16
VID_FRAMES = 4
AUDIO_T = 8

VMEM_SPEC = pl.BlockSpec(memory_space=pltpu.MemorySpace.VMEM)


# ------------------------------ fused forward kernel ------------------------------

def fused_forward_kernel(
        video_ref, audio_ref,
        conv_rhs_ref, conv_b_ref, poolfc_ref, fcb_ref,
        wih1v_ref, u1v_ref, b1v_ref, wih2v_ref, u2v_ref, b2v_ref,
        wih1a_ref, u1a_ref, b1a_ref, wih2a_ref, u2a_ref, b2a_ref,
        plo1_ref, phi1_ref, kw1_ref, kb1_ref,
        plo2_ref, phi2_ref, kw2_ref, kb2_ref,
        out_ref,
        *, batch, frames, t_audio, hid, img_h, img_w, in_ch, conv_oc):
    f32, bf16 = jnp.float32, jnp.bfloat16
    B = batch
    H2, H8 = 2 * hid, 8 * hid

    # ---------------- Video CNN: 3x3 same conv + ReLU + GAP + FC + ReLU ----------------
    # Banded-matmul formulation: rows = (image, h), contraction = (c, kh, w_in),
    # output lanes = (w, oc) -> a single lane-dense (128, 144) x (144, 128) matmul.
    BF = B * frames
    xv = video_ref[...]                                               # (BF, C, H, W) f32
    zrow = jnp.zeros((BF, 1, img_w), f32)
    pieces = []
    for c in range(in_ch):
        xc = jnp.concatenate([zrow, xv[:, c], zrow], axis=1)          # (BF, H+2, W) H-padded
        for kh in range(3):
            pieces.append(xc[:, kh:kh + img_h, :])                    # (BF, H, W)
    lhs = jnp.concatenate(pieces, axis=-1)                            # (BF, H, C*3*W)
    lhs = lhs.reshape(BF * img_h, in_ch * 3 * img_w)                  # rows ordered (bf, h)
    conv = jnp.dot(lhs.astype(bf16), conv_rhs_ref[...],
                   preferred_element_type=f32) + conv_b_ref[...]      # (BF*H, W*OC)
    conv = jnp.maximum(conv, 0.0)
    rowsum = jnp.sum(conv.reshape(BF, img_h, img_w * conv_oc), axis=1)  # sum over h -> (BF, W*OC)
    # poolfc folds: sum over w, 1/(H*W) mean scale, and the FC weight.
    feats = jnp.dot(rowsum.astype(bf16), poolfc_ref[...],
                    preferred_element_type=f32) + fcb_ref[...]        # (BF, VIDEO_FEAT)
    feats = jnp.maximum(feats, 0.0)                                   # rows ordered (b, f)

    # ---------------- shared bidirectional-LSTM machinery ----------------
    # Gate layout along 8H=256 lanes: [I | F | G | O], each gate = [fwd(hid) | bwd(hid)].
    lanes_w = jax.lax.broadcasted_iota(jnp.int32, (B, H8), 1)
    fwd_mask_w = (lanes_w % H2) < hid                                 # fwd lanes of the gate vector
    lanes_h = jax.lax.broadcasted_iota(jnp.int32, (B, H2), 1)
    fwd_mask_h = lanes_h < hid                                        # fwd lanes of h/c

    def gate_step(h, c, xsel, u_ref):
        # One recurrent step advancing BOTH directions: a single (B,64)x(64,256) matmul.
        g = xsel + jnp.dot(h.astype(bf16), u_ref[...], preferred_element_type=f32)
        s = jax.nn.sigmoid(g)                                         # full-width EUP pass
        i_g = s[:, 0:H2]
        f_g = s[:, H2:2 * H2]
        o_g = s[:, 3 * H2:4 * H2]
        g_g = jnp.tanh(g[:, 2 * H2:3 * H2])
        c = f_g * c + i_g * g_g
        h = o_g * jnp.tanh(c)
        return h, c

    def bilstm_stack(x_bt, T, wih1_ref, u1_ref, bias1_ref, wih2_ref, u2_ref, bias2_ref):
        # x_bt: (B*T, D) f32, rows ordered (b, t).  Returns output[:, -1, :] = (B, 2*hid).
        xw1 = jnp.dot(x_bt.astype(bf16), wih1_ref[...],
                      preferred_element_type=f32) + bias1_ref[...]    # hoisted input proj + bias

        def rows_bt(arr, t):
            return jnp.concatenate(
                [arr[b * T + t:b * T + t + 1, :] for b in range(B)], axis=0)

        # ---- layer 1: fwd consumes time s, bwd consumes time T-1-s in the same step ----
        h = jnp.zeros((B, H2), f32)
        c = jnp.zeros((B, H2), f32)
        hs1 = []
        for s_ in range(T):
            xsel = jnp.where(fwd_mask_w, rows_bt(xw1, s_), rows_bt(xw1, T - 1 - s_))
            h, c = gate_step(h, c, xsel, u1_ref)
            hs1.append(h)
        # y1[t] = [h_fwd(t) | h_bwd(t)]  (time-major rows (t, b))
        y1 = jnp.concatenate(
            [jnp.where(fwd_mask_h, hs1[t], hs1[T - 1 - t]) for t in range(T)], axis=0)

        # ---- layer 2 ----
        xw2 = jnp.dot(y1.astype(bf16), wih2_ref[...],
                      preferred_element_type=f32) + bias2_ref[...]
        h = jnp.zeros((B, H2), f32)
        c = jnp.zeros((B, H2), f32)
        hs2 = []
        for s_ in range(T):
            xsel = jnp.where(fwd_mask_w, xw2[s_ * B:(s_ + 1) * B, :],
                             xw2[(T - 1 - s_) * B:(T - s_) * B, :])
            h, c = gate_step(h, c, xsel, u2_ref)
            hs2.append(h)
        # output[:, -1, :] = [fwd hidden at t=T-1 | bwd hidden at t=T-1 (its first step)]
        return jnp.where(fwd_mask_h, hs2[T - 1], hs2[0])

    v_last = bilstm_stack(feats, frames,
                          wih1v_ref, u1v_ref, b1v_ref, wih2v_ref, u2v_ref, b2v_ref)
    audio2d = audio_ref[...].reshape(B * t_audio, -1)                 # rows ordered (b, t)
    a_last = bilstm_stack(audio2d, t_audio,
                          wih1a_ref, u1a_ref, b1a_ref, wih2a_ref, u2a_ref, b2a_ref)

    # ---------------- KAN head (Dropout(0.3) is identity in eval mode) ----------------
    combined = jnp.concatenate([v_last, a_last], axis=1)              # (B, 4*hid) = (B, 128)

    def relu_kan(x, plo_ref, phi_ref, w_ref, b_ref):
        # basis lane n = j*in + i : (relu(x_i - plo_j) * relu(phi_j - x_i) * r)^2
        xt = jnp.concatenate([x] * GK, axis=1)                        # (B, GK*in)
        x1 = jnp.maximum(xt - plo_ref[...], 0.0)
        x2 = jnp.maximum(phi_ref[...] - xt, 0.0)
        basis = x1 * x2 * KAN_R
        basis = basis * basis
        return jnp.dot(basis.astype(bf16), w_ref[...],
                       preferred_element_type=f32) + b_ref[...]

    hmid = relu_kan(combined, plo1_ref, phi1_ref, kw1_ref, kb1_ref)   # (B, 128)
    out_ref[...] = relu_kan(hmid, plo2_ref, phi2_ref, kw2_ref, kb2_ref)  # (B, num_classes)


# ------------------------------ model glue ------------------------------

def forward(video_input, audio_input, params):
    B, F, C, H, W = video_input.shape
    x_video = video_input.reshape(B * F, C, H, W)            # free reshape (no data movement)
    audio_flat = audio_input.reshape(B, -1)
    t_a = audio_flat.shape[1] // N_MFCC
    x_audio = audio_flat.reshape(B, t_a, N_MFCC)             # free reshape

    kernel = functools.partial(
        fused_forward_kernel, batch=B, frames=F, t_audio=t_a, hid=LSTM_DIM,
        img_h=H, img_w=W, in_ch=C, conv_oc=CNN_OC)
    args = (x_video, x_audio) + tuple(params)
    return pl.pallas_call(
        kernel,
        out_shape=jax.ShapeDtypeStruct((B, NUM_CLASSES), jnp.float32),
        in_specs=[VMEM_SPEC] * len(args),
        out_specs=VMEM_SPEC,
    )(*args)


# ------------------------------ deterministic params ------------------------------

def init_params():
    rng = np.random.default_rng(42)

    def u(shape, s):
        return rng.uniform(-s, s, size=shape).astype(np.float32)

    # --- video CNN (synthesized; see TODO at top) ---
    conv_w = u((CNN_OC, VID_C, 3, 3), 0.3)
    conv_b = u((CNN_OC,), 0.1)
    # banded conv RHS: rows k = c*3*W + kh*W + w_in, lanes n = w*OC + oc
    conv_rhs = np.zeros((VID_C * 3 * VID_W, VID_W * CNN_OC), np.float32)
    for c in range(VID_C):
        for kh in range(3):
            for w_in in range(VID_W):
                for wo in range(VID_W):
                    kw = w_in - wo + 1                      # padding=1
                    if 0 <= kw <= 2:
                        conv_rhs[c * 3 * VID_W + kh * VID_W + w_in,
                                 wo * CNN_OC:(wo + 1) * CNN_OC] = conv_w[:, c, kh, kw]
    conv_b_row = np.tile(conv_b, VID_W)[None, :]            # (1, W*OC), lane n = w*OC + oc
    fc_w = u((CNN_OC, VIDEO_FEAT), 0.3)
    fc_b = u((1, VIDEO_FEAT), 0.1)
    pool_fc = np.tile(fc_w / float(VID_H * VID_W), (VID_W, 1))  # (W*OC, FEAT): pool+scale+FC folded

    # --- bidirectional LSTM params in the fused [I|F|G|O] x [fwd|bwd] lane layout ---
    def bilstm_params(input_dim):
        s = 1.0 / np.sqrt(LSTM_DIM)
        wih = np.zeros((input_dim, 8 * LSTM_DIM), np.float32)
        whh = np.zeros((2 * LSTM_DIM, 8 * LSTM_DIM), np.float32)     # block-striped per direction
        b = np.zeros((1, 8 * LSTM_DIM), np.float32)
        for d in range(2):                                           # 0 = fwd, 1 = bwd
            for g_ in range(4):                                      # i, f, g, o
                col = g_ * 2 * LSTM_DIM + d * LSTM_DIM
                wih[:, col:col + LSTM_DIM] = u((input_dim, LSTM_DIM), s)
                whh[d * LSTM_DIM:(d + 1) * LSTM_DIM, col:col + LSTM_DIM] = u((LSTM_DIM, LSTM_DIM), s)
                b[0, col:col + LSTM_DIM] = u((LSTM_DIM,), s) + u((LSTM_DIM,), s)  # b_ih + b_hh
        return wih, whh, b

    wih1v, u1v, b1v = bilstm_params(VIDEO_FEAT)
    wih2v, u2v, b2v = bilstm_params(2 * LSTM_DIM)
    wih1a, u1a, b1a = bilstm_params(N_MFCC)
    wih2a, u2a, b2a = bilstm_params(2 * LSTM_DIM)

    # --- ReLUKAN layers (phases flattened; conv weight permuted to basis lane order) ---
    def kan_params(in_size, out_size):
        phase_low = (np.arange(-K_ORDER, GRID_SIZE) / GRID_SIZE).astype(np.float32)   # (gk,)
        phase_high = phase_low + (K_ORDER + 1) / GRID_SIZE
        plo = np.repeat(phase_low, in_size)[None, :].astype(np.float32)   # lane n = j*in + i
        phi = np.repeat(phase_high, in_size)[None, :].astype(np.float32)
        s = 1.0 / np.sqrt(GK * in_size)
        cw = u((out_size, GK * in_size), s)                 # Conv2d(1, out, (g+k, in)) flat weight
        cb = u((1, out_size), s)
        # Faithful to PyTorch's flat-reinterpret reshape: basis flat index m = i*gk + j pairs
        # with conv weight column m; our kernel builds basis lanes as n = j*in + i.
        wk = cw.T.reshape(in_size, GK, out_size).transpose(1, 0, 2).reshape(GK * in_size, out_size)
        return plo, phi, np.ascontiguousarray(wk), cb

    plo1, phi1, kw1, kb1 = kan_params(4 * LSTM_DIM, 128)
    plo2, phi2, kw2, kb2 = kan_params(128, NUM_CLASSES)

    bfp = lambda a: jnp.asarray(a, jnp.bfloat16)
    f32 = lambda a: jnp.asarray(a, jnp.float32)
    return (bfp(conv_rhs), f32(conv_b_row), bfp(pool_fc), f32(fc_b),
            bfp(wih1v), bfp(u1v), f32(b1v), bfp(wih2v), bfp(u2v), f32(b2v),
            bfp(wih1a), bfp(u1a), f32(b1a), bfp(wih2a), bfp(u2a), f32(b2a),
            f32(plo1), f32(phi1), bfp(kw1), f32(kb1),
            f32(plo2), f32(phi2), bfp(kw2), f32(kb2))


if __name__ == "__main__":
    params = init_params()
    kv, ka = jax.random.split(jax.random.PRNGKey(0))
    video_input = jax.random.normal(kv, (2, VID_FRAMES, VID_C, VID_H, VID_W), jnp.float32)
    audio_input = jax.random.normal(ka, (2, AUDIO_T, N_MFCC), jnp.float32)

    out = jax.jit(forward)(video_input, audio_input, params)
    out = jax.block_until_ready(out)
    assert out.shape == (2, NUM_CLASSES), out.shape
    assert bool(jnp.all(jnp.isfinite(out)))
    print("KERNEL_OK")
</pallas_src>

<mosaic_0001>
module attributes {stable_mosaic.version = 11 : i64} {
  func.func @fused_forward_kernel(%arg0: memref<8x3x16x16xf32, #tpu.memory_space<vmem>>, %arg1: memref<2x8x60xf32, #tpu.memory_space<vmem>>, %arg2: memref<144x128xbf16, #tpu.memory_space<vmem>>, %arg3: memref<1x128xf32, #tpu.memory_space<vmem>>, %arg4: memref<128x64xbf16, #tpu.memory_space<vmem>>, %arg5: memref<1x64xf32, #tpu.memory_space<vmem>>, %arg6: memref<64x256xbf16, #tpu.memory_space<vmem>>, %arg7: memref<64x256xbf16, #tpu.memory_space<vmem>>, %arg8: memref<1x256xf32, #tpu.memory_space<vmem>>, %arg9: memref<64x256xbf16, #tpu.memory_space<vmem>>, %arg10: memref<64x256xbf16, #tpu.memory_space<vmem>>, %arg11: memref<1x256xf32, #tpu.memory_space<vmem>>, %arg12: memref<60x256xbf16, #tpu.memory_space<vmem>>, %arg13: memref<64x256xbf16, #tpu.memory_space<vmem>>, %arg14: memref<1x256xf32, #tpu.memory_space<vmem>>, %arg15: memref<64x256xbf16, #tpu.memory_space<vmem>>, %arg16: memref<64x256xbf16, #tpu.memory_space<vmem>>, %arg17: memref<1x256xf32, #tpu.memory_space<vmem>>, %arg18: memref<1x1024xf32, #tpu.memory_space<vmem>>, %arg19: memref<1x1024xf32, #tpu.memory_space<vmem>>, %arg20: memref<1024x128xbf16, #tpu.memory_space<vmem>>, %arg21: memref<1x128xf32, #tpu.memory_space<vmem>>, %arg22: memref<1x1024xf32, #tpu.memory_space<vmem>>, %arg23: memref<1x1024xf32, #tpu.memory_space<vmem>>, %arg24: memref<1024x2xbf16, #tpu.memory_space<vmem>>, %arg25: memref<1x2xf32, #tpu.memory_space<vmem>>, %arg26: memref<2x2xf32, #tpu.memory_space<vmem>>) attributes {dimension_semantics = [], scalar_prefetch = 0 : i64, scratch_operands = 0 : i64, tpu.core_type = #tpu.core_type<tc>} {
    %c0 = arith.constant 0 : index
    %c0_0 = arith.constant 0 : index
    %c0_1 = arith.constant 0 : index
    %c0_2 = arith.constant 0 : index
    %0 = vector.load %arg0[%c0, %c0_0, %c0_1, %c0_2] : memref<8x3x16x16xf32, #tpu.memory_space<vmem>>, vector<8x3x16x16xf32>
    %cst = arith.constant 0.000000e+00 : f32
    %1 = vector.broadcast %cst : f32 to vector<8x1x16xf32>
    %2 = vector.extract_strided_slice %0 {offsets = [0, 0, 0, 0], sizes = [8, 1, 16, 16], strides = [1, 1, 1, 1]} : vector<8x3x16x16xf32> to vector<8x1x16x16xf32>
    %3 = vector.shape_cast %2 : vector<8x1x16x16xf32> to vector<8x16x16xf32>
    %4 = tpu.concatenate %1, %3, %1 in 1 : vector<8x1x16xf32>, vector<8x16x16xf32>, vector<8x1x16xf32> -> vector<8x18x16xf32>
    %5 = vector.extract_strided_slice %4 {offsets = [0, 0, 0], sizes = [8, 16, 16], strides = [1, 1, 1]} : vector<8x18x16xf32> to vector<8x16x16xf32>
    %6 = vector.extract_strided_slice %4 {offsets = [0, 1, 0], sizes = [8, 16, 16], strides = [1, 1, 1]} : vector<8x18x16xf32> to vector<8x16x16xf32>
    %7 = vector.extract_strided_slice %4 {offsets = [0, 2, 0], sizes = [8, 16, 16], strides = [1, 1, 1]} : vector<8x18x16xf32> to vector<8x16x16xf32>
    %8 = vector.extract_strided_slice %0 {offsets = [0, 1, 0, 0], sizes = [8, 1, 16, 16], strides = [1, 1, 1, 1]} : vector<8x3x16x16xf32> to vector<8x1x16x16xf32>
    %9 = vector.shape_cast %8 : vector<8x1x16x16xf32> to vector<8x16x16xf32>
    %10 = tpu.concatenate %1, %9, %1 in 1 : vector<8x1x16xf32>, vector<8x16x16xf32>, vector<8x1x16xf32> -> vector<8x18x16xf32>
    %11 = vector.extract_strided_slice %10 {offsets = [0, 0, 0], sizes = [8, 16, 16], strides = [1, 1, 1]} : vector<8x18x16xf32> to vector<8x16x16xf32>
    %12 = vector.extract_strided_slice %10 {offsets = [0, 1, 0], sizes = [8, 16, 16], strides = [1, 1, 1]} : vector<8x18x16xf32> to vector<8x16x16xf32>
    %13 = vector.extract_strided_slice %10 {offsets = [0, 2, 0], sizes = [8, 16, 16], strides = [1, 1, 1]} : vector<8x18x16xf32> to vector<8x16x16xf32>
    %14 = vector.extract_strided_slice %0 {offsets = [0, 2, 0, 0], sizes = [8, 1, 16, 16], strides = [1, 1, 1, 1]} : vector<8x3x16x16xf32> to vector<8x1x16x16xf32>
    %15 = vector.shape_cast %14 : vector<8x1x16x16xf32> to vector<8x16x16xf32>
    %16 = tpu.concatenate %1, %15, %1 in 1 : vector<8x1x16xf32>, vector<8x16x16xf32>, vector<8x1x16xf32> -> vector<8x18x16xf32>
    %17 = vector.extract_strided_slice %16 {offsets = [0, 0, 0], sizes = [8, 16, 16], strides = [1, 1, 1]} : vector<8x18x16xf32> to vector<8x16x16xf32>
    %18 = vector.extract_strided_slice %16 {offsets = [0, 1, 0], sizes = [8, 16, 16], strides = [1, 1, 1]} : vector<8x18x16xf32> to vector<8x16x16xf32>
    %19 = vector.extract_strided_slice %16 {offsets = [0, 2, 0], sizes = [8, 16, 16], strides = [1, 1, 1]} : vector<8x18x16xf32> to vector<8x16x16xf32>
    %20 = tpu.concatenate %5, %6, %7, %11, %12, %13, %17, %18, %19 in 2 : vector<8x16x16xf32>, vector<8x16x16xf32>, vector<8x16x16xf32>, vector<8x16x16xf32>, vector<8x16x16xf32>, vector<8x16x16xf32>, vector<8x16x16xf32>, vector<8x16x16xf32>, vector<8x16x16xf32> -> vector<8x16x144xf32>
    %21 = vector.shape_cast %20 : vector<8x16x144xf32> to vector<128x144xf32>
    %22 = arith.truncf %21 : vector<128x144xf32> to vector<128x144xbf16>
    %c0_3 = arith.constant 0 : index
    %c0_4 = arith.constant 0 : index
    %23 = vector.load %arg2[%c0_3, %c0_4] : memref<144x128xbf16, #tpu.memory_space<vmem>>, vector<144x128xbf16>
    %cst_5 = arith.constant dense<0.000000e+00> : vector<128x128xf32>
    %24 = tpu.matmul %22, %23, %cst_5 {dimension_numbers = #tpu.dot_dimension_numbers<[1], [0], [0], [1], [0, 0, 1, 1], [], []>} : vector<128x144xbf16>, vector<144x128xbf16>, vector<128x128xf32> -> vector<128x128xf32>
    %c0_6 = arith.constant 0 : index
    %c0_7 = arith.constant 0 : index
    %25 = vector.load %arg3[%c0_6, %c0_7] : memref<1x128xf32, #tpu.memory_space<vmem>>, vector<1x128xf32>
    %26 = vector.broadcast %25 : vector<1x128xf32> to vector<128x128xf32>
    %27 = arith.addf %24, %26 : vector<128x128xf32>
    %cst_8 = arith.constant 0.000000e+00 : f32
    %28 = vector.broadcast %cst_8 : f32 to vector<128x128xf32>
    %29 = arith.maximumf %27, %28 : vector<128x128xf32>
    %30 = vector.shape_cast %29 : vector<128x128xf32> to vector<8x16x128xf32>
    %cst_9 = arith.constant dense<0.000000e+00> : vector<8x128xf32>
    %31 = vector.multi_reduction <add>, %30, %cst_9 [1] : vector<8x16x128xf32> to vector<8x128xf32>
    %32 = arith.truncf %31 : vector<8x128xf32> to vector<8x128xbf16>
    %c0_10 = arith.constant 0 : index
    %c0_11 = arith.constant 0 : index
    %33 = vector.load %arg4[%c0_10, %c0_11] : memref<128x64xbf16, #tpu.memory_space<vmem>>, vector<128x64xbf16>
    %cst_12 = arith.constant dense<0.000000e+00> : vector<8x64xf32>
    %34 = tpu.matmul %32, %33, %cst_12 {dimension_numbers = #tpu.dot_dimension_numbers<[1], [0], [0], [1], [0, 0, 1, 1], [], []>} : vector<8x128xbf16>, vector<128x64xbf16>, vector<8x64xf32> -> vector<8x64xf32>
    %c0_13 = arith.constant 0 : index
    %c0_14 = arith.constant 0 : index
    %35 = vector.load %arg5[%c0_13, %c0_14] : memref<1x64xf32, #tpu.memory_space<vmem>>, vector<1x64xf32>
    %36 = vector.broadcast %35 : vector<1x64xf32> to vector<8x64xf32>
    %37 = arith.addf %34, %36 : vector<8x64xf32>
    %cst_15 = arith.constant 0.000000e+00 : f32
    %38 = vector.broadcast %cst_15 : f32 to vector<8x64xf32>
    %39 = arith.maximumf %37, %38 : vector<8x64xf32>
    %40 = tpu.iota {dimensions = array<i32: 1>} : vector<2x256xi32>
    %c64_i32 = arith.constant 64 : i32
    %c0_i32 = arith.constant 0 : i32
    %41 = arith.cmpi eq, %c64_i32, %c0_i32 : i32
    %c1_i32 = arith.constant 1 : i32
    %42 = arith.select %41, %c1_i32, %c64_i32 : i32
    %43 = vector.broadcast %42 : i32 to vector<2x256xi32>
    %44 = arith.remsi %40, %43 : vector<2x256xi32>
    %c0_i32_16 = arith.constant 0 : i32
    %45 = vector.broadcast %c0_i32_16 : i32 to vector<2x256xi32>
    %46 = arith.cmpi ne, %44, %45 : vector<2x256xi32>
    %c0_i32_17 = arith.constant 0 : i32
    %47 = vector.broadcast %c0_i32_17 : i32 to vector<2x256xi32>
    %48 = arith.cmpi slt, %44, %47 : vector<2x256xi32>
    %c0_i32_18 = arith.constant 0 : i32
    %49 = arith.cmpi slt, %42, %c0_i32_18 : i32
    %50 = vector.broadcast %49 : i1 to vector<2x256xi1>
    %51 = vector.broadcast %50 : vector<2x256xi1> to vector<2x256xi1>
    %52 = arith.xori %48, %51 : vector<2x256xi1>
    %53 = arith.andi %52, %46 : vector<2x256xi1>
    %54 = vector.broadcast %42 : i32 to vector<2x256xi32>
    %55 = arith.addi %44, %54 : vector<2x256xi32>
    %56 = arith.select %53, %55, %44 : vector<2x256xi1>, vector<2x256xi32>
    %c32_i32 = arith.constant 32 : i32
    %57 = vector.broadcast %c32_i32 : i32 to vector<2x256xi32>
    %58 = arith.cmpi slt, %56, %57 : vector<2x256xi32>
    %59 = tpu.iota {dimensions = array<i32: 1>} : vector<2x64xi32>
    %c32_i32_19 = arith.constant 32 : i32
    %60 = vector.broadcast %c32_i32_19 : i32 to vector<2x64xi32>
    %61 = arith.cmpi slt, %59, %60 : vector<2x64xi32>
    %62 = arith.truncf %39 : vector<8x64xf32> to vector<8x64xbf16>
    %c0_20 = arith.constant 0 : index
    %c0_21 = arith.constant 0 : index
    %63 = vector.load %arg6[%c0_20, %c0_21] : memref<64x256xbf16, #tpu.memory_space<vmem>>, vector<64x256xbf16>
    %cst_22 = arith.constant dense<0.000000e+00> : vector<8x256xf32>
    %64 = tpu.matmul %62, %63, %cst_22 {dimension_numbers = #tpu.dot_dimension_numbers<[1], [0], [0], [1], [0, 0, 1, 1], [], []>} : vector<8x64xbf16>, vector<64x256xbf16>, vector<8x256xf32> -> vector<8x256xf32>
    %c0_23 = arith.constant 0 : index
    %c0_24 = arith.constant 0 : index
    %65 = vector.load %arg8[%c0_23, %c0_24] : memref<1x256xf32, #tpu.memory_space<vmem>>, vector<1x256xf32>
    %66 = vector.broadcast %65 : vector<1x256xf32> to vector<8x256xf32>
    %67 = arith.addf %64, %66 : vector<8x256xf32>
    %cst_25 = arith.constant 0.000000e+00 : f32
    %68 = vector.broadcast %cst_25 : f32 to vector<2x64xf32>
    %cst_26 = arith.constant 0.000000e+00 : f32
    %69 = vector.broadcast %cst_26 : f32 to vector<2x64xf32>
    %70 = vector.extract_strided_slice %67 {offsets = [0, 0], sizes = [1, 256], strides = [1, 1]} : vector<8x256xf32> to vector<1x256xf32>
    %71 = vector.extract_strided_slice %67 {offsets = [4, 0], sizes = [1, 256], strides = [1, 1]} : vector<8x256xf32> to vector<1x256xf32>
    %72 = tpu.concatenate %70, %71 in 0 : vector<1x256xf32>, vector<1x256xf32> -> vector<2x256xf32>
    %73 = vector.extract_strided_slice %67 {offsets = [3, 0], sizes = [1, 256], strides = [1, 1]} : vector<8x256xf32> to vector<1x256xf32>
    %74 = vector.extract_strided_slice %67 {offsets = [7, 0], sizes = [1, 256], strides = [1, 1]} : vector<8x256xf32> to vector<1x256xf32>
    %75 = tpu.concatenate %73, %74 in 0 : vector<1x256xf32>, vector<1x256xf32> -> vector<2x256xf32>
    %76 = arith.select %58, %72, %75 : vector<2x256xi1>, vector<2x256xf32>
    %77 = arith.truncf %68 : vector<2x64xf32> to vector<2x64xbf16>
    %c0_27 = arith.constant 0 : index
    %c0_28 = arith.constant 0 : index
    %78 = vector.load %arg7[%c0_27, %c0_28] : memref<64x256xbf16, #tpu.memory_space<vmem>>, vector<64x256xbf16>
    %cst_29 = arith.constant dense<0.000000e+00> : vector<2x256xf32>
    %79 = tpu.matmul %77, %78, %cst_29 {dimension_numbers = #tpu.dot_dimension_numbers<[1], [0], [0], [1], [0, 0, 1, 1], [], []>} : vector<2x64xbf16>, vector<64x256xbf16>, vector<2x256xf32> -> vector<2x256xf32>
    %80 = arith.addf %76, %79 : vector<2x256xf32>
    %81 = arith.negf %80 : vector<2x256xf32>
    %82 = math.exp %81 : vector<2x256xf32>
    %cst_30 = arith.constant 1.000000e+00 : f32
    %83 = vector.broadcast %cst_30 : f32 to vector<2x256xf32>
    %84 = arith.addf %83, %82 : vector<2x256xf32>
    %85 = arith.divf %83, %84 : vector<2x256xf32>
    %86 = vector.extract_strided_slice %85 {offsets = [0, 0], sizes = [2, 64], strides = [1, 1]} : vector<2x256xf32> to vector<2x64xf32>
    %87 = vector.extract_strided_slice %85 {offsets = [0, 64], sizes = [2, 64], strides = [1, 1]} : vector<2x256xf32> to vector<2x64xf32>
    %88 = vector.extract_strided_slice %85 {offsets = [0, 192], sizes = [2, 64], strides = [1, 1]} : vector<2x256xf32> to vector<2x64xf32>
    %89 = vector.extract_strided_slice %80 {offsets = [0, 128], sizes = [2, 64], strides = [1, 1]} : vector<2x256xf32> to vector<2x64xf32>
    %90 = math.tanh %89 : vector<2x64xf32>
    %91 = arith.mulf %87, %69 : vector<2x64xf32>
    %92 = arith.mulf %86, %90 : vector<2x64xf32>
    %93 = arith.addf %91, %92 : vector<2x64xf32>
    %94 = math.tanh %93 : vector<2x64xf32>
    %95 = arith.mulf %88, %94 : vector<2x64xf32>
    %96 = vector.extract_strided_slice %67 {offsets = [1, 0], sizes = [1, 256], strides = [1, 1]} : vector<8x256xf32> to vector<1x256xf32>
    %97 = vector.extract_strided_slice %67 {offsets = [5, 0], sizes = [1, 256], strides = [1, 1]} : vector<8x256xf32> to vector<1x256xf32>
    %98 = tpu.concatenate %96, %97 in 0 : vector<1x256xf32>, vector<1x256xf32> -> vector<2x256xf32>
    %99 = vector.extract_strided_slice %67 {offsets = [2, 0], sizes = [1, 256], strides = [1, 1]} : vector<8x256xf32> to vector<1x256xf32>
    %100 = vector.extract_strided_slice %67 {offsets = [6, 0], sizes = [1, 256], strides = [1, 1]} : vector<8x256xf32> to vector<1x256xf32>
    %101 = tpu.concatenate %99, %100 in 0 : vector<1x256xf32>, vector<1x256xf32> -> vector<2x256xf32>
    %102 = arith.select %58, %98, %101 : vector<2x256xi1>, vector<2x256xf32>
    %103 = arith.truncf %95 : vector<2x64xf32> to vector<2x64xbf16>
    %c0_31 = arith.constant 0 : index
    %c0_32 = arith.constant 0 : index
    %104 = vector.load %arg7[%c0_31, %c0_32] : memref<64x256xbf16, #tpu.memory_space<vmem>>, vector<64x256xbf16>
    %cst_33 = arith.constant dense<0.000000e+00> : vector<2x256xf32>
    %105 = tpu.matmul %103, %104, %cst_33 {dimension_numbers = #tpu.dot_dimension_numbers<[1], [0], [0], [1], [0, 0, 1, 1], [], []>} : vector<2x64xbf16>, vector<64x256xbf16>, vector<2x256xf32> -> vector<2x256xf32>
    %106 = arith.addf %102, %105 : vector<2x256xf32>
    %107 = arith.negf %106 : vector<2x256xf32>
    %108 = math.exp %107 : vector<2x256xf32>
    %cst_34 = arith.constant 1.000000e+00 : f32
    %109 = vector.broadcast %cst_34 : f32 to vector<2x256xf32>
    %110 = arith.addf %109, %108 : vector<2x256xf32>
    %111 = arith.divf %109, %110 : vector<2x256xf32>
    %112 = vector.extract_strided_slice %111 {offsets = [0, 0], sizes = [2, 64], strides = [1, 1]} : vector<2x256xf32> to vector<2x64xf32>
    %113 = vector.extract_strided_slice %111 {offsets = [0, 64], sizes = [2, 64], strides = [1, 1]} : vector<2x256xf32> to vector<2x64xf32>
    %114 = vector.extract_strided_slice %111 {offsets = [0, 192], sizes = [2, 64], strides = [1, 1]} : vector<2x256xf32> to vector<2x64xf32>
    %115 = vector.extract_strided_slice %106 {offsets = [0, 128], sizes = [2, 64], strides = [1, 1]} : vector<2x256xf32> to vector<2x64xf32>
    %116 = math.tanh %115 : vector<2x64xf32>
    %117 = arith.mulf %113, %93 : vector<2x64xf32>
    %118 = arith.mulf %112, %116 : vector<2x64xf32>
    %119 = arith.addf %117, %118 : vector<2x64xf32>
    %120 = math.tanh %119 : vector<2x64xf32>
    %121 = arith.mulf %114, %120 : vector<2x64xf32>
    %122 = vector.extract_strided_slice %67 {offsets = [2, 0], sizes = [1, 256], strides = [1, 1]} : vector<8x256xf32> to vector<1x256xf32>
    %123 = vector.extract_strided_slice %67 {offsets = [6, 0], sizes = [1, 256], strides = [1, 1]} : vector<8x256xf32> to vector<1x256xf32>
    %124 = tpu.concatenate %122, %123 in 0 : vector<1x256xf32>, vector<1x256xf32> -> vector<2x256xf32>
    %125 = vector.extract_strided_slice %67 {offsets = [1, 0], sizes = [1, 256], strides = [1, 1]} : vector<8x256xf32> to vector<1x256xf32>
    %126 = vector.extract_strided_slice %67 {offsets = [5, 0], sizes = [1, 256], strides = [1, 1]} : vector<8x256xf32> to vector<1x256xf32>
    %127 = tpu.concatenate %125, %126 in 0 : vector<1x256xf32>, vector<1x256xf32> -> vector<2x256xf32>
    %128 = arith.select %58, %124, %127 : vector<2x256xi1>, vector<2x256xf32>
    %129 = arith.truncf %121 : vector<2x64xf32> to vector<2x64xbf16>
    %c0_35 = arith.constant 0 : index
    %c0_36 = arith.constant 0 : index
    %130 = vector.load %arg7[%c0_35, %c0_36] : memref<64x256xbf16, #tpu.memory_space<vmem>>, vector<64x256xbf16>
    %cst_37 = arith.constant dense<0.000000e+00> : vector<2x256xf32>
    %131 = tpu.matmul %129, %130, %cst_37 {dimension_numbers = #tpu.dot_dimension_numbers<[1], [0], [0], [1], [0, 0, 1, 1], [], []>} : vector<2x64xbf16>, vector<64x256xbf16>, vector<2x256xf32> -> vector<2x256xf32>
    %132 = arith.addf %128, %131 : vector<2x256xf32>
    %133 = arith.negf %132 : vector<2x256xf32>
    %134 = math.exp %133 : vector<2x256xf32>
    %cst_38 = arith.constant 1.000000e+00 : f32
    %135 = vector.broadcast %cst_38 : f32 to vector<2x256xf32>
    %136 = arith.addf %135, %134 : vector<2x256xf32>
    %137 = arith.divf %135, %136 : vector<2x256xf32>
    %138 = vector.extract_strided_slice %137 {offsets = [0, 0], sizes = [2, 64], strides = [1, 1]} : vector<2x256xf32> to vector<2x64xf32>
    %139 = vector.extract_strided_slice %137 {offsets = [0, 64], sizes = [2, 64], strides = [1, 1]} : vector<2x256xf32> to vector<2x64xf32>
    %140 = vector.extract_strided_slice %137 {offsets = [0, 192], sizes = [2, 64], strides = [1, 1]} : vector<2x256xf32> to vector<2x64xf32>
    %141 = vector.extract_strided_slice %132 {offsets = [0, 128], sizes = [2, 64], strides = [1, 1]} : vector<2x256xf32> to vector<2x64xf32>
    %142 = math.tanh %141 : vector<2x64xf32>
    %143 = arith.mulf %139, %119 : vector<2x64xf32>
    %144 = arith.mulf %138, %142 : vector<2x64xf32>
    %145 = arith.addf %143, %144 : vector<2x64xf32>
    %146 = math.tanh %145 : vector<2x64xf32>
    %147 = arith.mulf %140, %146 : vector<2x64xf32>
    %148 = vector.extract_strided_slice %67 {offsets = [3, 0], sizes = [1, 256], strides = [1, 1]} : vector<8x256xf32> to vector<1x256xf32>
    %149 = vector.extract_strided_slice %67 {offsets = [7, 0], sizes = [1, 256], strides = [1, 1]} : vector<8x256xf32> to vector<1x256xf32>
    %150 = tpu.concatenate %148, %149 in 0 : vector<1x256xf32>, vector<1x256xf32> -> vector<2x256xf32>
    %151 = vector.extract_strided_slice %67 {offsets = [0, 0], sizes = [1, 256], strides = [1, 1]} : vector<8x256xf32> to vector<1x256xf32>
    %152 = vector.extract_strided_slice %67 {offsets = [4, 0], sizes = [1, 256], strides = [1, 1]} : vector<8x256xf32> to vector<1x256xf32>
    %153 = tpu.concatenate %151, %152 in 0 : vector<1x256xf32>, vector<1x256xf32> -> vector<2x256xf32>
    %154 = arith.select %58, %150, %153 : vector<2x256xi1>, vector<2x256xf32>
    %155 = arith.truncf %147 : vector<2x64xf32> to vector<2x64xbf16>
    %c0_39 = arith.constant 0 : index
    %c0_40 = arith.constant 0 : index
    %156 = vector.load %arg7[%c0_39, %c0_40] : memref<64x256xbf16, #tpu.memory_space<vmem>>, vector<64x256xbf16>
    %cst_41 = arith.constant dense<0.000000e+00> : vector<2x256xf32>
    %157 = tpu.matmul %155, %156, %cst_41 {dimension_numbers = #tpu.dot_dimension_numbers<[1], [0], [0], [1], [0, 0, 1, 1], [], []>} : vector<2x64xbf16>, vector<64x256xbf16>, vector<2x256xf32> -> vector<2x256xf32>
    %158 = arith.addf %154, %157 : vector<2x256xf32>
    %159 = arith.negf %158 : vector<2x256xf32>
    %160 = math.exp %159 : vector<2x256xf32>
    %cst_42 = arith.constant 1.000000e+00 : f32
    %161 = vector.broadcast %cst_42 : f32 to vector<2x256xf32>
    %162 = arith.addf %161, %160 : vector<2x256xf32>
    %163 = arith.divf %161, %162 : vector<2x256xf32>
    %164 = vector.extract_strided_slice %163 {offsets = [0, 0], sizes = [2, 64], strides = [1, 1]} : vector<2x256xf32> to vector<2x64xf32>
    %165 = vector.extract_strided_slice %163 {offsets = [0, 64], sizes = [2, 64], strides = [1, 1]} : vector<2x256xf32> to vector<2x64xf32>
    %166 = vector.extract_strided_slice %163 {offsets = [0, 192], sizes = [2, 64], strides = [1, 1]} : vector<2x256xf32> to vector<2x64xf32>
    %167 = vector.extract_strided_slice %158 {offsets = [0, 128], sizes = [2, 64], strides = [1, 1]} : vector<2x256xf32> to vector<2x64xf32>
    %168 = math.tanh %167 : vector<2x64xf32>
    %169 = arith.mulf %165, %145 : vector<2x64xf32>
    %170 = arith.mulf %164, %168 : vector<2x64xf32>
    %171 = arith.addf %169, %170 : vector<2x64xf32>
    %172 = math.tanh %171 : vector<2x64xf32>
    %173 = arith.mulf %166, %172 : vector<2x64xf32>
    %174 = arith.select %61, %95, %173 : vector<2x64xi1>, vector<2x64xf32>
    %175 = arith.select %61, %121, %147 : vector<2x64xi1>, vector<2x64xf32>
    %176 = arith.select %61, %147, %121 : vector<2x64xi1>, vector<2x64xf32>
    %177 = arith.select %61, %173, %95 : vector<2x64xi1>, vector<2x64xf32>
    %178 = tpu.concatenate %174, %175, %176, %177 in 0 : vector<2x64xf32>, vector<2x64xf32>, vector<2x64xf32>, vector<2x64xf32> -> vector<8x64xf32>
    %179 = arith.truncf %178 : vector<8x64xf32> to vector<8x64xbf16>
    %c0_43 = arith.constant 0 : index
    %c0_44 = arith.constant 0 : index
    %180 = vector.load %arg9[%c0_43, %c0_44] : memref<64x256xbf16, #tpu.memory_space<vmem>>, vector<64x256xbf16>
    %cst_45 = arith.constant dense<0.000000e+00> : vector<8x256xf32>
    %181 = tpu.matmul %179, %180, %cst_45 {dimension_numbers = #tpu.dot_dimension_numbers<[1], [0], [0], [1], [0, 0, 1, 1], [], []>} : vector<8x64xbf16>, vector<64x256xbf16>, vector<8x256xf32> -> vector<8x256xf32>
    %c0_46 = arith.constant 0 : index
    %c0_47 = arith.constant 0 : index
    %182 = vector.load %arg11[%c0_46, %c0_47] : memref<1x256xf32, #tpu.memory_space<vmem>>, vector<1x256xf32>
    %183 = vector.broadcast %182 : vector<1x256xf32> to vector<8x256xf32>
    %184 = arith.addf %181, %183 : vector<8x256xf32>
    %cst_48 = arith.constant 0.000000e+00 : f32
    %185 = vector.broadcast %cst_48 : f32 to vector<2x64xf32>
    %cst_49 = arith.constant 0.000000e+00 : f32
    %186 = vector.broadcast %cst_49 : f32 to vector<2x64xf32>
    %187 = vector.extract_strided_slice %184 {offsets = [0, 0], sizes = [2, 256], strides = [1, 1]} : vector<8x256xf32> to vector<2x256xf32>
    %188 = vector.extract_strided_slice %184 {offsets = [6, 0], sizes = [2, 256], strides = [1, 1]} : vector<8x256xf32> to vector<2x256xf32>
    %189 = arith.select %58, %187, %188 : vector<2x256xi1>, vector<2x256xf32>
    %190 = arith.truncf %185 : vector<2x64xf32> to vector<2x64xbf16>
    %c0_50 = arith.constant 0 : index
    %c0_51 = arith.constant 0 : index
    %191 = vector.load %arg10[%c0_50, %c0_51] : memref<64x256xbf16, #tpu.memory_space<vmem>>, vector<64x256xbf16>
    %cst_52 = arith.constant dense<0.000000e+00> : vector<2x256xf32>
    %192 = tpu.matmul %190, %191, %cst_52 {dimension_numbers = #tpu.dot_dimension_numbers<[1], [0], [0], [1], [0, 0, 1, 1], [], []>} : vector<2x64xbf16>, vector<64x256xbf16>, vector<2x256xf32> -> vector<2x256xf32>
    %193 = arith.addf %189, %192 : vector<2x256xf32>
    %194 = arith.negf %193 : vector<2x256xf32>
    %195 = math.exp %194 : vector<2x256xf32>
    %cst_53 = arith.constant 1.000000e+00 : f32
    %196 = vector.broadcast %cst_53 : f32 to vector<2x256xf32>
    %197 = arith.addf %196, %195 : vector<2x256xf32>
    %198 = arith.divf %196, %197 : vector<2x256xf32>
    %199 = vector.extract_strided_slice %198 {offsets = [0, 0], sizes = [2, 64], strides = [1, 1]} : vector<2x256xf32> to vector<2x64xf32>
    %200 = vector.extract_strided_slice %198 {offsets = [0, 64], sizes = [2, 64], strides = [1, 1]} : vector<2x256xf32> to vector<2x64xf32>
    %201 = vector.extract_strided_slice %198 {offsets = [0, 192], sizes = [2, 64], strides = [1, 1]} : vector<2x256xf32> to vector<2x64xf32>
    %202 = vector.extract_strided_slice %193 {offsets = [0, 128], sizes = [2, 64], strides = [1, 1]} : vector<2x256xf32> to vector<2x64xf32>
    %203 = math.tanh %202 : vector<2x64xf32>
    %204 = arith.mulf %200, %186 : vector<2x64xf32>
    %205 = arith.mulf %199, %203 : vector<2x64xf32>
    %206 = arith.addf %204, %205 : vector<2x64xf32>
    %207 = math.tanh %206 : vector<2x64xf32>
    %208 = arith.mulf %201, %207 : vector<2x64xf32>
    %209 = vector.extract_strided_slice %184 {offsets = [2, 0], sizes = [2, 256], strides = [1, 1]} : vector<8x256xf32> to vector<2x256xf32>
    %210 = vector.extract_strided_slice %184 {offsets = [4, 0], sizes = [2, 256], strides = [1, 1]} : vector<8x256xf32> to vector<2x256xf32>
    %211 = arith.select %58, %209, %210 : vector<2x256xi1>, vector<2x256xf32>
    %212 = arith.truncf %208 : vector<2x64xf32> to vector<2x64xbf16>
    %c0_54 = arith.constant 0 : index
    %c0_55 = arith.constant 0 : index
    %213 = vector.load %arg10[%c0_54, %c0_55] : memref<64x256xbf16, #tpu.memory_space<vmem>>, vector<64x256xbf16>
    %cst_56 = arith.constant dense<0.000000e+00> : vector<2x256xf32>
    %214 = tpu.matmul %212, %213, %cst_56 {dimension_numbers = #tpu.dot_dimension_numbers<[1], [0], [0], [1], [0, 0, 1, 1], [], []>} : vector<2x64xbf16>, vector<64x256xbf16>, vector<2x256xf32> -> vector<2x256xf32>
    %215 = arith.addf %211, %214 : vector<2x256xf32>
    %216 = arith.negf %215 : vector<2x256xf32>
    %217 = math.exp %216 : vector<2x256xf32>
    %cst_57 = arith.constant 1.000000e+00 : f32
    %218 = vector.broadcast %cst_57 : f32 to vector<2x256xf32>
    %219 = arith.addf %218, %217 : vector<2x256xf32>
    %220 = arith.divf %218, %219 : vector<2x256xf32>
    %221 = vector.extract_strided_slice %220 {offsets = [0, 0], sizes = [2, 64], strides = [1, 1]} : vector<2x256xf32> to vector<2x64xf32>
    %222 = vector.extract_strided_slice %220 {offsets = [0, 64], sizes = [2, 64], strides = [1, 1]} : vector<2x256xf32> to vector<2x64xf32>
    %223 = vector.extract_strided_slice %220 {offsets = [0, 192], sizes = [2, 64], strides = [1, 1]} : vector<2x256xf32> to vector<2x64xf32>
    %224 = vector.extract_strided_slice %215 {offsets = [0, 128], sizes = [2, 64], strides = [1, 1]} : vector<2x256xf32> to vector<2x64xf32>
    %225 = math.tanh %224 : vector<2x64xf32>
    %226 = arith.mulf %222, %206 : vector<2x64xf32>
    %227 = arith.mulf %221, %225 : vector<2x64xf32>
    %228 = arith.addf %226, %227 : vector<2x64xf32>
    %229 = math.tanh %228 : vector<2x64xf32>
    %230 = arith.mulf %223, %229 : vector<2x64xf32>
    %231 = vector.extract_strided_slice %184 {offsets = [4, 0], sizes = [2, 256], strides = [1, 1]} : vector<8x256xf32> to vector<2x256xf32>
    %232 = vector.extract_strided_slice %184 {offsets = [2, 0], sizes = [2, 256], strides = [1, 1]} : vector<8x256xf32> to vector<2x256xf32>
    %233 = arith.select %58, %231, %232 : vector<2x256xi1>, vector<2x256xf32>
    %234 = arith.truncf %230 : vector<2x64xf32> to vector<2x64xbf16>
    %c0_58 = arith.constant 0 : index
    %c0_59 = arith.constant 0 : index
    %235 = vector.load %arg10[%c0_58, %c0_59] : memref<64x256xbf16, #tpu.memory_space<vmem>>, vector<64x256xbf16>
    %cst_60 = arith.constant dense<0.000000e+00> : vector<2x256xf32>
    %236 = tpu.matmul %234, %235, %cst_60 {dimension_numbers = #tpu.dot_dimension_numbers<[1], [0], [0], [1], [0, 0, 1, 1], [], []>} : vector<2x64xbf16>, vector<64x256xbf16>, vector<2x256xf32> -> vector<2x256xf32>
    %237 = arith.addf %233, %236 : vector<2x256xf32>
    %238 = arith.negf %237 : vector<2x256xf32>
    %239 = math.exp %238 : vector<2x256xf32>
    %cst_61 = arith.constant 1.000000e+00 : f32
    %240 = vector.broadcast %cst_61 : f32 to vector<2x256xf32>
    %241 = arith.addf %240, %239 : vector<2x256xf32>
    %242 = arith.divf %240, %241 : vector<2x256xf32>
    %243 = vector.extract_strided_slice %242 {offsets = [0, 0], sizes = [2, 64], strides = [1, 1]} : vector<2x256xf32> to vector<2x64xf32>
    %244 = vector.extract_strided_slice %242 {offsets = [0, 64], sizes = [2, 64], strides = [1, 1]} : vector<2x256xf32> to vector<2x64xf32>
    %245 = vector.extract_strided_slice %242 {offsets = [0, 192], sizes = [2, 64], strides = [1, 1]} : vector<2x256xf32> to vector<2x64xf32>
    %246 = vector.extract_strided_slice %237 {offsets = [0, 128], sizes = [2, 64], strides = [1, 1]} : vector<2x256xf32> to vector<2x64xf32>
    %247 = math.tanh %246 : vector<2x64xf32>
    %248 = arith.mulf %244, %228 : vector<2x64xf32>
    %249 = arith.mulf %243, %247 : vector<2x64xf32>
    %250 = arith.addf %248, %249 : vector<2x64xf32>
    %251 = math.tanh %250 : vector<2x64xf32>
    %252 = arith.mulf %245, %251 : vector<2x64xf32>
    %253 = vector.extract_strided_slice %184 {offsets = [6, 0], sizes = [2, 256], strides = [1, 1]} : vector<8x256xf32> to vector<2x256xf32>
    %254 = vector.extract_strided_slice %184 {offsets = [0, 0], sizes = [2, 256], strides = [1, 1]} : vector<8x256xf32> to vector<2x256xf32>
    %255 = arith.select %58, %253, %254 : vector<2x256xi1>, vector<2x256xf32>
    %256 = arith.truncf %252 : vector<2x64xf32> to vector<2x64xbf16>
    %c0_62 = arith.constant 0 : index
    %c0_63 = arith.constant 0 : index
    %257 = vector.load %arg10[%c0_62, %c0_63] : memref<64x256xbf16, #tpu.memory_space<vmem>>, vector<64x256xbf16>
    %cst_64 = arith.constant dense<0.000000e+00> : vector<2x256xf32>
    %258 = tpu.matmul %256, %257, %cst_64 {dimension_numbers = #tpu.dot_dimension_numbers<[1], [0], [0], [1], [0, 0, 1, 1], [], []>} : vector<2x64xbf16>, vector<64x256xbf16>, vector<2x256xf32> -> vector<2x256xf32>
    %259 = arith.addf %255, %258 : vector<2x256xf32>
    %260 = arith.negf %259 : vector<2x256xf32>
    %261 = math.exp %260 : vector<2x256xf32>
    %cst_65 = arith.constant 1.000000e+00 : f32
    %262 = vector.broadcast %cst_65 : f32 to vector<2x256xf32>
    %263 = arith.addf %262, %261 : vector<2x256xf32>
    %264 = arith.divf %262, %263 : vector<2x256xf32>
    %265 = vector.extract_strided_slice %264 {offsets = [0, 0], sizes = [2, 64], strides = [1, 1]} : vector<2x256xf32> to vector<2x64xf32>
    %266 = vector.extract_strided_slice %264 {offsets = [0, 64], sizes = [2, 64], strides = [1, 1]} : vector<2x256xf32> to vector<2x64xf32>
    %267 = vector.extract_strided_slice %264 {offsets = [0, 192], sizes = [2, 64], strides = [1, 1]} : vector<2x256xf32> to vector<2x64xf32>
    %268 = vector.extract_strided_slice %259 {offsets = [0, 128], sizes = [2, 64], strides = [1, 1]} : vector<2x256xf32> to vector<2x64xf32>
    %269 = math.tanh %268 : vector<2x64xf32>
    %270 = arith.mulf %266, %250 : vector<2x64xf32>
    %271 = arith.mulf %265, %269 : vector<2x64xf32>
    %272 = arith.addf %270, %271 : vector<2x64xf32>
    %273 = math.tanh %272 : vector<2x64xf32>
    %274 = arith.mulf %267, %273 : vector<2x64xf32>
    %275 = arith.select %61, %274, %208 : vector<2x64xi1>, vector<2x64xf32>
    %c0_66 = arith.constant 0 : index
    %c0_67 = arith.constant 0 : index
    %c0_68 = arith.constant 0 : index
    %276 = vector.load %arg1[%c0_66, %c0_67, %c0_68] : memref<2x8x60xf32, #tpu.memory_space<vmem>>, vector<2x8x60xf32>
    %277 = vector.shape_cast %276 : vector<2x8x60xf32> to vector<16x60xf32>
    %278 = arith.truncf %277 : vector<16x60xf32> to vector<16x60xbf16>
    %c0_69 = arith.constant 0 : index
    %c0_70 = arith.constant 0 : index
    %279 = vector.load %arg12[%c0_69, %c0_70] : memref<60x256xbf16, #tpu.memory_space<vmem>>, vector<60x256xbf16>
    %cst_71 = arith.constant dense<0.000000e+00> : vector<16x256xf32>
    %280 = tpu.matmul %278, %279, %cst_71 {dimension_numbers = #tpu.dot_dimension_numbers<[1], [0], [0], [1], [0, 0, 1, 1], [], []>} : vector<16x60xbf16>, vector<60x256xbf16>, vector<16x256xf32> -> vector<16x256xf32>
    %c0_72 = arith.constant 0 : index
    %c0_73 = arith.constant 0 : index
    %281 = vector.load %arg14[%c0_72, %c0_73] : memref<1x256xf32, #tpu.memory_space<vmem>>, vector<1x256xf32>
    %282 = vector.broadcast %281 : vector<1x256xf32> to vector<16x256xf32>
    %283 = arith.addf %280, %282 : vector<16x256xf32>
    %cst_74 = arith.constant 0.000000e+00 : f32
    %284 = vector.broadcast %cst_74 : f32 to vector<2x64xf32>
    %cst_75 = arith.constant 0.000000e+00 : f32
    %285 = vector.broadcast %cst_75 : f32 to vector<2x64xf32>
    %286 = vector.extract_strided_slice %283 {offsets = [0, 0], sizes = [1, 256], strides = [1, 1]} : vector<16x256xf32> to vector<1x256xf32>
    %287 = vector.extract_strided_slice %283 {offsets = [8, 0], sizes = [1, 256], strides = [1, 1]} : vector<16x256xf32> to vector<1x256xf32>
    %288 = tpu.concatenate %286, %287 in 0 : vector<1x256xf32>, vector<1x256xf32> -> vector<2x256xf32>
    %289 = vector.extract_strided_slice %283 {offsets = [7, 0], sizes = [1, 256], strides = [1, 1]} : vector<16x256xf32> to vector<1x256xf32>
    %290 = vector.extract_strided_slice %283 {offsets = [15, 0], sizes = [1, 256], strides = [1, 1]} : vector<16x256xf32> to vector<1x256xf32>
    %291 = tpu.concatenate %289, %290 in 0 : vector<1x256xf32>, vector<1x256xf32> -> vector<2x256xf32>
    %292 = arith.select %58, %288, %291 : vector<2x256xi1>, vector<2x256xf32>
    %293 = arith.truncf %284 : vector<2x64xf32> to vector<2x64xbf16>
    %c0_76 = arith.constant 0 : index
    %c0_77 = arith.constant 0 : index
    %294 = vector.load %arg13[%c0_76, %c0_77] : memref<64x256xbf16, #tpu.memory_space<vmem>>, vector<64x256xbf16>
    %cst_78 = arith.constant dense<0.000000e+00> : vector<2x256xf32>
    %295 = tpu.matmul %293, %294, %cst_78 {dimension_numbers = #tpu.dot_dimension_numbers<[1], [0], [0], [1], [0, 0, 1, 1], [], []>} : vector<2x64xbf16>, vector<64x256xbf16>, vector<2x256xf32> -> vector<2x256xf32>
    %296 = arith.addf %292, %295 : vector<2x256xf32>
    %297 = arith.negf %296 : vector<2x256xf32>
    %298 = math.exp %297 : vector<2x256xf32>
    %cst_79 = arith.constant 1.000000e+00 : f32
    %299 = vector.broadcast %cst_79 : f32 to vector<2x256xf32>
    %300 = arith.addf %299, %298 : vector<2x256xf32>
    %301 = arith.divf %299, %300 : vector<2x256xf32>
    %302 = vector.extract_strided_slice %301 {offsets = [0, 0], sizes = [2, 64], strides = [1, 1]} : vector<2x256xf32> to vector<2x64xf32>
    %303 = vector.extract_strided_slice %301 {offsets = [0, 64], sizes = [2, 64], strides = [1, 1]} : vector<2x256xf32> to vector<2x64xf32>
    %304 = vector.extract_strided_slice %301 {offsets = [0, 192], sizes = [2, 64], strides = [1, 1]} : vector<2x256xf32> to vector<2x64xf32>
    %305 = vector.extract_strided_slice %296 {offsets = [0, 128], sizes = [2, 64], strides = [1, 1]} : vector<2x256xf32> to vector<2x64xf32>
    %306 = math.tanh %305 : vector<2x64xf32>
    %307 = arith.mulf %303, %285 : vector<2x64xf32>
    %308 = arith.mulf %302, %306 : vector<2x64xf32>
    %309 = arith.addf %307, %308 : vector<2x64xf32>
    %310 = math.tanh %309 : vector<2x64xf32>
    %311 = arith.mulf %304, %310 : vector<2x64xf32>
    %312 = vector.extract_strided_slice %283 {offsets = [1, 0], sizes = [1, 256], strides = [1, 1]} : vector<16x256xf32> to vector<1x256xf32>
    %313 = vector.extract_strided_slice %283 {offsets = [9, 0], sizes = [1, 256], strides = [1, 1]} : vector<16x256xf32> to vector<1x256xf32>
    %314 = tpu.concatenate %312, %313 in 0 : vector<1x256xf32>, vector<1x256xf32> -> vector<2x256xf32>
    %315 = vector.extract_strided_slice %283 {offsets = [6, 0], sizes = [1, 256], strides = [1, 1]} : vector<16x256xf32> to vector<1x256xf32>
    %316 = vector.extract_strided_slice %283 {offsets = [14, 0], sizes = [1, 256], strides = [1, 1]} : vector<16x256xf32> to vector<1x256xf32>
    %317 = tpu.concatenate %315, %316 in 0 : vector<1x256xf32>, vector<1x256xf32> -> vector<2x256xf32>
    %318 = arith.select %58, %314, %317 : vector<2x256xi1>, vector<2x256xf32>
    %319 = arith.truncf %311 : vector<2x64xf32> to vector<2x64xbf16>
    %c0_80 = arith.constant 0 : index
    %c0_81 = arith.constant 0 : index
    %320 = vector.load %arg13[%c0_80, %c0_81] : memref<64x256xbf16, #tpu.memory_space<vmem>>, vector<64x256xbf16>
    %cst_82 = arith.constant dense<0.000000e+00> : vector<2x256xf32>
    %321 = tpu.matmul %319, %320, %cst_82 {dimension_numbers = #tpu.dot_dimension_numbers<[1], [0], [0], [1], [0, 0, 1, 1], [], []>} : vector<2x64xbf16>, vector<64x256xbf16>, vector<2x256xf32> -> vector<2x256xf32>
    %322 = arith.addf %318, %321 : vector<2x256xf32>
    %323 = arith.negf %322 : vector<2x256xf32>
    %324 = math.exp %323 : vector<2x256xf32>
    %cst_83 = arith.constant 1.000000e+00 : f32
    %325 = vector.broadcast %cst_83 : f32 to vector<2x256xf32>
    %326 = arith.addf %325, %324 : vector<2x256xf32>
    %327 = arith.divf %325, %326 : vector<2x256xf32>
    %328 = vector.extract_strided_slice %327 {offsets = [0, 0], sizes = [2, 64], strides = [1, 1]} : vector<2x256xf32> to vector<2x64xf32>
    %329 = vector.extract_strided_slice %327 {offsets = [0, 64], sizes = [2, 64], strides = [1, 1]} : vector<2x256xf32> to vector<2x64xf32>
    %330 = vector.extract_strided_slice %327 {offsets = [0, 192], sizes = [2, 64], strides = [1, 1]} : vector<2x256xf32> to vector<2x64xf32>
    %331 = vector.extract_strided_slice %322 {offsets = [0, 128], sizes = [2, 64], strides = [1, 1]} : vector<2x256xf32> to vector<2x64xf32>
    %332 = math.tanh %331 : vector<2x64xf32>
    %333 = arith.mulf %329, %309 : vector<2x64xf32>
    %334 = arith.mulf %328, %332 : vector<2x64xf32>
    %335 = arith.addf %333, %334 : vector<2x64xf32>
    %336 = math.tanh %335 : vector<2x64xf32>
    %337 = arith.mulf %330, %336 : vector<2x64xf32>
    %338 = vector.extract_strided_slice %283 {offsets = [2, 0], sizes = [1, 256], strides = [1, 1]} : vector<16x256xf32> to vector<1x256xf32>
    %339 = vector.extract_strided_slice %283 {offsets = [10, 0], sizes = [1, 256], strides = [1, 1]} : vector<16x256xf32> to vector<1x256xf32>
    %340 = tpu.concatenate %338, %339 in 0 : vector<1x256xf32>, vector<1x256xf32> -> vector<2x256xf32>
    %341 = vector.extract_strided_slice %283 {offsets = [5, 0], sizes = [1, 256], strides = [1, 1]} : vector<16x256xf32> to vector<1x256xf32>
    %342 = vector.extract_strided_slice %283 {offsets = [13, 0], sizes = [1, 256], strides = [1, 1]} : vector<16x256xf32> to vector<1x256xf32>
    %343 = tpu.concatenate %341, %342 in 0 : vector<1x256xf32>, vector<1x256xf32> -> vector<2x256xf32>
    %344 = arith.select %58, %340, %343 : vector<2x256xi1>, vector<2x256xf32>
    %345 = arith.truncf %337 : vector<2x64xf32> to vector<2x64xbf16>
    %c0_84 = arith.constant 0 : index
    %c0_85 = arith.constant 0 : index
    %346 = vector.load %arg13[%c0_84, %c0_85] : memref<64x256xbf16, #tpu.memory_space<vmem>>, vector<64x256xbf16>
    %cst_86 = arith.constant dense<0.000000e+00> : vector<2x256xf32>
    %347 = tpu.matmul %345, %346, %cst_86 {dimension_numbers = #tpu.dot_dimension_numbers<[1], [0], [0], [1], [0, 0, 1, 1], [], []>} : vector<2x64xbf16>, vector<64x256xbf16>, vector<2x256xf32> -> vector<2x256xf32>
    %348 = arith.addf %344, %347 : vector<2x256xf32>
    %349 = arith.negf %348 : vector<2x256xf32>
    %350 = math.exp %349 : vector<2x256xf32>
    %cst_87 = arith.constant 1.000000e+00 : f32
    %351 = vector.broadcast %cst_87 : f32 to vector<2x256xf32>
    %352 = arith.addf %351, %350 : vector<2x256xf32>
    %353 = arith.divf %351, %352 : vector<2x256xf32>
    %354 = vector.extract_strided_slice %353 {offsets = [0, 0], sizes = [2, 64], strides = [1, 1]} : vector<2x256xf32> to vector<2x64xf32>
    %355 = vector.extract_strided_slice %353 {offsets = [0, 64], sizes = [2, 64], strides = [1, 1]} : vector<2x256xf32> to vector<2x64xf32>
    %356 = vector.extract_strided_slice %353 {offsets = [0, 192], sizes = [2, 64], strides = [1, 1]} : vector<2x256xf32> to vector<2x64xf32>
    %357 = vector.extract_strided_slice %348 {offsets = [0, 128], sizes = [2, 64], strides = [1, 1]} : vector<2x256xf32> to vector<2x64xf32>
    %358 = math.tanh %357 : vector<2x64xf32>
    %359 = arith.mulf %355, %335 : vector<2x64xf32>
    %360 = arith.mulf %354, %358 : vector<2x64xf32>
    %361 = arith.addf %359, %360 : vector<2x64xf32>
    %362 = math.tanh %361 : vector<2x64xf32>
    %363 = arith.mulf %356, %362 : vector<2x64xf32>
    %364 = vector.extract_strided_slice %283 {offsets = [3, 0], sizes = [1, 256], strides = [1, 1]} : vector<16x256xf32> to vector<1x256xf32>
    %365 = vector.extract_strided_slice %283 {offsets = [11, 0], sizes = [1, 256], strides = [1, 1]} : vector<16x256xf32> to vector<1x256xf32>
    %366 = tpu.concatenate %364, %365 in 0 : vector<1x256xf32>, vector<1x256xf32> -> vector<2x256xf32>
    %367 = vector.extract_strided_slice %283 {offsets = [4, 0], sizes = [1, 256], strides = [1, 1]} : vector<16x256xf32> to vector<1x256xf32>
    %368 = vector.extract_strided_slice %283 {offsets = [12, 0], sizes = [1, 256], strides = [1, 1]} : vector<16x256xf32> to vector<1x256xf32>
    %369 = tpu.concatenate %367, %368 in 0 : vector<1x256xf32>, vector<1x256xf32> -> vector<2x256xf32>
    %370 = arith.select %58, %366, %369 : vector<2x256xi1>, vector<2x256xf32>
    %371 = arith.truncf %363 : vector<2x64xf32> to vector<2x64xbf16>
    %c0_88 = arith.constant 0 : index
    %c0_89 = arith.constant 0 : index
    %372 = vector.load %arg13[%c0_88, %c0_89] : memref<64x256xbf16, #tpu.memory_space<vmem>>, vector<64x256xbf16>
    %cst_90 = arith.constant dense<0.000000e+00> : vector<2x256xf32>
    %373 = tpu.matmul %371, %372, %cst_90 {dimension_numbers = #tpu.dot_dimension_numbers<[1], [0], [0], [1], [0, 0, 1, 1], [], []>} : vector<2x64xbf16>, vector<64x256xbf16>, vector<2x256xf32> -> vector<2x256xf32>
    %374 = arith.addf %370, %373 : vector<2x256xf32>
    %375 = arith.negf %374 : vector<2x256xf32>
    %376 = math.exp %375 : vector<2x256xf32>
    %cst_91 = arith.constant 1.000000e+00 : f32
    %377 = vector.broadcast %cst_91 : f32 to vector<2x256xf32>
    %378 = arith.addf %377, %376 : vector<2x256xf32>
    %379 = arith.divf %377, %378 : vector<2x256xf32>
    %380 = vector.extract_strided_slice %379 {offsets = [0, 0], sizes = [2, 64], strides = [1, 1]} : vector<2x256xf32> to vector<2x64xf32>
    %381 = vector.extract_strided_slice %379 {offsets = [0, 64], sizes = [2, 64], strides = [1, 1]} : vector<2x256xf32> to vector<2x64xf32>
    %382 = vector.extract_strided_slice %379 {offsets = [0, 192], sizes = [2, 64], strides = [1, 1]} : vector<2x256xf32> to vector<2x64xf32>
    %383 = vector.extract_strided_slice %374 {offsets = [0, 128], sizes = [2, 64], strides = [1, 1]} : vector<2x256xf32> to vector<2x64xf32>
    %384 = math.tanh %383 : vector<2x64xf32>
    %385 = arith.mulf %381, %361 : vector<2x64xf32>
    %386 = arith.mulf %380, %384 : vector<2x64xf32>
    %387 = arith.addf %385, %386 : vector<2x64xf32>
    %388 = math.tanh %387 : vector<2x64xf32>
    %389 = arith.mulf %382, %388 : vector<2x64xf32>
    %390 = vector.extract_strided_slice %283 {offsets = [4, 0], sizes = [1, 256], strides = [1, 1]} : vector<16x256xf32> to vector<1x256xf32>
    %391 = vector.extract_strided_slice %283 {offsets = [12, 0], sizes = [1, 256], strides = [1, 1]} : vector<16x256xf32> to vector<1x256xf32>
    %392 = tpu.concatenate %390, %391 in 0 : vector<1x256xf32>, vector<1x256xf32> -> vector<2x256xf32>
    %393 = vector.extract_strided_slice %283 {offsets = [3, 0], sizes = [1, 256], strides = [1, 1]} : vector<16x256xf32> to vector<1x256xf32>
    %394 = vector.extract_strided_slice %283 {offsets = [11, 0], sizes = [1, 256], strides = [1, 1]} : vector<16x256xf32> to vector<1x256xf32>
    %395 = tpu.concatenate %393, %394 in 0 : vector<1x256xf32>, vector<1x256xf32> -> vector<2x256xf32>
    %396 = arith.select %58, %392, %395 : vector<2x256xi1>, vector<2x256xf32>
    %397 = arith.truncf %389 : vector<2x64xf32> to vector<2x64xbf16>
    %c0_92 = arith.constant 0 : index
    %c0_93 = arith.constant 0 : index
    %398 = vector.load %arg13[%c0_92, %c0_93] : memref<64x256xbf16, #tpu.memory_space<vmem>>, vector<64x256xbf16>
    %cst_94 = arith.constant dense<0.000000e+00> : vector<2x256xf32>
    %399 = tpu.matmul %397, %398, %cst_94 {dimension_numbers = #tpu.dot_dimension_numbers<[1], [0], [0], [1], [0, 0, 1, 1], [], []>} : vector<2x64xbf16>, vector<64x256xbf16>, vector<2x256xf32> -> vector<2x256xf32>
    %400 = arith.addf %396, %399 : vector<2x256xf32>
    %401 = arith.negf %400 : vector<2x256xf32>
    %402 = math.exp %401 : vector<2x256xf32>
    %cst_95 = arith.constant 1.000000e+00 : f32
    %403 = vector.broadcast %cst_95 : f32 to vector<2x256xf32>
    %404 = arith.addf %403, %402 : vector<2x256xf32>
    %405 = arith.divf %403, %404 : vector<2x256xf32>
    %406 = vector.extract_strided_slice %405 {offsets = [0, 0], sizes = [2, 64], strides = [1, 1]} : vector<2x256xf32> to vector<2x64xf32>
    %407 = vector.extract_strided_slice %405 {offsets = [0, 64], sizes = [2, 64], strides = [1, 1]} : vector<2x256xf32> to vector<2x64xf32>
    %408 = vector.extract_strided_slice %405 {offsets = [0, 192], sizes = [2, 64], strides = [1, 1]} : vector<2x256xf32> to vector<2x64xf32>
    %409 = vector.extract_strided_slice %400 {offsets = [0, 128], sizes = [2, 64], strides = [1, 1]} : vector<2x256xf32> to vector<2x64xf32>
    %410 = math.tanh %409 : vector<2x64xf32>
    %411 = arith.mulf %407, %387 : vector<2x64xf32>
    %412 = arith.mulf %406, %410 : vector<2x64xf32>
    %413 = arith.addf %411, %412 : vector<2x64xf32>
    %414 = math.tanh %413 : vector<2x64xf32>
    %415 = arith.mulf %408, %414 : vector<2x64xf32>
    %416 = vector.extract_strided_slice %283 {offsets = [5, 0], sizes = [1, 256], strides = [1, 1]} : vector<16x256xf32> to vector<1x256xf32>
    %417 = vector.extract_strided_slice %283 {offsets = [13, 0], sizes = [1, 256], strides = [1, 1]} : vector<16x256xf32> to vector<1x256xf32>
    %418 = tpu.concatenate %416, %417 in 0 : vector<1x256xf32>, vector<1x256xf32> -> vector<2x256xf32>
    %419 = vector.extract_strided_slice %283 {offsets = [2, 0], sizes = [1, 256], strides = [1, 1]} : vector<16x256xf32> to vector<1x256xf32>
    %420 = vector.extract_strided_slice %283 {offsets = [10, 0], sizes = [1, 256], strides = [1, 1]} : vector<16x256xf32> to vector<1x256xf32>
    %421 = tpu.concatenate %419, %420 in 0 : vector<1x256xf32>, vector<1x256xf32> -> vector<2x256xf32>
    %422 = arith.select %58, %418, %421 : vector<2x256xi1>, vector<2x256xf32>
    %423 = arith.truncf %415 : vector<2x64xf32> to vector<2x64xbf16>
    %c0_96 = arith.constant 0 : index
    %c0_97 = arith.constant 0 : index
    %424 = vector.load %arg13[%c0_96, %c0_97] : memref<64x256xbf16, #tpu.memory_space<vmem>>, vector<64x256xbf16>
    %cst_98 = arith.constant dense<0.000000e+00> : vector<2x256xf32>
    %425 = tpu.matmul %423, %424, %cst_98 {dimension_numbers = #tpu.dot_dimension_numbers<[1], [0], [0], [1], [0, 0, 1, 1], [], []>} : vector<2x64xbf16>, vector<64x256xbf16>, vector<2x256xf32> -> vector<2x256xf32>
    %426 = arith.addf %422, %425 : vector<2x256xf32>
    %427 = arith.negf %426 : vector<2x256xf32>
    %428 = math.exp %427 : vector<2x256xf32>
    %cst_99 = arith.constant 1.000000e+00 : f32
    %429 = vector.broadcast %cst_99 : f32 to vector<2x256xf32>
    %430 = arith.addf %429, %428 : vector<2x256xf32>
    %431 = arith.divf %429, %430 : vector<2x256xf32>
    %432 = vector.extract_strided_slice %431 {offsets = [0, 0], sizes = [2, 64], strides = [1, 1]} : vector<2x256xf32> to vector<2x64xf32>
    %433 = vector.extract_strided_slice %431 {offsets = [0, 64], sizes = [2, 64], strides = [1, 1]} : vector<2x256xf32> to vector<2x64xf32>
    %434 = vector.extract_strided_slice %431 {offsets = [0, 192], sizes = [2, 64], strides = [1, 1]} : vector<2x256xf32> to vector<2x64xf32>
    %435 = vector.extract_strided_slice %426 {offsets = [0, 128], sizes = [2, 64], strides = [1, 1]} : vector<2x256xf32> to vector<2x64xf32>
    %436 = math.tanh %435 : vector<2x64xf32>
    %437 = arith.mulf %433, %413 : vector<2x64xf32>
    %438 = arith.mulf %432, %436 : vector<2x64xf32>
    %439 = arith.addf %437, %438 : vector<2x64xf32>
    %440 = math.tanh %439 : vector<2x64xf32>
    %441 = arith.mulf %434, %440 : vector<2x64xf32>
    %442 = vector.extract_strided_slice %283 {offsets = [6, 0], sizes = [1, 256], strides = [1, 1]} : vector<16x256xf32> to vector<1x256xf32>
    %443 = vector.extract_strided_slice %283 {offsets = [14, 0], sizes = [1, 256], strides = [1, 1]} : vector<16x256xf32> to vector<1x256xf32>
    %444 = tpu.concatenate %442, %443 in 0 : vector<1x256xf32>, vector<1x256xf32> -> vector<2x256xf32>
    %445 = vector.extract_strided_slice %283 {offsets = [1, 0], sizes = [1, 256], strides = [1, 1]} : vector<16x256xf32> to vector<1x256xf32>
    %446 = vector.extract_strided_slice %283 {offsets = [9, 0], sizes = [1, 256], strides = [1, 1]} : vector<16x256xf32> to vector<1x256xf32>
    %447 = tpu.concatenate %445, %446 in 0 : vector<1x256xf32>, vector<1x256xf32> -> vector<2x256xf32>
    %448 = arith.select %58, %444, %447 : vector<2x256xi1>, vector<2x256xf32>
    %449 = arith.truncf %441 : vector<2x64xf32> to vector<2x64xbf16>
    %c0_100 = arith.constant 0 : index
    %c0_101 = arith.constant 0 : index
    %450 = vector.load %arg13[%c0_100, %c0_101] : memref<64x256xbf16, #tpu.memory_space<vmem>>, vector<64x256xbf16>
    %cst_102 = arith.constant dense<0.000000e+00> : vector<2x256xf32>
    %451 = tpu.matmul %449, %450, %cst_102 {dimension_numbers = #tpu.dot_dimension_numbers<[1], [0], [0], [1], [0, 0, 1, 1], [], []>} : vector<2x64xbf16>, vector<64x256xbf16>, vector<2x256xf32> -> vector<2x256xf32>
    %452 = arith.addf %448, %451 : vector<2x256xf32>
    %453 = arith.negf %452 : vector<2x256xf32>
    %454 = math.exp %453 : vector<2x256xf32>
    %cst_103 = arith.constant 1.000000e+00 : f32
    %455 = vector.broadcast %cst_103 : f32 to vector<2x256xf32>
    %456 = arith.addf %455, %454 : vector<2x256xf32>
    %457 = arith.divf %455, %456 : vector<2x256xf32>
    %458 = vector.extract_strided_slice %457 {offsets = [0, 0], sizes = [2, 64], strides = [1, 1]} : vector<2x256xf32> to vector<2x64xf32>
    %459 = vector.extract_strided_slice %457 {offsets = [0, 64], sizes = [2, 64], strides = [1, 1]} : vector<2x256xf32> to vector<2x64xf32>
    %460 = vector.extract_strided_slice %457 {offsets = [0, 192], sizes = [2, 64], strides = [1, 1]} : vector<2x256xf32> to vector<2x64xf32>
    %461 = vector.extract_strided_slice %452 {offsets = [0, 128], sizes = [2, 64], strides = [1, 1]} : vector<2x256xf32> to vector<2x64xf32>
    %462 = math.tanh %461 : vector<2x64xf32>
    %463 = arith.mulf %459, %439 : vector<2x64xf32>
    %464 = arith.mulf %458, %462 : vector<2x64xf32>
    %465 = arith.addf %463, %464 : vector<2x64xf32>
    %466 = math.tanh %465 : vector<2x64xf32>
    %467 = arith.mulf %460, %466 : vector<2x64xf32>
    %468 = vector.extract_strided_slice %283 {offsets = [7, 0], sizes = [1, 256], strides = [1, 1]} : vector<16x256xf32> to vector<1x256xf32>
    %469 = vector.extract_strided_slice %283 {offsets = [15, 0], sizes = [1, 256], strides = [1, 1]} : vector<16x256xf32> to vector<1x256xf32>
    %470 = tpu.concatenate %468, %469 in 0 : vector<1x256xf32>, vector<1x256xf32> -> vector<2x256xf32>
    %471 = vector.extract_strided_slice %283 {offsets = [0, 0], sizes = [1, 256], strides = [1, 1]} : vector<16x256xf32> to vector<1x256xf32>
    %472 = vector.extract_strided_slice %283 {offsets = [8, 0], sizes = [1, 256], strides = [1, 1]} : vector<16x256xf32> to vector<1x256xf32>
    %473 = tpu.concatenate %471, %472 in 0 : vector<1x256xf32>, vector<1x256xf32> -> vector<2x256xf32>
    %474 = arith.select %58, %470, %473 : vector<2x256xi1>, vector<2x256xf32>
    %475 = arith.truncf %467 : vector<2x64xf32> to vector<2x64xbf16>
    %c0_104 = arith.constant 0 : index
    %c0_105 = arith.constant 0 : index
    %476 = vector.load %arg13[%c0_104, %c0_105] : memref<64x256xbf16, #tpu.memory_space<vmem>>, vector<64x256xbf16>
    %cst_106 = arith.constant dense<0.000000e+00> : vector<2x256xf32>
    %477 = tpu.matmul %475, %476, %cst_106 {dimension_numbers = #tpu.dot_dimension_numbers<[1], [0], [0], [1], [0, 0, 1, 1], [], []>} : vector<2x64xbf16>, vector<64x256xbf16>, vector<2x256xf32> -> vector<2x256xf32>
    %478 = arith.addf %474, %477 : vector<2x256xf32>
    %479 = arith.negf %478 : vector<2x256xf32>
    %480 = math.exp %479 : vector<2x256xf32>
    %cst_107 = arith.constant 1.000000e+00 : f32
    %481 = vector.broadcast %cst_107 : f32 to vector<2x256xf32>
    %482 = arith.addf %481, %480 : vector<2x256xf32>
    %483 = arith.divf %481, %482 : vector<2x256xf32>
    %484 = vector.extract_strided_slice %483 {offsets = [0, 0], sizes = [2, 64], strides = [1, 1]} : vector<2x256xf32> to vector<2x64xf32>
    %485 = vector.extract_strided_slice %483 {offsets = [0, 64], sizes = [2, 64], strides = [1, 1]} : vector<2x256xf32> to vector<2x64xf32>
    %486 = vector.extract_strided_slice %483 {offsets = [0, 192], sizes = [2, 64], strides = [1, 1]} : vector<2x256xf32> to vector<2x64xf32>
    %487 = vector.extract_strided_slice %478 {offsets = [0, 128], sizes = [2, 64], strides = [1, 1]} : vector<2x256xf32> to vector<2x64xf32>
    %488 = math.tanh %487 : vector<2x64xf32>
    %489 = arith.mulf %485, %465 : vector<2x64xf32>
    %490 = arith.mulf %484, %488 : vector<2x64xf32>
    %491 = arith.addf %489, %490 : vector<2x64xf32>
    %492 = math.tanh %491 : vector<2x64xf32>
    %493 = arith.mulf %486, %492 : vector<2x64xf32>
    %494 = arith.select %61, %311, %493 : vector<2x64xi1>, vector<2x64xf32>
    %495 = arith.select %61, %337, %467 : vector<2x64xi1>, vector<2x64xf32>
    %496 = arith.select %61, %363, %441 : vector<2x64xi1>, vector<2x64xf32>
    %497 = arith.select %61, %389, %415 : vector<2x64xi1>, vector<2x64xf32>
    %498 = arith.select %61, %415, %389 : vector<2x64xi1>, vector<2x64xf32>
    %499 = arith.select %61, %441, %363 : vector<2x64xi1>, vector<2x64xf32>
    %500 = arith.select %61, %467, %337 : vector<2x64xi1>, vector<2x64xf32>
    %501 = arith.select %61, %493, %311 : vector<2x64xi1>, vector<2x64xf32>
    %502 = tpu.concatenate %494, %495, %496, %497, %498, %499, %500, %501 in 0 : vector<2x64xf32>, vector<2x64xf32>, vector<2x64xf32>, vector<2x64xf32>, vector<2x64xf32>, vector<2x64xf32>, vector<2x64xf32>, vector<2x64xf32> -> vector<16x64xf32>
    %503 = arith.truncf %502 : vector<16x64xf32> to vector<16x64xbf16>
    %c0_108 = arith.constant 0 : index
    %c0_109 = arith.constant 0 : index
    %504 = vector.load %arg15[%c0_108, %c0_109] : memref<64x256xbf16, #tpu.memory_space<vmem>>, vector<64x256xbf16>
    %cst_110 = arith.constant dense<0.000000e+00> : vector<16x256xf32>
    %505 = tpu.matmul %503, %504, %cst_110 {dimension_numbers = #tpu.dot_dimension_numbers<[1], [0], [0], [1], [0, 0, 1, 1], [], []>} : vector<16x64xbf16>, vector<64x256xbf16>, vector<16x256xf32> -> vector<16x256xf32>
    %c0_111 = arith.constant 0 : index
    %c0_112 = arith.constant 0 : index
    %506 = vector.load %arg17[%c0_111, %c0_112] : memref<1x256xf32, #tpu.memory_space<vmem>>, vector<1x256xf32>
    %507 = vector.broadcast %506 : vector<1x256xf32> to vector<16x256xf32>
    %508 = arith.addf %505, %507 : vector<16x256xf32>
    %cst_113 = arith.constant 0.000000e+00 : f32
    %509 = vector.broadcast %cst_113 : f32 to vector<2x64xf32>
    %cst_114 = arith.constant 0.000000e+00 : f32
    %510 = vector.broadcast %cst_114 : f32 to vector<2x64xf32>
    %511 = vector.extract_strided_slice %508 {offsets = [0, 0], sizes = [2, 256], strides = [1, 1]} : vector<16x256xf32> to vector<2x256xf32>
    %512 = vector.extract_strided_slice %508 {offsets = [14, 0], sizes = [2, 256], strides = [1, 1]} : vector<16x256xf32> to vector<2x256xf32>
    %513 = arith.select %58, %511, %512 : vector<2x256xi1>, vector<2x256xf32>
    %514 = arith.truncf %509 : vector<2x64xf32> to vector<2x64xbf16>
    %c0_115 = arith.constant 0 : index
    %c0_116 = arith.constant 0 : index
    %515 = vector.load %arg16[%c0_115, %c0_116] : memref<64x256xbf16, #tpu.memory_space<vmem>>, vector<64x256xbf16>
    %cst_117 = arith.constant dense<0.000000e+00> : vector<2x256xf32>
    %516 = tpu.matmul %514, %515, %cst_117 {dimension_numbers = #tpu.dot_dimension_numbers<[1], [0], [0], [1], [0, 0, 1, 1], [], []>} : vector<2x64xbf16>, vector<64x256xbf16>, vector<2x256xf32> -> vector<2x256xf32>
    %517 = arith.addf %513, %516 : vector<2x256xf32>
    %518 = arith.negf %517 : vector<2x256xf32>
    %519 = math.exp %518 : vector<2x256xf32>
    %cst_118 = arith.constant 1.000000e+00 : f32
    %520 = vector.broadcast %cst_118 : f32 to vector<2x256xf32>
    %521 = arith.addf %520, %519 : vector<2x256xf32>
    %522 = arith.divf %520, %521 : vector<2x256xf32>
    %523 = vector.extract_strided_slice %522 {offsets = [0, 0], sizes = [2, 64], strides = [1, 1]} : vector<2x256xf32> to vector<2x64xf32>
    %524 = vector.extract_strided_slice %522 {offsets = [0, 64], sizes = [2, 64], strides = [1, 1]} : vector<2x256xf32> to vector<2x64xf32>
    %525 = vector.extract_strided_slice %522 {offsets = [0, 192], sizes = [2, 64], strides = [1, 1]} : vector<2x256xf32> to vector<2x64xf32>
    %526 = vector.extract_strided_slice %517 {offsets = [0, 128], sizes = [2, 64], strides = [1, 1]} : vector<2x256xf32> to vector<2x64xf32>
    %527 = math.tanh %526 : vector<2x64xf32>
    %528 = arith.mulf %524, %510 : vector<2x64xf32>
    %529 = arith.mulf %523, %527 : vector<2x64xf32>
    %530 = arith.addf %528, %529 : vector<2x64xf32>
    %531 = math.tanh %530 : vector<2x64xf32>
    %532 = arith.mulf %525, %531 : vector<2x64xf32>
    %533 = vector.extract_strided_slice %508 {offsets = [2, 0], sizes = [2, 256], strides = [1, 1]} : vector<16x256xf32> to vector<2x256xf32>
    %534 = vector.extract_strided_slice %508 {offsets = [12, 0], sizes = [2, 256], strides = [1, 1]} : vector<16x256xf32> to vector<2x256xf32>
    %535 = arith.select %58, %533, %534 : vector<2x256xi1>, vector<2x256xf32>
    %536 = arith.truncf %532 : vector<2x64xf32> to vector<2x64xbf16>
    %c0_119 = arith.constant 0 : index
    %c0_120 = arith.constant 0 : index
    %537 = vector.load %arg16[%c0_119, %c0_120] : memref<64x256xbf16, #tpu.memory_space<vmem>>, vector<64x256xbf16>
    %cst_121 = arith.constant dense<0.000000e+00> : vector<2x256xf32>
    %538 = tpu.matmul %536, %537, %cst_121 {dimension_numbers = #tpu.dot_dimension_numbers<[1], [0], [0], [1], [0, 0, 1, 1], [], []>} : vector<2x64xbf16>, vector<64x256xbf16>, vector<2x256xf32> -> vector<2x256xf32>
    %539 = arith.addf %535, %538 : vector<2x256xf32>
    %540 = arith.negf %539 : vector<2x256xf32>
    %541 = math.exp %540 : vector<2x256xf32>
    %cst_122 = arith.constant 1.000000e+00 : f32
    %542 = vector.broadcast %cst_122 : f32 to vector<2x256xf32>
    %543 = arith.addf %542, %541 : vector<2x256xf32>
    %544 = arith.divf %542, %543 : vector<2x256xf32>
    %545 = vector.extract_strided_slice %544 {offsets = [0, 0], sizes = [2, 64], strides = [1, 1]} : vector<2x256xf32> to vector<2x64xf32>
    %546 = vector.extract_strided_slice %544 {offsets = [0, 64], sizes = [2, 64], strides = [1, 1]} : vector<2x256xf32> to vector<2x64xf32>
    %547 = vector.extract_strided_slice %544 {offsets = [0, 192], sizes = [2, 64], strides = [1, 1]} : vector<2x256xf32> to vector<2x64xf32>
    %548 = vector.extract_strided_slice %539 {offsets = [0, 128], sizes = [2, 64], strides = [1, 1]} : vector<2x256xf32> to vector<2x64xf32>
    %549 = math.tanh %548 : vector<2x64xf32>
    %550 = arith.mulf %546, %530 : vector<2x64xf32>
    %551 = arith.mulf %545, %549 : vector<2x64xf32>
    %552 = arith.addf %550, %551 : vector<2x64xf32>
    %553 = math.tanh %552 : vector<2x64xf32>
    %554 = arith.mulf %547, %553 : vector<2x64xf32>
    %555 = vector.extract_strided_slice %508 {offsets = [4, 0], sizes = [2, 256], strides = [1, 1]} : vector<16x256xf32> to vector<2x256xf32>
    %556 = vector.extract_strided_slice %508 {offsets = [10, 0], sizes = [2, 256], strides = [1, 1]} : vector<16x256xf32> to vector<2x256xf32>
    %557 = arith.select %58, %555, %556 : vector<2x256xi1>, vector<2x256xf32>
    %558 = arith.truncf %554 : vector<2x64xf32> to vector<2x64xbf16>
    %c0_123 = arith.constant 0 : index
    %c0_124 = arith.constant 0 : index
    %559 = vector.load %arg16[%c0_123, %c0_124] : memref<64x256xbf16, #tpu.memory_space<vmem>>, vector<64x256xbf16>
    %cst_125 = arith.constant dense<0.000000e+00> : vector<2x256xf32>
    %560 = tpu.matmul %558, %559, %cst_125 {dimension_numbers = #tpu.dot_dimension_numbers<[1], [0], [0], [1], [0, 0, 1, 1], [], []>} : vector<2x64xbf16>, vector<64x256xbf16>, vector<2x256xf32> -> vector<2x256xf32>
    %561 = arith.addf %557, %560 : vector<2x256xf32>
    %562 = arith.negf %561 : vector<2x256xf32>
    %563 = math.exp %562 : vector<2x256xf32>
    %cst_126 = arith.constant 1.000000e+00 : f32
    %564 = vector.broadcast %cst_126 : f32 to vector<2x256xf32>
    %565 = arith.addf %564, %563 : vector<2x256xf32>
    %566 = arith.divf %564, %565 : vector<2x256xf32>
    %567 = vector.extract_strided_slice %566 {offsets = [0, 0], sizes = [2, 64], strides = [1, 1]} : vector<2x256xf32> to vector<2x64xf32>
    %568 = vector.extract_strided_slice %566 {offsets = [0, 64], sizes = [2, 64], strides = [1, 1]} : vector<2x256xf32> to vector<2x64xf32>
    %569 = vector.extract_strided_slice %566 {offsets = [0, 192], sizes = [2, 64], strides = [1, 1]} : vector<2x256xf32> to vector<2x64xf32>
    %570 = vector.extract_strided_slice %561 {offsets = [0, 128], sizes = [2, 64], strides = [1, 1]} : vector<2x256xf32> to vector<2x64xf32>
    %571 = math.tanh %570 : vector<2x64xf32>
    %572 = arith.mulf %568, %552 : vector<2x64xf32>
    %573 = arith.mulf %567, %571 : vector<2x64xf32>
    %574 = arith.addf %572, %573 : vector<2x64xf32>
    %575 = math.tanh %574 : vector<2x64xf32>
    %576 = arith.mulf %569, %575 : vector<2x64xf32>
    %577 = vector.extract_strided_slice %508 {offsets = [6, 0], sizes = [2, 256], strides = [1, 1]} : vector<16x256xf32> to vector<2x256xf32>
    %578 = vector.extract_strided_slice %508 {offsets = [8, 0], sizes = [2, 256], strides = [1, 1]} : vector<16x256xf32> to vector<2x256xf32>
    %579 = arith.select %58, %577, %578 : vector<2x256xi1>, vector<2x256xf32>
    %580 = arith.truncf %576 : vector<2x64xf32> to vector<2x64xbf16>
    %c0_127 = arith.constant 0 : index
    %c0_128 = arith.constant 0 : index
    %581 = vector.load %arg16[%c0_127, %c0_128] : memref<64x256xbf16, #tpu.memory_space<vmem>>, vector<64x256xbf16>
    %cst_129 = arith.constant dense<0.000000e+00> : vector<2x256xf32>
    %582 = tpu.matmul %580, %581, %cst_129 {dimension_numbers = #tpu.dot_dimension_numbers<[1], [0], [0], [1], [0, 0, 1, 1], [], []>} : vector<2x64xbf16>, vector<64x256xbf16>, vector<2x256xf32> -> vector<2x256xf32>
    %583 = arith.addf %579, %582 : vector<2x256xf32>
    %584 = arith.negf %583 : vector<2x256xf32>
    %585 = math.exp %584 : vector<2x256xf32>
    %cst_130 = arith.constant 1.000000e+00 : f32
    %586 = vector.broadcast %cst_130 : f32 to vector<2x256xf32>
    %587 = arith.addf %586, %585 : vector<2x256xf32>
    %588 = arith.divf %586, %587 : vector<2x256xf32>
    %589 = vector.extract_strided_slice %588 {offsets = [0, 0], sizes = [2, 64], strides = [1, 1]} : vector<2x256xf32> to vector<2x64xf32>
    %590 = vector.extract_strided_slice %588 {offsets = [0, 64], sizes = [2, 64], strides = [1, 1]} : vector<2x256xf32> to vector<2x64xf32>
    %591 = vector.extract_strided_slice %588 {offsets = [0, 192], sizes = [2, 64], strides = [1, 1]} : vector<2x256xf32> to vector<2x64xf32>
    %592 = vector.extract_strided_slice %583 {offsets = [0, 128], sizes = [2, 64], strides = [1, 1]} : vector<2x256xf32> to vector<2x64xf32>
    %593 = math.tanh %592 : vector<2x64xf32>
    %594 = arith.mulf %590, %574 : vector<2x64xf32>
    %595 = arith.mulf %589, %593 : vector<2x64xf32>
    %596 = arith.addf %594, %595 : vector<2x64xf32>
    %597 = math.tanh %596 : vector<2x64xf32>
    %598 = arith.mulf %591, %597 : vector<2x64xf32>
    %599 = vector.extract_strided_slice %508 {offsets = [8, 0], sizes = [2, 256], strides = [1, 1]} : vector<16x256xf32> to vector<2x256xf32>
    %600 = vector.extract_strided_slice %508 {offsets = [6, 0], sizes = [2, 256], strides = [1, 1]} : vector<16x256xf32> to vector<2x256xf32>
    %601 = arith.select %58, %599, %600 : vector<2x256xi1>, vector<2x256xf32>
    %602 = arith.truncf %598 : vector<2x64xf32> to vector<2x64xbf16>
    %c0_131 = arith.constant 0 : index
    %c0_132 = arith.constant 0 : index
    %603 = vector.load %arg16[%c0_131, %c0_132] : memref<64x256xbf16, #tpu.memory_space<vmem>>, vector<64x256xbf16>
    %cst_133 = arith.constant dense<0.000000e+00> : vector<2x256xf32>
    %604 = tpu.matmul %602, %603, %cst_133 {dimension_numbers = #tpu.dot_dimension_numbers<[1], [0], [0], [1], [0, 0, 1, 1], [], []>} : vector<2x64xbf16>, vector<64x256xbf16>, vector<2x256xf32> -> vector<2x256xf32>
    %605 = arith.addf %601, %604 : vector<2x256xf32>
    %606 = arith.negf %605 : vector<2x256xf32>
    %607 = math.exp %606 : vector<2x256xf32>
    %cst_134 = arith.constant 1.000000e+00 : f32
    %608 = vector.broadcast %cst_134 : f32 to vector<2x256xf32>
    %609 = arith.addf %608, %607 : vector<2x256xf32>
    %610 = arith.divf %608, %609 : vector<2x256xf32>
    %611 = vector.extract_strided_slice %610 {offsets = [0, 0], sizes = [2, 64], strides = [1, 1]} : vector<2x256xf32> to vector<2x64xf32>
    %612 = vector.extract_strided_slice %610 {offsets = [0, 64], sizes = [2, 64], strides = [1, 1]} : vector<2x256xf32> to vector<2x64xf32>
    %613 = vector.extract_strided_slice %610 {offsets = [0, 192], sizes = [2, 64], strides = [1, 1]} : vector<2x256xf32> to vector<2x64xf32>
    %614 = vector.extract_strided_slice %605 {offsets = [0, 128], sizes = [2, 64], strides = [1, 1]} : vector<2x256xf32> to vector<2x64xf32>
    %615 = math.tanh %614 : vector<2x64xf32>
    %616 = arith.mulf %612, %596 : vector<2x64xf32>
    %617 = arith.mulf %611, %615 : vector<2x64xf32>
    %618 = arith.addf %616, %617 : vector<2x64xf32>
    %619 = math.tanh %618 : vector<2x64xf32>
    %620 = arith.mulf %613, %619 : vector<2x64xf32>
    %621 = vector.extract_strided_slice %508 {offsets = [10, 0], sizes = [2, 256], strides = [1, 1]} : vector<16x256xf32> to vector<2x256xf32>
    %622 = vector.extract_strided_slice %508 {offsets = [4, 0], sizes = [2, 256], strides = [1, 1]} : vector<16x256xf32> to vector<2x256xf32>
    %623 = arith.select %58, %621, %622 : vector<2x256xi1>, vector<2x256xf32>
    %624 = arith.truncf %620 : vector<2x64xf32> to vector<2x64xbf16>
    %c0_135 = arith.constant 0 : index
    %c0_136 = arith.constant 0 : index
    %625 = vector.load %arg16[%c0_135, %c0_136] : memref<64x256xbf16, #tpu.memory_space<vmem>>, vector<64x256xbf16>
    %cst_137 = arith.constant dense<0.000000e+00> : vector<2x256xf32>
    %626 = tpu.matmul %624, %625, %cst_137 {dimension_numbers = #tpu.dot_dimension_numbers<[1], [0], [0], [1], [0, 0, 1, 1], [], []>} : vector<2x64xbf16>, vector<64x256xbf16>, vector<2x256xf32> -> vector<2x256xf32>
    %627 = arith.addf %623, %626 : vector<2x256xf32>
    %628 = arith.negf %627 : vector<2x256xf32>
    %629 = math.exp %628 : vector<2x256xf32>
    %cst_138 = arith.constant 1.000000e+00 : f32
    %630 = vector.broadcast %cst_138 : f32 to vector<2x256xf32>
    %631 = arith.addf %630, %629 : vector<2x256xf32>
    %632 = arith.divf %630, %631 : vector<2x256xf32>
    %633 = vector.extract_strided_slice %632 {offsets = [0, 0], sizes = [2, 64], strides = [1, 1]} : vector<2x256xf32> to vector<2x64xf32>
    %634 = vector.extract_strided_slice %632 {offsets = [0, 64], sizes = [2, 64], strides = [1, 1]} : vector<2x256xf32> to vector<2x64xf32>
    %635 = vector.extract_strided_slice %632 {offsets = [0, 192], sizes = [2, 64], strides = [1, 1]} : vector<2x256xf32> to vector<2x64xf32>
    %636 = vector.extract_strided_slice %627 {offsets = [0, 128], sizes = [2, 64], strides = [1, 1]} : vector<2x256xf32> to vector<2x64xf32>
    %637 = math.tanh %636 : vector<2x64xf32>
    %638 = arith.mulf %634, %618 : vector<2x64xf32>
    %639 = arith.mulf %633, %637 : vector<2x64xf32>
    %640 = arith.addf %638, %639 : vector<2x64xf32>
    %641 = math.tanh %640 : vector<2x64xf32>
    %642 = arith.mulf %635, %641 : vector<2x64xf32>
    %643 = vector.extract_strided_slice %508 {offsets = [12, 0], sizes = [2, 256], strides = [1, 1]} : vector<16x256xf32> to vector<2x256xf32>
    %644 = vector.extract_strided_slice %508 {offsets = [2, 0], sizes = [2, 256], strides = [1, 1]} : vector<16x256xf32> to vector<2x256xf32>
    %645 = arith.select %58, %643, %644 : vector<2x256xi1>, vector<2x256xf32>
    %646 = arith.truncf %642 : vector<2x64xf32> to vector<2x64xbf16>
    %c0_139 = arith.constant 0 : index
    %c0_140 = arith.constant 0 : index
    %647 = vector.load %arg16[%c0_139, %c0_140] : memref<64x256xbf16, #tpu.memory_space<vmem>>, vector<64x256xbf16>
    %cst_141 = arith.constant dense<0.000000e+00> : vector<2x256xf32>
    %648 = tpu.matmul %646, %647, %cst_141 {dimension_numbers = #tpu.dot_dimension_numbers<[1], [0], [0], [1], [0, 0, 1, 1], [], []>} : vector<2x64xbf16>, vector<64x256xbf16>, vector<2x256xf32> -> vector<2x256xf32>
    %649 = arith.addf %645, %648 : vector<2x256xf32>
    %650 = arith.negf %649 : vector<2x256xf32>
    %651 = math.exp %650 : vector<2x256xf32>
    %cst_142 = arith.constant 1.000000e+00 : f32
    %652 = vector.broadcast %cst_142 : f32 to vector<2x256xf32>
    %653 = arith.addf %652, %651 : vector<2x256xf32>
    %654 = arith.divf %652, %653 : vector<2x256xf32>
    %655 = vector.extract_strided_slice %654 {offsets = [0, 0], sizes = [2, 64], strides = [1, 1]} : vector<2x256xf32> to vector<2x64xf32>
    %656 = vector.extract_strided_slice %654 {offsets = [0, 64], sizes = [2, 64], strides = [1, 1]} : vector<2x256xf32> to vector<2x64xf32>
    %657 = vector.extract_strided_slice %654 {offsets = [0, 192], sizes = [2, 64], strides = [1, 1]} : vector<2x256xf32> to vector<2x64xf32>
    %658 = vector.extract_strided_slice %649 {offsets = [0, 128], sizes = [2, 64], strides = [1, 1]} : vector<2x256xf32> to vector<2x64xf32>
    %659 = math.tanh %658 : vector<2x64xf32>
    %660 = arith.mulf %656, %640 : vector<2x64xf32>
    %661 = arith.mulf %655, %659 : vector<2x64xf32>
    %662 = arith.addf %660, %661 : vector<2x64xf32>
    %663 = math.tanh %662 : vector<2x64xf32>
    %664 = arith.mulf %657, %663 : vector<2x64xf32>
    %665 = vector.extract_strided_slice %508 {offsets = [14, 0], sizes = [2, 256], strides = [1, 1]} : vector<16x256xf32> to vector<2x256xf32>
    %666 = vector.extract_strided_slice %508 {offsets = [0, 0], sizes = [2, 256], strides = [1, 1]} : vector<16x256xf32> to vector<2x256xf32>
    %667 = arith.select %58, %665, %666 : vector<2x256xi1>, vector<2x256xf32>
    %668 = arith.truncf %664 : vector<2x64xf32> to vector<2x64xbf16>
    %c0_143 = arith.constant 0 : index
    %c0_144 = arith.constant 0 : index
    %669 = vector.load %arg16[%c0_143, %c0_144] : memref<64x256xbf16, #tpu.memory_space<vmem>>, vector<64x256xbf16>
    %cst_145 = arith.constant dense<0.000000e+00> : vector<2x256xf32>
    %670 = tpu.matmul %668, %669, %cst_145 {dimension_numbers = #tpu.dot_dimension_numbers<[1], [0], [0], [1], [0, 0, 1, 1], [], []>} : vector<2x64xbf16>, vector<64x256xbf16>, vector<2x256xf32> -> vector<2x256xf32>
    %671 = arith.addf %667, %670 : vector<2x256xf32>
    %672 = arith.negf %671 : vector<2x256xf32>
    %673 = math.exp %672 : vector<2x256xf32>
    %cst_146 = arith.constant 1.000000e+00 : f32
    %674 = vector.broadcast %cst_146 : f32 to vector<2x256xf32>
    %675 = arith.addf %674, %673 : vector<2x256xf32>
    %676 = arith.divf %674, %675 : vector<2x256xf32>
    %677 = vector.extract_strided_slice %676 {offsets = [0, 0], sizes = [2, 64], strides = [1, 1]} : vector<2x256xf32> to vector<2x64xf32>
    %678 = vector.extract_strided_slice %676 {offsets = [0, 64], sizes = [2, 64], strides = [1, 1]} : vector<2x256xf32> to vector<2x64xf32>
    %679 = vector.extract_strided_slice %676 {offsets = [0, 192], sizes = [2, 64], strides = [1, 1]} : vector<2x256xf32> to vector<2x64xf32>
    %680 = vector.extract_strided_slice %671 {offsets = [0, 128], sizes = [2, 64], strides = [1, 1]} : vector<2x256xf32> to vector<2x64xf32>
    %681 = math.tanh %680 : vector<2x64xf32>
    %682 = arith.mulf %678, %662 : vector<2x64xf32>
    %683 = arith.mulf %677, %681 : vector<2x64xf32>
    %684 = arith.addf %682, %683 : vector<2x64xf32>
    %685 = math.tanh %684 : vector<2x64xf32>
    %686 = arith.mulf %679, %685 : vector<2x64xf32>
    %687 = arith.select %61, %686, %532 : vector<2x64xi1>, vector<2x64xf32>
    %688 = tpu.concatenate %275, %687 in 1 : vector<2x64xf32>, vector<2x64xf32> -> vector<2x128xf32>
    %689 = tpu.concatenate %688, %688, %688, %688, %688, %688, %688, %688 in 1 : vector<2x128xf32>, vector<2x128xf32>, vector<2x128xf32>, vector<2x128xf32>, vector<2x128xf32>, vector<2x128xf32>, vector<2x128xf32>, vector<2x128xf32> -> vector<2x1024xf32>
    %c0_147 = arith.constant 0 : index
    %c0_148 = arith.constant 0 : index
    %690 = vector.load %arg18[%c0_147, %c0_148] : memref<1x1024xf32, #tpu.memory_space<vmem>>, vector<1x1024xf32>
    %691 = vector.broadcast %690 : vector<1x1024xf32> to vector<2x1024xf32>
    %692 = arith.subf %689, %691 : vector<2x1024xf32>
    %cst_149 = arith.constant 0.000000e+00 : f32
    %693 = vector.broadcast %cst_149 : f32 to vector<2x1024xf32>
    %694 = arith.maximumf %692, %693 : vector<2x1024xf32>
    %c0_150 = arith.constant 0 : index
    %c0_151 = arith.constant 0 : index
    %695 = vector.load %arg19[%c0_150, %c0_151] : memref<1x1024xf32, #tpu.memory_space<vmem>>, vector<1x1024xf32>
    %696 = vector.broadcast %695 : vector<1x1024xf32> to vector<2x1024xf32>
    %697 = arith.subf %696, %689 : vector<2x1024xf32>
    %cst_152 = arith.constant 0.000000e+00 : f32
    %698 = vector.broadcast %cst_152 : f32 to vector<2x1024xf32>
    %699 = arith.maximumf %697, %698 : vector<2x1024xf32>
    %700 = arith.mulf %694, %699 : vector<2x1024xf32>
    %cst_153 = arith.constant 6.250000e+00 : f32
    %701 = vector.broadcast %cst_153 : f32 to vector<2x1024xf32>
    %702 = arith.mulf %700, %701 : vector<2x1024xf32>
    %703 = arith.mulf %702, %702 : vector<2x1024xf32>
    %704 = arith.truncf %703 : vector<2x1024xf32> to vector<2x1024xbf16>
    %c0_154 = arith.constant 0 : index
    %c0_155 = arith.constant 0 : index
    %705 = vector.load %arg20[%c0_154, %c0_155] : memref<1024x128xbf16, #tpu.memory_space<vmem>>, vector<1024x128xbf16>
    %cst_156 = arith.constant dense<0.000000e+00> : vector<2x128xf32>
    %706 = tpu.matmul %704, %705, %cst_156 {dimension_numbers = #tpu.dot_dimension_numbers<[1], [0], [0], [1], [0, 0, 1, 1], [], []>} : vector<2x1024xbf16>, vector<1024x128xbf16>, vector<2x128xf32> -> vector<2x128xf32>
    %c0_157 = arith.constant 0 : index
    %c0_158 = arith.constant 0 : index
    %707 = vector.load %arg21[%c0_157, %c0_158] : memref<1x128xf32, #tpu.memory_space<vmem>>, vector<1x128xf32>
    %708 = vector.broadcast %707 : vector<1x128xf32> to vector<2x128xf32>
    %709 = arith.addf %706, %708 : vector<2x128xf32>
    %710 = tpu.concatenate %709, %709, %709, %709, %709, %709, %709, %709 in 1 : vector<2x128xf32>, vector<2x128xf32>, vector<2x128xf32>, vector<2x128xf32>, vector<2x128xf32>, vector<2x128xf32>, vector<2x128xf32>, vector<2x128xf32> -> vector<2x1024xf32>
    %c0_159 = arith.constant 0 : index
    %c0_160 = arith.constant 0 : index
    %711 = vector.load %arg22[%c0_159, %c0_160] : memref<1x1024xf32, #tpu.memory_space<vmem>>, vector<1x1024xf32>
    %712 = vector.broadcast %711 : vector<1x1024xf32> to vector<2x1024xf32>
    %713 = arith.subf %710, %712 : vector<2x1024xf32>
    %cst_161 = arith.constant 0.000000e+00 : f32
    %714 = vector.broadcast %cst_161 : f32 to vector<2x1024xf32>
    %715 = arith.maximumf %713, %714 : vector<2x1024xf32>
    %c0_162 = arith.constant 0 : index
    %c0_163 = arith.constant 0 : index
    %716 = vector.load %arg23[%c0_162, %c0_163] : memref<1x1024xf32, #tpu.memory_space<vmem>>, vector<1x1024xf32>
    %717 = vector.broadcast %716 : vector<1x1024xf32> to vector<2x1024xf32>
    %718 = arith.subf %717, %710 : vector<2x1024xf32>
    %cst_164 = arith.constant 0.000000e+00 : f32
    %719 = vector.broadcast %cst_164 : f32 to vector<2x1024xf32>
    %720 = arith.maximumf %718, %719 : vector<2x1024xf32>
    %721 = arith.mulf %715, %720 : vector<2x1024xf32>
    %cst_165 = arith.constant 6.250000e+00 : f32
    %722 = vector.broadcast %cst_165 : f32 to vector<2x1024xf32>
    %723 = arith.mulf %721, %722 : vector<2x1024xf32>
    %724 = arith.mulf %723, %723 : vector<2x1024xf32>
    %725 = arith.truncf %724 : vector<2x1024xf32> to vector<2x1024xbf16>
    %c0_166 = arith.constant 0 : index
    %c0_167 = arith.constant 0 : index
    %726 = vector.load %arg24[%c0_166, %c0_167] : memref<1024x2xbf16, #tpu.memory_space<vmem>>, vector<1024x2xbf16>
    %cst_168 = arith.constant dense<0.000000e+00> : vector<2x2xf32>
    %727 = tpu.matmul %725, %726, %cst_168 {dimension_numbers = #tpu.dot_dimension_numbers<[1], [0], [0], [1], [0, 0, 1, 1], [], []>} : vector<2x1024xbf16>, vector<1024x2xbf16>, vector<2x2xf32> -> vector<2x2xf32>
    %c0_169 = arith.constant 0 : index
    %c0_170 = arith.constant 0 : index
    %728 = vector.load %arg25[%c0_169, %c0_170] : memref<1x2xf32, #tpu.memory_space<vmem>>, vector<1x2xf32>
    %729 = vector.broadcast %728 : vector<1x2xf32> to vector<2x2xf32>
    %730 = arith.addf %727, %729 : vector<2x2xf32>
    %c0_171 = arith.constant 0 : index
    %c0_172 = arith.constant 0 : index
    %731 = vector.load %arg26[%c0_171, %c0_172] : memref<2x2xf32, #tpu.memory_space<vmem>>, vector<2x2xf32>
    tpu.vector_store %arg26[%c0_171, %c0_172], %730 {strides = array<i32>} : memref<2x2xf32, #tpu.memory_space<vmem>>, vector<2x2xf32>,
    return
  }
}

</mosaic_0001>

<llo_original>
// kernel: forward.1
$region0: #{forward.1}
  #allocation0 [shape = 'u32[]', space=smem, size = 0x4, offset = 0x4, fixed_abs, tag = 'smem constant byte address 0x4 - core index']
  #allocation1 [shape = 'u32[144,128]{1,0:T(1,128)}', space=vmem, size = 0x12000, scoped, tag = 'internal scratch']
  %s0 = inlined_call_operand.hbm [shape: f32[8,3,16,16], index: 0, kind: input, shape index: {}]
  %s1 = inlined_call_operand.vmem [shape: f32[2,8,60], index: 1, kind: input, shape index: {}]
  %s2 = inlined_call_operand.vmem [shape: bf16[144,128], index: 2, kind: input, shape index: {}]
  %s3 = inlined_call_operand.hbm [shape: f32[1,128], index: 3, kind: input, shape index: {}]
  %s4 = inlined_call_operand.vmem [shape: bf16[128,64], index: 4, kind: input, shape index: {}]
  %s5 = inlined_call_operand.hbm [shape: f32[1,64], index: 5, kind: input, shape index: {}]
  %s6 = inlined_call_operand.vmem [shape: bf16[64,256], index: 6, kind: input, shape index: {}]
  %s7 = inlined_call_operand.hbm [shape: bf16[64,256], index: 7, kind: input, shape index: {}]
  %s8 = inlined_call_operand.vmem [shape: f32[1,256], index: 8, kind: input, shape index: {}]
  %s9 = inlined_call_operand.hbm [shape: bf16[64,256], index: 9, kind: input, shape index: {}]
  %s10 = inlined_call_operand.hbm [shape: bf16[64,256], index: 10, kind: input, shape index: {}]
  %s11 = inlined_call_operand.hbm [shape: f32[1,256], index: 11, kind: input, shape index: {}]
  %s12 = inlined_call_operand.hbm [shape: bf16[60,256], index: 12, kind: input, shape index: {}]
  %s13 = inlined_call_operand.hbm [shape: bf16[64,256], index: 13, kind: input, shape index: {}]
  %s14 = inlined_call_operand.hbm [shape: f32[1,256], index: 14, kind: input, shape index: {}]
  %s15 = inlined_call_operand.hbm [shape: bf16[64,256], index: 15, kind: input, shape index: {}]
  %s16 = inlined_call_operand.hbm [shape: bf16[64,256], index: 16, kind: input, shape index: {}]
  %s17 = inlined_call_operand.hbm [shape: f32[1,256], index: 17, kind: input, shape index: {}]
  %s18 = inlined_call_operand.vmem [shape: f32[1,1024], index: 18, kind: input, shape index: {}]
  %s19 = inlined_call_operand.vmem [shape: f32[1,1024], index: 19, kind: input, shape index: {}]
  %s20 = inlined_call_operand.vmem [shape: bf16[1024,128], index: 20, kind: input, shape index: {}]
  %s21 = inlined_call_operand.hbm [shape: f32[1,128], index: 21, kind: input, shape index: {}]
  %s22 = inlined_call_operand.vmem [shape: f32[1,1024], index: 22, kind: input, shape index: {}]
  %s23 = inlined_call_operand.vmem [shape: f32[1,1024], index: 23, kind: input, shape index: {}]
  %s24 = inlined_call_operand.vmem [shape: bf16[1024,2], index: 24, kind: input, shape index: {}]
  %s25 = inlined_call_operand.vmem [shape: f32[1,2], index: 25, kind: input, shape index: {}]
  %s26 = inlined_call_operand.hbm [shape: f32[2,2], index: 26, kind: output, shape index: {}]
  %s27 = sld [smem:[#allocation0]]
  $region170: #{forward.1} parent=0
    _
  %s29 = ssub.s32 1, %s27
  %s30 = scalar_select 0, %s29, %s27
  $region1: #{forward.1} parent=0
    #allocation2 [shape = 'u8[196608]{0}', space=vmem, size = 0x30000, scoped, tag = 'input window, operand 0, single buffered']
    #allocation3 [shape = 's32[1]{0}', space=sflag, size = 0x4, scoped, tag = 'scoped memory for forward.1']
    #allocation4 [shape = 's32[1]{0}', space=sflag, size = 0x4, scoped, tag = 'scoped memory for forward.1']
    #allocation5 [shape = 'u8[512]{0}', space=vmem, size = 0x400, scoped, tag = 'input window, operand 3, single buffered']
    #allocation6 [shape = 's32[1]{0}', space=sflag, size = 0x4, scoped, tag = 'scoped memory for forward.1']
    #allocation7 [shape = 'u8[512]{0}', space=vmem, size = 0x400, scoped, tag = 'input window, operand 5, single buffered']
    #allocation8 [shape = 'u8[32768]{0}', space=vmem, size = 0x8000, scoped, tag = 'input window, operand 7, single buffered']
    #allocation9 [shape = 's32[1]{0}', space=sflag, size = 0x4, scoped, tag = 'scoped memory for forward.1']
    #allocation10 [shape = 'u8[32768]{0}', space=vmem, size = 0x8000, scoped, tag = 'input window, operand 9, single buffered']
    #allocation11 [shape = 'u8[32768]{0}', space=vmem, size = 0x8000, scoped, tag = 'input window, operand 10, single buffered']
    #allocation12 [shape = 's32[1]{0}', space=sflag, size = 0x4, scoped, tag = 'scoped memory for forward.1']
    #allocation13 [shape = 'u8[1024]{0}', space=vmem, size = 0x400, scoped, tag = 'input window, operand 11, single buffered']
    #allocation14 [shape = 'u8[32768]{0}', space=vmem, size = 0x8000, scoped, tag = 'input window, operand 12, single buffered']
    #allocation15 [shape = 's32[1]{0}', space=sflag, size = 0x4, scoped, tag = 'scoped memory for forward.1']
    #allocation16 [shape = 'u8[32768]{0}', space=vmem, size = 0x8000, scoped, tag = 'input window, operand 13, single buffered']
    #allocation17 [shape = 'u8[1024]{0}', space=vmem, size = 0x400, scoped, tag = 'input window, operand 14, single buffered']
    #allocation18 [shape = 's32[1]{0}', space=sflag, size = 0x4, scoped, tag = 'scoped memory for forward.1']
    #allocation19 [shape = 'u8[32768]{0}', space=vmem, size = 0x8000, scoped, tag = 'input window, operand 15, single buffered']
    #allocation20 [shape = 'u8[32768]{0}', space=vmem, size = 0x8000, scoped, tag = 'input window, operand 16, single buffered']
    #allocation21 [shape = 's32[1]{0}', space=sflag, size = 0x4, scoped, tag = 'scoped memory for forward.1']
    #allocation22 [shape = 'u8[1024]{0}', space=vmem, size = 0x400, scoped, tag = 'input window, operand 17, single buffered']
    #allocation23 [shape = 'u8[512]{0}', space=vmem, size = 0x400, scoped, tag = 'input window, operand 21, single buffered']
    #allocation24 [shape = 's32[1]{0}', space=sflag, size = 0x4, scoped, tag = 'scoped memory for forward.1']
    #allocation25 [shape = 'u8[1024]{0}', space=vmem, size = 0x400, scoped, tag = 'output window, operand 0, single buffered']
    %31 = vsyncpa [#allocation3], 0
    %32 = vsyncpa [#allocation6], 0
    %33 = vsyncpa [#allocation9], 0
    %34 = vsyncpa [#allocation12], 0
    %35 = vsyncpa [#allocation15], 0
    %36 = vsyncpa [#allocation18], 0
    %37 = vsyncpa [#allocation21], 0
    %38 = vsyncpa [#allocation24], 0
    %39 = vsyncpa [#allocation4], 0
    // Predicated region
    $region2: #{forward.1} parent=1 // pred_check
      _
    $region3: #{forward.1} parent=1 // pred_check_branch
      %41 = sbr.rel (0) target = $region5
    $region4: #{forward.1} parent=1 // pred_region
      %s43 = ssub.s32 6144, 6144
      %44 = vsyncadd [#allocation3], %s43
      %s45 = sshll.u32 [#allocation2], 4
      %s46 = int_to_ptr.vmem [resolvable:$true] %s45
      %51 = dma.hbm_to_vmem [thread:$0]  %s0, 6144, %s46, [#allocation3], 128, 128, 8
    $region5: #{forward.1} parent=1 // pred_fallthru
      _
    // Predicated region
    $region6: #{forward.1} parent=1 // pred_check
      _
    $region7: #{forward.1} parent=1 // pred_check_branch
      %53 = sbr.rel (0) target = $region9
    $region8: #{forward.1} parent=1 // pred_region
      _
    $region9: #{forward.1} parent=1 // pred_fallthru
      _
    // Predicated region
    $region10: #{forward.1} parent=1 // pred_check
      _
    $region11: #{forward.1} parent=1 // pred_check_branch
      %55 = sbr.rel (0) target = $region13
    $region12: #{forward.1} parent=1 // pred_region
      _
    $region13: #{forward.1} parent=1 // pred_fallthru
      _
    // Predicated region
    $region14: #{forward.1} parent=1 // pred_check
      _
    $region15: #{forward.1} parent=1 // pred_check_branch
      %57 = sbr.rel (0) target = $region17
    $region16: #{forward.1} parent=1 // pred_region
      %s59 = ssub.s32 16, 16
      %60 = vsyncadd [#allocation6], %s59
      %s62 = sshll.u32 [#allocation5], 4
      %s63 = int_to_ptr.vmem [resolvable:$true] %s62
      %65 = dma.hbm_to_vmem [thread:$0]  %s3, 16, %s63, [#allocation6]
    $region17: #{forward.1} parent=1 // pred_fallthru
      _
    // Predicated region
    $region18: #{forward.1} parent=1 // pred_check
      _
    $region19: #{forward.1} parent=1 // pred_check_branch
      %67 = sbr.rel (0) target = $region21
    $region20: #{forward.1} parent=1 // pred_region
      _
    $region21: #{forward.1} parent=1 // pred_fallthru
      _
    // Predicated region
    $region22: #{forward.1} parent=1 // pred_check
      _
    $region23: #{forward.1} parent=1 // pred_check_branch
      %69 = sbr.rel (0) target = $region25
    $region24: #{forward.1} parent=1 // pred_region
      %s71 = ssub.s32 16, 16
      %72 = vsyncadd [#allocation6], %s71
      %s74 = sshll.u32 [#allocation7], 4
      %s75 = int_to_ptr.vmem [resolvable:$true] %s74
      %77 = dma.hbm_to_vmem [thread:$0]  %s5, 16, %s75, [#allocation6]
    $region25: #{forward.1} parent=1 // pred_fallthru
      _
    // Predicated region
    $region26: #{forward.1} parent=1 // pred_check
      _
    $region27: #{forward.1} parent=1 // pred_check_branch
      %79 = sbr.rel (0) target = $region29
    $region28: #{forward.1} parent=1 // pred_region
      _
    $region29: #{forward.1} parent=1 // pred_fallthru
      _
    // Predicated region
    $region30: #{forward.1} parent=1 // pred_check
      _
    $region31: #{forward.1} parent=1 // pred_check_branch
      %81 = sbr.rel (0) target = $region33
    $region32: #{forward.1} parent=1 // pred_region
      %s83 = ssub.s32 1024, 1024
      %84 = vsyncadd [#allocation9], %s83
      %s85 = sshll.u32 [#allocation8], 4
      %s86 = int_to_ptr.vmem [resolvable:$true] %s85
      %91 = dma.hbm_to_vmem [thread:$0]  %s7, 1024, %s86, [#allocation9], 128, 128, 8
    $region33: #{forward.1} parent=1 // pred_fallthru
      _
    // Predicated region
    $region34: #{forward.1} parent=1 // pred_check
      _
    $region35: #{forward.1} parent=1 // pred_check_branch
      %93 = sbr.rel (0) target = $region37
    $region36: #{forward.1} parent=1 // pred_region
      _
    $region37: #{forward.1} parent=1 // pred_fallthru
      _
    // Predicated region
    $region38: #{forward.1} parent=1 // pred_check
      _
    $region39: #{forward.1} parent=1 // pred_check_branch
      %95 = sbr.rel (0) target = $region41
    $region40: #{forward.1} parent=1 // pred_region
      %s97 = ssub.s32 1024, 1024
      %98 = vsyncadd [#allocation9], %s97
      %s99 = sshll.u32 [#allocation10], 4
      %s100 = int_to_ptr.vmem [resolvable:$true] %s99
      %105 = dma.hbm_to_vmem [thread:$0]  %s9, 1024, %s100, [#allocation9], 128, 128, 8
    $region41: #{forward.1} parent=1 // pred_fallthru
      _
    // Predicated region
    $region42: #{forward.1} parent=1 // pred_check
      _
    $region43: #{forward.1} parent=1 // pred_check_branch
      %107 = sbr.rel (0) target = $region45
    $region44: #{forward.1} parent=1 // pred_region
      %s109 = ssub.s32 1024, 1024
      %110 = vsyncadd [#allocation12], %s109
      %s111 = sshll.u32 [#allocation11], 4
      %s112 = int_to_ptr.vmem [resolvable:$true] %s111
      %117 = dma.hbm_to_vmem [thread:$0]  %s10, 1024, %s112, [#allocation12], 128, 128, 8
    $region45: #{forward.1} parent=1 // pred_fallthru
      _
    // Predicated region
    $region46: #{forward.1} parent=1 // pred_check
      _
    $region47: #{forward.1} parent=1 // pred_check_branch
      %119 = sbr.rel (0) target = $region49
    $region48: #{forward.1} parent=1 // pred_region
      %s121 = ssub.s32 32, 32
      %122 = vsyncadd [#allocation12], %s121
      %s124 = sshll.u32 [#allocation13], 4
      %s125 = int_to_ptr.vmem [resolvable:$true] %s124
      %127 = dma.hbm_to_vmem [thread:$0]  %s11, 32, %s125, [#allocation12]
    $region49: #{forward.1} parent=1 // pred_fallthru
      _
    // Predicated region
    $region50: #{forward.1} parent=1 // pred_check
      _
    $region51: #{forward.1} parent=1 // pred_check_branch
      %129 = sbr.rel (0) target = $region53
    $region52: #{forward.1} parent=1 // pred_region
      %s131 = ssub.s32 1024, 1024
      %132 = vsyncadd [#allocation15], %s131
      %s133 = sshll.u32 [#allocation14], 4
      %s134 = int_to_ptr.vmem [resolvable:$true] %s133
      %139 = dma.hbm_to_vmem [thread:$0]  %s12, 1024, %s134, [#allocation15], 128, 128, 8
    $region53: #{forward.1} parent=1 // pred_fallthru
      _
    // Predicated region
    $region54: #{forward.1} parent=1 // pred_check
      _
    $region55: #{forward.1} parent=1 // pred_check_branch
      %141 = sbr.rel (0) target = $region57
    $region56: #{forward.1} parent=1 // pred_region
      %s143 = ssub.s32 1024, 1024
      %144 = vsyncadd [#allocation15], %s143
      %s145 = sshll.u32 [#allocation16], 4
      %s146 = int_to_ptr.vmem [resolvable:$true] %s145
      %151 = dma.hbm_to_vmem [thread:$0]  %s13, 1024, %s146, [#allocation15], 128, 128, 8
    $region57: #{forward.1} parent=1 // pred_fallthru
      _
    // Predicated region
    $region58: #{forward.1} parent=1 // pred_check
      _
    $region59: #{forward.1} parent=1 // pred_check_branch
      %153 = sbr.rel (0) target = $region61
    $region60: #{forward.1} parent=1 // pred_region
      %s155 = ssub.s32 32, 32
      %156 = vsyncadd [#allocation18], %s155
      %s158 = sshll.u32 [#allocation17], 4
      %s159 = int_to_ptr.vmem [resolvable:$true] %s158
      %161 = dma.hbm_to_vmem [thread:$0]  %s14, 32, %s159, [#allocation18]
    $region61: #{forward.1} parent=1 // pred_fallthru
      _
    // Predicated region
    $region62: #{forward.1} parent=1 // pred_check
      _
    $region63: #{forward.1} parent=1 // pred_check_branch
      %163 = sbr.rel (0) target = $region65
    $region64: #{forward.1} parent=1 // pred_region
      %s165 = ssub.s32 1024, 1024
      %166 = vsyncadd [#allocation18], %s165
      %s167 = sshll.u32 [#allocation19], 4
      %s168 = int_to_ptr.vmem [resolvable:$true] %s167
      %173 = dma.hbm_to_vmem [thread:$0]  %s15, 1024, %s168, [#allocation18], 128, 128, 8
    $region65: #{forward.1} parent=1 // pred_fallthru
      _
    // Predicated region
    $region66: #{forward.1} parent=1 // pred_check
      _
    $region67: #{forward.1} parent=1 // pred_check_branch
      %175 = sbr.rel (0) target = $region69
    $region68: #{forward.1} parent=1 // pred_region
      %s177 = ssub.s32 1024, 1024
      %178 = vsyncadd [#allocation21], %s177
      %s179 = sshll.u32 [#allocation20], 4
      %s180 = int_to_ptr.vmem [resolvable:$true] %s179
      %185 = dma.hbm_to_vmem [thread:$0]  %s16, 1024, %s180, [#allocation21], 128, 128, 8
    $region69: #{forward.1} parent=1 // pred_fallthru
      _
    // Predicated region
    $region70: #{forward.1} parent=1 // pred_check
      _
    $region71: #{forward.1} parent=1 // pred_check_branch
      %187 = sbr.rel (0) target = $region73
    $region72: #{forward.1} parent=1 // pred_region
      %s189 = ssub.s32 32, 32
      %190 = vsyncadd [#allocation21], %s189
      %s192 = sshll.u32 [#allocation22], 4
      %s193 = int_to_ptr.vmem [resolvable:$true] %s192
      %195 = dma.hbm_to_vmem [thread:$0]  %s17, 32, %s193, [#allocation21]
    $region73: #{forward.1} parent=1 // pred_fallthru
      _
    // Predicated region
    $region74: #{forward.1} parent=1 // pred_check
      _
    $region75: #{forward.1} parent=1 // pred_check_branch
      %197 = sbr.rel (0) target = $region77
    $region76: #{forward.1} parent=1 // pred_region
      _
    $region77: #{forward.1} parent=1 // pred_fallthru
      _
    // Predicated region
    $region78: #{forward.1} parent=1 // pred_check
      _
    $region79: #{forward.1} parent=1 // pred_check_branch
      %199 = sbr.rel (0) target = $region81
    $region80: #{forward.1} parent=1 // pred_region
      _
    $region81: #{forward.1} parent=1 // pred_fallthru
      _
    // Predicated region
    $region82: #{forward.1} parent=1 // pred_check
      _
    $region83: #{forward.1} parent=1 // pred_check_branch
      %201 = sbr.rel (0) target = $region85
    $region84: #{forward.1} parent=1 // pred_region
      _
    $region85: #{forward.1} parent=1 // pred_fallthru
      _
    // Predicated region
    $region86: #{forward.1} parent=1 // pred_check
      _
    $region87: #{forward.1} parent=1 // pred_check_branch
      %203 = sbr.rel (0) target = $region89
    $region88: #{forward.1} parent=1 // pred_region
      %s205 = ssub.s32 16, 16
      %206 = vsyncadd [#allocation24], %s205
      %s208 = sshll.u32 [#allocation23], 4
      %s209 = int_to_ptr.vmem [resolvable:$true] %s208
      %211 = dma.hbm_to_vmem [thread:$0]  %s21, 16, %s209, [#allocation24]
    $region89: #{forward.1} parent=1 // pred_fallthru
      _
    // Predicated region
    $region90: #{forward.1} parent=1 // pred_check
      _
    $region91: #{forward.1} parent=1 // pred_check_branch
      %213 = sbr.rel (0) target = $region93
    $region92: #{forward.1} parent=1 // pred_region
      _
    $region93: #{forward.1} parent=1 // pred_fallthru
      _
    // Predicated region
    $region94: #{forward.1} parent=1 // pred_check
      _
    $region95: #{forward.1} parent=1 // pred_check_branch
      %215 = sbr.rel (0) target = $region97
    $region96: #{forward.1} parent=1 // pred_region
      _
    $region97: #{forward.1} parent=1 // pred_fallthru
      _
    // Predicated region
    $region98: #{forward.1} parent=1 // pred_check
      _
    $region99: #{forward.1} parent=1 // pred_check_branch
      %217 = sbr.rel (0) target = $region101
    $region100: #{forward.1} parent=1 // pred_region
      _
    $region101: #{forward.1} parent=1 // pred_fallthru
      _
    // Predicated region
    $region102: #{forward.1} parent=1 // pred_check
      _
    $region103: #{forward.1} parent=1 // pred_check_branch
      %219 = sbr.rel (0) target = $region105
    $region104: #{forward.1} parent=1 // pred_region
      _
    $region105: #{forward.1} parent=1 // pred_fallthru
      _
    // Predicated region
    $region106: #{forward.1} parent=1 // pred_check
      _
    $region107: #{forward.1} parent=1 // pred_check_branch
      %221 = sbr.rel (0) target = $region109
    $region108: #{forward.1} parent=1 // pred_region
      %222 = dma.done [#allocation3], 6144
    $region109: #{forward.1} parent=1 // pred_fallthru
      _
    // Predicated region
    $region110: #{forward.1} parent=1 // pred_check
      _
    $region111: #{forward.1} parent=1 // pred_check_branch
      %224 = sbr.rel (0) target = $region113
    $region112: #{forward.1} parent=1 // pred_region
      %225 = dma.done [#allocation6], 16
    $region113: #{forward.1} parent=1 // pred_fallthru
      _
    // Predicated region
    $region114: #{forward.1} parent=1 // pred_check
      _
    $region115: #{forward.1} parent=1 // pred_check_branch
      %227 = sbr.rel (0) target = $region117
    $region116: #{forward.1} parent=1 // pred_region
      %228 = dma.done [#allocation6], 16
    $region117: #{forward.1} parent=1 // pred_fallthru
      _
    // Predicated region
    $region118: #{forward.1} parent=1 // pred_check
      _
    $region119: #{forward.1} parent=1 // pred_check_branch
      %230 = sbr.rel (0) target = $region121
    $region120: #{forward.1} parent=1 // pred_region
      %231 = dma.done [#allocation9], 1024
    $region121: #{forward.1} parent=1 // pred_fallthru
      _
    // Predicated region
    $region122: #{forward.1} parent=1 // pred_check
      _
    $region123: #{forward.1} parent=1 // pred_check_branch
      %233 = sbr.rel (0) target = $region125
    $region124: #{forward.1} parent=1 // pred_region
      %234 = dma.done [#allocation9], 1024
    $region125: #{forward.1} parent=1 // pred_fallthru
      _
    // Predicated region
    $region126: #{forward.1} parent=1 // pred_check
      _
    $region127: #{forward.1} parent=1 // pred_check_branch
      %236 = sbr.rel (0) target = $region129
    $region128: #{forward.1} parent=1 // pred_region
      %237 = dma.done [#allocation12], 1024
    $region129: #{forward.1} parent=1 // pred_fallthru
      _
    // Predicated region
    $region130: #{forward.1} parent=1 // pred_check
      _
    $region131: #{forward.1} parent=1 // pred_check_branch
      %239 = sbr.rel (0) target = $region133
    $region132: #{forward.1} parent=1 // pred_region
      %240 = dma.done [#allocation12], 32
    $region133: #{forward.1} parent=1 // pred_fallthru
      _
    // Predicated region
    $region134: #{forward.1} parent=1 // pred_check
      _
    $region135: #{forward.1} parent=1 // pred_check_branch
      %242 = sbr.rel (0) target = $region137
    $region136: #{forward.1} parent=1 // pred_region
      %243 = dma.done [#allocation15], 1024
    $region137: #{forward.1} parent=1 // pred_fallthru
      _
    // Predicated region
    $region138: #{forward.1} parent=1 // pred_check
      _
    $region139: #{forward.1} parent=1 // pred_check_branch
      %245 = sbr.rel (0) target = $region141
    $region140: #{forward.1} parent=1 // pred_region
      %246 = dma.done [#allocation15], 1024
    $region141: #{forward.1} parent=1 // pred_fallthru
      _
    // Predicated region
    $region142: #{forward.1} parent=1 // pred_check
      _
    $region143: #{forward.1} parent=1 // pred_check_branch
      %248 = sbr.rel (0) target = $region145
    $region144: #{forward.1} parent=1 // pred_region
      %249 = dma.done [#allocation18], 32
    $region145: #{forward.1} parent=1 // pred_fallthru
      _
    // Predicated region
    $region146: #{forward.1} parent=1 // pred_check
      _
    $region147: #{forward.1} parent=1 // pred_check_branch
      %251 = sbr.rel (0) target = $region149
    $region148: #{forward.1} parent=1 // pred_region
      %252 = dma.done [#allocation18], 1024
    $region149: #{forward.1} parent=1 // pred_fallthru
      _
    // Predicated region
    $region150: #{forward.1} parent=1 // pred_check
      _
    $region151: #{forward.1} parent=1 // pred_check_branch
      %254 = sbr.rel (0) target = $region153
    $region152: #{forward.1} parent=1 // pred_region
      %255 = dma.done [#allocation21], 1024
    $region153: #{forward.1} parent=1 // pred_fallthru
      _
    // Predicated region
    $region154: #{forward.1} parent=1 // pred_check
      _
    $region155: #{forward.1} parent=1 // pred_check_branch
      %257 = sbr.rel (0) target = $region157
    $region156: #{forward.1} parent=1 // pred_region
      %258 = dma.done [#allocation21], 32
    $region157: #{forward.1} parent=1 // pred_fallthru
      _
    // Predicated region
    $region158: #{forward.1} parent=1 // pred_check
      _
    $region159: #{forward.1} parent=1 // pred_check_branch
      %260 = sbr.rel (0) target = $region161
    $region160: #{forward.1} parent=1 // pred_region
      %261 = dma.done [#allocation24], 16
    $region161: #{forward.1} parent=1 // pred_fallthru
      _
    %v263 = vld [vmem:[#allocation2] sm:$0xff]
    %v264 = vld [vmem:[#allocation2 + $0x8] sm:$0xff]
    %v265 = vld [vmem:[#allocation2 + $0x10] sm:$0xff]
    %v266 = vld [vmem:[#allocation2 + $0x18] sm:$0xff]
    %v267 = vld [vmem:[#allocation2 + $0x20] sm:$0xff]
    %v268 = vld [vmem:[#allocation2 + $0x28] sm:$0xff]
    %v269 = vld [vmem:[#allocation2 + $0x30] sm:$0xff]
    %v270 = vld [vmem:[#allocation2 + $0x38] sm:$0xff]
    %v271 = vld [vmem:[#allocation2 + $0x40] sm:$0xff]
    %v272 = vld [vmem:[#allocation2 + $0x48] sm:$0xff]
    %v273 = vld [vmem:[#allocation2 + $0x50] sm:$0xff]
    %v274 = vld [vmem:[#allocation2 + $0x58] sm:$0xff]
    %v275 = vld [vmem:[#allocation2 + $0x60] sm:$0xff]
    %v276 = vld [vmem:[#allocation2 + $0x68] sm:$0xff]
    %v277 = vld [vmem:[#allocation2 + $0x70] sm:$0xff]
    %v278 = vld [vmem:[#allocation2 + $0x78] sm:$0xff]
    %v279 = vld [vmem:[#allocation2 + $0x80] sm:$0xff]
    %v280 = vld [vmem:[#allocation2 + $0x88] sm:$0xff]
    %v281 = vld [vmem:[#allocation2 + $0x90] sm:$0xff]
    %v282 = vld [vmem:[#allocation2 + $0x98] sm:$0xff]
    %v283 = vld [vmem:[#allocation2 + $0xa0] sm:$0xff]
    %v284 = vld [vmem:[#allocation2 + $0xa8] sm:$0xff]
    %v285 = vld [vmem:[#allocation2 + $0xb0] sm:$0xff]
    %v286 = vld [vmem:[#allocation2 + $0xb8] sm:$0xff]
    %v287 = vld [vmem:[#allocation2 + $0xc0] sm:$0xff]
    %v288 = vld [vmem:[#allocation2 + $0xc8] sm:$0xff]
    %v289 = vld [vmem:[#allocation2 + $0xd0] sm:$0xff]
    %v290 = vld [vmem:[#allocation2 + $0xd8] sm:$0xff]
    %v291 = vld [vmem:[#allocation2 + $0xe0] sm:$0xff]
    %v292 = vld [vmem:[#allocation2 + $0xe8] sm:$0xff]
    %v293 = vld [vmem:[#allocation2 + $0xf0] sm:$0xff]
    %v294 = vld [vmem:[#allocation2 + $0xf8] sm:$0xff]
    %v295 = vld [vmem:[#allocation2 + $0x100] sm:$0xff]
    %v296 = vld [vmem:[#allocation2 + $0x108] sm:$0xff]
    %v297 = vld [vmem:[#allocation2 + $0x110] sm:$0xff]
    %v298 = vld [vmem:[#allocation2 + $0x118] sm:$0xff]
    %v299 = vld [vmem:[#allocation2 + $0x120] sm:$0xff]
    %v300 = vld [vmem:[#allocation2 + $0x128] sm:$0xff]
    %v301 = vld [vmem:[#allocation2 + $0x130] sm:$0xff]
    %v302 = vld [vmem:[#allocation2 + $0x138] sm:$0xff]
    %v303 = vld [vmem:[#allocation2 + $0x140] sm:$0xff]
    %v304 = vld [vmem:[#allocation2 + $0x148] sm:$0xff]
    %v305 = vld [vmem:[#allocation2 + $0x150] sm:$0xff]
    %v306 = vld [vmem:[#allocation2 + $0x158] sm:$0xff]
    %v307 = vld [vmem:[#allocation2 + $0x160] sm:$0xff]
    %v308 = vld [vmem:[#allocation2 + $0x168] sm:$0xff]
    %v309 = vld [vmem:[#allocation2 + $0x170] sm:$0xff]
    %v310 = vld [vmem:[#allocation2 + $0x178] sm:$0xff]
    %vm327 = vcmask 1040384
    %v328 = vrot.slane %v263, 7
    %v329 = vrot.slane %v264, 7
    %v330 = vsel %vm327, %v328, %v329
    %v331 = vrot.slane %v269, 7
    %v332 = vrot.slane %v270, 7
    %v333 = vsel %vm327, %v331, %v332
    %v334 = vrot.slane %v275, 7
    %v335 = vrot.slane %v276, 7
    %v336 = vsel %vm327, %v334, %v335
    %v337 = vrot.slane %v281, 7
    %v338 = vrot.slane %v282, 7
    %v339 = vsel %vm327, %v337, %v338
    %v340 = vrot.slane %v287, 7
    %v341 = vrot.slane %v288, 7
    %v342 = vsel %vm327, %v340, %v341
    %v343 = vrot.slane %v293, 7
    %v344 = vrot.slane %v294, 7
    %v345 = vsel %vm327, %v343, %v344
    %v346 = vrot.slane %v299, 7
    %v347 = vrot.slane %v300, 7
    %v348 = vsel %vm327, %v346, %v347
    %v349 = vrot.slane %v305, 7
    %v350 = vrot.slane %v306, 7
    %v351 = vsel %vm327, %v349, %v350
    %v376 = vsel %vm327, 0.0, %v328
    %v377 = vsel %vm327, 0.0, %v331
    %v378 = vsel %vm327, 0.0, %v334
    %v379 = vsel %vm327, 0.0, %v337
    %v380 = vsel %vm327, 0.0, %v340
    %v381 = vsel %vm327, 0.0, %v343
    %v382 = vsel %vm327, 0.0, %v346
    %v383 = vsel %vm327, 0.0, %v349
    %v384 = vsel %vm327, %v329, 0.0
    %v385 = vsel %vm327, %v332, 0.0
    %v386 = vsel %vm327, %v335, 0.0
    %v387 = vsel %vm327, %v338, 0.0
    %v388 = vsel %vm327, %v341, 0.0
    %v389 = vsel %vm327, %v344, 0.0
    %v390 = vsel %vm327, %v347, 0.0
    %v391 = vsel %vm327, %v350, 0.0
    %v408 = vrot.slane %v265, 7
    %v409 = vrot.slane %v266, 7
    %v410 = vsel %vm327, %v408, %v409
    %v411 = vrot.slane %v271, 7
    %v412 = vrot.slane %v272, 7
    %v413 = vsel %vm327, %v411, %v412
    %v414 = vrot.slane %v277, 7
    %v415 = vrot.slane %v278, 7
    %v416 = vsel %vm327, %v414, %v415
    %v417 = vrot.slane %v283, 7
    %v418 = vrot.slane %v284, 7
    %v419 = vsel %vm327, %v417, %v418
    %v420 = vrot.slane %v289, 7
    %v421 = vrot.slane %v290, 7
    %v422 = vsel %vm327, %v420, %v421
    %v423 = vrot.slane %v295, 7
    %v424 = vrot.slane %v296, 7
    %v425 = vsel %vm327, %v423, %v424
    %v426 = vrot.slane %v301, 7
    %v427 = vrot.slane %v302, 7
    %v428 = vsel %vm327, %v426, %v427
    %v429 = vrot.slane %v307, 7
    %v430 = vrot.slane %v308, 7
    %v431 = vsel %vm327, %v429, %v430
    %v448 = vsel %vm327, 0.0, %v408
    %v449 = vsel %vm327, 0.0, %v411
    %v450 = vsel %vm327, 0.0, %v414
    %v451 = vsel %vm327, 0.0, %v417
    %v452 = vsel %vm327, 0.0, %v420
    %v453 = vsel %vm327, 0.0, %v423
    %v454 = vsel %vm327, 0.0, %v426
    %v455 = vsel %vm327, 0.0, %v429
    %v456 = vsel %vm327, %v409, 0.0
    %v457 = vsel %vm327, %v412, 0.0
    %v458 = vsel %vm327, %v415, 0.0
    %v459 = vsel %vm327, %v418, 0.0
    %v460 = vsel %vm327, %v421, 0.0
    %v461 = vsel %vm327, %v424, 0.0
    %v462 = vsel %vm327, %v427, 0.0
    %v463 = vsel %vm327, %v430, 0.0
    %v480 = vrot.slane %v267, 7
    %v481 = vrot.slane %v268, 7
    %v482 = vsel %vm327, %v480, %v481
    %v483 = vrot.slane %v273, 7
    %v484 = vrot.slane %v274, 7
    %v485 = vsel %vm327, %v483, %v484
    %v486 = vrot.slane %v279, 7
    %v487 = vrot.slane %v280, 7
    %v488 = vsel %vm327, %v486, %v487
    %v489 = vrot.slane %v285, 7
    %v490 = vrot.slane %v286, 7
    %v491 = vsel %vm327, %v489, %v490
    %v492 = vrot.slane %v291, 7
    %v493 = vrot.slane %v292, 7
    %v494 = vsel %vm327, %v492, %v493
    %v495 = vrot.slane %v297, 7
    %v496 = vrot.slane %v298, 7
    %v497 = vsel %vm327, %v495, %v496
    %v498 = vrot.slane %v303, 7
    %v499 = vrot.slane %v304, 7
    %v500 = vsel %vm327, %v498, %v499
    %v501 = vrot.slane %v309, 7
    %v502 = vrot.slane %v310, 7
    %v503 = vsel %vm327, %v501, %v502
    %v520 = vsel %vm327, 0.0, %v480
    %v521 = vsel %vm327, 0.0, %v483
    %v522 = vsel %vm327, 0.0, %v486
    %v523 = vsel %vm327, 0.0, %v489
    %v524 = vsel %vm327, 0.0, %v492
    %v525 = vsel %vm327, 0.0, %v495
    %v526 = vsel %vm327, 0.0, %v498
    %v527 = vsel %vm327, 0.0, %v501
    %v528 = vsel %vm327, %v481, 0.0
    %v529 = vsel %vm327, %v484, 0.0
    %v530 = vsel %vm327, %v487, 0.0
    %v531 = vsel %vm327, %v490, 0.0
    %v532 = vsel %vm327, %v493, 0.0
    %v533 = vsel %vm327, %v496, 0.0
    %v534 = vsel %vm327, %v499, 0.0
    %v535 = vsel %vm327, %v502, 0.0
    %vm552 = vcmask 1046528
    %v553 = vrot.slane %v376, 1
    %v554 = vrot.slane %v330, 1
    %v555 = vsel %vm552, %v553, %v554
    %v556 = vrot.slane %v384, 1
    %v557 = vsel %vm552, %v554, %v556
    %v558 = vrot.slane %v377, 1
    %v559 = vrot.slane %v333, 1
    %v560 = vsel %vm552, %v558, %v559
    %v561 = vrot.slane %v385, 1
    %v562 = vsel %vm552, %v559, %v561
    %v563 = vrot.slane %v378, 1
    %v564 = vrot.slane %v336, 1
    %v565 = vsel %vm552, %v563, %v564
    %v566 = vrot.slane %v386, 1
    %v567 = vsel %vm552, %v564, %v566
    %v568 = vrot.slane %v379, 1
    %v569 = vrot.slane %v339, 1
    %v570 = vsel %vm552, %v568, %v569
    %v571 = vrot.slane %v387, 1
    %v572 = vsel %vm552, %v569, %v571
    %v573 = vrot.slane %v380, 1
    %v574 = vrot.slane %v342, 1
    %v575 = vsel %vm552, %v573, %v574
    %v576 = vrot.slane %v388, 1
    %v577 = vsel %vm552, %v574, %v576
    %v578 = vrot.slane %v381, 1
    %v579 = vrot.slane %v345, 1
    %v580 = vsel %vm552, %v578, %v579
    %v581 = vrot.slane %v389, 1
    %v582 = vsel %vm552, %v579, %v581
    %v583 = vrot.slane %v382, 1
    %v584 = vrot.slane %v348, 1
    %v585 = vsel %vm552, %v583, %v584
    %v586 = vrot.slane %v390, 1
    %v587 = vsel %vm552, %v584, %v586
    %v588 = vrot.slane %v383, 1
    %v589 = vrot.slane %v351, 1
    %v590 = vsel %vm552, %v588, %v589
    %v591 = vrot.slane %v391, 1
    %v592 = vsel %vm552, %v589, %v591
    %593 = vrot.lane.b32.xlu0 %v555, 16
    %v594 = vpop.permute.xlu0 %593
    %595 = vrot.lane.b32.xlu0 %v557, 16
    %v596 = vpop.permute.xlu0 %595
    %597 = vrot.lane.b32.xlu0 %v560, 16
    %v598 = vpop.permute.xlu0 %597
    %599 = vrot.lane.b32.xlu0 %v562, 16
    %v600 = vpop.permute.xlu0 %599
    %601 = vrot.lane.b32.xlu0 %v565, 16
    %v602 = vpop.permute.xlu0 %601
    %603 = vrot.lane.b32.xlu0 %v567, 16
    %v604 = vpop.permute.xlu0 %603
    %605 = vrot.lane.b32.xlu0 %v570, 16
    %v606 = vpop.permute.xlu0 %605
    %607 = vrot.lane.b32.xlu0 %v572, 16
    %v608 = vpop.permute.xlu0 %607
    %609 = vrot.lane.b32.xlu0 %v575, 16
    %v610 = vpop.permute.xlu0 %609
    %611 = vrot.lane.b32.xlu0 %v577, 16
    %v612 = vpop.permute.xlu0 %611
    %613 = vrot.lane.b32.xlu0 %v580, 16
    %v614 = vpop.permute.xlu0 %613
    %615 = vrot.lane.b32.xlu0 %v582, 16
    %v616 = vpop.permute.xlu0 %615
    %617 = vrot.lane.b32.xlu0 %v585, 16
    %v618 = vpop.permute.xlu0 %617
    %619 = vrot.lane.b32.xlu0 %v587, 16
    %v620 = vpop.permute.xlu0 %619
    %621 = vrot.lane.b32.xlu0 %v590, 16
    %v622 = vpop.permute.xlu0 %621
    %623 = vrot.lane.b32.xlu0 %v592, 16
    %v624 = vpop.permute.xlu0 %623
    %vm641 = vcmask 1045504
    %v642 = vrot.slane %v376, 2
    %v643 = vrot.slane %v330, 2
    %v644 = vsel %vm641, %v642, %v643
    %v645 = vrot.slane %v384, 2
    %v646 = vsel %vm641, %v643, %v645
    %v647 = vrot.slane %v377, 2
    %v648 = vrot.slane %v333, 2
    %v649 = vsel %vm641, %v647, %v648
    %v650 = vrot.slane %v385, 2
    %v651 = vsel %vm641, %v648, %v650
    %v652 = vrot.slane %v378, 2
    %v653 = vrot.slane %v336, 2
    %v654 = vsel %vm641, %v652, %v653
    %v655 = vrot.slane %v386, 2
    %v656 = vsel %vm641, %v653, %v655
    %v657 = vrot.slane %v379, 2
    %v658 = vrot.slane %v339, 2
    %v659 = vsel %vm641, %v657, %v658
    %v660 = vrot.slane %v387, 2
    %v661 = vsel %vm641, %v658, %v660
    %v662 = vrot.slane %v380, 2
    %v663 = vrot.slane %v342, 2
    %v664 = vsel %vm641, %v662, %v663
    %v665 = vrot.slane %v388, 2
    %v666 = vsel %vm641, %v663, %v665
    %v667 = vrot.slane %v381, 2
    %v668 = vrot.slane %v345, 2
    %v669 = vsel %vm641, %v667, %v668
    %v670 = vrot.slane %v389, 2
    %v671 = vsel %vm641, %v668, %v670
    %v672 = vrot.slane %v382, 2
    %v673 = vrot.slane %v348, 2
    %v674 = vsel %vm641, %v672, %v673
    %v675 = vrot.slane %v390, 2
    %v676 = vsel %vm641, %v673, %v675
    %v677 = vrot.slane %v383, 2
    %v678 = vrot.slane %v351, 2
    %v679 = vsel %vm641, %v677, %v678
    %v680 = vrot.slane %v391, 2
    %v681 = vsel %vm641, %v678, %v680
    %682 = vrot.lane.b32.xlu0 %v644, 32
    %v683 = vpop.permute.xlu0 %682
    %684 = vrot.lane.b32.xlu0 %v646, 32
    %v685 = vpop.permute.xlu0 %684
    %686 = vrot.lane.b32.xlu0 %v649, 32
    %v687 = vpop.permute.xlu0 %686
    %688 = vrot.lane.b32.xlu0 %v651, 32
    %v689 = vpop.permute.xlu0 %688
    %690 = vrot.lane.b32.xlu0 %v654, 32
    %v691 = vpop.permute.xlu0 %690
    %692 = vrot.lane.b32.xlu0 %v656, 32
    %v693 = vpop.permute.xlu0 %692
    %694 = vrot.lane.b32.xlu0 %v659, 32
    %v695 = vpop.permute.xlu0 %694
    %696 = vrot.lane.b32.xlu0 %v661, 32
    %v697 = vpop.permute.xlu0 %696
    %698 = vrot.lane.b32.xlu0 %v664, 32
    %v699 = vpop.permute.xlu0 %698
    %700 = vrot.lane.b32.xlu0 %v666, 32
    %v701 = vpop.permute.xlu0 %700
    %702 = vrot.lane.b32.xlu0 %v669, 32
    %v703 = vpop.permute.xlu0 %702
    %704 = vrot.lane.b32.xlu0 %v671, 32
    %v705 = vpop.permute.xlu0 %704
    %706 = vrot.lane.b32.xlu0 %v674, 32
    %v707 = vpop.permute.xlu0 %706
    %708 = vrot.lane.b32.xlu0 %v676, 32
    %v709 = vpop.permute.xlu0 %708
    %710 = vrot.lane.b32.xlu0 %v679, 32
    %v711 = vpop.permute.xlu0 %710
    %712 = vrot.lane.b32.xlu0 %v681, 32
    %v713 = vpop.permute.xlu0 %712
    %738 = vrot.lane.b32.xlu0 %v448, 48
    %v739 = vpop.permute.xlu0 %738
    %740 = vrot.lane.b32.xlu0 %v410, 48
    %v741 = vpop.permute.xlu0 %740
    %742 = vrot.lane.b32.xlu0 %v449, 48
    %v743 = vpop.permute.xlu0 %742
    %744 = vrot.lane.b32.xlu0 %v413, 48
    %v745 = vpop.permute.xlu0 %744
    %746 = vrot.lane.b32.xlu0 %v450, 48
    %v747 = vpop.permute.xlu0 %746
    %748 = vrot.lane.b32.xlu0 %v416, 48
    %v749 = vpop.permute.xlu0 %748
    %750 = vrot.lane.b32.xlu0 %v451, 48
    %v751 = vpop.permute.xlu0 %750
    %752 = vrot.lane.b32.xlu0 %v419, 48
    %v753 = vpop.permute.xlu0 %752
    %754 = vrot.lane.b32.xlu0 %v452, 48
    %v755 = vpop.permute.xlu0 %754
    %756 = vrot.lane.b32.xlu0 %v422, 48
    %v757 = vpop.permute.xlu0 %756
    %758 = vrot.lane.b32.xlu0 %v453, 48
    %v759 = vpop.permute.xlu0 %758
    %760 = vrot.lane.b32.xlu0 %v425, 48
    %v761 = vpop.permute.xlu0 %760
    %762 = vrot.lane.b32.xlu0 %v454, 48
    %v763 = vpop.permute.xlu0 %762
    %764 = vrot.lane.b32.xlu0 %v428, 48
    %v765 = vpop.permute.xlu0 %764
    %766 = vrot.lane.b32.xlu0 %v455, 48
    %v767 = vpop.permute.xlu0 %766
    %768 = vrot.lane.b32.xlu0 %v431, 48
    %v769 = vpop.permute.xlu0 %768
    %v794 = vrot.slane %v448, 1
    %v795 = vrot.slane %v410, 1
    %v796 = vsel %vm552, %v794, %v795
    %v797 = vrot.slane %v456, 1
    %v798 = vsel %vm552, %v795, %v797
    %v799 = vrot.slane %v449, 1
    %v800 = vrot.slane %v413, 1
    %v801 = vsel %vm552, %v799, %v800
    %v802 = vrot.slane %v457, 1
    %v803 = vsel %vm552, %v800, %v802
    %v804 = vrot.slane %v450, 1
    %v805 = vrot.slane %v416, 1
    %v806 = vsel %vm552, %v804, %v805
    %v807 = vrot.slane %v458, 1
    %v808 = vsel %vm552, %v805, %v807
    %v809 = vrot.slane %v451, 1
    %v810 = vrot.slane %v419, 1
    %v811 = vsel %vm552, %v809, %v810
    %v812 = vrot.slane %v459, 1
    %v813 = vsel %vm552, %v810, %v812
    %v814 = vrot.slane %v452, 1
    %v815 = vrot.slane %v422, 1
    %v816 = vsel %vm552, %v814, %v815
    %v817 = vrot.slane %v460, 1
    %v818 = vsel %vm552, %v815, %v817
    %v819 = vrot.slane %v453, 1
    %v820 = vrot.slane %v425, 1
    %v821 = vsel %vm552, %v819, %v820
    %v822 = vrot.slane %v461, 1
    %v823 = vsel %vm552, %v820, %v822
    %v824 = vrot.slane %v454, 1
    %v825 = vrot.slane %v428, 1
    %v826 = vsel %vm552, %v824, %v825
    %v827 = vrot.slane %v462, 1
    %v828 = vsel %vm552, %v825, %v827
    %v829 = vrot.slane %v455, 1
    %v830 = vrot.slane %v431, 1
    %v831 = vsel %vm552, %v829, %v830
    %v832 = vrot.slane %v463, 1
    %v833 = vsel %vm552, %v830, %v832
    %834 = vrot.lane.b32.xlu0 %v796, 64
    %v835 = vpop.permute.xlu0 %834
    %836 = vrot.lane.b32.xlu0 %v798, 64
    %v837 = vpop.permute.xlu0 %836
    %838 = vrot.lane.b32.xlu0 %v801, 64
    %v839 = vpop.permute.xlu0 %838
    %840 = vrot.lane.b32.xlu0 %v803, 64
    %v841 = vpop.permute.xlu0 %840
    %842 = vrot.lane.b32.xlu0 %v806, 64
    %v843 = vpop.permute.xlu0 %842
    %844 = vrot.lane.b32.xlu0 %v808, 64
    %v845 = vpop.permute.xlu0 %844
    %846 = vrot.lane.b32.xlu0 %v811, 64
    %v847 = vpop.permute.xlu0 %846
    %848 = vrot.lane.b32.xlu0 %v813, 64
    %v849 = vpop.permute.xlu0 %848
    %850 = vrot.lane.b32.xlu0 %v816, 64
    %v851 = vpop.permute.xlu0 %850
    %852 = vrot.lane.b32.xlu0 %v818, 64
    %v853 = vpop.permute.xlu0 %852
    %854 = vrot.lane.b32.xlu0 %v821, 64
    %v855 = vpop.permute.xlu0 %854
    %856 = vrot.lane.b32.xlu0 %v823, 64
    %v857 = vpop.permute.xlu0 %856
    %858 = vrot.lane.b32.xlu0 %v826, 64
    %v859 = vpop.permute.xlu0 %858
    %860 = vrot.lane.b32.xlu0 %v828, 64
    %v861 = vpop.permute.xlu0 %860
    %862 = vrot.lane.b32.xlu0 %v831, 64
    %v863 = vpop.permute.xlu0 %862
    %864 = vrot.lane.b32.xlu0 %v833, 64
    %v865 = vpop.permute.xlu0 %864
    %v882 = vrot.slane %v448, 2
    %v883 = vrot.slane %v410, 2
    %v884 = vsel %vm641, %v882, %v883
    %v885 = vrot.slane %v456, 2
    %v886 = vsel %vm641, %v883, %v885
    %v887 = vrot.slane %v449, 2
    %v888 = vrot.slane %v413, 2
    %v889 = vsel %vm641, %v887, %v888
    %v890 = vrot.slane %v457, 2
    %v891 = vsel %vm641, %v888, %v890
    %v892 = vrot.slane %v450, 2
    %v893 = vrot.slane %v416, 2
    %v894 = vsel %vm641, %v892, %v893
    %v895 = vrot.slane %v458, 2
    %v896 = vsel %vm641, %v893, %v895
    %v897 = vrot.slane %v451, 2
    %v898 = vrot.slane %v419, 2
    %v899 = vsel %vm641, %v897, %v898
    %v900 = vrot.slane %v459, 2
    %v901 = vsel %vm641, %v898, %v900
    %v902 = vrot.slane %v452, 2
    %v903 = vrot.slane %v422, 2
    %v904 = vsel %vm641, %v902, %v903
    %v905 = vrot.slane %v460, 2
    %v906 = vsel %vm641, %v903, %v905
    %v907 = vrot.slane %v453, 2
    %v908 = vrot.slane %v425, 2
    %v909 = vsel %vm641, %v907, %v908
    %v910 = vrot.slane %v461, 2
    %v911 = vsel %vm641, %v908, %v910
    %v912 = vrot.slane %v454, 2
    %v913 = vrot.slane %v428, 2
    %v914 = vsel %vm641, %v912, %v913
    %v915 = vrot.slane %v462, 2
    %v916 = vsel %vm641, %v913, %v915
    %v917 = vrot.slane %v455, 2
    %v918 = vrot.slane %v431, 2
    %v919 = vsel %vm641, %v917, %v918
    %v920 = vrot.slane %v463, 2
    %v921 = vsel %vm641, %v918, %v920
    %922 = vrot.lane.b32.xlu0 %v884, 80
    %v923 = vpop.permute.xlu0 %922
    %924 = vrot.lane.b32.xlu0 %v886, 80
    %v925 = vpop.permute.xlu0 %924
    %926 = vrot.lane.b32.xlu0 %v889, 80
    %v927 = vpop.permute.xlu0 %926
    %928 = vrot.lane.b32.xlu0 %v891, 80
    %v929 = vpop.permute.xlu0 %928
    %930 = vrot.lane.b32.xlu0 %v894, 80
    %v931 = vpop.permute.xlu0 %930
    %932 = vrot.lane.b32.xlu0 %v896, 80
    %v933 = vpop.permute.xlu0 %932
    %934 = vrot.lane.b32.xlu0 %v899, 80
    %v935 = vpop.permute.xlu0 %934
    %936 = vrot.lane.b32.xlu0 %v901, 80
    %v937 = vpop.permute.xlu0 %936
    %938 = vrot.lane.b32.xlu0 %v904, 80
    %v939 = vpop.permute.xlu0 %938
    %940 = vrot.lane.b32.xlu0 %v906, 80
    %v941 = vpop.permute.xlu0 %940
    %942 = vrot.lane.b32.xlu0 %v909, 80
    %v943 = vpop.permute.xlu0 %942
    %944 = vrot.lane.b32.xlu0 %v911, 80
    %v945 = vpop.permute.xlu0 %944
    %946 = vrot.lane.b32.xlu0 %v914, 80
    %v947 = vpop.permute.xlu0 %946
    %948 = vrot.lane.b32.xlu0 %v916, 80
    %v949 = vpop.permute.xlu0 %948
    %950 = vrot.lane.b32.xlu0 %v919, 80
    %v951 = vpop.permute.xlu0 %950
    %952 = vrot.lane.b32.xlu0 %v921, 80
    %v953 = vpop.permute.xlu0 %952
    %978 = vrot.lane.b32.xlu0 %v520, 96
    %v979 = vpop.permute.xlu0 %978
    %980 = vrot.lane.b32.xlu0 %v482, 96
    %v981 = vpop.permute.xlu0 %980
    %982 = vrot.lane.b32.xlu0 %v521, 96
    %v983 = vpop.permute.xlu0 %982
    %984 = vrot.lane.b32.xlu0 %v485, 96
    %v985 = vpop.permute.xlu0 %984
    %986 = vrot.lane.b32.xlu0 %v522, 96
    %v987 = vpop.permute.xlu0 %986
    %988 = vrot.lane.b32.xlu0 %v488, 96
    %v989 = vpop.permute.xlu0 %988
    %990 = vrot.lane.b32.xlu0 %v523, 96
    %v991 = vpop.permute.xlu0 %990
    %992 = vrot.lane.b32.xlu0 %v491, 96
    %v993 = vpop.permute.xlu0 %992
    %994 = vrot.lane.b32.xlu0 %v524, 96
    %v995 = vpop.permute.xlu0 %994
    %996 = vrot.lane.b32.xlu0 %v494, 96
    %v997 = vpop.permute.xlu0 %996
    %998 = vrot.lane.b32.xlu0 %v525, 96
    %v999 = vpop.permute.xlu0 %998
    %1000 = vrot.lane.b32.xlu0 %v497, 96
    %v1001 = vpop.permute.xlu0 %1000
    %1002 = vrot.lane.b32.xlu0 %v526, 96
    %v1003 = vpop.permute.xlu0 %1002
    %1004 = vrot.lane.b32.xlu0 %v500, 96
    %v1005 = vpop.permute.xlu0 %1004
    %1006 = vrot.lane.b32.xlu0 %v527, 96
    %v1007 = vpop.permute.xlu0 %1006
    %1008 = vrot.lane.b32.xlu0 %v503, 96
    %v1009 = vpop.permute.xlu0 %1008
    %v1034 = vrot.slane %v520, 1
    %v1035 = vrot.slane %v482, 1
    %v1036 = vsel %vm552, %v1034, %v1035
    %v1037 = vrot.slane %v528, 1
    %v1038 = vsel %vm552, %v1035, %v1037
    %v1039 = vrot.slane %v521, 1
    %v1040 = vrot.slane %v485, 1
    %v1041 = vsel %vm552, %v1039, %v1040
    %v1042 = vrot.slane %v529, 1
    %v1043 = vsel %vm552, %v1040, %v1042
    %v1044 = vrot.slane %v522, 1
    %v1045 = vrot.slane %v488, 1
    %v1046 = vsel %vm552, %v1044, %v1045
    %v1047 = vrot.slane %v530, 1
    %v1048 = vsel %vm552, %v1045, %v1047
    %v1049 = vrot.slane %v523, 1
    %v1050 = vrot.slane %v491, 1
    %v1051 = vsel %vm552, %v1049, %v1050
    %v1052 = vrot.slane %v531, 1
    %v1053 = vsel %vm552, %v1050, %v1052
    %v1054 = vrot.slane %v524, 1
    %v1055 = vrot.slane %v494, 1
    %v1056 = vsel %vm552, %v1054, %v1055
    %v1057 = vrot.slane %v532, 1
    %v1058 = vsel %vm552, %v1055, %v1057
    %v1059 = vrot.slane %v525, 1
    %v1060 = vrot.slane %v497, 1
    %v1061 = vsel %vm552, %v1059, %v1060
    %v1062 = vrot.slane %v533, 1
    %v1063 = vsel %vm552, %v1060, %v1062
    %v1064 = vrot.slane %v526, 1
    %v1065 = vrot.slane %v500, 1
    %v1066 = vsel %vm552, %v1064, %v1065
    %v1067 = vrot.slane %v534, 1
    %v1068 = vsel %vm552, %v1065, %v1067
    %v1069 = vrot.slane %v527, 1
    %v1070 = vrot.slane %v503, 1
    %v1071 = vsel %vm552, %v1069, %v1070
    %v1072 = vrot.slane %v535, 1
    %v1073 = vsel %vm552, %v1070, %v1072
    %1074 = vrot.lane.b32.xlu0 %v1036, 112
    %v1075 = vpop.permute.xlu0 %1074
    %1076 = vrot.lane.b32.xlu0 %v1038, 112
    %v1077 = vpop.permute.xlu0 %1076
    %1078 = vrot.lane.b32.xlu0 %v1041, 112
    %v1079 = vpop.permute.xlu0 %1078
    %1080 = vrot.lane.b32.xlu0 %v1043, 112
    %v1081 = vpop.permute.xlu0 %1080
    %1082 = vrot.lane.b32.xlu0 %v1046, 112
    %v1083 = vpop.permute.xlu0 %1082
    %1084 = vrot.lane.b32.xlu0 %v1048, 112
    %v1085 = vpop.permute.xlu0 %1084
    %1086 = vrot.lane.b32.xlu0 %v1051, 112
    %v1087 = vpop.permute.xlu0 %1086
    %1088 = vrot.lane.b32.xlu0 %v1053, 112
    %v1089 = vpop.permute.xlu0 %1088
    %1090 = vrot.lane.b32.xlu0 %v1056, 112
    %v1091 = vpop.permute.xlu0 %1090
    %1092 = vrot.lane.b32.xlu0 %v1058, 112
    %v1093 = vpop.permute.xlu0 %1092
    %1094 = vrot.lane.b32.xlu0 %v1061, 112
    %v1095 = vpop.permute.xlu0 %1094
    %1096 = vrot.lane.b32.xlu0 %v1063, 112
    %v1097 = vpop.permute.xlu0 %1096
    %1098 = vrot.lane.b32.xlu0 %v1066, 112
    %v1099 = vpop.permute.xlu0 %1098
    %1100 = vrot.lane.b32.xlu0 %v1068, 112
    %v1101 = vpop.permute.xlu0 %1100
    %1102 = vrot.lane.b32.xlu0 %v1071, 112
    %v1103 = vpop.permute.xlu0 %1102
    %1104 = vrot.lane.b32.xlu0 %v1073, 112
    %v1105 = vpop.permute.xlu0 %1104
    %v1122 = vrot.slane %v520, 2
    %v1123 = vrot.slane %v482, 2
    %v1124 = vsel %vm641, %v1122, %v1123
    %v1125 = vrot.slane %v528, 2
    %v1126 = vsel %vm641, %v1123, %v1125
    %v1127 = vrot.slane %v521, 2
    %v1128 = vrot.slane %v485, 2
    %v1129 = vsel %vm641, %v1127, %v1128
    %v1130 = vrot.slane %v529, 2
    %v1131 = vsel %vm641, %v1128, %v1130
    %v1132 = vrot.slane %v522, 2
    %v1133 = vrot.slane %v488, 2
    %v1134 = vsel %vm641, %v1132, %v1133
    %v1135 = vrot.slane %v530, 2
    %v1136 = vsel %vm641, %v1133, %v1135
    %v1137 = vrot.slane %v523, 2
    %v1138 = vrot.slane %v491, 2
    %v1139 = vsel %vm641, %v1137, %v1138
    %v1140 = vrot.slane %v531, 2
    %v1141 = vsel %vm641, %v1138, %v1140
    %v1142 = vrot.slane %v524, 2
    %v1143 = vrot.slane %v494, 2
    %v1144 = vsel %vm641, %v1142, %v1143
    %v1145 = vrot.slane %v532, 2
    %v1146 = vsel %vm641, %v1143, %v1145
    %v1147 = vrot.slane %v525, 2
    %v1148 = vrot.slane %v497, 2
    %v1149 = vsel %vm641, %v1147, %v1148
    %v1150 = vrot.slane %v533, 2
    %v1151 = vsel %vm641, %v1148, %v1150
    %v1152 = vrot.slane %v526, 2
    %v1153 = vrot.slane %v500, 2
    %v1154 = vsel %vm641, %v1152, %v1153
    %v1155 = vrot.slane %v534, 2
    %v1156 = vsel %vm641, %v1153, %v1155
    %v1157 = vrot.slane %v527, 2
    %v1158 = vrot.slane %v503, 2
    %v1159 = vsel %vm641, %v1157, %v1158
    %v1160 = vrot.slane %v535, 2
    %v1161 = vsel %vm641, %v1158, %v1160
    %vm1178 = vcmask 130048
    %v1179 = vsel %vm1178, %v376, %v594
    %v1180 = vsel %vm1178, %v330, %v596
    %v1181 = vsel %vm1178, %v377, %v598
    %v1182 = vsel %vm1178, %v333, %v600
    %v1183 = vsel %vm1178, %v378, %v602
    %v1184 = vsel %vm1178, %v336, %v604
    %v1185 = vsel %vm1178, %v379, %v606
    %v1186 = vsel %vm1178, %v339, %v608
    %v1187 = vsel %vm1178, %v380, %v610
    %v1188 = vsel %vm1178, %v342, %v612
    %v1189 = vsel %vm1178, %v381, %v614
    %v1190 = vsel %vm1178, %v345, %v616
    %v1191 = vsel %vm1178, %v382, %v618
    %v1192 = vsel %vm1178, %v348, %v620
    %v1193 = vsel %vm1178, %v383, %v622
    %v1194 = vsel %vm1178, %v351, %v624
    %vm1195 = vcmask 261120
    %v1196 = vsel %vm1195, %v1179, %v683
    %v1197 = vsel %vm1195, %v1180, %v685
    %v1198 = vsel %vm1195, %v1181, %v687
    %v1199 = vsel %vm1195, %v1182, %v689
    %v1200 = vsel %vm1195, %v1183, %v691
    %v1201 = vsel %vm1195, %v1184, %v693
    %v1202 = vsel %vm1195, %v1185, %v695
    %v1203 = vsel %vm1195, %v1186, %v697
    %v1204 = vsel %vm1195, %v1187, %v699
    %v1205 = vsel %vm1195, %v1188, %v701
    %v1206 = vsel %vm1195, %v1189, %v703
    %v1207 = vsel %vm1195, %v1190, %v705
    %v1208 = vsel %vm1195, %v1191, %v707
    %v1209 = vsel %vm1195, %v1192, %v709
    %v1210 = vsel %vm1195, %v1193, %v711
    %v1211 = vsel %vm1195, %v1194, %v713
    %vm1212 = vcmask 392192
    %v1213 = vsel %vm1212, %v1196, %v739
    %v1214 = vsel %vm1212, %v1197, %v741
    %v1215 = vsel %vm1212, %v1198, %v743
    %v1216 = vsel %vm1212, %v1199, %v745
    %v1217 = vsel %vm1212, %v1200, %v747
    %v1218 = vsel %vm1212, %v1201, %v749
    %v1219 = vsel %vm1212, %v1202, %v751
    %v1220 = vsel %vm1212, %v1203, %v753
    %v1221 = vsel %vm1212, %v1204, %v755
    %v1222 = vsel %vm1212, %v1205, %v757
    %v1223 = vsel %vm1212, %v1206, %v759
    %v1224 = vsel %vm1212, %v1207, %v761
    %v1225 = vsel %vm1212, %v1208, %v763
    %v1226 = vsel %vm1212, %v1209, %v765
    %v1227 = vsel %vm1212, %v1210, %v767
    %v1228 = vsel %vm1212, %v1211, %v769
    %vm1229 = vcmask 523264
    %v1230 = vsel %vm1229, %v1213, %v835
    %v1231 = vsel %vm1229, %v1214, %v837
    %v1232 = vsel %vm1229, %v1215, %v839
    %v1233 = vsel %vm1229, %v1216, %v841
    %v1234 = vsel %vm1229, %v1217, %v843
    %v1235 = vsel %vm1229, %v1218, %v845
    %v1236 = vsel %vm1229, %v1219, %v847
    %v1237 = vsel %vm1229, %v1220, %v849
    %v1238 = vsel %vm1229, %v1221, %v851
    %v1239 = vsel %vm1229, %v1222, %v853
    %v1240 = vsel %vm1229, %v1223, %v855
    %v1241 = vsel %vm1229, %v1224, %v857
    %v1242 = vsel %vm1229, %v1225, %v859
    %v1243 = vsel %vm1229, %v1226, %v861
    %v1244 = vsel %vm1229, %v1227, %v863
    %v1245 = vsel %vm1229, %v1228, %v865
    %vm1246 = vcmask 654336
    %v1247 = vsel %vm1246, %v1230, %v923
    %v1248 = vsel %vm1246, %v1231, %v925
    %v1249 = vsel %vm1246, %v1232, %v927
    %v1250 = vsel %vm1246, %v1233, %v929
    %v1251 = vsel %vm1246, %v1234, %v931
    %v1252 = vsel %vm1246, %v1235, %v933
    %v1253 = vsel %vm1246, %v1236, %v935
    %v1254 = vsel %vm1246, %v1237, %v937
    %v1255 = vsel %vm1246, %v1238, %v939
    %v1256 = vsel %vm1246, %v1239, %v941
    %v1257 = vsel %vm1246, %v1240, %v943
    %v1258 = vsel %vm1246, %v1241, %v945
    %v1259 = vsel %vm1246, %v1242, %v947
    %v1260 = vsel %vm1246, %v1243, %v949
    %v1261 = vsel %vm1246, %v1244, %v951
    %v1262 = vsel %vm1246, %v1245, %v953
    %vm1263 = vcmask 785408
    %v1264 = vsel %vm1263, %v1247, %v979
    %v1265 = vsel %vm1263, %v1248, %v981
    %v1266 = vsel %vm1263, %v1249, %v983
    %v1267 = vsel %vm1263, %v1250, %v985
    %v1268 = vsel %vm1263, %v1251, %v987
    %v1269 = vsel %vm1263, %v1252, %v989
    %v1270 = vsel %vm1263, %v1253, %v991
    %v1271 = vsel %vm1263, %v1254, %v993
    %v1272 = vsel %vm1263, %v1255, %v995
    %v1273 = vsel %vm1263, %v1256, %v997
    %v1274 = vsel %vm1263, %v1257, %v999
    %v1275 = vsel %vm1263, %v1258, %v1001
    %v1276 = vsel %vm1263, %v1259, %v1003
    %v1277 = vsel %vm1263, %v1260, %v1005
    %v1278 = vsel %vm1263, %v1261, %v1007
    %v1279 = vsel %vm1263, %v1262, %v1009
    %vm1280 = vcmask 916480
    %v1281 = vsel %vm1280, %v1264, %v1075
    %v1282 = vsel %vm1280, %v1265, %v1077
    %v1283 = vsel %vm1280, %v1266, %v1079
    %v1284 = vsel %vm1280, %v1267, %v1081
    %v1285 = vsel %vm1280, %v1268, %v1083
    %v1286 = vsel %vm1280, %v1269, %v1085
    %v1287 = vsel %vm1280, %v1270, %v1087
    %v1288 = vsel %vm1280, %v1271, %v1089
    %v1289 = vsel %vm1280, %v1272, %v1091
    %v1290 = vsel %vm1280, %v1273, %v1093
    %v1291 = vsel %vm1280, %v1274, %v1095
    %v1292 = vsel %vm1280, %v1275, %v1097
    %v1293 = vsel %vm1280, %v1276, %v1099
    %v1294 = vsel %vm1280, %v1277, %v1101
    %v1295 = vsel %vm1280, %v1278, %v1103
    %v1296 = vsel %vm1280, %v1279, %v1105
    %v1297 = vpack.c.bf16 %v1282, %v1281
    %v1298 = vpack.c.bf16 %v1126, %v1124
    %v1299 = vpack.c.bf16 %v1284, %v1283
    %v1300 = vpack.c.bf16 %v1131, %v1129
    %v1301 = vpack.c.bf16 %v1286, %v1285
    %v1302 = vpack.c.bf16 %v1136, %v1134
    %v1303 = vpack.c.bf16 %v1288, %v1287
    %v1304 = vpack.c.bf16 %v1141, %v1139
    %v1305 = vpack.c.bf16 %v1290, %v1289
    %v1306 = vpack.c.bf16 %v1146, %v1144
    %v1307 = vpack.c.bf16 %v1292, %v1291
    %v1308 = vpack.c.bf16 %v1151, %v1149
    %v1309 = vpack.c.bf16 %v1294, %v1293
    %v1310 = vpack.c.bf16 %v1156, %v1154
    %v1311 = vpack.c.bf16 %v1296, %v1295
    %v1312 = vpack.c.bf16 %v1161, %v1159
    %v1313 = vld [vmem:[%s2] sm:$0xf]
    %v1314 = vld [vmem:[%s2 + $0x4] sm:$0xf]
    %v1315 = vld [vmem:[%s2 + $0x8] sm:$0xf]
    %v1316 = vld [vmem:[%s2 + $0xc] sm:$0xf]
    %v1317 = vld [vmem:[%s2 + $0x10] sm:$0xf]
    %v1318 = vld [vmem:[%s2 + $0x14] sm:$0xf]
    %v1319 = vld [vmem:[%s2 + $0x18] sm:$0xf]
    %v1320 = vld [vmem:[%s2 + $0x1c] sm:$0xf]
    %v1321 = vld [vmem:[%s2 + $0x20] sm:$0xf]
    %v1322 = vld [vmem:[%s2 + $0x24] sm:$0xf]
    %v1323 = vld [vmem:[%s2 + $0x28] sm:$0xf]
    %v1324 = vld [vmem:[%s2 + $0x2c] sm:$0xf]
    %v1325 = vld [vmem:[%s2 + $0x30] sm:$0xf]
    %v1326 = vld [vmem:[%s2 + $0x34] sm:$0xf]
    %v1327 = vld [vmem:[%s2 + $0x38] sm:$0xf]
    %v1328 = vld [vmem:[%s2 + $0x3c] sm:$0xf]
    %v1329 = vld [vmem:[%s2 + $0x40] sm:$0xf]
    %v1330 = vld [vmem:[%s2 + $0x44] sm:$0xf]
    %v1331 = vld [vmem:[#allocation5] sm:$0x1]
    %v1333 = vlaneseq
    %v1334 = vshrl.u32 %v1333, 7
    %v1335 = vsub.s32 0, %v1334
    %v1336 = vrot.slane %v1331, %v1335
    %v1356 = vunpack.c.l.b16 %v1313
    %v1357 = vunpack.c.l.b16 %v1314
    %v1358 = vunpack.c.l.b16 %v1315
    %v1359 = vunpack.c.l.b16 %v1316
    %v1360 = vunpack.c.l.b16 %v1317
    %v1361 = vunpack.c.l.b16 %v1318
    %v1362 = vunpack.c.l.b16 %v1319
    %v1363 = vunpack.c.l.b16 %v1320
    %v1364 = vunpack.c.l.b16 %v1321
    %v1365 = vunpack.c.l.b16 %v1322
    %v1366 = vunpack.c.l.b16 %v1323
    %v1367 = vunpack.c.l.b16 %v1324
    %v1368 = vunpack.c.l.b16 %v1325
    %v1369 = vunpack.c.l.b16 %v1326
    %v1370 = vunpack.c.l.b16 %v1327
    %v1371 = vunpack.c.l.b16 %v1328
    %v1372 = vunpack.c.l.b16 %v1329
    %v1373 = vunpack.c.l.b16 %v1330
    %v1374 = vpack.c.b16 %v1357, %v1356
    %v1375 = vpack.c.b16 %v1359, %v1358
    %v1376 = vpack.c.b16 %v1361, %v1360
    %v1377 = vpack.c.b16 %v1363, %v1362
    %v1378 = vpack.c.b16 %v1365, %v1364
    %v1379 = vpack.c.b16 %v1367, %v1366
    %v1380 = vpack.c.b16 %v1369, %v1368
    %v1381 = vpack.c.b16 %v1371, %v1370
    %v1382 = vpack.c.b16 %v1373, %v1372
    %v1393 = vsel %vm1178, %v1298, 0
    %v1396 = vsel %vm1178, %v1300, 0
    %v1399 = vsel %vm1178, %v1302, 0
    %v1402 = vsel %vm1178, %v1304, 0
    %v1405 = vsel %vm1178, %v1306, 0
    %v1408 = vsel %vm1178, %v1308, 0
    %v1411 = vsel %vm1178, %v1310, 0
    %v1414 = vsel %vm1178, %v1312, 0
    %1416 = vmatprep.subr.bf16.mxu0 0
    %1417 = vmatpush1.bf16.msra.mxu0 %v1374
    %1418 = vmatprep.subr.bf16.mxu0 0
    %1419 = vmatpush1.bf16.msra.mxu0 %v1375
    %1420 = vmatprep.subr.bf16.mxu0 0
    %1421 = vmatpush1.bf16.msra.mxu0 %v1376
    %1422 = vmatprep.subr.bf16.mxu0 0
    %1423 = vmatpush1.bf16.msra.mxu0 %v1377
    %1424 = vmatprep.subr.bf16.mxu0 0
    %1425 = vmatpush1.bf16.msra.mxu0 %v1378
    %1426 = vmatprep.subr.bf16.mxu0 0
    %1427 = vmatpush1.bf16.msra.mxu0 %v1379
    %1428 = vmatprep.subr.bf16.mxu0 0
    %1429 = vmatpush1.bf16.msra.mxu0 %v1380
    %1430 = vmatprep.subr.bf16.mxu0 0
    %1431 = vmatpush1.bf16.msra.mxu0 %v1381
    %1432 = vmatprep.subr.bf16.mxu0 0
    %1433 = vmatpush1.bf16.msra.mxu0 %v1382
    %1434 = vmatprep.subr.bf16.mxu0 0
    %1435 = vmatpush1.bf16.msra.mxu0 0
    %1436 = vmatprep.subr.bf16.mxu0 0
    %1437 = vmatpush1.bf16.msra.mxu0 0
    %1438 = vmatprep.subr.bf16.mxu0 0
    %1439 = vmatpush1.bf16.msra.mxu0 0
    %1440 = vmatprep.subr.bf16.mxu0 0
    %1441 = vmatpush1.bf16.msra.mxu0 0
    %1442 = vmatprep.subr.bf16.mxu0 0
    %1443 = vmatpush1.bf16.msra.mxu0 0
    %1444 = vmatprep.subr.bf16.mxu0 0
    %1445 = vmatpush1.bf16.msra.mxu0 0
    %1446 = vmatprep.subr.bf16.mxu0 0
    %1447 = vmatpush1.bf16.msra.mxu0 0
    %1448 = vmatprep.mubr.bf16.mxu0 %v1393
    %1449 = vmatmul.mubr.bf16.gmra.mrb[0].mxu0 %v1297
    %v1450 = vpop.f32.mrb[0].mxu0
    %v1451 = vadd.f32 %v1336, %v1450
    %v1452 = vpop.f32.mrb[0].mxu0
    %v1453 = vpop.f32.mrb[0].mxu0
    %v1454 = vadd.f32 %v1336, %v1453
    %v1455 = vpop.f32.mrb[0].mxu0
    %1456 = vmatprep.mubr.bf16.mxu0 %v1396
    %1457 = vmatmul.mubr.bf16.gmra.mrb[0].mxu0 %v1299
    %v1458 = vpop.f32.mrb[0].mxu0
    %v1459 = vadd.f32 %v1336, %v1458
    %v1460 = vpop.f32.mrb[0].mxu0
    %v1461 = vpop.f32.mrb[0].mxu0
    %v1462 = vadd.f32 %v1336, %v1461
    %v1463 = vpop.f32.mrb[0].mxu0
    %1464 = vmatprep.mubr.bf16.mxu0 %v1399
    %1465 = vmatmul.mubr.bf16.gmra.mrb[0].mxu0 %v1301
    %v1466 = vpop.f32.mrb[0].mxu0
    %v1467 = vadd.f32 %v1336, %v1466
    %v1468 = vpop.f32.mrb[0].mxu0
    %v1469 = vpop.f32.mrb[0].mxu0
    %v1470 = vadd.f32 %v1336, %v1469
    %v1471 = vpop.f32.mrb[0].mxu0
    %1472 = vmatprep.mubr.bf16.mxu0 %v1402
    %1473 = vmatmul.mubr.bf16.gmra.mrb[0].mxu0 %v1303
    %v1474 = vpop.f32.mrb[0].mxu0
    %v1475 = vadd.f32 %v1336, %v1474
    %v1476 = vpop.f32.mrb[0].mxu0
    %v1477 = vpop.f32.mrb[0].mxu0
    %v1478 = vadd.f32 %v1336, %v1477
    %v1479 = vpop.f32.mrb[0].mxu0
    %1480 = vmatprep.mubr.bf16.mxu0 %v1405
    %1481 = vmatmul.mubr.bf16.gmra.mrb[0].mxu0 %v1305
    %v1482 = vpop.f32.mrb[0].mxu0
    %v1483 = vadd.f32 %v1336, %v1482
    %v1484 = vpop.f32.mrb[0].mxu0
    %v1485 = vpop.f32.mrb[0].mxu0
    %v1486 = vadd.f32 %v1336, %v1485
    %v1487 = vpop.f32.mrb[0].mxu0
    %1488 = vmatprep.mubr.bf16.mxu0 %v1408
    %1489 = vmatmul.mubr.bf16.gmra.mrb[0].mxu0 %v1307
    %v1490 = vpop.f32.mrb[0].mxu0
    %v1491 = vadd.f32 %v1336, %v1490
    %v1492 = vpop.f32.mrb[0].mxu0
    %v1493 = vpop.f32.mrb[0].mxu0
    %v1494 = vadd.f32 %v1336, %v1493
    %v1495 = vpop.f32.mrb[0].mxu0
    %1496 = vmatprep.mubr.bf16.mxu0 %v1411
    %1497 = vmatmul.mubr.bf16.gmra.mrb[0].mxu0 %v1309
    %v1498 = vpop.f32.mrb[0].mxu0
    %v1499 = vadd.f32 %v1336, %v1498
    %v1500 = vpop.f32.mrb[0].mxu0
    %v1501 = vpop.f32.mrb[0].mxu0
    %v1502 = vadd.f32 %v1336, %v1501
    %v1503 = vpop.f32.mrb[0].mxu0
    %1504 = vmatprep.mubr.bf16.mxu0 %v1414
    %1505 = vmatmul.mubr.bf16.gmra.mrb[0].mxu0 %v1311
    %v1506 = vpop.f32.mrb[0].mxu0
    %v1507 = vadd.f32 %v1336, %v1506
    %v1508 = vpop.f32.mrb[0].mxu0
    %v1509 = vpop.f32.mrb[0].mxu0
    %v1510 = vadd.f32 %v1336, %v1509
    %v1511 = vpop.f32.mrb[0].mxu0
    %1512 = vdwg.mxu0
    %v1513 = vmax.f32 %v1451, 0.0
    %v1514 = vmax.f32 %v1454, 0.0
    %v1515 = vmax.f32 %v1459, 0.0
    %v1516 = vmax.f32 %v1462, 0.0
    %v1517 = vmax.f32 %v1467, 0.0
    %v1518 = vmax.f32 %v1470, 0.0
    %v1519 = vmax.f32 %v1475, 0.0
    %v1520 = vmax.f32 %v1478, 0.0
    %v1521 = vmax.f32 %v1483, 0.0
    %v1522 = vmax.f32 %v1486, 0.0
    %v1523 = vmax.f32 %v1491, 0.0
    %v1524 = vmax.f32 %v1494, 0.0
    %v1525 = vmax.f32 %v1499, 0.0
    %v1526 = vmax.f32 %v1502, 0.0
    %v1527 = vmax.f32 %v1507, 0.0
    %v1528 = vmax.f32 %v1510, 0.0
    %v1529 = vadd.f32 %v1513, %v1514
    %v1530 = vrot.slane %v1529, 4
    %v1531 = vadd.f32 %v1529, %v1530
    %v1532 = vrot.slane %v1531, 2
    %v1533 = vadd.f32 %v1531, %v1532
    %v1534 = vrot.slane %v1533, 1
    %v1535 = vadd.f32 %v1533, %v1534
    %v1536 = vadd.f32 %v1515, %v1516
    %v1537 = vrot.slane %v1536, 4
    %v1538 = vadd.f32 %v1536, %v1537
    %v1539 = vrot.slane %v1538, 2
    %v1540 = vadd.f32 %v1538, %v1539
    %v1541 = vrot.slane %v1540, 1
    %v1542 = vadd.f32 %v1540, %v1541
    %v1543 = vadd.f32 %v1517, %v1518
    %v1544 = vrot.slane %v1543, 4
    %v1545 = vadd.f32 %v1543, %v1544
    %v1546 = vrot.slane %v1545, 2
    %v1547 = vadd.f32 %v1545, %v1546
    %v1548 = vrot.slane %v1547, 1
    %v1549 = vadd.f32 %v1547, %v1548
    %v1550 = vadd.f32 %v1519, %v1520
    %v1551 = vrot.slane %v1550, 4
    %v1552 = vadd.f32 %v1550, %v1551
    %v1553 = vrot.slane %v1552, 2
    %v1554 = vadd.f32 %v1552, %v1553
    %v1555 = vrot.slane %v1554, 1
    %v1556 = vadd.f32 %v1554, %v1555
    %v1557 = vadd.f32 %v1521, %v1522
    %v1558 = vrot.slane %v1557, 4
    %v1559 = vadd.f32 %v1557, %v1558
    %v1560 = vrot.slane %v1559, 2
    %v1561 = vadd.f32 %v1559, %v1560
    %v1562 = vrot.slane %v1561, 1
    %v1563 = vadd.f32 %v1561, %v1562
    %v1564 = vadd.f32 %v1523, %v1524
    %v1565 = vrot.slane %v1564, 4
    %v1566 = vadd.f32 %v1564, %v1565
    %v1567 = vrot.slane %v1566, 2
    %v1568 = vadd.f32 %v1566, %v1567
    %v1569 = vrot.slane %v1568, 1
    %v1570 = vadd.f32 %v1568, %v1569
    %v1571 = vadd.f32 %v1525, %v1526
    %v1572 = vrot.slane %v1571, 4
    %v1573 = vadd.f32 %v1571, %v1572
    %v1574 = vrot.slane %v1573, 2
    %v1575 = vadd.f32 %v1573, %v1574
    %v1576 = vrot.slane %v1575, 1
    %v1577 = vadd.f32 %v1575, %v1576
    %v1578 = vadd.f32 %v1527, %v1528
    %v1579 = vrot.slane %v1578, 4
    %v1580 = vadd.f32 %v1578, %v1579
    %v1581 = vrot.slane %v1580, 2
    %v1582 = vadd.f32 %v1580, %v1581
    %v1583 = vrot.slane %v1582, 1
    %v1584 = vadd.f32 %v1582, %v1583
    %v1585 = vpack.c.bf16 %v1535, %v1535
    %v1586 = vpack.c.bf16 %v1542, %v1542
    %v1587 = vpack.c.bf16 %v1549, %v1549
    %v1588 = vpack.c.bf16 %v1556, %v1556
    %v1589 = vpack.c.bf16 %v1563, %v1563
    %v1590 = vpack.c.bf16 %v1570, %v1570
    %v1591 = vpack.c.bf16 %v1577, %v1577
    %v1592 = vpack.c.bf16 %v1584, %v1584
    %v1593 = vld [vmem:[%s4] sm:$0xf]
    %v1594 = vld [vmem:[%s4 + $0x4] sm:$0xf]
    %v1595 = vld [vmem:[%s4 + $0x8] sm:$0xf]
    %v1596 = vld [vmem:[%s4 + $0xc] sm:$0xf]
    %v1597 = vld [vmem:[%s4 + $0x10] sm:$0xf]
    %v1598 = vld [vmem:[%s4 + $0x14] sm:$0xf]
    %v1599 = vld [vmem:[%s4 + $0x18] sm:$0xf]
    %v1600 = vld [vmem:[%s4 + $0x1c] sm:$0xf]
    %v1601 = vld [vmem:[%s4 + $0x20] sm:$0xf]
    %v1602 = vld [vmem:[%s4 + $0x24] sm:$0xf]
    %v1603 = vld [vmem:[%s4 + $0x28] sm:$0xf]
    %v1604 = vld [vmem:[%s4 + $0x2c] sm:$0xf]
    %v1605 = vld [vmem:[%s4 + $0x30] sm:$0xf]
    %v1606 = vld [vmem:[%s4 + $0x34] sm:$0xf]
    %v1607 = vld [vmem:[%s4 + $0x38] sm:$0xf]
    %v1608 = vld [vmem:[%s4 + $0x3c] sm:$0xf]
    %v1609 = vld [vmem:[#allocation7] sm:$0x1]
    %v1611 = vlaneseq
    %v1612 = vshrl.u32 %v1611, 7
    %v1613 = vsub.s32 0, %v1612
    %v1614 = vrot.slane %v1609, %v1613
    %v1624 = vunpack.c.l.b16 %v1585
    %v1625 = vunpack.c.l.b16 %v1586
    %v1626 = vunpack.c.l.b16 %v1587
    %v1627 = vunpack.c.l.b16 %v1588
    %v1628 = vunpack.c.l.b16 %v1589
    %v1629 = vunpack.c.l.b16 %v1590
    %v1630 = vunpack.c.l.b16 %v1591
    %v1631 = vunpack.c.l.b16 %v1592
    %vm1632 = vcmask 1041409
    %v1633 = vsel %vm1632, %v1625, %v1624
    %vm1634 = vcmask 1042434
    %v1635 = vsel %vm1634, %v1626, %v1633
    %vm1636 = vcmask 1043459
    %v1637 = vsel %vm1636, %v1627, %v1635
    %vm1638 = vcmask 1044484
    %v1639 = vsel %vm1638, %v1628, %v1637
    %vm1640 = vcmask 1045509
    %v1641 = vsel %vm1640, %v1629, %v1639
    %vm1642 = vcmask 1046534
    %v1643 = vsel %vm1642, %v1630, %v1641
    %vm1644 = vcmask 1047559
    %v1645 = vsel %vm1644, %v1631, %v1643
    %v1646 = vpack.c.b16 %v1645, %v1645
    %v1664 = vunpack.c.l.b16 %v1593
    %v1665 = vunpack.c.l.b16 %v1594
    %v1666 = vunpack.c.l.b16 %v1595
    %v1667 = vunpack.c.l.b16 %v1596
    %v1668 = vunpack.c.l.b16 %v1597
    %v1669 = vunpack.c.l.b16 %v1598
    %v1670 = vunpack.c.l.b16 %v1599
    %v1671 = vunpack.c.l.b16 %v1600
    %v1672 = vunpack.c.l.b16 %v1601
    %v1673 = vunpack.c.l.b16 %v1602
    %v1674 = vunpack.c.l.b16 %v1603
    %v1675 = vunpack.c.l.b16 %v1604
    %v1676 = vunpack.c.l.b16 %v1605
    %v1677 = vunpack.c.l.b16 %v1606
    %v1678 = vunpack.c.l.b16 %v1607
    %v1679 = vunpack.c.l.b16 %v1608
    %v1680 = vpack.c.b16 %v1665, %v1664
    %v1681 = vpack.c.b16 %v1667, %v1666
    %v1682 = vpack.c.b16 %v1669, %v1668
    %v1683 = vpack.c.b16 %v1671, %v1670
    %v1684 = vpack.c.b16 %v1673, %v1672
    %v1685 = vpack.c.b16 %v1675, %v1674
    %v1686 = vpack.c.b16 %v1677, %v1676
    %v1687 = vpack.c.b16 %v1679, %v1678
    %1696 = vmatprep.subr.bf16.mxu0 0
    %1697 = vmatpush1.bf16.msra.mxu0 %v1680
    %1698 = vmatprep.subr.bf16.mxu0 0
    %1699 = vmatpush1.bf16.msra.mxu0 %v1681
    %1700 = vmatprep.subr.bf16.mxu0 0
    %1701 = vmatpush1.bf16.msra.mxu0 %v1682
    %1702 = vmatprep.subr.bf16.mxu0 0
    %1703 = vmatpush1.bf16.msra.mxu0 %v1683
    %1704 = vmatprep.subr.bf16.mxu0 0
    %1705 = vmatpush1.bf16.msra.mxu0 %v1684
    %1706 = vmatprep.subr.bf16.mxu0 0
    %1707 = vmatpush1.bf16.msra.mxu0 %v1685
    %1708 = vmatprep.subr.bf16.mxu0 0
    %1709 = vmatpush1.bf16.msra.mxu0 %v1686
    %1710 = vmatprep.subr.bf16.mxu0 0
    %1711 = vmatpush1.bf16.msra.mxu0 %v1687
    %1712 = vmatprep.subr.bf16.mxu0 0
    %1713 = vmatpush1.bf16.msra.mxu0 0
    %1714 = vmatprep.subr.bf16.mxu0 0
    %1715 = vmatpush1.bf16.msra.mxu0 0
    %1716 = vmatprep.subr.bf16.mxu0 0
    %1717 = vmatpush1.bf16.msra.mxu0 0
    %1718 = vmatprep.subr.bf16.mxu0 0
    %1719 = vmatpush1.bf16.msra.mxu0 0
    %1720 = vmatprep.subr.bf16.mxu0 0
    %1721 = vmatpush1.bf16.msra.mxu0 0
    %1722 = vmatprep.subr.bf16.mxu0 0
    %1723 = vmatpush1.bf16.msra.mxu0 0
    %1724 = vmatprep.subr.bf16.mxu0 0
    %1725 = vmatpush1.bf16.msra.mxu0 0
    %1726 = vmatprep.subr.bf16.mxu0 0
    %1727 = vmatpush1.bf16.msra.mxu0 0
    %1728 = vmatprep.mubr.bf16.mxu0 0
    %1729 = vmatmul.mubr.bf16.gmra.mrb[0].mxu0 %v1646
    %v1730 = vpop.f32.mrb[0].mxu0
    %v1731 = vadd.f32 %v1614, %v1730
    %v1732 = vpop.f32.mrb[0].mxu0
    %v1733 = vpop.f32.mrb[0].mxu0
    %v1734 = vpop.f32.mrb[0].mxu0
    %1735 = vdwg.mxu0
    %v1736 = vmax.f32 %v1731, 0.0
    %v1737 = vlaneseq
    %v1738 = vand.u32 %v1737, 127
    %v1739 = vadd.s32 %v1738, 128
    %vm1740 = vcmp.lt.s32.totalorder %v1738, 0
    %v1741 = vsub.s32 0, %v1738
    %v1742 = vsel %vm1740, %v1741, %v1738
    %v1743 = vshrl.u32 %v1742, 6
    %v1744 = vand.u32 %v1742, 63
    %v1745 = vsub.s32 0, %v1744
    %v1746 = vsel %vm1740, %v1745, %v1744
    %vm1747 = vcmp.lt.s32.totalorder %v1739, 0
    %v1748 = vsub.s32 0, %v1739
    %v1749 = vsel %vm1747, %v1748, %v1739
    %v1750 = vshrl.u32 %v1749, 6
    %v1751 = vand.u32 %v1749, 63
    %v1752 = vsub.s32 0, %v1751
    %v1753 = vsel %vm1747, %v1752, %v1751
    %vm1754 = vcmp.ne.s32.totalorder %v1746, 0
    %vm1755 = vcmp.ne.s32.totalorder %v1753, 0
    %vm1756 = vcmp.lt.s32.totalorder %v1746, 0
    %vm1757 = vcmp.lt.s32.totalorder %v1753, 0
    %vm1758 = vmand %vm1756, %vm1754
    %vm1759 = vmand %vm1757, %vm1755
    %v1760 = vadd.s32 %v1746, 64
    %v1761 = vadd.s32 %v1753, 64
    %v1762 = vsel %vm1758, %v1760, %v1746
    %v1763 = vsel %vm1759, %v1761, %v1753
    %vm1764 = vcmp.lt.s32.totalorder %v1762, 32
    %vm1765 = vcmp.lt.s32.totalorder %v1763, 32
    %vm1766 = vcmp.lt.s32.totalorder %v1738, 32
    %v1767 = vpack.c.bf16 %v1736, %v1736
    %v1768 = vld [vmem:[%s6] sm:$0xff]
    %v1769 = vld [vmem:[%s6 + $0x8] sm:$0xff]
    %v1770 = vld [vmem:[%s6 + $0x10] sm:$0xff]
    %v1771 = vld [vmem:[%s6 + $0x18] sm:$0xff]
    %v1772 = vld [vmem:[%s6 + $0x20] sm:$0xff]
    %v1773 = vld [vmem:[%s6 + $0x28] sm:$0xff]
    %v1774 = vld [vmem:[%s6 + $0x30] sm:$0xff]
    %v1775 = vld [vmem:[%s6 + $0x38] sm:$0xff]
    %v1776 = vld [vmem:[%s8] sm:$0x3]
    %v1778 = vlaneseq
    %v1779 = vshrl.u32 %v1778, 7
    %v1780 = vsub.s32 0, %v1779
    %v1781 = vrot.slane %v1776, %v1780
    %v1782 = vlaneseq
    %v1783 = vshrl.u32 %v1782, 7
    %v1784 = vsub.s32 1, %v1783
    %v1785 = vrot.slane %v1776, %v1784
    %v1796 = vunpack.c.l.b16 %v1768
    %v1797 = vunpack.c.h.b16 %v1768
    %v1798 = vunpack.c.l.b16 %v1769
    %v1799 = vunpack.c.h.b16 %v1769
    %v1800 = vunpack.c.l.b16 %v1770
    %v1801 = vunpack.c.h.b16 %v1770
    %v1802 = vunpack.c.l.b16 %v1771
    %v1803 = vunpack.c.h.b16 %v1771
    %v1804 = vunpack.c.l.b16 %v1772
    %v1805 = vunpack.c.h.b16 %v1772
    %v1806 = vunpack.c.l.b16 %v1773
    %v1807 = vunpack.c.h.b16 %v1773
    %v1808 = vunpack.c.l.b16 %v1774
    %v1809 = vunpack.c.h.b16 %v1774
    %v1810 = vunpack.c.l.b16 %v1775
    %v1811 = vunpack.c.h.b16 %v1775
    %v1812 = vpack.c.b16 %v1798, %v1796
    %v1813 = vpack.c.b16 %v1799, %v1797
    %v1814 = vpack.c.b16 %v1802, %v1800
    %v1815 = vpack.c.b16 %v1803, %v1801
    %v1816 = vpack.c.b16 %v1806, %v1804
    %v1817 = vpack.c.b16 %v1807, %v1805
    %v1818 = vpack.c.b16 %v1810, %v1808
    %v1819 = vpack.c.b16 %v1811, %v1809
    %v1829 = vsel %vm1229, %v1767, 0
    %1831 = vmatprep.subr.bf16.mxu0 %v1813
    %1832 = vmatpush1.bf16.msra.mxu0 %v1812
    %1833 = vmatprep.subr.bf16.mxu0 %v1815
    %1834 = vmatpush1.bf16.msra.mxu0 %v1814
    %1835 = vmatprep.subr.bf16.mxu0 %v1817
    %1836 = vmatpush1.bf16.msra.mxu0 %v1816
    %1837 = vmatprep.subr.bf16.mxu0 %v1819
    %1838 = vmatpush1.bf16.msra.mxu0 %v1818
    %1839 = vmatprep.subr.bf16.mxu0 0
    %1840 = vmatpush1.bf16.msra.mxu0 0
    %1841 = vmatprep.subr.bf16.mxu0 0
    %1842 = vmatpush1.bf16.msra.mxu0 0
    %1843 = vmatprep.subr.bf16.mxu0 0
    %1844 = vmatpush1.bf16.msra.mxu0 0
    %1845 = vmatprep.subr.bf16.mxu0 0
    %1846 = vmatpush1.bf16.msra.mxu0 0
    %1847 = vmatprep.subr.bf16.mxu0 0
    %1848 = vmatpush1.bf16.msra.mxu0 0
    %1849 = vmatprep.subr.bf16.mxu0 0
    %1850 = vmatpush1.bf16.msra.mxu0 0
    %1851 = vmatprep.subr.bf16.mxu0 0
    %1852 = vmatpush1.bf16.msra.mxu0 0
    %1853 = vmatprep.subr.bf16.mxu0 0
    %1854 = vmatpush1.bf16.msra.mxu0 0
    %1855 = vmatprep.subr.bf16.mxu0 0
    %1856 = vmatpush1.bf16.msra.mxu0 0
    %1857 = vmatprep.subr.bf16.mxu0 0
    %1858 = vmatpush1.bf16.msra.mxu0 0
    %1859 = vmatprep.subr.bf16.mxu0 0
    %1860 = vmatpush1.bf16.msra.mxu0 0
    %1861 = vmatprep.subr.bf16.mxu0 0
    %1862 = vmatpush1.bf16.msra.mxu0 0
    %1863 = vmatprep.mubr.bf16.mxu0 0
    %1864 = vmatmul.mubr.bf16.gmra.mrb[0].mxu0 %v1829
    %v1865 = vpop.f32.mrb[0].mxu0
    %v1866 = vadd.f32 %v1781, %v1865
    %v1867 = vpop.f32.mrb[0].mxu0
    %v1868 = vadd.f32 %v1785, %v1867
    %v1869 = vpop.f32.mrb[0].mxu0
    %v1870 = vpop.f32.mrb[0].mxu0
    %1871 = vdwg.mxu0
    %v1874 = vrot.slane %v1866, 3
    %v1875 = vrot.slane %v1868, 3
    %v1878 = vsel %vm327, %v1866, %v1874
    %v1879 = vsel %vm327, %v1868, %v1875
    %v1880 = vrot.slane %v1866, 6
    %v1881 = vrot.slane %v1868, 6
    %v1884 = vsel %vm327, %v1874, %v1880
    %v1885 = vsel %vm327, %v1875, %v1881
    %v1886 = vsel %vm1764, %v1878, %v1884
    %v1887 = vsel %vm1765, %v1879, %v1885
    %v1888 = vld [vmem:[#allocation8] sm:$0xff]
    %v1889 = vld [vmem:[#allocation8 + $0x8] sm:$0xff]
    %v1890 = vld [vmem:[#allocation8 + $0x10] sm:$0xff]
    %v1891 = vld [vmem:[#allocation8 + $0x18] sm:$0xff]
    %v1892 = vld [vmem:[#allocation8 + $0x20] sm:$0xff]
    %v1893 = vld [vmem:[#allocation8 + $0x28] sm:$0xff]
    %v1894 = vld [vmem:[#allocation8 + $0x30] sm:$0xff]
    %v1895 = vld [vmem:[#allocation8 + $0x38] sm:$0xff]
    %v1904 = vunpack.c.l.b16 %v1888
    %v1905 = vunpack.c.h.b16 %v1888
    %v1906 = vunpack.c.l.b16 %v1889
    %v1907 = vunpack.c.h.b16 %v1889
    %v1908 = vunpack.c.l.b16 %v1890
    %v1909 = vunpack.c.h.b16 %v1890
    %v1910 = vunpack.c.l.b16 %v1891
    %v1911 = vunpack.c.h.b16 %v1891
    %v1912 = vunpack.c.l.b16 %v1892
    %v1913 = vunpack.c.h.b16 %v1892
    %v1914 = vunpack.c.l.b16 %v1893
    %v1915 = vunpack.c.h.b16 %v1893
    %v1916 = vunpack.c.l.b16 %v1894
    %v1917 = vunpack.c.h.b16 %v1894
    %v1918 = vunpack.c.l.b16 %v1895
    %v1919 = vunpack.c.h.b16 %v1895
    %v1920 = vpack.c.b16 %v1906, %v1904
    %v1921 = vpack.c.b16 %v1907, %v1905
    %v1922 = vpack.c.b16 %v1910, %v1908
    %v1923 = vpack.c.b16 %v1911, %v1909
    %v1924 = vpack.c.b16 %v1914, %v1912
    %v1925 = vpack.c.b16 %v1915, %v1913
    %v1926 = vpack.c.b16 %v1918, %v1916
    %v1927 = vpack.c.b16 %v1919, %v1917
    %v1937 = vsel %vm1229, 0, 0
    %1939 = vmatprep.subr.bf16.mxu0 %v1921
    %1940 = vmatpush1.bf16.msra.mxu0 %v1920
    %1941 = vmatprep.subr.bf16.mxu0 %v1923
    %1942 = vmatpush1.bf16.msra.mxu0 %v1922
    %1943 = vmatprep.subr.bf16.mxu0 %v1925
    %1944 = vmatpush1.bf16.msra.mxu0 %v1924
    %1945 = vmatprep.subr.bf16.mxu0 %v1927
    %1946 = vmatpush1.bf16.msra.mxu0 %v1926
    %1947 = vmatprep.subr.bf16.mxu0 0
    %1948 = vmatpush1.bf16.msra.mxu0 0
    %1949 = vmatprep.subr.bf16.mxu0 0
    %1950 = vmatpush1.bf16.msra.mxu0 0
    %1951 = vmatprep.subr.bf16.mxu0 0
    %1952 = vmatpush1.bf16.msra.mxu0 0
    %1953 = vmatprep.subr.bf16.mxu0 0
    %1954 = vmatpush1.bf16.msra.mxu0 0
    %1955 = vmatprep.subr.bf16.mxu0 0
    %1956 = vmatpush1.bf16.msra.mxu0 0
    %1957 = vmatprep.subr.bf16.mxu0 0
    %1958 = vmatpush1.bf16.msra.mxu0 0
    %1959 = vmatprep.subr.bf16.mxu0 0
    %1960 = vmatpush1.bf16.msra.mxu0 0
    %1961 = vmatprep.subr.bf16.mxu0 0
    %1962 = vmatpush1.bf16.msra.mxu0 0
    %1963 = vmatprep.subr.bf16.mxu0 0
    %1964 = vmatpush1.bf16.msra.mxu0 0
    %1965 = vmatprep.subr.bf16.mxu0 0
    %1966 = vmatpush1.bf16.msra.mxu0 0
    %1967 = vmatprep.subr.bf16.mxu0 0
    %1968 = vmatpush1.bf16.msra.mxu0 0
    %1969 = vmatprep.subr.bf16.mxu0 0
    %1970 = vmatpush1.bf16.msra.mxu0 0
    %1971 = vmatprep.mubr.bf16.mxu0 0
    %1972 = vmatmul.mubr.bf16.gmra.mrb[0].mxu0 %v1937
    %v1973 = vpop.f32.mrb[0].mxu0
    %v1974 = vadd.f32 0.0, %v1973
    %v1975 = vpop.f32.mrb[0].mxu0
    %v1976 = vadd.f32 0.0, %v1975
    %v1977 = vpop.f32.mrb[0].mxu0
    %v1978 = vpop.f32.mrb[0].mxu0
    %1979 = vdwg.mxu0
    %v1980 = vadd.f32 %v1886, %v1974
    %v1981 = vadd.f32 %v1887, %v1976
    %v1982 = vxor.u32 %v1980, 2147483648
    %v1983 = vxor.u32 %v1981, 2147483648
    %v1984 = vmul.f32 %v1982, 1.442695
    %v1985 = vpow.pop %v1984
    %v1986 = vmul.f32 %v1983, 1.442695
    %v1987 = vpow.pop %v1986
    %v1988 = vadd.f32 %v1985, 1.0
    %v1989 = vadd.f32 %v1987, 1.0
    %v1990 = vrcp.pop %v1988
    %v1991 = vmul.f32 1.0, %v1990
    %v1992 = vrcp.pop %v1989
    %v1993 = vmul.f32 1.0, %v1992
    %v1994 = vtanh.pop %v1981
    %v1995 = vmul.f32 %v1991, 0.0
    %v1996 = vmul.f32 %v1991, %v1994
    %1998 = vrot.lane.b32.xlu0 %v1996, 64
    %v1999 = vpop.permute.xlu0 %1998
    %v2001 = vadd.f32 %v1995, %v1999
    %v2002 = vtanh.pop %v2001
    %v2003 = vmul.f32 %v1993, %v2002
    %v2004 = vrot.slane %v1866, 1
    %v2005 = vrot.slane %v1868, 1
    %v2008 = vrot.slane %v1866, 4
    %v2009 = vrot.slane %v1868, 4
    %v2012 = vsel %vm327, %v2004, %v2008
    %v2013 = vsel %vm327, %v2005, %v2009
    %v2014 = vrot.slane %v1866, 2
    %v2015 = vrot.slane %v1868, 2
    %v2018 = vrot.slane %v1866, 5
    %v2019 = vrot.slane %v1868, 5
    %v2022 = vsel %vm327, %v2014, %v2018
    %v2023 = vsel %vm327, %v2015, %v2019
    %v2024 = vsel %vm1764, %v2012, %v2022
    %v2025 = vsel %vm1765, %v2013, %v2023
    %v2026 = vpack.c.bf16 %v2003, %v2003
    %2028 = vrot.lane.b32.xlu0 %v2026, 64
    %v2029 = vpop.permute.xlu0 %2028
    %v2031 = vsel %vm1229, %v2029, 0
    %2033 = vmatprep.subr.bf16.mxu0 %v1921
    %2034 = vmatpush1.bf16.msra.mxu0 %v1920
    %2035 = vmatprep.subr.bf16.mxu0 %v1923
    %2036 = vmatpush1.bf16.msra.mxu0 %v1922
    %2037 = vmatprep.subr.bf16.mxu0 %v1925
    %2038 = vmatpush1.bf16.msra.mxu0 %v1924
    %2039 = vmatprep.subr.bf16.mxu0 %v1927
    %2040 = vmatpush1.bf16.msra.mxu0 %v1926
    %2041 = vmatprep.subr.bf16.mxu0 0
    %2042 = vmatpush1.bf16.msra.mxu0 0
    %2043 = vmatprep.subr.bf16.mxu0 0
    %2044 = vmatpush1.bf16.msra.mxu0 0
    %2045 = vmatprep.subr.bf16.mxu0 0
    %2046 = vmatpush1.bf16.msra.mxu0 0
    %2047 = vmatprep.subr.bf16.mxu0 0
    %2048 = vmatpush1.bf16.msra.mxu0 0
    %2049 = vmatprep.subr.bf16.mxu0 0
    %2050 = vmatpush1.bf16.msra.mxu0 0
    %2051 = vmatprep.subr.bf16.mxu0 0
    %2052 = vmatpush1.bf16.msra.mxu0 0
    %2053 = vmatprep.subr.bf16.mxu0 0
    %2054 = vmatpush1.bf16.msra.mxu0 0
    %2055 = vmatprep.subr.bf16.mxu0 0
    %2056 = vmatpush1.bf16.msra.mxu0 0
    %2057 = vmatprep.subr.bf16.mxu0 0
    %2058 = vmatpush1.bf16.msra.mxu0 0
    %2059 = vmatprep.subr.bf16.mxu0 0
    %2060 = vmatpush1.bf16.msra.mxu0 0
    %2061 = vmatprep.subr.bf16.mxu0 0
    %2062 = vmatpush1.bf16.msra.mxu0 0
    %2063 = vmatprep.subr.bf16.mxu0 0
    %2064 = vmatpush1.bf16.msra.mxu0 0
    %2065 = vmatprep.mubr.bf16.mxu0 0
    %2066 = vmatmul.mubr.bf16.gmra.mrb[0].mxu0 %v2031
    %v2067 = vpop.f32.mrb[0].mxu0
    %v2068 = vadd.f32 0.0, %v2067
    %v2069 = vpop.f32.mrb[0].mxu0
    %v2070 = vadd.f32 0.0, %v2069
    %v2071 = vpop.f32.mrb[0].mxu0
    %v2072 = vpop.f32.mrb[0].mxu0
    %2073 = vdwg.mxu0
    %v2074 = vadd.f32 %v2024, %v2068
    %v2075 = vadd.f32 %v2025, %v2070
    %v2076 = vxor.u32 %v2074, 2147483648
    %v2077 = vxor.u32 %v2075, 2147483648
    %v2078 = vmul.f32 %v2076, 1.442695
    %v2079 = vpow.pop %v2078
    %v2080 = vmul.f32 %v2077, 1.442695
    %v2081 = vpow.pop %v2080
    %v2082 = vadd.f32 %v2079, 1.0
    %v2083 = vadd.f32 %v2081, 1.0
    %v2084 = vrcp.pop %v2082
    %v2085 = vmul.f32 1.0, %v2084
    %v2086 = vrcp.pop %v2083
    %v2087 = vmul.f32 1.0, %v2086
    %v2088 = vtanh.pop %v2075
    %v2089 = vmul.f32 %v2085, %v2001
    %v2090 = vmul.f32 %v2085, %v2088
    %2092 = vrot.lane.b32.xlu0 %v2090, 64
    %v2093 = vpop.permute.xlu0 %2092
    %v2095 = vadd.f32 %v2089, %v2093
    %v2096 = vtanh.pop %v2095
    %v2097 = vmul.f32 %v2087, %v2096
    %v2098 = vsel %vm1764, %v2022, %v2012
    %v2099 = vsel %vm1765, %v2023, %v2013
    %v2100 = vpack.c.bf16 %v2097, %v2097
    %2102 = vrot.lane.b32.xlu0 %v2100, 64
    %v2103 = vpop.permute.xlu0 %2102
    %v2105 = vsel %vm1229, %v2103, 0
    %2107 = vmatprep.subr.bf16.mxu0 %v1921
    %2108 = vmatpush1.bf16.msra.mxu0 %v1920
    %2109 = vmatprep.subr.bf16.mxu0 %v1923
    %2110 = vmatpush1.bf16.msra.mxu0 %v1922
    %2111 = vmatprep.subr.bf16.mxu0 %v1925
    %2112 = vmatpush1.bf16.msra.mxu0 %v1924
    %2113 = vmatprep.subr.bf16.mxu0 %v1927
    %2114 = vmatpush1.bf16.msra.mxu0 %v1926
    %2115 = vmatprep.subr.bf16.mxu0 0
    %2116 = vmatpush1.bf16.msra.mxu0 0
    %2117 = vmatprep.subr.bf16.mxu0 0
    %2118 = vmatpush1.bf16.msra.mxu0 0
    %2119 = vmatprep.subr.bf16.mxu0 0
    %2120 = vmatpush1.bf16.msra.mxu0 0
    %2121 = vmatprep.subr.bf16.mxu0 0
    %2122 = vmatpush1.bf16.msra.mxu0 0
    %2123 = vmatprep.subr.bf16.mxu0 0
    %2124 = vmatpush1.bf16.msra.mxu0 0
    %2125 = vmatprep.subr.bf16.mxu0 0
    %2126 = vmatpush1.bf16.msra.mxu0 0
    %2127 = vmatprep.subr.bf16.mxu0 0
    %2128 = vmatpush1.bf16.msra.mxu0 0
    %2129 = vmatprep.subr.bf16.mxu0 0
    %2130 = vmatpush1.bf16.msra.mxu0 0
    %2131 = vmatprep.subr.bf16.mxu0 0
    %2132 = vmatpush1.bf16.msra.mxu0 0
    %2133 = vmatprep.subr.bf16.mxu0 0
    %2134 = vmatpush1.bf16.msra.mxu0 0
    %2135 = vmatprep.subr.bf16.mxu0 0
    %2136 = vmatpush1.bf16.msra.mxu0 0
    %2137 = vmatprep.subr.bf16.mxu0 0
    %2138 = vmatpush1.bf16.msra.mxu0 0
    %2139 = vmatprep.mubr.bf16.mxu0 0
    %2140 = vmatmul.mubr.bf16.gmra.mrb[0].mxu0 %v2105
    %v2141 = vpop.f32.mrb[0].mxu0
    %v2142 = vadd.f32 0.0, %v2141
    %v2143 = vpop.f32.mrb[0].mxu0
    %v2144 = vadd.f32 0.0, %v2143
    %v2145 = vpop.f32.mrb[0].mxu0
    %v2146 = vpop.f32.mrb[0].mxu0
    %2147 = vdwg.mxu0
    %v2148 = vadd.f32 %v2098, %v2142
    %v2149 = vadd.f32 %v2099, %v2144
    %v2150 = vxor.u32 %v2148, 2147483648
    %v2151 = vxor.u32 %v2149, 2147483648
    %v2152 = vmul.f32 %v2150, 1.442695
    %v2153 = vpow.pop %v2152
    %v2154 = vmul.f32 %v2151, 1.442695
    %v2155 = vpow.pop %v2154
    %v2156 = vadd.f32 %v2153, 1.0
    %v2157 = vadd.f32 %v2155, 1.0
    %v2158 = vrcp.pop %v2156
    %v2159 = vmul.f32 1.0, %v2158
    %v2160 = vrcp.pop %v2157
    %v2161 = vmul.f32 1.0, %v2160
    %v2162 = vtanh.pop %v2149
    %v2163 = vmul.f32 %v2159, %v2095
    %v2164 = vmul.f32 %v2159, %v2162
    %2166 = vrot.lane.b32.xlu0 %v2164, 64
    %v2167 = vpop.permute.xlu0 %2166
    %v2169 = vadd.f32 %v2163, %v2167
    %v2170 = vtanh.pop %v2169
    %v2171 = vmul.f32 %v2161, %v2170
    %v2172 = vsel %vm1764, %v1884, %v1878
    %v2173 = vsel %vm1765, %v1885, %v1879
    %v2174 = vpack.c.bf16 %v2171, %v2171
    %2176 = vrot.lane.b32.xlu0 %v2174, 64
    %v2177 = vpop.permute.xlu0 %2176
    %v2179 = vsel %vm1229, %v2177, 0
    %2181 = vmatprep.subr.bf16.mxu0 %v1921
    %2182 = vmatpush1.bf16.msra.mxu0 %v1920
    %2183 = vmatprep.subr.bf16.mxu0 %v1923
    %2184 = vmatpush1.bf16.msra.mxu0 %v1922
    %2185 = vmatprep.subr.bf16.mxu0 %v1925
    %2186 = vmatpush1.bf16.msra.mxu0 %v1924
    %2187 = vmatprep.subr.bf16.mxu0 %v1927
    %2188 = vmatpush1.bf16.msra.mxu0 %v1926
    %2189 = vmatprep.subr.bf16.mxu0 0
    %2190 = vmatpush1.bf16.msra.mxu0 0
    %2191 = vmatprep.subr.bf16.mxu0 0
    %2192 = vmatpush1.bf16.msra.mxu0 0
    %2193 = vmatprep.subr.bf16.mxu0 0
    %2194 = vmatpush1.bf16.msra.mxu0 0
    %2195 = vmatprep.subr.bf16.mxu0 0
    %2196 = vmatpush1.bf16.msra.mxu0 0
    %2197 = vmatprep.subr.bf16.mxu0 0
    %2198 = vmatpush1.bf16.msra.mxu0 0
    %2199 = vmatprep.subr.bf16.mxu0 0
    %2200 = vmatpush1.bf16.msra.mxu0 0
    %2201 = vmatprep.subr.bf16.mxu0 0
    %2202 = vmatpush1.bf16.msra.mxu0 0
    %2203 = vmatprep.subr.bf16.mxu0 0
    %2204 = vmatpush1.bf16.msra.mxu0 0
    %2205 = vmatprep.subr.bf16.mxu0 0
    %2206 = vmatpush1.bf16.msra.mxu0 0
    %2207 = vmatprep.subr.bf16.mxu0 0
    %2208 = vmatpush1.bf16.msra.mxu0 0
    %2209 = vmatprep.subr.bf16.mxu0 0
    %2210 = vmatpush1.bf16.msra.mxu0 0
    %2211 = vmatprep.subr.bf16.mxu0 0
    %2212 = vmatpush1.bf16.msra.mxu0 0
    %2213 = vmatprep.mubr.bf16.mxu0 0
    %2214 = vmatmul.mubr.bf16.gmra.mrb[0].mxu0 %v2179
    %v2215 = vpop.f32.mrb[0].mxu0
    %v2216 = vadd.f32 0.0, %v2215
    %v2217 = vpop.f32.mrb[0].mxu0
    %v2218 = vadd.f32 0.0, %v2217
    %v2219 = vpop.f32.mrb[0].mxu0
    %v2220 = vpop.f32.mrb[0].mxu0
    %2221 = vdwg.mxu0
    %v2222 = vadd.f32 %v2172, %v2216
    %v2223 = vadd.f32 %v2173, %v2218
    %v2224 = vxor.u32 %v2222, 2147483648
    %v2225 = vxor.u32 %v2223, 2147483648
    %v2226 = vmul.f32 %v2224, 1.442695
    %v2227 = vpow.pop %v2226
    %v2228 = vmul.f32 %v2225, 1.442695
    %v2229 = vpow.pop %v2228
    %v2230 = vadd.f32 %v2227, 1.0
    %v2231 = vadd.f32 %v2229, 1.0
    %v2232 = vrcp.pop %v2230
    %v2233 = vmul.f32 1.0, %v2232
    %v2234 = vrcp.pop %v2231
    %v2235 = vmul.f32 1.0, %v2234
    %v2236 = vtanh.pop %v2223
    %v2237 = vmul.f32 %v2233, %v2169
    %v2238 = vmul.f32 %v2233, %v2236
    %2240 = vrot.lane.b32.xlu0 %v2238, 64
    %v2241 = vpop.permute.xlu0 %2240
    %v2243 = vadd.f32 %v2237, %v2241
    %v2244 = vtanh.pop %v2243
    %v2245 = vmul.f32 %v2235, %v2244
    %2247 = vrot.lane.b32.xlu0 %v2003, 64
    %v2248 = vpop.permute.xlu0 %2247
    %2251 = vrot.lane.b32.xlu0 %v2245, 64
    %v2252 = vpop.permute.xlu0 %2251
    %v2254 = vsel %vm1766, %v2248, %v2252
    %2256 = vrot.lane.b32.xlu0 %v2097, 64
    %v2257 = vpop.permute.xlu0 %2256
    %2260 = vrot.lane.b32.xlu0 %v2171, 64
    %v2261 = vpop.permute.xlu0 %2260
    %v2263 = vsel %vm1766, %v2257, %v2261
    %v2264 = vsel %vm1766, %v2261, %v2257
    %v2265 = vsel %vm1766, %v2252, %v2248
    %v2267 = vrot.slane %v2263, 6
    %v2270 = vrot.slane %v2264, 4
    %v2273 = vrot.slane %v2265, 2
    %vm2275 = vcmask 1041408
    %v2276 = vsel %vm2275, %v2254, %v2267
    %vm2277 = vcmask 1043456
    %v2278 = vsel %vm2277, %v2276, %v2270
    %v2279 = vsel %vm641, %v2278, %v2273
    %v2280 = vpack.c.bf16 %v2279, %v2279
    %v2281 = vld [vmem:[#allocation10] sm:$0xff]
    %v2282 = vld [vmem:[#allocation10 + $0x8] sm:$0xff]
    %v2283 = vld [vmem:[#allocation10 + $0x10] sm:$0xff]
    %v2284 = vld [vmem:[#allocation10 + $0x18] sm:$0xff]
    %v2285 = vld [vmem:[#allocation10 + $0x20] sm:$0xff]
    %v2286 = vld [vmem:[#allocation10 + $0x28] sm:$0xff]
    %v2287 = vld [vmem:[#allocation10 + $0x30] sm:$0xff]
    %v2288 = vld [vmem:[#allocation10 + $0x38] sm:$0xff]
    %v2289 = vld [vmem:[#allocation13] sm:$0x3]
    %v2291 = vlaneseq
    %v2292 = vshrl.u32 %v2291, 7
    %v2293 = vsub.s32 0, %v2292
    %v2294 = vrot.slane %v2289, %v2293
    %v2295 = vlaneseq
    %v2296 = vshrl.u32 %v2295, 7
    %v2297 = vsub.s32 1, %v2296
    %v2298 = vrot.slane %v2289, %v2297
    %v2309 = vunpack.c.l.b16 %v2281
    %v2310 = vunpack.c.h.b16 %v2281
    %v2311 = vunpack.c.l.b16 %v2282
    %v2312 = vunpack.c.h.b16 %v2282
    %v2313 = vunpack.c.l.b16 %v2283
    %v2314 = vunpack.c.h.b16 %v2283
    %v2315 = vunpack.c.l.b16 %v2284
    %v2316 = vunpack.c.h.b16 %v2284
    %v2317 = vunpack.c.l.b16 %v2285
    %v2318 = vunpack.c.h.b16 %v2285
    %v2319 = vunpack.c.l.b16 %v2286
    %v2320 = vunpack.c.h.b16 %v2286
    %v2321 = vunpack.c.l.b16 %v2287
    %v2322 = vunpack.c.h.b16 %v2287
    %v2323 = vunpack.c.l.b16 %v2288
    %v2324 = vunpack.c.h.b16 %v2288
    %v2325 = vpack.c.b16 %v2311, %v2309
    %v2326 = vpack.c.b16 %v2312, %v2310
    %v2327 = vpack.c.b16 %v2315, %v2313
    %v2328 = vpack.c.b16 %v2316, %v2314
    %v2329 = vpack.c.b16 %v2319, %v2317
    %v2330 = vpack.c.b16 %v2320, %v2318
    %v2331 = vpack.c.b16 %v2323, %v2321
    %v2332 = vpack.c.b16 %v2324, %v2322
    %v2342 = vsel %vm1229, %v2280, 0
    %2344 = vmatprep.subr.bf16.mxu0 %v2326
    %2345 = vmatpush1.bf16.msra.mxu0 %v2325
    %2346 = vmatprep.subr.bf16.mxu0 %v2328
    %2347 = vmatpush1.bf16.msra.mxu0 %v2327
    %2348 = vmatprep.subr.bf16.mxu0 %v2330
    %2349 = vmatpush1.bf16.msra.mxu0 %v2329
    %2350 = vmatprep.subr.bf16.mxu0 %v2332
    %2351 = vmatpush1.bf16.msra.mxu0 %v2331
    %2352 = vmatprep.subr.bf16.mxu0 0
    %2353 = vmatpush1.bf16.msra.mxu0 0
    %2354 = vmatprep.subr.bf16.mxu0 0
    %2355 = vmatpush1.bf16.msra.mxu0 0
    %2356 = vmatprep.subr.bf16.mxu0 0
    %2357 = vmatpush1.bf16.msra.mxu0 0
    %2358 = vmatprep.subr.bf16.mxu0 0
    %2359 = vmatpush1.bf16.msra.mxu0 0
    %2360 = vmatprep.subr.bf16.mxu0 0
    %2361 = vmatpush1.bf16.msra.mxu0 0
    %2362 = vmatprep.subr.bf16.mxu0 0
    %2363 = vmatpush1.bf16.msra.mxu0 0
    %2364 = vmatprep.subr.bf16.mxu0 0
    %2365 = vmatpush1.bf16.msra.mxu0 0
    %2366 = vmatprep.subr.bf16.mxu0 0
    %2367 = vmatpush1.bf16.msra.mxu0 0
    %2368 = vmatprep.subr.bf16.mxu0 0
    %2369 = vmatpush1.bf16.msra.mxu0 0
    %2370 = vmatprep.subr.bf16.mxu0 0
    %2371 = vmatpush1.bf16.msra.mxu0 0
    %2372 = vmatprep.subr.bf16.mxu0 0
    %2373 = vmatpush1.bf16.msra.mxu0 0
    %2374 = vmatprep.subr.bf16.mxu0 0
    %2375 = vmatpush1.bf16.msra.mxu0 0
    %2376 = vmatprep.mubr.bf16.mxu0 0
    %2377 = vmatmul.mubr.bf16.gmra.mrb[0].mxu0 %v2342
    %v2378 = vpop.f32.mrb[0].mxu0
    %v2379 = vadd.f32 %v2294, %v2378
    %v2380 = vpop.f32.mrb[0].mxu0
    %v2381 = vadd.f32 %v2298, %v2380
    %v2382 = vpop.f32.mrb[0].mxu0
    %v2383 = vpop.f32.mrb[0].mxu0
    %2384 = vdwg.mxu0
    %v2387 = vrot.slane %v2379, 6
    %v2388 = vrot.slane %v2381, 6
    %v2391 = vsel %vm1764, %v2379, %v2387
    %v2392 = vsel %vm1765, %v2381, %v2388
    %v2393 = vld [vmem:[#allocation11] sm:$0xff]
    %v2394 = vld [vmem:[#allocation11 + $0x8] sm:$0xff]
    %v2395 = vld [vmem:[#allocation11 + $0x10] sm:$0xff]
    %v2396 = vld [vmem:[#allocation11 + $0x18] sm:$0xff]
    %v2397 = vld [vmem:[#allocation11 + $0x20] sm:$0xff]
    %v2398 = vld [vmem:[#allocation11 + $0x28] sm:$0xff]
    %v2399 = vld [vmem:[#allocation11 + $0x30] sm:$0xff]
    %v2400 = vld [vmem:[#allocation11 + $0x38] sm:$0xff]
    %v2409 = vunpack.c.l.b16 %v2393
    %v2410 = vunpack.c.h.b16 %v2393
    %v2411 = vunpack.c.l.b16 %v2394
    %v2412 = vunpack.c.h.b16 %v2394
    %v2413 = vunpack.c.l.b16 %v2395
    %v2414 = vunpack.c.h.b16 %v2395
    %v2415 = vunpack.c.l.b16 %v2396
    %v2416 = vunpack.c.h.b16 %v2396
    %v2417 = vunpack.c.l.b16 %v2397
    %v2418 = vunpack.c.h.b16 %v2397
    %v2419 = vunpack.c.l.b16 %v2398
    %v2420 = vunpack.c.h.b16 %v2398
    %v2421 = vunpack.c.l.b16 %v2399
    %v2422 = vunpack.c.h.b16 %v2399
    %v2423 = vunpack.c.l.b16 %v2400
    %v2424 = vunpack.c.h.b16 %v2400
    %v2425 = vpack.c.b16 %v2411, %v2409
    %v2426 = vpack.c.b16 %v2412, %v2410
    %v2427 = vpack.c.b16 %v2415, %v2413
    %v2428 = vpack.c.b16 %v2416, %v2414
    %v2429 = vpack.c.b16 %v2419, %v2417
    %v2430 = vpack.c.b16 %v2420, %v2418
    %v2431 = vpack.c.b16 %v2423, %v2421
    %v2432 = vpack.c.b16 %v2424, %v2422
    %2441 = vmatprep.subr.bf16.mxu0 %v2426
    %2442 = vmatpush1.bf16.msra.mxu0 %v2425
    %2443 = vmatprep.subr.bf16.mxu0 %v2428
    %2444 = vmatpush1.bf16.msra.mxu0 %v2427
    %2445 = vmatprep.subr.bf16.mxu0 %v2430
    %2446 = vmatpush1.bf16.msra.mxu0 %v2429
    %2447 = vmatprep.subr.bf16.mxu0 %v2432
    %2448 = vmatpush1.bf16.msra.mxu0 %v2431
    %2449 = vmatprep.subr.bf16.mxu0 0
    %2450 = vmatpush1.bf16.msra.mxu0 0
    %2451 = vmatprep.subr.bf16.mxu0 0
    %2452 = vmatpush1.bf16.msra.mxu0 0
    %2453 = vmatprep.subr.bf16.mxu0 0
    %2454 = vmatpush1.bf16.msra.mxu0 0
    %2455 = vmatprep.subr.bf16.mxu0 0
    %2456 = vmatpush1.bf16.msra.mxu0 0
    %2457 = vmatprep.subr.bf16.mxu0 0
    %2458 = vmatpush1.bf16.msra.mxu0 0
    %2459 = vmatprep.subr.bf16.mxu0 0
    %2460 = vmatpush1.bf16.msra.mxu0 0
    %2461 = vmatprep.subr.bf16.mxu0 0
    %2462 = vmatpush1.bf16.msra.mxu0 0
    %2463 = vmatprep.subr.bf16.mxu0 0
    %2464 = vmatpush1.bf16.msra.mxu0 0
    %2465 = vmatprep.subr.bf16.mxu0 0
    %2466 = vmatpush1.bf16.msra.mxu0 0
    %2467 = vmatprep.subr.bf16.mxu0 0
    %2468 = vmatpush1.bf16.msra.mxu0 0
    %2469 = vmatprep.subr.bf16.mxu0 0
    %2470 = vmatpush1.bf16.msra.mxu0 0
    %2471 = vmatprep.subr.bf16.mxu0 0
    %2472 = vmatpush1.bf16.msra.mxu0 0
    %2473 = vmatprep.mubr.bf16.mxu0 0
    %2474 = vmatmul.mubr.bf16.gmra.mrb[0].mxu0 %v1937
    %v2475 = vpop.f32.mrb[0].mxu0
    %v2476 = vadd.f32 0.0, %v2475
    %v2477 = vpop.f32.mrb[0].mxu0
    %v2478 = vadd.f32 0.0, %v2477
    %v2479 = vpop.f32.mrb[0].mxu0
    %v2480 = vpop.f32.mrb[0].mxu0
    %2481 = vdwg.mxu0
    %v2482 = vadd.f32 %v2391, %v2476
    %v2483 = vadd.f32 %v2392, %v2478
    %v2484 = vxor.u32 %v2482, 2147483648
    %v2485 = vxor.u32 %v2483, 2147483648
    %v2486 = vmul.f32 %v2484, 1.442695
    %v2487 = vpow.pop %v2486
    %v2488 = vmul.f32 %v2485, 1.442695
    %v2489 = vpow.pop %v2488
    %v2490 = vadd.f32 %v2487, 1.0
    %v2491 = vadd.f32 %v2489, 1.0
    %v2492 = vrcp.pop %v2490
    %v2493 = vmul.f32 1.0, %v2492
    %v2494 = vrcp.pop %v2491
    %v2495 = vmul.f32 1.0, %v2494
    %v2496 = vtanh.pop %v2483
    %v2497 = vmul.f32 %v2493, 0.0
    %v2498 = vmul.f32 %v2493, %v2496
    %2500 = vrot.lane.b32.xlu0 %v2498, 64
    %v2501 = vpop.permute.xlu0 %2500
    %v2503 = vadd.f32 %v2497, %v2501
    %v2504 = vtanh.pop %v2503
    %v2505 = vmul.f32 %v2495, %v2504
    %v2506 = vrot.slane %v2379, 2
    %v2507 = vrot.slane %v2381, 2
    %v2510 = vsel %vm1764, %v2379, %v2506
    %v2511 = vsel %vm1765, %v2381, %v2507
    %v2512 = vpack.c.bf16 %v2505, %v2505
    %2514 = vrot.lane.b32.xlu0 %v2512, 64
    %v2515 = vpop.permute.xlu0 %2514
    %v2517 = vsel %vm1229, %v2515, 0
    %2519 = vmatprep.subr.bf16.mxu0 %v2426
    %2520 = vmatpush1.bf16.msra.mxu0 %v2425
    %2521 = vmatprep.subr.bf16.mxu0 %v2428
    %2522 = vmatpush1.bf16.msra.mxu0 %v2427
    %2523 = vmatprep.subr.bf16.mxu0 %v2430
    %2524 = vmatpush1.bf16.msra.mxu0 %v2429
    %2525 = vmatprep.subr.bf16.mxu0 %v2432
    %2526 = vmatpush1.bf16.msra.mxu0 %v2431
    %2527 = vmatprep.subr.bf16.mxu0 0
    %2528 = vmatpush1.bf16.msra.mxu0 0
    %2529 = vmatprep.subr.bf16.mxu0 0
    %2530 = vmatpush1.bf16.msra.mxu0 0
    %2531 = vmatprep.subr.bf16.mxu0 0
    %2532 = vmatpush1.bf16.msra.mxu0 0
    %2533 = vmatprep.subr.bf16.mxu0 0
    %2534 = vmatpush1.bf16.msra.mxu0 0
    %2535 = vmatprep.subr.bf16.mxu0 0
    %2536 = vmatpush1.bf16.msra.mxu0 0
    %2537 = vmatprep.subr.bf16.mxu0 0
    %2538 = vmatpush1.bf16.msra.mxu0 0
    %2539 = vmatprep.subr.bf16.mxu0 0
    %2540 = vmatpush1.bf16.msra.mxu0 0
    %2541 = vmatprep.subr.bf16.mxu0 0
    %2542 = vmatpush1.bf16.msra.mxu0 0
    %2543 = vmatprep.subr.bf16.mxu0 0
    %2544 = vmatpush1.bf16.msra.mxu0 0
    %2545 = vmatprep.subr.bf16.mxu0 0
    %2546 = vmatpush1.bf16.msra.mxu0 0
    %2547 = vmatprep.subr.bf16.mxu0 0
    %2548 = vmatpush1.bf16.msra.mxu0 0
    %2549 = vmatprep.subr.bf16.mxu0 0
    %2550 = vmatpush1.bf16.msra.mxu0 0
    %2551 = vmatprep.mubr.bf16.mxu0 0
    %2552 = vmatmul.mubr.bf16.gmra.mrb[0].mxu0 %v2517
    %v2553 = vpop.f32.mrb[0].mxu0
    %v2554 = vadd.f32 0.0, %v2553
    %v2555 = vpop.f32.mrb[0].mxu0
    %v2556 = vadd.f32 0.0, %v2555
    %v2557 = vpop.f32.mrb[0].mxu0
    %v2558 = vpop.f32.mrb[0].mxu0
    %2559 = vdwg.mxu0
    %v2562 = vrot.slane %v2554, 6
    %v2563 = vrot.slane %v2556, 6
    %v2566 = vadd.f32 %v2510, %v2562
    %v2567 = vadd.f32 %v2511, %v2563
    %v2568 = vxor.u32 %v2566, 2147483648
    %v2569 = vxor.u32 %v2567, 2147483648
    %v2570 = vmul.f32 %v2568, 1.442695
    %v2571 = vpow.pop %v2570
    %v2572 = vmul.f32 %v2569, 1.442695
    %v2573 = vpow.pop %v2572
    %v2574 = vadd.f32 %v2571, 1.0
    %v2575 = vadd.f32 %v2573, 1.0
    %v2576 = vrcp.pop %v2574
    %v2577 = vmul.f32 1.0, %v2576
    %v2578 = vrcp.pop %v2575
    %v2579 = vmul.f32 1.0, %v2578
    %v2580 = vtanh.pop %v2567
    %v2582 = vrot.slane %v2503, 6
    %v2584 = vmul.f32 %v2577, %v2582
    %v2585 = vmul.f32 %v2577, %v2580
    %2587 = vrot.lane.b32.xlu0 %v2585, 64
    %v2588 = vpop.permute.xlu0 %2587
    %v2590 = vadd.f32 %v2584, %v2588
    %v2591 = vtanh.pop %v2590
    %v2592 = vmul.f32 %v2579, %v2591
    %v2593 = vpack.c.bf16 %v2592, %v2592
    %v2595 = vrot.slane %v2593, 1
    %2596 = vrot.lane.b32.xlu0 %v2595, 64
    %v2597 = vpop.permute.xlu0 %2596
    %v2599 = vsel %vm1229, %v2597, 0
    %2601 = vmatprep.subr.bf16.mxu0 %v2426
    %2602 = vmatpush1.bf16.msra.mxu0 %v2425
    %2603 = vmatprep.subr.bf16.mxu0 %v2428
    %2604 = vmatpush1.bf16.msra.mxu0 %v2427
    %2605 = vmatprep.subr.bf16.mxu0 %v2430
    %2606 = vmatpush1.bf16.msra.mxu0 %v2429
    %2607 = vmatprep.subr.bf16.mxu0 %v2432
    %2608 = vmatpush1.bf16.msra.mxu0 %v2431
    %2609 = vmatprep.subr.bf16.mxu0 0
    %2610 = vmatpush1.bf16.msra.mxu0 0
    %2611 = vmatprep.subr.bf16.mxu0 0
    %2612 = vmatpush1.bf16.msra.mxu0 0
    %2613 = vmatprep.subr.bf16.mxu0 0
    %2614 = vmatpush1.bf16.msra.mxu0 0
    %2615 = vmatprep.subr.bf16.mxu0 0
    %2616 = vmatpush1.bf16.msra.mxu0 0
    %2617 = vmatprep.subr.bf16.mxu0 0
    %2618 = vmatpush1.bf16.msra.mxu0 0
    %2619 = vmatprep.subr.bf16.mxu0 0
    %2620 = vmatpush1.bf16.msra.mxu0 0
    %2621 = vmatprep.subr.bf16.mxu0 0
    %2622 = vmatpush1.bf16.msra.mxu0 0
    %2623 = vmatprep.subr.bf16.mxu0 0
    %2624 = vmatpush1.bf16.msra.mxu0 0
    %2625 = vmatprep.subr.bf16.mxu0 0
    %2626 = vmatpush1.bf16.msra.mxu0 0
    %2627 = vmatprep.subr.bf16.mxu0 0
    %2628 = vmatpush1.bf16.msra.mxu0 0
    %2629 = vmatprep.subr.bf16.mxu0 0
    %2630 = vmatpush1.bf16.msra.mxu0 0
    %2631 = vmatprep.subr.bf16.mxu0 0
    %2632 = vmatpush1.bf16.msra.mxu0 0
    %2633 = vmatprep.mubr.bf16.mxu0 0
    %2634 = vmatmul.mubr.bf16.gmra.mrb[0].mxu0 %v2599
    %v2635 = vpop.f32.mrb[0].mxu0
    %v2636 = vadd.f32 0.0, %v2635
    %v2637 = vpop.f32.mrb[0].mxu0
    %v2638 = vadd.f32 0.0, %v2637
    %v2639 = vpop.f32.mrb[0].mxu0
    %v2640 = vpop.f32.mrb[0].mxu0
    %2641 = vdwg.mxu0
    %v2644 = vrot.slane %v2636, 4
    %v2645 = vrot.slane %v2638, 4
    %v2648 = vadd.f32 %v2391, %v2644
    %v2649 = vadd.f32 %v2392, %v2645
    %v2650 = vxor.u32 %v2648, 2147483648
    %v2651 = vxor.u32 %v2649, 2147483648
    %v2652 = vmul.f32 %v2650, 1.442695
    %v2653 = vpow.pop %v2652
    %v2654 = vmul.f32 %v2651, 1.442695
    %v2655 = vpow.pop %v2654
    %v2656 = vadd.f32 %v2653, 1.0
    %v2657 = vadd.f32 %v2655, 1.0
    %v2658 = vrcp.pop %v2656
    %v2659 = vmul.f32 1.0, %v2658
    %v2660 = vrcp.pop %v2657
    %v2661 = vmul.f32 1.0, %v2660
    %v2662 = vtanh.pop %v2649
    %v2664 = vrot.slane %v2590, 6
    %v2666 = vmul.f32 %v2659, %v2664
    %v2667 = vmul.f32 %v2659, %v2662
    %2669 = vrot.lane.b32.xlu0 %v2667, 64
    %v2670 = vpop.permute.xlu0 %2669
    %v2672 = vadd.f32 %v2666, %v2670
    %v2673 = vtanh.pop %v2672
    %v2674 = vmul.f32 %v2661, %v2673
    %v2675 = vpack.c.bf16 %v2674, %v2674
    %v2677 = vrot.slane %v2675, 2
    %2678 = vrot.lane.b32.xlu0 %v2677, 64
    %v2679 = vpop.permute.xlu0 %2678
    %v2681 = vsel %vm1229, %v2679, 0
    %2683 = vmatprep.subr.bf16.mxu0 %v2426
    %2684 = vmatpush1.bf16.msra.mxu0 %v2425
    %2685 = vmatprep.subr.bf16.mxu0 %v2428
    %2686 = vmatpush1.bf16.msra.mxu0 %v2427
    %2687 = vmatprep.subr.bf16.mxu0 %v2430
    %2688 = vmatpush1.bf16.msra.mxu0 %v2429
    %2689 = vmatprep.subr.bf16.mxu0 %v2432
    %2690 = vmatpush1.bf16.msra.mxu0 %v2431
    %2691 = vmatprep.subr.bf16.mxu0 0
    %2692 = vmatpush1.bf16.msra.mxu0 0
    %2693 = vmatprep.subr.bf16.mxu0 0
    %2694 = vmatpush1.bf16.msra.mxu0 0
    %2695 = vmatprep.subr.bf16.mxu0 0
    %2696 = vmatpush1.bf16.msra.mxu0 0
    %2697 = vmatprep.subr.bf16.mxu0 0
    %2698 = vmatpush1.bf16.msra.mxu0 0
    %2699 = vmatprep.subr.bf16.mxu0 0
    %2700 = vmatpush1.bf16.msra.mxu0 0
    %2701 = vmatprep.subr.bf16.mxu0 0
    %2702 = vmatpush1.bf16.msra.mxu0 0
    %2703 = vmatprep.subr.bf16.mxu0 0
    %2704 = vmatpush1.bf16.msra.mxu0 0
    %2705 = vmatprep.subr.bf16.mxu0 0
    %2706 = vmatpush1.bf16.msra.mxu0 0
    %2707 = vmatprep.subr.bf16.mxu0 0
    %2708 = vmatpush1.bf16.msra.mxu0 0
    %2709 = vmatprep.subr.bf16.mxu0 0
    %2710 = vmatpush1.bf16.msra.mxu0 0
    %2711 = vmatprep.subr.bf16.mxu0 0
    %2712 = vmatpush1.bf16.msra.mxu0 0
    %2713 = vmatprep.subr.bf16.mxu0 0
    %2714 = vmatpush1.bf16.msra.mxu0 0
    %2715 = vmatprep.mubr.bf16.mxu0 0
    %2716 = vmatmul.mubr.bf16.gmra.mrb[0].mxu0 %v2681
    %v2717 = vpop.f32.mrb[0].mxu0
    %v2718 = vadd.f32 0.0, %v2717
    %v2719 = vpop.f32.mrb[0].mxu0
    %v2720 = vadd.f32 0.0, %v2719
    %v2721 = vpop.f32.mrb[0].mxu0
    %v2722 = vpop.f32.mrb[0].mxu0
    %2723 = vdwg.mxu0
    %v2726 = vrot.slane %v2718, 2
    %v2727 = vrot.slane %v2720, 2
    %v2730 = vadd.f32 %v2510, %v2726
    %v2731 = vadd.f32 %v2511, %v2727
    %v2732 = vxor.u32 %v2730, 2147483648
    %v2733 = vxor.u32 %v2731, 2147483648
    %v2734 = vmul.f32 %v2732, 1.442695
    %v2735 = vpow.pop %v2734
    %v2736 = vmul.f32 %v2733, 1.442695
    %v2737 = vpow.pop %v2736
    %v2738 = vadd.f32 %v2735, 1.0
    %v2739 = vadd.f32 %v2737, 1.0
    %v2740 = vrcp.pop %v2738
    %v2741 = vmul.f32 1.0, %v2740
    %v2742 = vrcp.pop %v2739
    %v2743 = vmul.f32 1.0, %v2742
    %v2744 = vtanh.pop %v2731
    %v2746 = vrot.slane %v2672, 6
    %v2748 = vmul.f32 %v2741, %v2746
    %v2749 = vmul.f32 %v2741, %v2744
    %2751 = vrot.lane.b32.xlu0 %v2749, 64
    %v2752 = vpop.permute.xlu0 %2751
    %v2754 = vadd.f32 %v2748, %v2752
    %v2755 = vtanh.pop %v2754
    %v2756 = vmul.f32 %v2743, %v2755
    %v2758 = vrot.slane %v2756, 6
    %2759 = vrot.lane.b32.xlu0 %v2758, 64
    %v2760 = vpop.permute.xlu0 %2759
    %2763 = vrot.lane.b32.xlu0 %v2505, 64
    %v2764 = vpop.permute.xlu0 %2763
    %v2766 = vsel %vm1766, %v2760, %v2764
    %v2767 = vld [vmem:[%s1] sm:$0xff]
    %v2768 = vld [vmem:[%s1 + $0x8] sm:$0xff]
    %v2769 = vpack.c.bf16 %v2768, %v2767
    %v2770 = vld [vmem:[#allocation14] sm:$0xff]
    %v2771 = vld [vmem:[#allocation14 + $0x8] sm:$0xff]
    %v2772 = vld [vmem:[#allocation14 + $0x10] sm:$0xff]
    %v2773 = vld [vmem:[#allocation14 + $0x18] sm:$0xff]
    %v2774 = vld [vmem:[#allocation14 + $0x20] sm:$0xff]
    %v2775 = vld [vmem:[#allocation14 + $0x28] sm:$0xff]
    %v2776 = vld [vmem:[#allocation14 + $0x30] sm:$0xff]
    %v2777 = vld [vmem:[#allocation14 + $0x38] sm:$0x33]
    %v2778 = vld [vmem:[#allocation17] sm:$0x3]
    %v2780 = vlaneseq
    %v2781 = vshrl.u32 %v2780, 7
    %v2782 = vsub.s32 0, %v2781
    %v2783 = vrot.slane %v2778, %v2782
    %v2784 = vlaneseq
    %v2785 = vshrl.u32 %v2784, 7
    %v2786 = vsub.s32 1, %v2785
    %v2787 = vrot.slane %v2778, %v2786
    %v2798 = vunpack.c.l.b16 %v2770
    %v2799 = vunpack.c.h.b16 %v2770
    %v2800 = vunpack.c.l.b16 %v2771
    %v2801 = vunpack.c.h.b16 %v2771
    %v2802 = vunpack.c.l.b16 %v2772
    %v2803 = vunpack.c.h.b16 %v2772
    %v2804 = vunpack.c.l.b16 %v2773
    %v2805 = vunpack.c.h.b16 %v2773
    %v2806 = vunpack.c.l.b16 %v2774
    %v2807 = vunpack.c.h.b16 %v2774
    %v2808 = vunpack.c.l.b16 %v2775
    %v2809 = vunpack.c.h.b16 %v2775
    %v2810 = vunpack.c.l.b16 %v2776
    %v2811 = vunpack.c.h.b16 %v2776
    %v2812 = vunpack.c.l.b16 %v2777
    %v2813 = vunpack.c.h.b16 %v2777
    %v2814 = vpack.c.b16 %v2800, %v2798
    %v2815 = vpack.c.b16 %v2801, %v2799
    %v2816 = vpack.c.b16 %v2804, %v2802
    %v2817 = vpack.c.b16 %v2805, %v2803
    %v2818 = vpack.c.b16 %v2808, %v2806
    %v2819 = vpack.c.b16 %v2809, %v2807
    %v2820 = vpack.c.b16 %v2812, %v2810
    %v2821 = vpack.c.b16 %v2813, %v2811
    %vm2828 = vcmask 490496
    %v2830 = vsel %vm2828, %v2769, 0
    %v2833 = vsel %vm641, %v2820, 0
    %v2836 = vsel %vm641, %v2821, 0
    %2838 = vmatprep.subr.bf16.mxu0 %v2815
    %2839 = vmatpush1.bf16.msra.mxu0 %v2814
    %2840 = vmatprep.subr.bf16.mxu0 %v2817
    %2841 = vmatpush1.bf16.msra.mxu0 %v2816
    %2842 = vmatprep.subr.bf16.mxu0 %v2819
    %2843 = vmatpush1.bf16.msra.mxu0 %v2818
    %2844 = vmatprep.subr.bf16.mxu0 %v2836
    %2845 = vmatpush1.bf16.msra.mxu0 %v2833
    %2846 = vmatprep.subr.bf16.mxu0 0
    %2847 = vmatpush1.bf16.msra.mxu0 0
    %2848 = vmatprep.subr.bf16.mxu0 0
    %2849 = vmatpush1.bf16.msra.mxu0 0
    %2850 = vmatprep.subr.bf16.mxu0 0
    %2851 = vmatpush1.bf16.msra.mxu0 0
    %2852 = vmatprep.subr.bf16.mxu0 0
    %2853 = vmatpush1.bf16.msra.mxu0 0
    %2854 = vmatprep.subr.bf16.mxu0 0
    %2855 = vmatpush1.bf16.msra.mxu0 0
    %2856 = vmatprep.subr.bf16.mxu0 0
    %2857 = vmatpush1.bf16.msra.mxu0 0
    %2858 = vmatprep.subr.bf16.mxu0 0
    %2859 = vmatpush1.bf16.msra.mxu0 0
    %2860 = vmatprep.subr.bf16.mxu0 0
    %2861 = vmatpush1.bf16.msra.mxu0 0
    %2862 = vmatprep.subr.bf16.mxu0 0
    %2863 = vmatpush1.bf16.msra.mxu0 0
    %2864 = vmatprep.subr.bf16.mxu0 0
    %2865 = vmatpush1.bf16.msra.mxu0 0
    %2866 = vmatprep.subr.bf16.mxu0 0
    %2867 = vmatpush1.bf16.msra.mxu0 0
    %2868 = vmatprep.subr.bf16.mxu0 0
    %2869 = vmatpush1.bf16.msra.mxu0 0
    %2870 = vmatprep.mubr.bf16.mxu0 0
    %2871 = vmatmul.mubr.bf16.gmra.mrb[0].mxu0 %v2830
    %v2872 = vpop.f32.mrb[0].mxu0
    %v2873 = vadd.f32 %v2783, %v2872
    %v2874 = vpop.f32.mrb[0].mxu0
    %v2875 = vadd.f32 %v2787, %v2874
    %v2876 = vpop.f32.mrb[0].mxu0
    %v2877 = vadd.f32 %v2783, %v2876
    %v2878 = vpop.f32.mrb[0].mxu0
    %v2879 = vadd.f32 %v2787, %v2878
    %2880 = vdwg.mxu0
    %v2883 = vrot.slane %v2877, 7
    %v2884 = vrot.slane %v2879, 7
    %v2887 = vsel %vm327, %v2873, %v2883
    %v2888 = vsel %vm327, %v2875, %v2884
    %v2891 = vrot.slane %v2873, 7
    %v2892 = vrot.slane %v2875, 7
    %v2895 = vrot.slane %v2877, 6
    %v2896 = vrot.slane %v2879, 6
    %v2899 = vsel %vm327, %v2891, %v2895
    %v2900 = vsel %vm327, %v2892, %v2896
    %v2901 = vsel %vm1764, %v2887, %v2899
    %v2902 = vsel %vm1765, %v2888, %v2900
    %v2903 = vld [vmem:[#allocation16] sm:$0xff]
    %v2904 = vld [vmem:[#allocation16 + $0x8] sm:$0xff]
    %v2905 = vld [vmem:[#allocation16 + $0x10] sm:$0xff]
    %v2906 = vld [vmem:[#allocation16 + $0x18] sm:$0xff]
    %v2907 = vld [vmem:[#allocation16 + $0x20] sm:$0xff]
    %v2908 = vld [vmem:[#allocation16 + $0x28] sm:$0xff]
    %v2909 = vld [vmem:[#allocation16 + $0x30] sm:$0xff]
    %v2910 = vld [vmem:[#allocation16 + $0x38] sm:$0xff]
    %v2919 = vunpack.c.l.b16 %v2903
    %v2920 = vunpack.c.h.b16 %v2903
    %v2921 = vunpack.c.l.b16 %v2904
    %v2922 = vunpack.c.h.b16 %v2904
    %v2923 = vunpack.c.l.b16 %v2905
    %v2924 = vunpack.c.h.b16 %v2905
    %v2925 = vunpack.c.l.b16 %v2906
    %v2926 = vunpack.c.h.b16 %v2906
    %v2927 = vunpack.c.l.b16 %v2907
    %v2928 = vunpack.c.h.b16 %v2907
    %v2929 = vunpack.c.l.b16 %v2908
    %v2930 = vunpack.c.h.b16 %v2908
    %v2931 = vunpack.c.l.b16 %v2909
    %v2932 = vunpack.c.h.b16 %v2909
    %v2933 = vunpack.c.l.b16 %v2910
    %v2934 = vunpack.c.h.b16 %v2910
    %v2935 = vpack.c.b16 %v2921, %v2919
    %v2936 = vpack.c.b16 %v2922, %v2920
    %v2937 = vpack.c.b16 %v2925, %v2923
    %v2938 = vpack.c.b16 %v2926, %v2924
    %v2939 = vpack.c.b16 %v2929, %v2927
    %v2940 = vpack.c.b16 %v2930, %v2928
    %v2941 = vpack.c.b16 %v2933, %v2931
    %v2942 = vpack.c.b16 %v2934, %v2932
    %2951 = vmatprep.subr.bf16.mxu0 %v2936
    %2952 = vmatpush1.bf16.msra.mxu0 %v2935
    %2953 = vmatprep.subr.bf16.mxu0 %v2938
    %2954 = vmatpush1.bf16.msra.mxu0 %v2937
    %2955 = vmatprep.subr.bf16.mxu0 %v2940
    %2956 = vmatpush1.bf16.msra.mxu0 %v2939
    %2957 = vmatprep.subr.bf16.mxu0 %v2942
    %2958 = vmatpush1.bf16.msra.mxu0 %v2941
    %2959 = vmatprep.subr.bf16.mxu0 0
    %2960 = vmatpush1.bf16.msra.mxu0 0
    %2961 = vmatprep.subr.bf16.mxu0 0
    %2962 = vmatpush1.bf16.msra.mxu0 0
    %2963 = vmatprep.subr.bf16.mxu0 0
    %2964 = vmatpush1.bf16.msra.mxu0 0
    %2965 = vmatprep.subr.bf16.mxu0 0
    %2966 = vmatpush1.bf16.msra.mxu0 0
    %2967 = vmatprep.subr.bf16.mxu0 0
    %2968 = vmatpush1.bf16.msra.mxu0 0
    %2969 = vmatprep.subr.bf16.mxu0 0
    %2970 = vmatpush1.bf16.msra.mxu0 0
    %2971 = vmatprep.subr.bf16.mxu0 0
    %2972 = vmatpush1.bf16.msra.mxu0 0
    %2973 = vmatprep.subr.bf16.mxu0 0
    %2974 = vmatpush1.bf16.msra.mxu0 0
    %2975 = vmatprep.subr.bf16.mxu0 0
    %2976 = vmatpush1.bf16.msra.mxu0 0
    %2977 = vmatprep.subr.bf16.mxu0 0
    %2978 = vmatpush1.bf16.msra.mxu0 0
    %2979 = vmatprep.subr.bf16.mxu0 0
    %2980 = vmatpush1.bf16.msra.mxu0 0
    %2981 = vmatprep.subr.bf16.mxu0 0
    %2982 = vmatpush1.bf16.msra.mxu0 0
    %2983 = vmatprep.mubr.bf16.mxu0 0
    %2984 = vmatmul.mubr.bf16.gmra.mrb[0].mxu0 %v1937
    %v2985 = vpop.f32.mrb[0].mxu0
    %v2986 = vadd.f32 0.0, %v2985
    %v2987 = vpop.f32.mrb[0].mxu0
    %v2988 = vadd.f32 0.0, %v2987
    %v2989 = vpop.f32.mrb[0].mxu0
    %v2990 = vpop.f32.mrb[0].mxu0
    %2991 = vdwg.mxu0
    %v2992 = vadd.f32 %v2901, %v2986
    %v2993 = vadd.f32 %v2902, %v2988
    %v2994 = vxor.u32 %v2992, 2147483648
    %v2995 = vxor.u32 %v2993, 2147483648
    %v2996 = vmul.f32 %v2994, 1.442695
    %v2997 = vpow.pop %v2996
    %v2998 = vmul.f32 %v2995, 1.442695
    %v2999 = vpow.pop %v2998
    %v3000 = vadd.f32 %v2997, 1.0
    %v3001 = vadd.f32 %v2999, 1.0
    %v3002 = vrcp.pop %v3000
    %v3003 = vmul.f32 1.0, %v3002
    %v3004 = vrcp.pop %v3001
    %v3005 = vmul.f32 1.0, %v3004
    %v3006 = vtanh.pop %v2993
    %v3007 = vmul.f32 %v3003, 0.0
    %v3008 = vmul.f32 %v3003, %v3006
    %3010 = vrot.lane.b32.xlu0 %v3008, 64
    %v3011 = vpop.permute.xlu0 %3010
    %v3013 = vadd.f32 %v3007, %v3011
    %v3014 = vtanh.pop %v3013
    %v3015 = vmul.f32 %v3005, %v3014
    %v3016 = vrot.slane %v2873, 1
    %v3017 = vrot.slane %v2875, 1
    %v3020 = vsel %vm327, %v3016, %v2877
    %v3021 = vsel %vm327, %v3017, %v2879
    %v3022 = vrot.slane %v2873, 6
    %v3023 = vrot.slane %v2875, 6
    %v3026 = vrot.slane %v2877, 5
    %v3027 = vrot.slane %v2879, 5
    %v3030 = vsel %vm327, %v3022, %v3026
    %v3031 = vsel %vm327, %v3023, %v3027
    %v3032 = vsel %vm1764, %v3020, %v3030
    %v3033 = vsel %vm1765, %v3021, %v3031
    %v3034 = vpack.c.bf16 %v3015, %v3015
    %3036 = vrot.lane.b32.xlu0 %v3034, 64
    %v3037 = vpop.permute.xlu0 %3036
    %v3039 = vsel %vm1229, %v3037, 0
    %3041 = vmatprep.subr.bf16.mxu0 %v2936
    %3042 = vmatpush1.bf16.msra.mxu0 %v2935
    %3043 = vmatprep.subr.bf16.mxu0 %v2938
    %3044 = vmatpush1.bf16.msra.mxu0 %v2937
    %3045 = vmatprep.subr.bf16.mxu0 %v2940
    %3046 = vmatpush1.bf16.msra.mxu0 %v2939
    %3047 = vmatprep.subr.bf16.mxu0 %v2942
    %3048 = vmatpush1.bf16.msra.mxu0 %v2941
    %3049 = vmatprep.subr.bf16.mxu0 0
    %3050 = vmatpush1.bf16.msra.mxu0 0
    %3051 = vmatprep.subr.bf16.mxu0 0
    %3052 = vmatpush1.bf16.msra.mxu0 0
    %3053 = vmatprep.subr.bf16.mxu0 0
    %3054 = vmatpush1.bf16.msra.mxu0 0
    %3055 = vmatprep.subr.bf16.mxu0 0
    %3056 = vmatpush1.bf16.msra.mxu0 0
    %3057 = vmatprep.subr.bf16.mxu0 0
    %3058 = vmatpush1.bf16.msra.mxu0 0
    %3059 = vmatprep.subr.bf16.mxu0 0
    %3060 = vmatpush1.bf16.msra.mxu0 0
    %3061 = vmatprep.subr.bf16.mxu0 0
    %3062 = vmatpush1.bf16.msra.mxu0 0
    %3063 = vmatprep.subr.bf16.mxu0 0
    %3064 = vmatpush1.bf16.msra.mxu0 0
    %3065 = vmatprep.subr.bf16.mxu0 0
    %3066 = vmatpush1.bf16.msra.mxu0 0
    %3067 = vmatprep.subr.bf16.mxu0 0
    %3068 = vmatpush1.bf16.msra.mxu0 0
    %3069 = vmatprep.subr.bf16.mxu0 0
    %3070 = vmatpush1.bf16.msra.mxu0 0
    %3071 = vmatprep.subr.bf16.mxu0 0
    %3072 = vmatpush1.bf16.msra.mxu0 0
    %3073 = vmatprep.mubr.bf16.mxu0 0
    %3074 = vmatmul.mubr.bf16.gmra.mrb[0].mxu0 %v3039
    %v3075 = vpop.f32.mrb[0].mxu0
    %v3076 = vadd.f32 0.0, %v3075
    %v3077 = vpop.f32.mrb[0].mxu0
    %v3078 = vadd.f32 0.0, %v3077
    %v3079 = vpop.f32.mrb[0].mxu0
    %v3080 = vpop.f32.mrb[0].mxu0
    %3081 = vdwg.mxu0
    %v3082 = vadd.f32 %v3032, %v3076
    %v3083 = vadd.f32 %v3033, %v3078
    %v3084 = vxor.u32 %v3082, 2147483648
    %v3085 = vxor.u32 %v3083, 2147483648
    %v3086 = vmul.f32 %v3084, 1.442695
    %v3087 = vpow.pop %v3086
    %v3088 = vmul.f32 %v3085, 1.442695
    %v3089 = vpow.pop %v3088
    %v3090 = vadd.f32 %v3087, 1.0
    %v3091 = vadd.f32 %v3089, 1.0
    %v3092 = vrcp.pop %v3090
    %v3093 = vmul.f32 1.0, %v3092
    %v3094 = vrcp.pop %v3091
    %v3095 = vmul.f32 1.0, %v3094
    %v3096 = vtanh.pop %v3083
    %v3097 = vmul.f32 %v3093, %v3013
    %v3098 = vmul.f32 %v3093, %v3096
    %3100 = vrot.lane.b32.xlu0 %v3098, 64
    %v3101 = vpop.permute.xlu0 %3100
    %v3103 = vadd.f32 %v3097, %v3101
    %v3104 = vtanh.pop %v3103
    %v3105 = vmul.f32 %v3095, %v3104
    %v3106 = vrot.slane %v2873, 2
    %v3107 = vrot.slane %v2875, 2
    %v3110 = vrot.slane %v2877, 1
    %v3111 = vrot.slane %v2879, 1
    %v3114 = vsel %vm327, %v3106, %v3110
    %v3115 = vsel %vm327, %v3107, %v3111
    %v3116 = vrot.slane %v2873, 5
    %v3117 = vrot.slane %v2875, 5
    %v3120 = vrot.slane %v2877, 4
    %v3121 = vrot.slane %v2879, 4
    %v3124 = vsel %vm327, %v3116, %v3120
    %v3125 = vsel %vm327, %v3117, %v3121
    %v3126 = vsel %vm1764, %v3114, %v3124
    %v3127 = vsel %vm1765, %v3115, %v3125
    %v3128 = vpack.c.bf16 %v3105, %v3105
    %3130 = vrot.lane.b32.xlu0 %v3128, 64
    %v3131 = vpop.permute.xlu0 %3130
    %v3133 = vsel %vm1229, %v3131, 0
    %3135 = vmatprep.subr.bf16.mxu0 %v2936
    %3136 = vmatpush1.bf16.msra.mxu0 %v2935
    %3137 = vmatprep.subr.bf16.mxu0 %v2938
    %3138 = vmatpush1.bf16.msra.mxu0 %v2937
    %3139 = vmatprep.subr.bf16.mxu0 %v2940
    %3140 = vmatpush1.bf16.msra.mxu0 %v2939
    %3141 = vmatprep.subr.bf16.mxu0 %v2942
    %3142 = vmatpush1.bf16.msra.mxu0 %v2941
    %3143 = vmatprep.subr.bf16.mxu0 0
    %3144 = vmatpush1.bf16.msra.mxu0 0
    %3145 = vmatprep.subr.bf16.mxu0 0
    %3146 = vmatpush1.bf16.msra.mxu0 0
    %3147 = vmatprep.subr.bf16.mxu0 0
    %3148 = vmatpush1.bf16.msra.mxu0 0
    %3149 = vmatprep.subr.bf16.mxu0 0
    %3150 = vmatpush1.bf16.msra.mxu0 0
    %3151 = vmatprep.subr.bf16.mxu0 0
    %3152 = vmatpush1.bf16.msra.mxu0 0
    %3153 = vmatprep.subr.bf16.mxu0 0
    %3154 = vmatpush1.bf16.msra.mxu0 0
    %3155 = vmatprep.subr.bf16.mxu0 0
    %3156 = vmatpush1.bf16.msra.mxu0 0
    %3157 = vmatprep.subr.bf16.mxu0 0
    %3158 = vmatpush1.bf16.msra.mxu0 0
    %3159 = vmatprep.subr.bf16.mxu0 0
    %3160 = vmatpush1.bf16.msra.mxu0 0
    %3161 = vmatprep.subr.bf16.mxu0 0
    %3162 = vmatpush1.bf16.msra.mxu0 0
    %3163 = vmatprep.subr.bf16.mxu0 0
    %3164 = vmatpush1.bf16.msra.mxu0 0
    %3165 = vmatprep.subr.bf16.mxu0 0
    %3166 = vmatpush1.bf16.msra.mxu0 0
    %3167 = vmatprep.mubr.bf16.mxu0 0
    %3168 = vmatmul.mubr.bf16.gmra.mrb[0].mxu0 %v3133
    %v3169 = vpop.f32.mrb[0].mxu0
    %v3170 = vadd.f32 0.0, %v3169
    %v3171 = vpop.f32.mrb[0].mxu0
    %v3172 = vadd.f32 0.0, %v3171
    %v3173 = vpop.f32.mrb[0].mxu0
    %v3174 = vpop.f32.mrb[0].mxu0
    %3175 = vdwg.mxu0
    %v3176 = vadd.f32 %v3126, %v3170
    %v3177 = vadd.f32 %v3127, %v3172
    %v3178 = vxor.u32 %v3176, 2147483648
    %v3179 = vxor.u32 %v3177, 2147483648
    %v3180 = vmul.f32 %v3178, 1.442695
    %v3181 = vpow.pop %v3180
    %v3182 = vmul.f32 %v3179, 1.442695
    %v3183 = vpow.pop %v3182
    %v3184 = vadd.f32 %v3181, 1.0
    %v3185 = vadd.f32 %v3183, 1.0
    %v3186 = vrcp.pop %v3184
    %v3187 = vmul.f32 1.0, %v3186
    %v3188 = vrcp.pop %v3185
    %v3189 = vmul.f32 1.0, %v3188
    %v3190 = vtanh.pop %v3177
    %v3191 = vmul.f32 %v3187, %v3103
    %v3192 = vmul.f32 %v3187, %v3190
    %3194 = vrot.lane.b32.xlu0 %v3192, 64
    %v3195 = vpop.permute.xlu0 %3194
    %v3197 = vadd.f32 %v3191, %v3195
    %v3198 = vtanh.pop %v3197
    %v3199 = vmul.f32 %v3189, %v3198
    %v3200 = vrot.slane %v2873, 3
    %v3201 = vrot.slane %v2875, 3
    %v3204 = vrot.slane %v2877, 2
    %v3205 = vrot.slane %v2879, 2
    %v3208 = vsel %vm327, %v3200, %v3204
    %v3209 = vsel %vm327, %v3201, %v3205
    %v3210 = vrot.slane %v2873, 4
    %v3211 = vrot.slane %v2875, 4
    %v3214 = vrot.slane %v2877, 3
    %v3215 = vrot.slane %v2879, 3
    %v3218 = vsel %vm327, %v3210, %v3214
    %v3219 = vsel %vm327, %v3211, %v3215
    %v3220 = vsel %vm1764, %v3208, %v3218
    %v3221 = vsel %vm1765, %v3209, %v3219
    %v3222 = vpack.c.bf16 %v3199, %v3199
    %3224 = vrot.lane.b32.xlu0 %v3222, 64
    %v3225 = vpop.permute.xlu0 %3224
    %v3227 = vsel %vm1229, %v3225, 0
    %3229 = vmatprep.subr.bf16.mxu0 %v2936
    %3230 = vmatpush1.bf16.msra.mxu0 %v2935
    %3231 = vmatprep.subr.bf16.mxu0 %v2938
    %3232 = vmatpush1.bf16.msra.mxu0 %v2937
    %3233 = vmatprep.subr.bf16.mxu0 %v2940
    %3234 = vmatpush1.bf16.msra.mxu0 %v2939
    %3235 = vmatprep.subr.bf16.mxu0 %v2942
    %3236 = vmatpush1.bf16.msra.mxu0 %v2941
    %3237 = vmatprep.subr.bf16.mxu0 0
    %3238 = vmatpush1.bf16.msra.mxu0 0
    %3239 = vmatprep.subr.bf16.mxu0 0
    %3240 = vmatpush1.bf16.msra.mxu0 0
    %3241 = vmatprep.subr.bf16.mxu0 0
    %3242 = vmatpush1.bf16.msra.mxu0 0
    %3243 = vmatprep.subr.bf16.mxu0 0
    %3244 = vmatpush1.bf16.msra.mxu0 0
    %3245 = vmatprep.subr.bf16.mxu0 0
    %3246 = vmatpush1.bf16.msra.mxu0 0
    %3247 = vmatprep.subr.bf16.mxu0 0
    %3248 = vmatpush1.bf16.msra.mxu0 0
    %3249 = vmatprep.subr.bf16.mxu0 0
    %3250 = vmatpush1.bf16.msra.mxu0 0
    %3251 = vmatprep.subr.bf16.mxu0 0
    %3252 = vmatpush1.bf16.msra.mxu0 0
    %3253 = vmatprep.subr.bf16.mxu0 0
    %3254 = vmatpush1.bf16.msra.mxu0 0
    %3255 = vmatprep.subr.bf16.mxu0 0
    %3256 = vmatpush1.bf16.msra.mxu0 0
    %3257 = vmatprep.subr.bf16.mxu0 0
    %3258 = vmatpush1.bf16.msra.mxu0 0
    %3259 = vmatprep.subr.bf16.mxu0 0
    %3260 = vmatpush1.bf16.msra.mxu0 0
    %3261 = vmatprep.mubr.bf16.mxu0 0
    %3262 = vmatmul.mubr.bf16.gmra.mrb[0].mxu0 %v3227
    %v3263 = vpop.f32.mrb[0].mxu0
    %v3264 = vadd.f32 0.0, %v3263
    %v3265 = vpop.f32.mrb[0].mxu0
    %v3266 = vadd.f32 0.0, %v3265
    %v3267 = vpop.f32.mrb[0].mxu0
    %v3268 = vpop.f32.mrb[0].mxu0
    %3269 = vdwg.mxu0
    %v3270 = vadd.f32 %v3220, %v3264
    %v3271 = vadd.f32 %v3221, %v3266
    %v3272 = vxor.u32 %v3270, 2147483648
    %v3273 = vxor.u32 %v3271, 2147483648
    %v3274 = vmul.f32 %v3272, 1.442695
    %v3275 = vpow.pop %v3274
    %v3276 = vmul.f32 %v3273, 1.442695
    %v3277 = vpow.pop %v3276
    %v3278 = vadd.f32 %v3275, 1.0
    %v3279 = vadd.f32 %v3277, 1.0
    %v3280 = vrcp.pop %v3278
    %v3281 = vmul.f32 1.0, %v3280
    %v3282 = vrcp.pop %v3279
    %v3283 = vmul.f32 1.0, %v3282
    %v3284 = vtanh.pop %v3271
    %v3285 = vmul.f32 %v3281, %v3197
    %v3286 = vmul.f32 %v3281, %v3284
    %3288 = vrot.lane.b32.xlu0 %v3286, 64
    %v3289 = vpop.permute.xlu0 %3288
    %v3291 = vadd.f32 %v3285, %v3289
    %v3292 = vtanh.pop %v3291
    %v3293 = vmul.f32 %v3283, %v3292
    %v3294 = vsel %vm1764, %v3218, %v3208
    %v3295 = vsel %vm1765, %v3219, %v3209
    %v3296 = vpack.c.bf16 %v3293, %v3293
    %3298 = vrot.lane.b32.xlu0 %v3296, 64
    %v3299 = vpop.permute.xlu0 %3298
    %v3301 = vsel %vm1229, %v3299, 0
    %3303 = vmatprep.subr.bf16.mxu0 %v2936
    %3304 = vmatpush1.bf16.msra.mxu0 %v2935
    %3305 = vmatprep.subr.bf16.mxu0 %v2938
    %3306 = vmatpush1.bf16.msra.mxu0 %v2937
    %3307 = vmatprep.subr.bf16.mxu0 %v2940
    %3308 = vmatpush1.bf16.msra.mxu0 %v2939
    %3309 = vmatprep.subr.bf16.mxu0 %v2942
    %3310 = vmatpush1.bf16.msra.mxu0 %v2941
    %3311 = vmatprep.subr.bf16.mxu0 0
    %3312 = vmatpush1.bf16.msra.mxu0 0
    %3313 = vmatprep.subr.bf16.mxu0 0
    %3314 = vmatpush1.bf16.msra.mxu0 0
    %3315 = vmatprep.subr.bf16.mxu0 0
    %3316 = vmatpush1.bf16.msra.mxu0 0
    %3317 = vmatprep.subr.bf16.mxu0 0
    %3318 = vmatpush1.bf16.msra.mxu0 0
    %3319 = vmatprep.subr.bf16.mxu0 0
    %3320 = vmatpush1.bf16.msra.mxu0 0
    %3321 = vmatprep.subr.bf16.mxu0 0
    %3322 = vmatpush1.bf16.msra.mxu0 0
    %3323 = vmatprep.subr.bf16.mxu0 0
    %3324 = vmatpush1.bf16.msra.mxu0 0
    %3325 = vmatprep.subr.bf16.mxu0 0
    %3326 = vmatpush1.bf16.msra.mxu0 0
    %3327 = vmatprep.subr.bf16.mxu0 0
    %3328 = vmatpush1.bf16.msra.mxu0 0
    %3329 = vmatprep.subr.bf16.mxu0 0
    %3330 = vmatpush1.bf16.msra.mxu0 0
    %3331 = vmatprep.subr.bf16.mxu0 0
    %3332 = vmatpush1.bf16.msra.mxu0 0
    %3333 = vmatprep.subr.bf16.mxu0 0
    %3334 = vmatpush1.bf16.msra.mxu0 0
    %3335 = vmatprep.mubr.bf16.mxu0 0
    %3336 = vmatmul.mubr.bf16.gmra.mrb[0].mxu0 %v3301
    %v3337 = vpop.f32.mrb[0].mxu0
    %v3338 = vadd.f32 0.0, %v3337
    %v3339 = vpop.f32.mrb[0].mxu0
    %v3340 = vadd.f32 0.0, %v3339
    %v3341 = vpop.f32.mrb[0].mxu0
    %v3342 = vpop.f32.mrb[0].mxu0
    %3343 = vdwg.mxu0
    %v3344 = vadd.f32 %v3294, %v3338
    %v3345 = vadd.f32 %v3295, %v3340
    %v3346 = vxor.u32 %v3344, 2147483648
    %v3347 = vxor.u32 %v3345, 2147483648
    %v3348 = vmul.f32 %v3346, 1.442695
    %v3349 = vpow.pop %v3348
    %v3350 = vmul.f32 %v3347, 1.442695
    %v3351 = vpow.pop %v3350
    %v3352 = vadd.f32 %v3349, 1.0
    %v3353 = vadd.f32 %v3351, 1.0
    %v3354 = vrcp.pop %v3352
    %v3355 = vmul.f32 1.0, %v3354
    %v3356 = vrcp.pop %v3353
    %v3357 = vmul.f32 1.0, %v3356
    %v3358 = vtanh.pop %v3345
    %v3359 = vmul.f32 %v3355, %v3291
    %v3360 = vmul.f32 %v3355, %v3358
    %3362 = vrot.lane.b32.xlu0 %v3360, 64
    %v3363 = vpop.permute.xlu0 %3362
    %v3365 = vadd.f32 %v3359, %v3363
    %v3366 = vtanh.pop %v3365
    %v3367 = vmul.f32 %v3357, %v3366
    %v3368 = vsel %vm1764, %v3124, %v3114
    %v3369 = vsel %vm1765, %v3125, %v3115
    %v3370 = vpack.c.bf16 %v3367, %v3367
    %3372 = vrot.lane.b32.xlu0 %v3370, 64
    %v3373 = vpop.permute.xlu0 %3372
    %v3375 = vsel %vm1229, %v3373, 0
    %3377 = vmatprep.subr.bf16.mxu0 %v2936
    %3378 = vmatpush1.bf16.msra.mxu0 %v2935
    %3379 = vmatprep.subr.bf16.mxu0 %v2938
    %3380 = vmatpush1.bf16.msra.mxu0 %v2937
    %3381 = vmatprep.subr.bf16.mxu0 %v2940
    %3382 = vmatpush1.bf16.msra.mxu0 %v2939
    %3383 = vmatprep.subr.bf16.mxu0 %v2942
    %3384 = vmatpush1.bf16.msra.mxu0 %v2941
    %3385 = vmatprep.subr.bf16.mxu0 0
    %3386 = vmatpush1.bf16.msra.mxu0 0
    %3387 = vmatprep.subr.bf16.mxu0 0
    %3388 = vmatpush1.bf16.msra.mxu0 0
    %3389 = vmatprep.subr.bf16.mxu0 0
    %3390 = vmatpush1.bf16.msra.mxu0 0
    %3391 = vmatprep.subr.bf16.mxu0 0
    %3392 = vmatpush1.bf16.msra.mxu0 0
    %3393 = vmatprep.subr.bf16.mxu0 0
    %3394 = vmatpush1.bf16.msra.mxu0 0
    %3395 = vmatprep.subr.bf16.mxu0 0
    %3396 = vmatpush1.bf16.msra.mxu0 0
    %3397 = vmatprep.subr.bf16.mxu0 0
    %3398 = vmatpush1.bf16.msra.mxu0 0
    %3399 = vmatprep.subr.bf16.mxu0 0
    %3400 = vmatpush1.bf16.msra.mxu0 0
    %3401 = vmatprep.subr.bf16.mxu0 0
    %3402 = vmatpush1.bf16.msra.mxu0 0
    %3403 = vmatprep.subr.bf16.mxu0 0
    %3404 = vmatpush1.bf16.msra.mxu0 0
    %3405 = vmatprep.subr.bf16.mxu0 0
    %3406 = vmatpush1.bf16.msra.mxu0 0
    %3407 = vmatprep.subr.bf16.mxu0 0
    %3408 = vmatpush1.bf16.msra.mxu0 0
    %3409 = vmatprep.mubr.bf16.mxu0 0
    %3410 = vmatmul.mubr.bf16.gmra.mrb[0].mxu0 %v3375
    %v3411 = vpop.f32.mrb[0].mxu0
    %v3412 = vadd.f32 0.0, %v3411
    %v3413 = vpop.f32.mrb[0].mxu0
    %v3414 = vadd.f32 0.0, %v3413
    %v3415 = vpop.f32.mrb[0].mxu0
    %v3416 = vpop.f32.mrb[0].mxu0
    %3417 = vdwg.mxu0
    %v3418 = vadd.f32 %v3368, %v3412
    %v3419 = vadd.f32 %v3369, %v3414
    %v3420 = vxor.u32 %v3418, 2147483648
    %v3421 = vxor.u32 %v3419, 2147483648
    %v3422 = vmul.f32 %v3420, 1.442695
    %v3423 = vpow.pop %v3422
    %v3424 = vmul.f32 %v3421, 1.442695
    %v3425 = vpow.pop %v3424
    %v3426 = vadd.f32 %v3423, 1.0
    %v3427 = vadd.f32 %v3425, 1.0
    %v3428 = vrcp.pop %v3426
    %v3429 = vmul.f32 1.0, %v3428
    %v3430 = vrcp.pop %v3427
    %v3431 = vmul.f32 1.0, %v3430
    %v3432 = vtanh.pop %v3419
    %v3433 = vmul.f32 %v3429, %v3365
    %v3434 = vmul.f32 %v3429, %v3432
    %3436 = vrot.lane.b32.xlu0 %v3434, 64
    %v3437 = vpop.permute.xlu0 %3436
    %v3439 = vadd.f32 %v3433, %v3437
    %v3440 = vtanh.pop %v3439
    %v3441 = vmul.f32 %v3431, %v3440
    %v3442 = vsel %vm1764, %v3030, %v3020
    %v3443 = vsel %vm1765, %v3031, %v3021
    %v3444 = vpack.c.bf16 %v3441, %v3441
    %3446 = vrot.lane.b32.xlu0 %v3444, 64
    %v3447 = vpop.permute.xlu0 %3446
    %v3449 = vsel %vm1229, %v3447, 0
    %3451 = vmatprep.subr.bf16.mxu0 %v2936
    %3452 = vmatpush1.bf16.msra.mxu0 %v2935
    %3453 = vmatprep.subr.bf16.mxu0 %v2938
    %3454 = vmatpush1.bf16.msra.mxu0 %v2937
    %3455 = vmatprep.subr.bf16.mxu0 %v2940
    %3456 = vmatpush1.bf16.msra.mxu0 %v2939
    %3457 = vmatprep.subr.bf16.mxu0 %v2942
    %3458 = vmatpush1.bf16.msra.mxu0 %v2941
    %3459 = vmatprep.subr.bf16.mxu0 0
    %3460 = vmatpush1.bf16.msra.mxu0 0
    %3461 = vmatprep.subr.bf16.mxu0 0
    %3462 = vmatpush1.bf16.msra.mxu0 0
    %3463 = vmatprep.subr.bf16.mxu0 0
    %3464 = vmatpush1.bf16.msra.mxu0 0
    %3465 = vmatprep.subr.bf16.mxu0 0
    %3466 = vmatpush1.bf16.msra.mxu0 0
    %3467 = vmatprep.subr.bf16.mxu0 0
    %3468 = vmatpush1.bf16.msra.mxu0 0
    %3469 = vmatprep.subr.bf16.mxu0 0
    %3470 = vmatpush1.bf16.msra.mxu0 0
    %3471 = vmatprep.subr.bf16.mxu0 0
    %3472 = vmatpush1.bf16.msra.mxu0 0
    %3473 = vmatprep.subr.bf16.mxu0 0
    %3474 = vmatpush1.bf16.msra.mxu0 0
    %3475 = vmatprep.subr.bf16.mxu0 0
    %3476 = vmatpush1.bf16.msra.mxu0 0
    %3477 = vmatprep.subr.bf16.mxu0 0
    %3478 = vmatpush1.bf16.msra.mxu0 0
    %3479 = vmatprep.subr.bf16.mxu0 0
    %3480 = vmatpush1.bf16.msra.mxu0 0
    %3481 = vmatprep.subr.bf16.mxu0 0
    %3482 = vmatpush1.bf16.msra.mxu0 0
    %3483 = vmatprep.mubr.bf16.mxu0 0
    %3484 = vmatmul.mubr.bf16.gmra.mrb[0].mxu0 %v3449
    %v3485 = vpop.f32.mrb[0].mxu0
    %v3486 = vadd.f32 0.0, %v3485
    %v3487 = vpop.f32.mrb[0].mxu0
    %v3488 = vadd.f32 0.0, %v3487
    %v3489 = vpop.f32.mrb[0].mxu0
    %v3490 = vpop.f32.mrb[0].mxu0
    %3491 = vdwg.mxu0
    %v3492 = vadd.f32 %v3442, %v3486
    %v3493 = vadd.f32 %v3443, %v3488
    %v3494 = vxor.u32 %v3492, 2147483648
    %v3495 = vxor.u32 %v3493, 2147483648
    %v3496 = vmul.f32 %v3494, 1.442695
    %v3497 = vpow.pop %v3496
    %v3498 = vmul.f32 %v3495, 1.442695
    %v3499 = vpow.pop %v3498
    %v3500 = vadd.f32 %v3497, 1.0
    %v3501 = vadd.f32 %v3499, 1.0
    %v3502 = vrcp.pop %v3500
    %v3503 = vmul.f32 1.0, %v3502
    %v3504 = vrcp.pop %v3501
    %v3505 = vmul.f32 1.0, %v3504
    %v3506 = vtanh.pop %v3493
    %v3507 = vmul.f32 %v3503, %v3439
    %v3508 = vmul.f32 %v3503, %v3506
    %3510 = vrot.lane.b32.xlu0 %v3508, 64
    %v3511 = vpop.permute.xlu0 %3510
    %v3513 = vadd.f32 %v3507, %v3511
    %v3514 = vtanh.pop %v3513
    %v3515 = vmul.f32 %v3505, %v3514
    %v3516 = vsel %vm1764, %v2899, %v2887
    %v3517 = vsel %vm1765, %v2900, %v2888
    %v3518 = vpack.c.bf16 %v3515, %v3515
    %3520 = vrot.lane.b32.xlu0 %v3518, 64
    %v3521 = vpop.permute.xlu0 %3520
    %v3523 = vsel %vm1229, %v3521, 0
    %3525 = vmatprep.subr.bf16.mxu0 %v2936
    %3526 = vmatpush1.bf16.msra.mxu0 %v2935
    %3527 = vmatprep.subr.bf16.mxu0 %v2938
    %3528 = vmatpush1.bf16.msra.mxu0 %v2937
    %3529 = vmatprep.subr.bf16.mxu0 %v2940
    %3530 = vmatpush1.bf16.msra.mxu0 %v2939
    %3531 = vmatprep.subr.bf16.mxu0 %v2942
    %3532 = vmatpush1.bf16.msra.mxu0 %v2941
    %3533 = vmatprep.subr.bf16.mxu0 0
    %3534 = vmatpush1.bf16.msra.mxu0 0
    %3535 = vmatprep.subr.bf16.mxu0 0
    %3536 = vmatpush1.bf16.msra.mxu0 0
    %3537 = vmatprep.subr.bf16.mxu0 0
    %3538 = vmatpush1.bf16.msra.mxu0 0
    %3539 = vmatprep.subr.bf16.mxu0 0
    %3540 = vmatpush1.bf16.msra.mxu0 0
    %3541 = vmatprep.subr.bf16.mxu0 0
    %3542 = vmatpush1.bf16.msra.mxu0 0
    %3543 = vmatprep.subr.bf16.mxu0 0
    %3544 = vmatpush1.bf16.msra.mxu0 0
    %3545 = vmatprep.subr.bf16.mxu0 0
    %3546 = vmatpush1.bf16.msra.mxu0 0
    %3547 = vmatprep.subr.bf16.mxu0 0
    %3548 = vmatpush1.bf16.msra.mxu0 0
    %3549 = vmatprep.subr.bf16.mxu0 0
    %3550 = vmatpush1.bf16.msra.mxu0 0
    %3551 = vmatprep.subr.bf16.mxu0 0
    %3552 = vmatpush1.bf16.msra.mxu0 0
    %3553 = vmatprep.subr.bf16.mxu0 0
    %3554 = vmatpush1.bf16.msra.mxu0 0
    %3555 = vmatprep.subr.bf16.mxu0 0
    %3556 = vmatpush1.bf16.msra.mxu0 0
    %3557 = vmatprep.mubr.bf16.mxu0 0
    %3558 = vmatmul.mubr.bf16.gmra.mrb[0].mxu0 %v3523
    %v3559 = vpop.f32.mrb[0].mxu0
    %v3560 = vadd.f32 0.0, %v3559
    %v3561 = vpop.f32.mrb[0].mxu0
    %v3562 = vadd.f32 0.0, %v3561
    %v3563 = vpop.f32.mrb[0].mxu0
    %v3564 = vpop.f32.mrb[0].mxu0
    %3565 = vdwg.mxu0
    %v3566 = vadd.f32 %v3516, %v3560
    %v3567 = vadd.f32 %v3517, %v3562
    %v3568 = vxor.u32 %v3566, 2147483648
    %v3569 = vxor.u32 %v3567, 2147483648
    %v3570 = vmul.f32 %v3568, 1.442695
    %v3571 = vpow.pop %v3570
    %v3572 = vmul.f32 %v3569, 1.442695
    %v3573 = vpow.pop %v3572
    %v3574 = vadd.f32 %v3571, 1.0
    %v3575 = vadd.f32 %v3573, 1.0
    %v3576 = vrcp.pop %v3574
    %v3577 = vmul.f32 1.0, %v3576
    %v3578 = vrcp.pop %v3575
    %v3579 = vmul.f32 1.0, %v3578
    %v3580 = vtanh.pop %v3567
    %v3581 = vmul.f32 %v3577, %v3513
    %v3582 = vmul.f32 %v3577, %v3580
    %3584 = vrot.lane.b32.xlu0 %v3582, 64
    %v3585 = vpop.permute.xlu0 %3584
    %v3587 = vadd.f32 %v3581, %v3585
    %v3588 = vtanh.pop %v3587
    %v3589 = vmul.f32 %v3579, %v3588
    %3591 = vrot.lane.b32.xlu0 %v3015, 64
    %v3592 = vpop.permute.xlu0 %3591
    %3595 = vrot.lane.b32.xlu0 %v3589, 64
    %v3596 = vpop.permute.xlu0 %3595
    %v3598 = vsel %vm1766, %v3592, %v3596
    %3600 = vrot.lane.b32.xlu0 %v3105, 64
    %v3601 = vpop.permute.xlu0 %3600
    %3604 = vrot.lane.b32.xlu0 %v3515, 64
    %v3605 = vpop.permute.xlu0 %3604
    %v3607 = vsel %vm1766, %v3601, %v3605
    %3609 = vrot.lane.b32.xlu0 %v3199, 64
    %v3610 = vpop.permute.xlu0 %3609
    %3613 = vrot.lane.b32.xlu0 %v3441, 64
    %v3614 = vpop.permute.xlu0 %3613
    %v3616 = vsel %vm1766, %v3610, %v3614
    %3618 = vrot.lane.b32.xlu0 %v3293, 64
    %v3619 = vpop.permute.xlu0 %3618
    %3622 = vrot.lane.b32.xlu0 %v3367, 64
    %v3623 = vpop.permute.xlu0 %3622
    %v3625 = vsel %vm1766, %v3619, %v3623
    %v3626 = vsel %vm1766, %v3623, %v3619
    %v3627 = vsel %vm1766, %v3614, %v3610
    %v3628 = vsel %vm1766, %v3605, %v3601
    %v3629 = vsel %vm1766, %v3596, %v3592
    %v3631 = vrot.slane %v3607, 6
    %v3634 = vrot.slane %v3616, 4
    %v3637 = vrot.slane %v3625, 2
    %v3640 = vrot.slane %v3627, 6
    %v3643 = vrot.slane %v3628, 4
    %v3646 = vrot.slane %v3629, 2
    %v3648 = vsel %vm2275, %v3598, %v3631
    %v3649 = vsel %vm2277, %v3648, %v3634
    %v3650 = vsel %vm641, %v3649, %v3637
    %v3651 = vsel %vm2275, %v3626, %v3640
    %v3652 = vsel %vm2277, %v3651, %v3643
    %v3653 = vsel %vm641, %v3652, %v3646
    %v3654 = vpack.c.bf16 %v3653, %v3650
    %v3655 = vld [vmem:[#allocation19] sm:$0xff]
    %v3656 = vld [vmem:[#allocation19 + $0x8] sm:$0xff]
    %v3657 = vld [vmem:[#allocation19 + $0x10] sm:$0xff]
    %v3658 = vld [vmem:[#allocation19 + $0x18] sm:$0xff]
    %v3659 = vld [vmem:[#allocation19 + $0x20] sm:$0xff]
    %v3660 = vld [vmem:[#allocation19 + $0x28] sm:$0xff]
    %v3661 = vld [vmem:[#allocation19 + $0x30] sm:$0xff]
    %v3662 = vld [vmem:[#allocation19 + $0x38] sm:$0xff]
    %v3663 = vld [vmem:[#allocation22] sm:$0x3]
    %v3665 = vlaneseq
    %v3666 = vshrl.u32 %v3665, 7
    %v3667 = vsub.s32 0, %v3666
    %v3668 = vrot.slane %v3663, %v3667
    %v3669 = vlaneseq
    %v3670 = vshrl.u32 %v3669, 7
    %v3671 = vsub.s32 1, %v3670
    %v3672 = vrot.slane %v3663, %v3671
    %v3683 = vunpack.c.l.b16 %v3655
    %v3684 = vunpack.c.h.b16 %v3655
    %v3685 = vunpack.c.l.b16 %v3656
    %v3686 = vunpack.c.h.b16 %v3656
    %v3687 = vunpack.c.l.b16 %v3657
    %v3688 = vunpack.c.h.b16 %v3657
    %v3689 = vunpack.c.l.b16 %v3658
    %v3690 = vunpack.c.h.b16 %v3658
    %v3691 = vunpack.c.l.b16 %v3659
    %v3692 = vunpack.c.h.b16 %v3659
    %v3693 = vunpack.c.l.b16 %v3660
    %v3694 = vunpack.c.h.b16 %v3660
    %v3695 = vunpack.c.l.b16 %v3661
    %v3696 = vunpack.c.h.b16 %v3661
    %v3697 = vunpack.c.l.b16 %v3662
    %v3698 = vunpack.c.h.b16 %v3662
    %v3699 = vpack.c.b16 %v3685, %v3683
    %v3700 = vpack.c.b16 %v3686, %v3684
    %v3701 = vpack.c.b16 %v3689, %v3687
    %v3702 = vpack.c.b16 %v3690, %v3688
    %v3703 = vpack.c.b16 %v3693, %v3691
    %v3704 = vpack.c.b16 %v3694, %v3692
    %v3705 = vpack.c.b16 %v3697, %v3695
    %v3706 = vpack.c.b16 %v3698, %v3696
    %v3716 = vsel %vm1229, %v3654, 0
    %3718 = vmatprep.subr.bf16.mxu0 %v3700
    %3719 = vmatpush1.bf16.msra.mxu0 %v3699
    %3720 = vmatprep.subr.bf16.mxu0 %v3702
    %3721 = vmatpush1.bf16.msra.mxu0 %v3701
    %3722 = vmatprep.subr.bf16.mxu0 %v3704
    %3723 = vmatpush1.bf16.msra.mxu0 %v3703
    %3724 = vmatprep.subr.bf16.mxu0 %v3706
    %3725 = vmatpush1.bf16.msra.mxu0 %v3705
    %3726 = vmatprep.subr.bf16.mxu0 0
    %3727 = vmatpush1.bf16.msra.mxu0 0
    %3728 = vmatprep.subr.bf16.mxu0 0
    %3729 = vmatpush1.bf16.msra.mxu0 0
    %3730 = vmatprep.subr.bf16.mxu0 0
    %3731 = vmatpush1.bf16.msra.mxu0 0
    %3732 = vmatprep.subr.bf16.mxu0 0
    %3733 = vmatpush1.bf16.msra.mxu0 0
    %3734 = vmatprep.subr.bf16.mxu0 0
    %3735 = vmatpush1.bf16.msra.mxu0 0
    %3736 = vmatprep.subr.bf16.mxu0 0
    %3737 = vmatpush1.bf16.msra.mxu0 0
    %3738 = vmatprep.subr.bf16.mxu0 0
    %3739 = vmatpush1.bf16.msra.mxu0 0
    %3740 = vmatprep.subr.bf16.mxu0 0
    %3741 = vmatpush1.bf16.msra.mxu0 0
    %3742 = vmatprep.subr.bf16.mxu0 0
    %3743 = vmatpush1.bf16.msra.mxu0 0
    %3744 = vmatprep.subr.bf16.mxu0 0
    %3745 = vmatpush1.bf16.msra.mxu0 0
    %3746 = vmatprep.subr.bf16.mxu0 0
    %3747 = vmatpush1.bf16.msra.mxu0 0
    %3748 = vmatprep.subr.bf16.mxu0 0
    %3749 = vmatpush1.bf16.msra.mxu0 0
    %3750 = vmatprep.mubr.bf16.mxu0 0
    %3751 = vmatmul.mubr.bf16.gmra.mrb[0].mxu0 %v3716
    %v3752 = vpop.f32.mrb[0].mxu0
    %v3753 = vadd.f32 %v3668, %v3752
    %v3754 = vpop.f32.mrb[0].mxu0
    %v3755 = vadd.f32 %v3672, %v3754
    %v3756 = vpop.f32.mrb[0].mxu0
    %v3757 = vadd.f32 %v3668, %v3756
    %v3758 = vpop.f32.mrb[0].mxu0
    %v3759 = vadd.f32 %v3672, %v3758
    %3760 = vdwg.mxu0
    %v3763 = vrot.slane %v3757, 6
    %v3764 = vrot.slane %v3759, 6
    %v3767 = vsel %vm1764, %v3753, %v3763
    %v3768 = vsel %vm1765, %v3755, %v3764
    %v3769 = vld [vmem:[#allocation20] sm:$0xff]
    %v3770 = vld [vmem:[#allocation20 + $0x8] sm:$0xff]
    %v3771 = vld [vmem:[#allocation20 + $0x10] sm:$0xff]
    %v3772 = vld [vmem:[#allocation20 + $0x18] sm:$0xff]
    %v3773 = vld [vmem:[#allocation20 + $0x20] sm:$0xff]
    %v3774 = vld [vmem:[#allocation20 + $0x28] sm:$0xff]
    %v3775 = vld [vmem:[#allocation20 + $0x30] sm:$0xff]
    %v3776 = vld [vmem:[#allocation20 + $0x38] sm:$0xff]
    %v3785 = vunpack.c.l.b16 %v3769
    %v3786 = vunpack.c.h.b16 %v3769
    %v3787 = vunpack.c.l.b16 %v3770
    %v3788 = vunpack.c.h.b16 %v3770
    %v3789 = vunpack.c.l.b16 %v3771
    %v3790 = vunpack.c.h.b16 %v3771
    %v3791 = vunpack.c.l.b16 %v3772
    %v3792 = vunpack.c.h.b16 %v3772
    %v3793 = vunpack.c.l.b16 %v3773
    %v3794 = vunpack.c.h.b16 %v3773
    %v3795 = vunpack.c.l.b16 %v3774
    %v3796 = vunpack.c.h.b16 %v3774
    %v3797 = vunpack.c.l.b16 %v3775
    %v3798 = vunpack.c.h.b16 %v3775
    %v3799 = vunpack.c.l.b16 %v3776
    %v3800 = vunpack.c.h.b16 %v3776
    %v3801 = vpack.c.b16 %v3787, %v3785
    %v3802 = vpack.c.b16 %v3788, %v3786
    %v3803 = vpack.c.b16 %v3791, %v3789
    %v3804 = vpack.c.b16 %v3792, %v3790
    %v3805 = vpack.c.b16 %v3795, %v3793
    %v3806 = vpack.c.b16 %v3796, %v3794
    %v3807 = vpack.c.b16 %v3799, %v3797
    %v3808 = vpack.c.b16 %v3800, %v3798
    %3817 = vmatprep.subr.bf16.mxu0 %v3802
    %3818 = vmatpush1.bf16.msra.mxu0 %v3801
    %3819 = vmatprep.subr.bf16.mxu0 %v3804
    %3820 = vmatpush1.bf16.msra.mxu0 %v3803
    %3821 = vmatprep.subr.bf16.mxu0 %v3806
    %3822 = vmatpush1.bf16.msra.mxu0 %v3805
    %3823 = vmatprep.subr.bf16.mxu0 %v3808
    %3824 = vmatpush1.bf16.msra.mxu0 %v3807
    %3825 = vmatprep.subr.bf16.mxu0 0
    %3826 = vmatpush1.bf16.msra.mxu0 0
    %3827 = vmatprep.subr.bf16.mxu0 0
    %3828 = vmatpush1.bf16.msra.mxu0 0
    %3829 = vmatprep.subr.bf16.mxu0 0
    %3830 = vmatpush1.bf16.msra.mxu0 0
    %3831 = vmatprep.subr.bf16.mxu0 0
    %3832 = vmatpush1.bf16.msra.mxu0 0
    %3833 = vmatprep.subr.bf16.mxu0 0
    %3834 = vmatpush1.bf16.msra.mxu0 0
    %3835 = vmatprep.subr.bf16.mxu0 0
    %3836 = vmatpush1.bf16.msra.mxu0 0
    %3837 = vmatprep.subr.bf16.mxu0 0
    %3838 = vmatpush1.bf16.msra.mxu0 0
    %3839 = vmatprep.subr.bf16.mxu0 0
    %3840 = vmatpush1.bf16.msra.mxu0 0
    %3841 = vmatprep.subr.bf16.mxu0 0
    %3842 = vmatpush1.bf16.msra.mxu0 0
    %3843 = vmatprep.subr.bf16.mxu0 0
    %3844 = vmatpush1.bf16.msra.mxu0 0
    %3845 = vmatprep.subr.bf16.mxu0 0
    %3846 = vmatpush1.bf16.msra.mxu0 0
    %3847 = vmatprep.subr.bf16.mxu0 0
    %3848 = vmatpush1.bf16.msra.mxu0 0
    %3849 = vmatprep.mubr.bf16.mxu0 0
    %3850 = vmatmul.mubr.bf16.gmra.mrb[0].mxu0 %v1937
    %v3851 = vpop.f32.mrb[0].mxu0
    %v3852 = vadd.f32 0.0, %v3851
    %v3853 = vpop.f32.mrb[0].mxu0
    %v3854 = vadd.f32 0.0, %v3853
    %v3855 = vpop.f32.mrb[0].mxu0
    %v3856 = vpop.f32.mrb[0].mxu0
    %3857 = vdwg.mxu0
    %v3858 = vadd.f32 %v3767, %v3852
    %v3859 = vadd.f32 %v3768, %v3854
    %v3860 = vxor.u32 %v3858, 2147483648
    %v3861 = vxor.u32 %v3859, 2147483648
    %v3862 = vmul.f32 %v3860, 1.442695
    %v3863 = vpow.pop %v3862
    %v3864 = vmul.f32 %v3861, 1.442695
    %v3865 = vpow.pop %v3864
    %v3866 = vadd.f32 %v3863, 1.0
    %v3867 = vadd.f32 %v3865, 1.0
    %v3868 = vrcp.pop %v3866
    %v3869 = vmul.f32 1.0, %v3868
    %v3870 = vrcp.pop %v3867
    %v3871 = vmul.f32 1.0, %v3870
    %v3872 = vtanh.pop %v3859
    %v3873 = vmul.f32 %v3869, 0.0
    %v3874 = vmul.f32 %v3869, %v3872
    %3876 = vrot.lane.b32.xlu0 %v3874, 64
    %v3877 = vpop.permute.xlu0 %3876
    %v3879 = vadd.f32 %v3873, %v3877
    %v3880 = vtanh.pop %v3879
    %v3881 = vmul.f32 %v3871, %v3880
    %v3882 = vrot.slane %v3757, 2
    %v3883 = vrot.slane %v3759, 2
    %v3886 = vsel %vm1764, %v3753, %v3882
    %v3887 = vsel %vm1765, %v3755, %v3883
    %v3888 = vpack.c.bf16 %v3881, %v3881
    %3890 = vrot.lane.b32.xlu0 %v3888, 64
    %v3891 = vpop.permute.xlu0 %3890
    %v3893 = vsel %vm1229, %v3891, 0
    %3895 = vmatprep.subr.bf16.mxu0 %v3802
    %3896 = vmatpush1.bf16.msra.mxu0 %v3801
    %3897 = vmatprep.subr.bf16.mxu0 %v3804
    %3898 = vmatpush1.bf16.msra.mxu0 %v3803
    %3899 = vmatprep.subr.bf16.mxu0 %v3806
    %3900 = vmatpush1.bf16.msra.mxu0 %v3805
    %3901 = vmatprep.subr.bf16.mxu0 %v3808
    %3902 = vmatpush1.bf16.msra.mxu0 %v3807
    %3903 = vmatprep.subr.bf16.mxu0 0
    %3904 = vmatpush1.bf16.msra.mxu0 0
    %3905 = vmatprep.subr.bf16.mxu0 0
    %3906 = vmatpush1.bf16.msra.mxu0 0
    %3907 = vmatprep.subr.bf16.mxu0 0
    %3908 = vmatpush1.bf16.msra.mxu0 0
    %3909 = vmatprep.subr.bf16.mxu0 0
    %3910 = vmatpush1.bf16.msra.mxu0 0
    %3911 = vmatprep.subr.bf16.mxu0 0
    %3912 = vmatpush1.bf16.msra.mxu0 0
    %3913 = vmatprep.subr.bf16.mxu0 0
    %3914 = vmatpush1.bf16.msra.mxu0 0
    %3915 = vmatprep.subr.bf16.mxu0 0
    %3916 = vmatpush1.bf16.msra.mxu0 0
    %3917 = vmatprep.subr.bf16.mxu0 0
    %3918 = vmatpush1.bf16.msra.mxu0 0
    %3919 = vmatprep.subr.bf16.mxu0 0
    %3920 = vmatpush1.bf16.msra.mxu0 0
    %3921 = vmatprep.subr.bf16.mxu0 0
    %3922 = vmatpush1.bf16.msra.mxu0 0
    %3923 = vmatprep.subr.bf16.mxu0 0
    %3924 = vmatpush1.bf16.msra.mxu0 0
    %3925 = vmatprep.subr.bf16.mxu0 0
    %3926 = vmatpush1.bf16.msra.mxu0 0
    %3927 = vmatprep.mubr.bf16.mxu0 0
    %3928 = vmatmul.mubr.bf16.gmra.mrb[0].mxu0 %v3893
    %v3929 = vpop.f32.mrb[0].mxu0
    %v3930 = vadd.f32 0.0, %v3929
    %v3931 = vpop.f32.mrb[0].mxu0
    %v3932 = vadd.f32 0.0, %v3931
    %v3933 = vpop.f32.mrb[0].mxu0
    %v3934 = vpop.f32.mrb[0].mxu0
    %3935 = vdwg.mxu0
    %v3938 = vrot.slane %v3930, 6
    %v3939 = vrot.slane %v3932, 6
    %v3942 = vadd.f32 %v3886, %v3938
    %v3943 = vadd.f32 %v3887, %v3939
    %v3944 = vxor.u32 %v3942, 2147483648
    %v3945 = vxor.u32 %v3943, 2147483648
    %v3946 = vmul.f32 %v3944, 1.442695
    %v3947 = vpow.pop %v3946
    %v3948 = vmul.f32 %v3945, 1.442695
    %v3949 = vpow.pop %v3948
    %v3950 = vadd.f32 %v3947, 1.0
    %v3951 = vadd.f32 %v3949, 1.0
    %v3952 = vrcp.pop %v3950
    %v3953 = vmul.f32 1.0, %v3952
    %v3954 = vrcp.pop %v3951
    %v3955 = vmul.f32 1.0, %v3954
    %v3956 = vtanh.pop %v3943
    %v3958 = vrot.slane %v3879, 6
    %v3960 = vmul.f32 %v3953, %v3958
    %v3961 = vmul.f32 %v3953, %v3956
    %3963 = vrot.lane.b32.xlu0 %v3961, 64
    %v3964 = vpop.permute.xlu0 %3963
    %v3966 = vadd.f32 %v3960, %v3964
    %v3967 = vtanh.pop %v3966
    %v3968 = vmul.f32 %v3955, %v3967
    %v3969 = vpack.c.bf16 %v3968, %v3968
    %v3971 = vrot.slane %v3969, 1
    %3972 = vrot.lane.b32.xlu0 %v3971, 64
    %v3973 = vpop.permute.xlu0 %3972
    %v3975 = vsel %vm1229, %v3973, 0
    %3977 = vmatprep.subr.bf16.mxu0 %v3802
    %3978 = vmatpush1.bf16.msra.mxu0 %v3801
    %3979 = vmatprep.subr.bf16.mxu0 %v3804
    %3980 = vmatpush1.bf16.msra.mxu0 %v3803
    %3981 = vmatprep.subr.bf16.mxu0 %v3806
    %3982 = vmatpush1.bf16.msra.mxu0 %v3805
    %3983 = vmatprep.subr.bf16.mxu0 %v3808
    %3984 = vmatpush1.bf16.msra.mxu0 %v3807
    %3985 = vmatprep.subr.bf16.mxu0 0
    %3986 = vmatpush1.bf16.msra.mxu0 0
    %3987 = vmatprep.subr.bf16.mxu0 0
    %3988 = vmatpush1.bf16.msra.mxu0 0
    %3989 = vmatprep.subr.bf16.mxu0 0
    %3990 = vmatpush1.bf16.msra.mxu0 0
    %3991 = vmatprep.subr.bf16.mxu0 0
    %3992 = vmatpush1.bf16.msra.mxu0 0
    %3993 = vmatprep.subr.bf16.mxu0 0
    %3994 = vmatpush1.bf16.msra.mxu0 0
    %3995 = vmatprep.subr.bf16.mxu0 0
    %3996 = vmatpush1.bf16.msra.mxu0 0
    %3997 = vmatprep.subr.bf16.mxu0 0
    %3998 = vmatpush1.bf16.msra.mxu0 0
    %3999 = vmatprep.subr.bf16.mxu0 0
    %4000 = vmatpush1.bf16.msra.mxu0 0
    %4001 = vmatprep.subr.bf16.mxu0 0
    %4002 = vmatpush1.bf16.msra.mxu0 0
    %4003 = vmatprep.subr.bf16.mxu0 0
    %4004 = vmatpush1.bf16.msra.mxu0 0
    %4005 = vmatprep.subr.bf16.mxu0 0
    %4006 = vmatpush1.bf16.msra.mxu0 0
    %4007 = vmatprep.subr.bf16.mxu0 0
    %4008 = vmatpush1.bf16.msra.mxu0 0
    %4009 = vmatprep.mubr.bf16.mxu0 0
    %4010 = vmatmul.mubr.bf16.gmra.mrb[0].mxu0 %v3975
    %v4011 = vpop.f32.mrb[0].mxu0
    %v4012 = vadd.f32 0.0, %v4011
    %v4013 = vpop.f32.mrb[0].mxu0
    %v4014 = vadd.f32 0.0, %v4013
    %v4015 = vpop.f32.mrb[0].mxu0
    %v4016 = vpop.f32.mrb[0].mxu0
    %4017 = vdwg.mxu0
    %v4020 = vrot.slane %v4012, 4
    %v4021 = vrot.slane %v4014, 4
    %v4024 = vadd.f32 %v3767, %v4020
    %v4025 = vadd.f32 %v3768, %v4021
    %v4026 = vxor.u32 %v4024, 2147483648
    %v4027 = vxor.u32 %v4025, 2147483648
    %v4028 = vmul.f32 %v4026, 1.442695
    %v4029 = vpow.pop %v4028
    %v4030 = vmul.f32 %v4027, 1.442695
    %v4031 = vpow.pop %v4030
    %v4032 = vadd.f32 %v4029, 1.0
    %v4033 = vadd.f32 %v4031, 1.0
    %v4034 = vrcp.pop %v4032
    %v4035 = vmul.f32 1.0, %v4034
    %v4036 = vrcp.pop %v4033
    %v4037 = vmul.f32 1.0, %v4036
    %v4038 = vtanh.pop %v4025
    %v4040 = vrot.slane %v3966, 6
    %v4042 = vmul.f32 %v4035, %v4040
    %v4043 = vmul.f32 %v4035, %v4038
    %4045 = vrot.lane.b32.xlu0 %v4043, 64
    %v4046 = vpop.permute.xlu0 %4045
    %v4048 = vadd.f32 %v4042, %v4046
    %v4049 = vtanh.pop %v4048
    %v4050 = vmul.f32 %v4037, %v4049
    %v4051 = vpack.c.bf16 %v4050, %v4050
    %v4053 = vrot.slane %v4051, 2
    %4054 = vrot.lane.b32.xlu0 %v4053, 64
    %v4055 = vpop.permute.xlu0 %4054
    %v4057 = vsel %vm1229, %v4055, 0
    %4059 = vmatprep.subr.bf16.mxu0 %v3802
    %4060 = vmatpush1.bf16.msra.mxu0 %v3801
    %4061 = vmatprep.subr.bf16.mxu0 %v3804
    %4062 = vmatpush1.bf16.msra.mxu0 %v3803
    %4063 = vmatprep.subr.bf16.mxu0 %v3806
    %4064 = vmatpush1.bf16.msra.mxu0 %v3805
    %4065 = vmatprep.subr.bf16.mxu0 %v3808
    %4066 = vmatpush1.bf16.msra.mxu0 %v3807
    %4067 = vmatprep.subr.bf16.mxu0 0
    %4068 = vmatpush1.bf16.msra.mxu0 0
    %4069 = vmatprep.subr.bf16.mxu0 0
    %4070 = vmatpush1.bf16.msra.mxu0 0
    %4071 = vmatprep.subr.bf16.mxu0 0
    %4072 = vmatpush1.bf16.msra.mxu0 0
    %4073 = vmatprep.subr.bf16.mxu0 0
    %4074 = vmatpush1.bf16.msra.mxu0 0
    %4075 = vmatprep.subr.bf16.mxu0 0
    %4076 = vmatpush1.bf16.msra.mxu0 0
    %4077 = vmatprep.subr.bf16.mxu0 0
    %4078 = vmatpush1.bf16.msra.mxu0 0
    %4079 = vmatprep.subr.bf16.mxu0 0
    %4080 = vmatpush1.bf16.msra.mxu0 0
    %4081 = vmatprep.subr.bf16.mxu0 0
    %4082 = vmatpush1.bf16.msra.mxu0 0
    %4083 = vmatprep.subr.bf16.mxu0 0
    %4084 = vmatpush1.bf16.msra.mxu0 0
    %4085 = vmatprep.subr.bf16.mxu0 0
    %4086 = vmatpush1.bf16.msra.mxu0 0
    %4087 = vmatprep.subr.bf16.mxu0 0
    %4088 = vmatpush1.bf16.msra.mxu0 0
    %4089 = vmatprep.subr.bf16.mxu0 0
    %4090 = vmatpush1.bf16.msra.mxu0 0
    %4091 = vmatprep.mubr.bf16.mxu0 0
    %4092 = vmatmul.mubr.bf16.gmra.mrb[0].mxu0 %v4057
    %v4093 = vpop.f32.mrb[0].mxu0
    %v4094 = vadd.f32 0.0, %v4093
    %v4095 = vpop.f32.mrb[0].mxu0
    %v4096 = vadd.f32 0.0, %v4095
    %v4097 = vpop.f32.mrb[0].mxu0
    %v4098 = vpop.f32.mrb[0].mxu0
    %4099 = vdwg.mxu0
    %v4102 = vrot.slane %v4094, 2
    %v4103 = vrot.slane %v4096, 2
    %v4106 = vadd.f32 %v3886, %v4102
    %v4107 = vadd.f32 %v3887, %v4103
    %v4108 = vxor.u32 %v4106, 2147483648
    %v4109 = vxor.u32 %v4107, 2147483648
    %v4110 = vmul.f32 %v4108, 1.442695
    %v4111 = vpow.pop %v4110
    %v4112 = vmul.f32 %v4109, 1.442695
    %v4113 = vpow.pop %v4112
    %v4114 = vadd.f32 %v4111, 1.0
    %v4115 = vadd.f32 %v4113, 1.0
    %v4116 = vrcp.pop %v4114
    %v4117 = vmul.f32 1.0, %v4116
    %v4118 = vrcp.pop %v4115
    %v4119 = vmul.f32 1.0, %v4118
    %v4120 = vtanh.pop %v4107
    %v4122 = vrot.slane %v4048, 6
    %v4124 = vmul.f32 %v4117, %v4122
    %v4125 = vmul.f32 %v4117, %v4120
    %4127 = vrot.lane.b32.xlu0 %v4125, 64
    %v4128 = vpop.permute.xlu0 %4127
    %v4130 = vadd.f32 %v4124, %v4128
    %v4131 = vtanh.pop %v4130
    %v4132 = vmul.f32 %v4119, %v4131
    %v4135 = vrot.slane %v3753, 6
    %v4136 = vrot.slane %v3755, 6
    %v4139 = vsel %vm1764, %v3757, %v4135
    %v4140 = vsel %vm1765, %v3759, %v4136
    %v4141 = vpack.c.bf16 %v4132, %v4132
    %v4143 = vrot.slane %v4141, 3
    %4144 = vrot.lane.b32.xlu0 %v4143, 64
    %v4145 = vpop.permute.xlu0 %4144
    %v4147 = vsel %vm1229, %v4145, 0
    %4149 = vmatprep.subr.bf16.mxu0 %v3802
    %4150 = vmatpush1.bf16.msra.mxu0 %v3801
    %4151 = vmatprep.subr.bf16.mxu0 %v3804
    %4152 = vmatpush1.bf16.msra.mxu0 %v3803
    %4153 = vmatprep.subr.bf16.mxu0 %v3806
    %4154 = vmatpush1.bf16.msra.mxu0 %v3805
    %4155 = vmatprep.subr.bf16.mxu0 %v3808
    %4156 = vmatpush1.bf16.msra.mxu0 %v3807
    %4157 = vmatprep.subr.bf16.mxu0 0
    %4158 = vmatpush1.bf16.msra.mxu0 0
    %4159 = vmatprep.subr.bf16.mxu0 0
    %4160 = vmatpush1.bf16.msra.mxu0 0
    %4161 = vmatprep.subr.bf16.mxu0 0
    %4162 = vmatpush1.bf16.msra.mxu0 0
    %4163 = vmatprep.subr.bf16.mxu0 0
    %4164 = vmatpush1.bf16.msra.mxu0 0
    %4165 = vmatprep.subr.bf16.mxu0 0
    %4166 = vmatpush1.bf16.msra.mxu0 0
    %4167 = vmatprep.subr.bf16.mxu0 0
    %4168 = vmatpush1.bf16.msra.mxu0 0
    %4169 = vmatprep.subr.bf16.mxu0 0
    %4170 = vmatpush1.bf16.msra.mxu0 0
    %4171 = vmatprep.subr.bf16.mxu0 0
    %4172 = vmatpush1.bf16.msra.mxu0 0
    %4173 = vmatprep.subr.bf16.mxu0 0
    %4174 = vmatpush1.bf16.msra.mxu0 0
    %4175 = vmatprep.subr.bf16.mxu0 0
    %4176 = vmatpush1.bf16.msra.mxu0 0
    %4177 = vmatprep.subr.bf16.mxu0 0
    %4178 = vmatpush1.bf16.msra.mxu0 0
    %4179 = vmatprep.subr.bf16.mxu0 0
    %4180 = vmatpush1.bf16.msra.mxu0 0
    %4181 = vmatprep.mubr.bf16.mxu0 0
    %4182 = vmatmul.mubr.bf16.gmra.mrb[0].mxu0 %v4147
    %v4183 = vpop.f32.mrb[0].mxu0
    %v4184 = vadd.f32 0.0, %v4183
    %v4185 = vpop.f32.mrb[0].mxu0
    %v4186 = vadd.f32 0.0, %v4185
    %v4187 = vpop.f32.mrb[0].mxu0
    %v4188 = vpop.f32.mrb[0].mxu0
    %4189 = vdwg.mxu0
    %v4190 = vadd.f32 %v4139, %v4184
    %v4191 = vadd.f32 %v4140, %v4186
    %v4192 = vxor.u32 %v4190, 2147483648
    %v4193 = vxor.u32 %v4191, 2147483648
    %v4194 = vmul.f32 %v4192, 1.442695
    %v4195 = vpow.pop %v4194
    %v4196 = vmul.f32 %v4193, 1.442695
    %v4197 = vpow.pop %v4196
    %v4198 = vadd.f32 %v4195, 1.0
    %v4199 = vadd.f32 %v4197, 1.0
    %v4200 = vrcp.pop %v4198
    %v4201 = vmul.f32 1.0, %v4200
    %v4202 = vrcp.pop %v4199
    %v4203 = vmul.f32 1.0, %v4202
    %v4204 = vtanh.pop %v4191
    %v4206 = vrot.slane %v4130, 6
    %v4208 = vmul.f32 %v4201, %v4206
    %v4209 = vmul.f32 %v4201, %v4204
    %4211 = vrot.lane.b32.xlu0 %v4209, 64
    %v4212 = vpop.permute.xlu0 %4211
    %v4214 = vadd.f32 %v4208, %v4212
    %v4215 = vtanh.pop %v4214
    %v4216 = vmul.f32 %v4203, %v4215
    %v4217 = vrot.slane %v3753, 2
    %v4218 = vrot.slane %v3755, 2
    %v4221 = vsel %vm1764, %v3757, %v4217
    %v4222 = vsel %vm1765, %v3759, %v4218
    %v4223 = vpack.c.bf16 %v4216, %v4216
    %4225 = vrot.lane.b32.xlu0 %v4223, 64
    %v4226 = vpop.permute.xlu0 %4225
    %v4228 = vsel %vm1229, %v4226, 0
    %4230 = vmatprep.subr.bf16.mxu0 %v3802
    %4231 = vmatpush1.bf16.msra.mxu0 %v3801
    %4232 = vmatprep.subr.bf16.mxu0 %v3804
    %4233 = vmatpush1.bf16.msra.mxu0 %v3803
    %4234 = vmatprep.subr.bf16.mxu0 %v3806
    %4235 = vmatpush1.bf16.msra.mxu0 %v3805
    %4236 = vmatprep.subr.bf16.mxu0 %v3808
    %4237 = vmatpush1.bf16.msra.mxu0 %v3807
    %4238 = vmatprep.subr.bf16.mxu0 0
    %4239 = vmatpush1.bf16.msra.mxu0 0
    %4240 = vmatprep.subr.bf16.mxu0 0
    %4241 = vmatpush1.bf16.msra.mxu0 0
    %4242 = vmatprep.subr.bf16.mxu0 0
    %4243 = vmatpush1.bf16.msra.mxu0 0
    %4244 = vmatprep.subr.bf16.mxu0 0
    %4245 = vmatpush1.bf16.msra.mxu0 0
    %4246 = vmatprep.subr.bf16.mxu0 0
    %4247 = vmatpush1.bf16.msra.mxu0 0
    %4248 = vmatprep.subr.bf16.mxu0 0
    %4249 = vmatpush1.bf16.msra.mxu0 0
    %4250 = vmatprep.subr.bf16.mxu0 0
    %4251 = vmatpush1.bf16.msra.mxu0 0
    %4252 = vmatprep.subr.bf16.mxu0 0
    %4253 = vmatpush1.bf16.msra.mxu0 0
    %4254 = vmatprep.subr.bf16.mxu0 0
    %4255 = vmatpush1.bf16.msra.mxu0 0
    %4256 = vmatprep.subr.bf16.mxu0 0
    %4257 = vmatpush1.bf16.msra.mxu0 0
    %4258 = vmatprep.subr.bf16.mxu0 0
    %4259 = vmatpush1.bf16.msra.mxu0 0
    %4260 = vmatprep.subr.bf16.mxu0 0
    %4261 = vmatpush1.bf16.msra.mxu0 0
    %4262 = vmatprep.mubr.bf16.mxu0 0
    %4263 = vmatmul.mubr.bf16.gmra.mrb[0].mxu0 %v4228
    %v4264 = vpop.f32.mrb[0].mxu0
    %v4265 = vadd.f32 0.0, %v4264
    %v4266 = vpop.f32.mrb[0].mxu0
    %v4267 = vadd.f32 0.0, %v4266
    %v4268 = vpop.f32.mrb[0].mxu0
    %v4269 = vpop.f32.mrb[0].mxu0
    %4270 = vdwg.mxu0
    %v4273 = vrot.slane %v4265, 6
    %v4274 = vrot.slane %v4267, 6
    %v4277 = vadd.f32 %v4221, %v4273
    %v4278 = vadd.f32 %v4222, %v4274
    %v4279 = vxor.u32 %v4277, 2147483648
    %v4280 = vxor.u32 %v4278, 2147483648
    %v4281 = vmul.f32 %v4279, 1.442695
    %v4282 = vpow.pop %v4281
    %v4283 = vmul.f32 %v4280, 1.442695
    %v4284 = vpow.pop %v4283
    %v4285 = vadd.f32 %v4282, 1.0
    %v4286 = vadd.f32 %v4284, 1.0
    %v4287 = vrcp.pop %v4285
    %v4288 = vmul.f32 1.0, %v4287
    %v4289 = vrcp.pop %v4286
    %v4290 = vmul.f32 1.0, %v4289
    %v4291 = vtanh.pop %v4278
    %v4293 = vrot.slane %v4214, 6
    %v4295 = vmul.f32 %v4288, %v4293
    %v4296 = vmul.f32 %v4288, %v4291
    %4298 = vrot.lane.b32.xlu0 %v4296, 64
    %v4299 = vpop.permute.xlu0 %4298
    %v4301 = vadd.f32 %v4295, %v4299
    %v4302 = vtanh.pop %v4301
    %v4303 = vmul.f32 %v4290, %v4302
    %v4304 = vpack.c.bf16 %v4303, %v4303
    %v4306 = vrot.slane %v4304, 1
    %4307 = vrot.lane.b32.xlu0 %v4306, 64
    %v4308 = vpop.permute.xlu0 %4307
    %v4310 = vsel %vm1229, %v4308, 0
    %4312 = vmatprep.subr.bf16.mxu0 %v3802
    %4313 = vmatpush1.bf16.msra.mxu0 %v3801
    %4314 = vmatprep.subr.bf16.mxu0 %v3804
    %4315 = vmatpush1.bf16.msra.mxu0 %v3803
    %4316 = vmatprep.subr.bf16.mxu0 %v3806
    %4317 = vmatpush1.bf16.msra.mxu0 %v3805
    %4318 = vmatprep.subr.bf16.mxu0 %v3808
    %4319 = vmatpush1.bf16.msra.mxu0 %v3807
    %4320 = vmatprep.subr.bf16.mxu0 0
    %4321 = vmatpush1.bf16.msra.mxu0 0
    %4322 = vmatprep.subr.bf16.mxu0 0
    %4323 = vmatpush1.bf16.msra.mxu0 0
    %4324 = vmatprep.subr.bf16.mxu0 0
    %4325 = vmatpush1.bf16.msra.mxu0 0
    %4326 = vmatprep.subr.bf16.mxu0 0
    %4327 = vmatpush1.bf16.msra.mxu0 0
    %4328 = vmatprep.subr.bf16.mxu0 0
    %4329 = vmatpush1.bf16.msra.mxu0 0
    %4330 = vmatprep.subr.bf16.mxu0 0
    %4331 = vmatpush1.bf16.msra.mxu0 0
    %4332 = vmatprep.subr.bf16.mxu0 0
    %4333 = vmatpush1.bf16.msra.mxu0 0
    %4334 = vmatprep.subr.bf16.mxu0 0
    %4335 = vmatpush1.bf16.msra.mxu0 0
    %4336 = vmatprep.subr.bf16.mxu0 0
    %4337 = vmatpush1.bf16.msra.mxu0 0
    %4338 = vmatprep.subr.bf16.mxu0 0
    %4339 = vmatpush1.bf16.msra.mxu0 0
    %4340 = vmatprep.subr.bf16.mxu0 0
    %4341 = vmatpush1.bf16.msra.mxu0 0
    %4342 = vmatprep.subr.bf16.mxu0 0
    %4343 = vmatpush1.bf16.msra.mxu0 0
    %4344 = vmatprep.mubr.bf16.mxu0 0
    %4345 = vmatmul.mubr.bf16.gmra.mrb[0].mxu0 %v4310
    %v4346 = vpop.f32.mrb[0].mxu0
    %v4347 = vadd.f32 0.0, %v4346
    %v4348 = vpop.f32.mrb[0].mxu0
    %v4349 = vadd.f32 0.0, %v4348
    %v4350 = vpop.f32.mrb[0].mxu0
    %v4351 = vpop.f32.mrb[0].mxu0
    %4352 = vdwg.mxu0
    %v4355 = vrot.slane %v4347, 4
    %v4356 = vrot.slane %v4349, 4
    %v4359 = vadd.f32 %v4139, %v4355
    %v4360 = vadd.f32 %v4140, %v4356
    %v4361 = vxor.u32 %v4359, 2147483648
    %v4362 = vxor.u32 %v4360, 2147483648
    %v4363 = vmul.f32 %v4361, 1.442695
    %v4364 = vpow.pop %v4363
    %v4365 = vmul.f32 %v4362, 1.442695
    %v4366 = vpow.pop %v4365
    %v4367 = vadd.f32 %v4364, 1.0
    %v4368 = vadd.f32 %v4366, 1.0
    %v4369 = vrcp.pop %v4367
    %v4370 = vmul.f32 1.0, %v4369
    %v4371 = vrcp.pop %v4368
    %v4372 = vmul.f32 1.0, %v4371
    %v4373 = vtanh.pop %v4360
    %v4375 = vrot.slane %v4301, 6
    %v4377 = vmul.f32 %v4370, %v4375
    %v4378 = vmul.f32 %v4370, %v4373
    %4380 = vrot.lane.b32.xlu0 %v4378, 64
    %v4381 = vpop.permute.xlu0 %4380
    %v4383 = vadd.f32 %v4377, %v4381
    %v4384 = vtanh.pop %v4383
    %v4385 = vmul.f32 %v4372, %v4384
    %v4386 = vpack.c.bf16 %v4385, %v4385
    %v4388 = vrot.slane %v4386, 2
    %4389 = vrot.lane.b32.xlu0 %v4388, 64
    %v4390 = vpop.permute.xlu0 %4389
    %v4392 = vsel %vm1229, %v4390, 0
    %4394 = vmatprep.subr.bf16.mxu0 %v3802
    %4395 = vmatpush1.bf16.msra.mxu0 %v3801
    %4396 = vmatprep.subr.bf16.mxu0 %v3804
    %4397 = vmatpush1.bf16.msra.mxu0 %v3803
    %4398 = vmatprep.subr.bf16.mxu0 %v3806
    %4399 = vmatpush1.bf16.msra.mxu0 %v3805
    %4400 = vmatprep.subr.bf16.mxu0 %v3808
    %4401 = vmatpush1.bf16.msra.mxu0 %v3807
    %4402 = vmatprep.subr.bf16.mxu0 0
    %4403 = vmatpush1.bf16.msra.mxu0 0
    %4404 = vmatprep.subr.bf16.mxu0 0
    %4405 = vmatpush1.bf16.msra.mxu0 0
    %4406 = vmatprep.subr.bf16.mxu0 0
    %4407 = vmatpush1.bf16.msra.mxu0 0
    %4408 = vmatprep.subr.bf16.mxu0 0
    %4409 = vmatpush1.bf16.msra.mxu0 0
    %4410 = vmatprep.subr.bf16.mxu0 0
    %4411 = vmatpush1.bf16.msra.mxu0 0
    %4412 = vmatprep.subr.bf16.mxu0 0
    %4413 = vmatpush1.bf16.msra.mxu0 0
    %4414 = vmatprep.subr.bf16.mxu0 0
    %4415 = vmatpush1.bf16.msra.mxu0 0
    %4416 = vmatprep.subr.bf16.mxu0 0
    %4417 = vmatpush1.bf16.msra.mxu0 0
    %4418 = vmatprep.subr.bf16.mxu0 0
    %4419 = vmatpush1.bf16.msra.mxu0 0
    %4420 = vmatprep.subr.bf16.mxu0 0
    %4421 = vmatpush1.bf16.msra.mxu0 0
    %4422 = vmatprep.subr.bf16.mxu0 0
    %4423 = vmatpush1.bf16.msra.mxu0 0
    %4424 = vmatprep.subr.bf16.mxu0 0
    %4425 = vmatpush1.bf16.msra.mxu0 0
    %4426 = vmatprep.mubr.bf16.mxu0 0
    %4427 = vmatmul.mubr.bf16.gmra.mrb[0].mxu0 %v4392
    %v4428 = vpop.f32.mrb[0].mxu0
    %v4429 = vadd.f32 0.0, %v4428
    %v4430 = vpop.f32.mrb[0].mxu0
    %v4431 = vadd.f32 0.0, %v4430
    %v4432 = vpop.f32.mrb[0].mxu0
    %v4433 = vpop.f32.mrb[0].mxu0
    %4434 = vdwg.mxu0
    %v4437 = vrot.slane %v4429, 2
    %v4438 = vrot.slane %v4431, 2
    %v4441 = vadd.f32 %v4221, %v4437
    %v4442 = vadd.f32 %v4222, %v4438
    %v4443 = vxor.u32 %v4441, 2147483648
    %v4444 = vxor.u32 %v4442, 2147483648
    %v4445 = vmul.f32 %v4443, 1.442695
    %v4446 = vpow.pop %v4445
    %v4447 = vmul.f32 %v4444, 1.442695
    %v4448 = vpow.pop %v4447
    %v4449 = vadd.f32 %v4446, 1.0
    %v4450 = vadd.f32 %v4448, 1.0
    %v4451 = vrcp.pop %v4449
    %v4452 = vmul.f32 1.0, %v4451
    %v4453 = vrcp.pop %v4450
    %v4454 = vmul.f32 1.0, %v4453
    %v4455 = vtanh.pop %v4442
    %v4457 = vrot.slane %v4383, 6
    %v4459 = vmul.f32 %v4452, %v4457
    %v4460 = vmul.f32 %v4452, %v4455
    %4462 = vrot.lane.b32.xlu0 %v4460, 64
    %v4463 = vpop.permute.xlu0 %4462
    %v4465 = vadd.f32 %v4459, %v4463
    %v4466 = vtanh.pop %v4465
    %v4467 = vmul.f32 %v4454, %v4466
    %v4469 = vrot.slane %v4467, 6
    %4470 = vrot.lane.b32.xlu0 %v4469, 64
    %v4471 = vpop.permute.xlu0 %4470
    %4474 = vrot.lane.b32.xlu0 %v3881, 64
    %v4475 = vpop.permute.xlu0 %4474
    %v4477 = vsel %vm1766, %v4471, %v4475
    %4479 = vrot.lane.b32.xlu0 %v4477, 64
    %v4480 = vpop.permute.xlu0 %4479
    %v4482 = vsel %vm1229, %v2766, %v4480
    %v4483 = vld [vmem:[%s18] sm:$0xff]
    %v4485 = vlaneseq
    %v4486 = vshrl.u32 %v4485, 7
    %v4487 = vsub.s32 0, %v4486
    %v4488 = vrot.slane %v4483, %v4487
    %v4489 = vlaneseq
    %v4490 = vshrl.u32 %v4489, 7
    %v4491 = vsub.s32 1, %v4490
    %v4492 = vrot.slane %v4483, %v4491
    %v4493 = vlaneseq
    %v4494 = vshrl.u32 %v4493, 7
    %v4495 = vsub.s32 2, %v4494
    %v4496 = vrot.slane %v4483, %v4495
    %v4497 = vlaneseq
    %v4498 = vshrl.u32 %v4497, 7
    %v4499 = vsub.s32 3, %v4498
    %v4500 = vrot.slane %v4483, %v4499
    %v4501 = vlaneseq
    %v4502 = vshrl.u32 %v4501, 7
    %v4503 = vsub.s32 4, %v4502
    %v4504 = vrot.slane %v4483, %v4503
    %v4505 = vlaneseq
    %v4506 = vshrl.u32 %v4505, 7
    %v4507 = vsub.s32 5, %v4506
    %v4508 = vrot.slane %v4483, %v4507
    %v4509 = vlaneseq
    %v4510 = vshrl.u32 %v4509, 7
    %v4511 = vsub.s32 6, %v4510
    %v4512 = vrot.slane %v4483, %v4511
    %v4513 = vlaneseq
    %v4514 = vshrl.u32 %v4513, 7
    %v4515 = vsub.s32 7, %v4514
    %v4516 = vrot.slane %v4483, %v4515
    %v4525 = vsub.f32 %v4482, %v4488
    %v4526 = vsub.f32 %v4482, %v4492
    %v4527 = vsub.f32 %v4482, %v4496
    %v4528 = vsub.f32 %v4482, %v4500
    %v4529 = vsub.f32 %v4482, %v4504
    %v4530 = vsub.f32 %v4482, %v4508
    %v4531 = vsub.f32 %v4482, %v4512
    %v4532 = vsub.f32 %v4482, %v4516
    %v4533 = vmax.f32 %v4525, 0.0
    %v4534 = vmax.f32 %v4526, 0.0
    %v4535 = vmax.f32 %v4527, 0.0
    %v4536 = vmax.f32 %v4528, 0.0
    %v4537 = vmax.f32 %v4529, 0.0
    %v4538 = vmax.f32 %v4530, 0.0
    %v4539 = vmax.f32 %v4531, 0.0
    %v4540 = vmax.f32 %v4532, 0.0
    %v4541 = vld [vmem:[%s19] sm:$0xff]
    %v4543 = vlaneseq
    %v4544 = vshrl.u32 %v4543, 7
    %v4545 = vsub.s32 0, %v4544
    %v4546 = vrot.slane %v4541, %v4545
    %v4547 = vlaneseq
    %v4548 = vshrl.u32 %v4547, 7
    %v4549 = vsub.s32 1, %v4548
    %v4550 = vrot.slane %v4541, %v4549
    %v4551 = vlaneseq
    %v4552 = vshrl.u32 %v4551, 7
    %v4553 = vsub.s32 2, %v4552
    %v4554 = vrot.slane %v4541, %v4553
    %v4555 = vlaneseq
    %v4556 = vshrl.u32 %v4555, 7
    %v4557 = vsub.s32 3, %v4556
    %v4558 = vrot.slane %v4541, %v4557
    %v4559 = vlaneseq
    %v4560 = vshrl.u32 %v4559, 7
    %v4561 = vsub.s32 4, %v4560
    %v4562 = vrot.slane %v4541, %v4561
    %v4563 = vlaneseq
    %v4564 = vshrl.u32 %v4563, 7
    %v4565 = vsub.s32 5, %v4564
    %v4566 = vrot.slane %v4541, %v4565
    %v4567 = vlaneseq
    %v4568 = vshrl.u32 %v4567, 7
    %v4569 = vsub.s32 6, %v4568
    %v4570 = vrot.slane %v4541, %v4569
    %v4571 = vlaneseq
    %v4572 = vshrl.u32 %v4571, 7
    %v4573 = vsub.s32 7, %v4572
    %v4574 = vrot.slane %v4541, %v4573
    %v4583 = vsub.f32 %v4546, %v4482
    %v4584 = vsub.f32 %v4550, %v4482
    %v4585 = vsub.f32 %v4554, %v4482
    %v4586 = vsub.f32 %v4558, %v4482
    %v4587 = vsub.f32 %v4562, %v4482
    %v4588 = vsub.f32 %v4566, %v4482
    %v4589 = vsub.f32 %v4570, %v4482
    %v4590 = vsub.f32 %v4574, %v4482
    %v4591 = vmax.f32 %v4583, 0.0
    %v4592 = vmax.f32 %v4584, 0.0
    %v4593 = vmax.f32 %v4585, 0.0
    %v4594 = vmax.f32 %v4586, 0.0
    %v4595 = vmax.f32 %v4587, 0.0
    %v4596 = vmax.f32 %v4588, 0.0
    %v4597 = vmax.f32 %v4589, 0.0
    %v4598 = vmax.f32 %v4590, 0.0
    %v4599 = vmul.f32 %v4533, %v4591
    %v4600 = vmul.f32 %v4534, %v4592
    %v4601 = vmul.f32 %v4535, %v4593
    %v4602 = vmul.f32 %v4536, %v4594
    %v4603 = vmul.f32 %v4537, %v4595
    %v4604 = vmul.f32 %v4538, %v4596
    %v4605 = vmul.f32 %v4539, %v4597
    %v4606 = vmul.f32 %v4540, %v4598
    %v4607 = vmul.f32 %v4599, 6.25
    %v4608 = vmul.f32 %v4600, 6.25
    %v4609 = vmul.f32 %v4601, 6.25
    %v4610 = vmul.f32 %v4602, 6.25
    %v4611 = vmul.f32 %v4603, 6.25
    %v4612 = vmul.f32 %v4604, 6.25
    %v4613 = vmul.f32 %v4605, 6.25
    %v4614 = vmul.f32 %v4606, 6.25
    %v4615 = vmul.f32 %v4607, %v4607
    %v4616 = vmul.f32 %v4608, %v4608
    %v4617 = vmul.f32 %v4609, %v4609
    %v4618 = vmul.f32 %v4610, %v4610
    %v4619 = vmul.f32 %v4611, %v4611
    %v4620 = vmul.f32 %v4612, %v4612
    %v4621 = vmul.f32 %v4613, %v4613
    %v4622 = vmul.f32 %v4614, %v4614
    %v4623 = vpack.c.bf16 %v4615, %v4615
    %v4624 = vpack.c.bf16 %v4616, %v4616
    %v4625 = vpack.c.bf16 %v4617, %v4617
    %v4626 = vpack.c.bf16 %v4618, %v4618
    %v4627 = vpack.c.bf16 %v4619, %v4619
    %v4628 = vpack.c.bf16 %v4620, %v4620
    %v4629 = vpack.c.bf16 %v4621, %v4621
    %v4630 = vpack.c.bf16 %v4622, %v4622
    %v4631 = vld [vmem:[%s20] sm:$0xf]
    %v4632 = vld [vmem:[%s20 + $0x4] sm:$0xf]
    %v4633 = vld [vmem:[%s20 + $0x8] sm:$0xf]
    %v4634 = vld [vmem:[%s20 + $0xc] sm:$0xf]
    %v4635 = vld [vmem:[%s20 + $0x10] sm:$0xf]
    %v4636 = vld [vmem:[%s20 + $0x14] sm:$0xf]
    %v4637 = vld [vmem:[%s20 + $0x18] sm:$0xf]
    %v4638 = vld [vmem:[%s20 + $0x1c] sm:$0xf]
    %v4639 = vld [vmem:[%s20 + $0x20] sm:$0xf]
    %v4640 = vld [vmem:[%s20 + $0x24] sm:$0xf]
    %v4641 = vld [vmem:[%s20 + $0x28] sm:$0xf]
    %v4642 = vld [vmem:[%s20 + $0x2c] sm:$0xf]
    %v4643 = vld [vmem:[%s20 + $0x30] sm:$0xf]
    %v4644 = vld [vmem:[%s20 + $0x34] sm:$0xf]
    %v4645 = vld [vmem:[%s20 + $0x38] sm:$0xf]
    %v4646 = vld [vmem:[%s20 + $0x3c] sm:$0xf]
    %v4647 = vld [vmem:[%s20 + $0x40] sm:$0xf]
    %v4648 = vld [vmem:[%s20 + $0x44] sm:$0xf]
    %v4649 = vld [vmem:[%s20 + $0x48] sm:$0xf]
    %v4650 = vld [vmem:[%s20 + $0x4c] sm:$0xf]
    %v4651 = vld [vmem:[%s20 + $0x50] sm:$0xf]
    %v4652 = vld [vmem:[%s20 + $0x54] sm:$0xf]
    %v4653 = vld [vmem:[%s20 + $0x58] sm:$0xf]
    %v4654 = vld [vmem:[%s20 + $0x5c] sm:$0xf]
    %v4655 = vld [vmem:[%s20 + $0x60] sm:$0xf]
    %v4656 = vld [vmem:[%s20 + $0x64] sm:$0xf]
    %v4657 = vld [vmem:[%s20 + $0x68] sm:$0xf]
    %v4658 = vld [vmem:[%s20 + $0x6c] sm:$0xf]
    %v4659 = vld [vmem:[%s20 + $0x70] sm:$0xf]
    %v4660 = vld [vmem:[%s20 + $0x74] sm:$0xf]
    %v4661 = vld [vmem:[%s20 + $0x78] sm:$0xf]
    %v4662 = vld [vmem:[%s20 + $0x7c] sm:$0xf]
    %v4663 = vld [vmem:[%s20 + $0x80] sm:$0xf]
    %v4664 = vld [vmem:[%s20 + $0x84] sm:$0xf]
    %v4665 = vld [vmem:[%s20 + $0x88] sm:$0xf]
    %v4666 = vld [vmem:[%s20 + $0x8c] sm:$0xf]
    %v4667 = vld [vmem:[%s20 + $0x90] sm:$0xf]
    %v4668 = vld [vmem:[%s20 + $0x94] sm:$0xf]
    %v4669 = vld [vmem:[%s20 + $0x98] sm:$0xf]
    %v4670 = vld [vmem:[%s20 + $0x9c] sm:$0xf]
    %v4671 = vld [vmem:[%s20 + $0xa0] sm:$0xf]
    %v4672 = vld [vmem:[%s20 + $0xa4] sm:$0xf]
    %v4673 = vld [vmem:[%s20 + $0xa8] sm:$0xf]
    %v4674 = vld [vmem:[%s20 + $0xac] sm:$0xf]
    %v4675 = vld [vmem:[%s20 + $0xb0] sm:$0xf]
    %v4676 = vld [vmem:[%s20 + $0xb4] sm:$0xf]
    %v4677 = vld [vmem:[%s20 + $0xb8] sm:$0xf]
    %v4678 = vld [vmem:[%s20 + $0xbc] sm:$0xf]
    %v4679 = vld [vmem:[%s20 + $0xc0] sm:$0xf]
    %v4680 = vld [vmem:[%s20 + $0xc4] sm:$0xf]
    %v4681 = vld [vmem:[%s20 + $0xc8] sm:$0xf]
    %v4682 = vld [vmem:[%s20 + $0xcc] sm:$0xf]
    %v4683 = vld [vmem:[%s20 + $0xd0] sm:$0xf]
    %v4684 = vld [vmem:[%s20 + $0xd4] sm:$0xf]
    %v4685 = vld [vmem:[%s20 + $0xd8] sm:$0xf]
    %v4686 = vld [vmem:[%s20 + $0xdc] sm:$0xf]
    %v4687 = vld [vmem:[%s20 + $0xe0] sm:$0xf]
    %v4688 = vld [vmem:[%s20 + $0xe4] sm:$0xf]
    %v4689 = vld [vmem:[%s20 + $0xe8] sm:$0xf]
    %v4690 = vld [vmem:[%s20 + $0xec] sm:$0xf]
    %v4691 = vld [vmem:[%s20 + $0xf0] sm:$0xf]
    %v4692 = vld [vmem:[%s20 + $0xf4] sm:$0xf]
    %v4693 = vld [vmem:[%s20 + $0xf8] sm:$0xf]
    %v4694 = vld [vmem:[%s20 + $0xfc] sm:$0xf]
    %v4695 = vld [vmem:[%s20 + $0x100] sm:$0xf]
    %v4696 = vld [vmem:[%s20 + $0x104] sm:$0xf]
    %v4697 = vld [vmem:[%s20 + $0x108] sm:$0xf]
    %v4698 = vld [vmem:[%s20 + $0x10c] sm:$0xf]
    %v4699 = vld [vmem:[%s20 + $0x110] sm:$0xf]
    %v4700 = vld [vmem:[%s20 + $0x114] sm:$0xf]
    %v4701 = vld [vmem:[%s20 + $0x118] sm:$0xf]
    %v4702 = vld [vmem:[%s20 + $0x11c] sm:$0xf]
    %v4703 = vld [vmem:[%s20 + $0x120] sm:$0xf]
    %v4704 = vld [vmem:[%s20 + $0x124] sm:$0xf]
    %v4705 = vld [vmem:[%s20 + $0x128] sm:$0xf]
    %v4706 = vld [vmem:[%s20 + $0x12c] sm:$0xf]
    %v4707 = vld [vmem:[%s20 + $0x130] sm:$0xf]
    %v4708 = vld [vmem:[%s20 + $0x134] sm:$0xf]
    %v4709 = vld [vmem:[%s20 + $0x138] sm:$0xf]
    %v4710 = vld [vmem:[%s20 + $0x13c] sm:$0xf]
    %v4711 = vld [vmem:[%s20 + $0x140] sm:$0xf]
    %v4712 = vld [vmem:[%s20 + $0x144] sm:$0xf]
    %v4713 = vld [vmem:[%s20 + $0x148] sm:$0xf]
    %v4714 = vld [vmem:[%s20 + $0x14c] sm:$0xf]
    %v4715 = vld [vmem:[%s20 + $0x150] sm:$0xf]
    %v4716 = vld [vmem:[%s20 + $0x154] sm:$0xf]
    %v4717 = vld [vmem:[%s20 + $0x158] sm:$0xf]
    %v4718 = vld [vmem:[%s20 + $0x15c] sm:$0xf]
    %v4719 = vld [vmem:[%s20 + $0x160] sm:$0xf]
    %v4720 = vld [vmem:[%s20 + $0x164] sm:$0xf]
    %v4721 = vld [vmem:[%s20 + $0x168] sm:$0xf]
    %v4722 = vld [vmem:[%s20 + $0x16c] sm:$0xf]
    %v4723 = vld [vmem:[%s20 + $0x170] sm:$0xf]
    %v4724 = vld [vmem:[%s20 + $0x174] sm:$0xf]
    %v4725 = vld [vmem:[%s20 + $0x178] sm:$0xf]
    %v4726 = vld [vmem:[%s20 + $0x17c] sm:$0xf]
    %v4727 = vld [vmem:[%s20 + $0x180] sm:$0xf]
    %v4728 = vld [vmem:[%s20 + $0x184] sm:$0xf]
    %v4729 = vld [vmem:[%s20 + $0x188] sm:$0xf]
    %v4730 = vld [vmem:[%s20 + $0x18c] sm:$0xf]
    %v4731 = vld [vmem:[%s20 + $0x190] sm:$0xf]
    %v4732 = vld [vmem:[%s20 + $0x194] sm:$0xf]
    %v4733 = vld [vmem:[%s20 + $0x198] sm:$0xf]
    %v4734 = vld [vmem:[%s20 + $0x19c] sm:$0xf]
    %v4735 = vld [vmem:[%s20 + $0x1a0] sm:$0xf]
    %v4736 = vld [vmem:[%s20 + $0x1a4] sm:$0xf]
    %v4737 = vld [vmem:[%s20 + $0x1a8] sm:$0xf]
    %v4738 = vld [vmem:[%s20 + $0x1ac] sm:$0xf]
    %v4739 = vld [vmem:[%s20 + $0x1b0] sm:$0xf]
    %v4740 = vld [vmem:[%s20 + $0x1b4] sm:$0xf]
    %v4741 = vld [vmem:[%s20 + $0x1b8] sm:$0xf]
    %v4742 = vld [vmem:[%s20 + $0x1bc] sm:$0xf]
    %v4743 = vld [vmem:[%s20 + $0x1c0] sm:$0xf]
    %v4744 = vld [vmem:[%s20 + $0x1c4] sm:$0xf]
    %v4745 = vld [vmem:[%s20 + $0x1c8] sm:$0xf]
    %v4746 = vld [vmem:[%s20 + $0x1cc] sm:$0xf]
    %v4747 = vld [vmem:[%s20 + $0x1d0] sm:$0xf]
    %v4748 = vld [vmem:[%s20 + $0x1d4] sm:$0xf]
    %v4749 = vld [vmem:[%s20 + $0x1d8] sm:$0xf]
    %v4750 = vld [vmem:[%s20 + $0x1dc] sm:$0xf]
    %v4751 = vld [vmem:[%s20 + $0x1e0] sm:$0xf]
    %v4752 = vld [vmem:[%s20 + $0x1e4] sm:$0xf]
    %v4753 = vld [vmem:[%s20 + $0x1e8] sm:$0xf]
    %v4754 = vld [vmem:[%s20 + $0x1ec] sm:$0xf]
    %v4755 = vld [vmem:[%s20 + $0x1f0] sm:$0xf]
    %v4756 = vld [vmem:[%s20 + $0x1f4] sm:$0xf]
    %v4757 = vld [vmem:[%s20 + $0x1f8] sm:$0xf]
    %v4758 = vld [vmem:[%s20 + $0x1fc] sm:$0xf]
    %v4759 = vld [vmem:[#allocation23] sm:$0x1]
    %v4761 = vlaneseq
    %v4762 = vshrl.u32 %v4761, 7
    %v4763 = vsub.s32 0, %v4762
    %v4764 = vrot.slane %v4759, %v4763
    %v4894 = vunpack.c.l.b16 %v4631
    %v4895 = vunpack.c.l.b16 %v4632
    %v4896 = vunpack.c.l.b16 %v4633
    %v4897 = vunpack.c.l.b16 %v4634
    %v4898 = vunpack.c.l.b16 %v4635
    %v4899 = vunpack.c.l.b16 %v4636
    %v4900 = vunpack.c.l.b16 %v4637
    %v4901 = vunpack.c.l.b16 %v4638
    %v4902 = vunpack.c.l.b16 %v4639
    %v4903 = vunpack.c.l.b16 %v4640
    %v4904 = vunpack.c.l.b16 %v4641
    %v4905 = vunpack.c.l.b16 %v4642
    %v4906 = vunpack.c.l.b16 %v4643
    %v4907 = vunpack.c.l.b16 %v4644
    %v4908 = vunpack.c.l.b16 %v4645
    %v4909 = vunpack.c.l.b16 %v4646
    %v4910 = vunpack.c.l.b16 %v4647
    %v4911 = vunpack.c.l.b16 %v4648
    %v4912 = vunpack.c.l.b16 %v4649
    %v4913 = vunpack.c.l.b16 %v4650
    %v4914 = vunpack.c.l.b16 %v4651
    %v4915 = vunpack.c.l.b16 %v4652
    %v4916 = vunpack.c.l.b16 %v4653
    %v4917 = vunpack.c.l.b16 %v4654
    %v4918 = vunpack.c.l.b16 %v4655
    %v4919 = vunpack.c.l.b16 %v4656
    %v4920 = vunpack.c.l.b16 %v4657
    %v4921 = vunpack.c.l.b16 %v4658
    %v4922 = vunpack.c.l.b16 %v4659
    %v4923 = vunpack.c.l.b16 %v4660
    %v4924 = vunpack.c.l.b16 %v4661
    %v4925 = vunpack.c.l.b16 %v4662
    %v4926 = vunpack.c.l.b16 %v4663
    %v4927 = vunpack.c.l.b16 %v4664
    %v4928 = vunpack.c.l.b16 %v4665
    %v4929 = vunpack.c.l.b16 %v4666
    %v4930 = vunpack.c.l.b16 %v4667
    %v4931 = vunpack.c.l.b16 %v4668
    %v4932 = vunpack.c.l.b16 %v4669
    %v4933 = vunpack.c.l.b16 %v4670
    %v4934 = vunpack.c.l.b16 %v4671
    %v4935 = vunpack.c.l.b16 %v4672
    %v4936 = vunpack.c.l.b16 %v4673
    %v4937 = vunpack.c.l.b16 %v4674
    %v4938 = vunpack.c.l.b16 %v4675
    %v4939 = vunpack.c.l.b16 %v4676
    %v4940 = vunpack.c.l.b16 %v4677
    %v4941 = vunpack.c.l.b16 %v4678
    %v4942 = vunpack.c.l.b16 %v4679
    %v4943 = vunpack.c.l.b16 %v4680
    %v4944 = vunpack.c.l.b16 %v4681
    %v4945 = vunpack.c.l.b16 %v4682
    %v4946 = vunpack.c.l.b16 %v4683
    %v4947 = vunpack.c.l.b16 %v4684
    %v4948 = vunpack.c.l.b16 %v4685
    %v4949 = vunpack.c.l.b16 %v4686
    %v4950 = vunpack.c.l.b16 %v4687
    %v4951 = vunpack.c.l.b16 %v4688
    %v4952 = vunpack.c.l.b16 %v4689
    %v4953 = vunpack.c.l.b16 %v4690
    %v4954 = vunpack.c.l.b16 %v4691
    %v4955 = vunpack.c.l.b16 %v4692
    %v4956 = vunpack.c.l.b16 %v4693
    %v4957 = vunpack.c.l.b16 %v4694
    %v4958 = vunpack.c.l.b16 %v4695
    %v4959 = vunpack.c.l.b16 %v4696
    %v4960 = vunpack.c.l.b16 %v4697
    %v4961 = vunpack.c.l.b16 %v4698
    %v4962 = vunpack.c.l.b16 %v4699
    %v4963 = vunpack.c.l.b16 %v4700
    %v4964 = vunpack.c.l.b16 %v4701
    %v4965 = vunpack.c.l.b16 %v4702
    %v4966 = vunpack.c.l.b16 %v4703
    %v4967 = vunpack.c.l.b16 %v4704
    %v4968 = vunpack.c.l.b16 %v4705
    %v4969 = vunpack.c.l.b16 %v4706
    %v4970 = vunpack.c.l.b16 %v4707
    %v4971 = vunpack.c.l.b16 %v4708
    %v4972 = vunpack.c.l.b16 %v4709
    %v4973 = vunpack.c.l.b16 %v4710
    %v4974 = vunpack.c.l.b16 %v4711
    %v4975 = vunpack.c.l.b16 %v4712
    %v4976 = vunpack.c.l.b16 %v4713
    %v4977 = vunpack.c.l.b16 %v4714
    %v4978 = vunpack.c.l.b16 %v4715
    %v4979 = vunpack.c.l.b16 %v4716
    %v4980 = vunpack.c.l.b16 %v4717
    %v4981 = vunpack.c.l.b16 %v4718
    %v4982 = vunpack.c.l.b16 %v4719
    %v4983 = vunpack.c.l.b16 %v4720
    %v4984 = vunpack.c.l.b16 %v4721
    %v4985 = vunpack.c.l.b16 %v4722
    %v4986 = vunpack.c.l.b16 %v4723
    %v4987 = vunpack.c.l.b16 %v4724
    %v4988 = vunpack.c.l.b16 %v4725
    %v4989 = vunpack.c.l.b16 %v4726
    %v4990 = vunpack.c.l.b16 %v4727
    %v4991 = vunpack.c.l.b16 %v4728
    %v4992 = vunpack.c.l.b16 %v4729
    %v4993 = vunpack.c.l.b16 %v4730
    %v4994 = vunpack.c.l.b16 %v4731
    %v4995 = vunpack.c.l.b16 %v4732
    %v4996 = vunpack.c.l.b16 %v4733
    %v4997 = vunpack.c.l.b16 %v4734
    %v4998 = vunpack.c.l.b16 %v4735
    %v4999 = vunpack.c.l.b16 %v4736
    %v5000 = vunpack.c.l.b16 %v4737
    %v5001 = vunpack.c.l.b16 %v4738
    %v5002 = vunpack.c.l.b16 %v4739
    %v5003 = vunpack.c.l.b16 %v4740
    %v5004 = vunpack.c.l.b16 %v4741
    %v5005 = vunpack.c.l.b16 %v4742
    %v5006 = vunpack.c.l.b16 %v4743
    %v5007 = vunpack.c.l.b16 %v4744
    %v5008 = vunpack.c.l.b16 %v4745
    %v5009 = vunpack.c.l.b16 %v4746
    %v5010 = vunpack.c.l.b16 %v4747
    %v5011 = vunpack.c.l.b16 %v4748
    %v5012 = vunpack.c.l.b16 %v4749
    %v5013 = vunpack.c.l.b16 %v4750
    %v5014 = vunpack.c.l.b16 %v4751
    %v5015 = vunpack.c.l.b16 %v4752
    %v5016 = vunpack.c.l.b16 %v4753
    %v5017 = vunpack.c.l.b16 %v4754
    %v5018 = vunpack.c.l.b16 %v4755
    %v5019 = vunpack.c.l.b16 %v4756
    %v5020 = vunpack.c.l.b16 %v4757
    %v5021 = vunpack.c.l.b16 %v4758
    %v5022 = vpack.c.b16 %v4895, %v4894
    %v5023 = vpack.c.b16 %v4897, %v4896
    %v5024 = vpack.c.b16 %v4899, %v4898
    %v5025 = vpack.c.b16 %v4901, %v4900
    %v5026 = vpack.c.b16 %v4903, %v4902
    %v5027 = vpack.c.b16 %v4905, %v4904
    %v5028 = vpack.c.b16 %v4907, %v4906
    %v5029 = vpack.c.b16 %v4909, %v4908
    %v5030 = vpack.c.b16 %v4911, %v4910
    %v5031 = vpack.c.b16 %v4913, %v4912
    %v5032 = vpack.c.b16 %v4915, %v4914
    %v5033 = vpack.c.b16 %v4917, %v4916
    %v5034 = vpack.c.b16 %v4919, %v4918
    %v5035 = vpack.c.b16 %v4921, %v4920
    %v5036 = vpack.c.b16 %v4923, %v4922
    %v5037 = vpack.c.b16 %v4925, %v4924
    %v5038 = vpack.c.b16 %v4927, %v4926
    %v5039 = vpack.c.b16 %v4929, %v4928
    %v5040 = vpack.c.b16 %v4931, %v4930
    %v5041 = vpack.c.b16 %v4933, %v4932
    %v5042 = vpack.c.b16 %v4935, %v4934
    %v5043 = vpack.c.b16 %v4937, %v4936
    %v5044 = vpack.c.b16 %v4939, %v4938
    %v5045 = vpack.c.b16 %v4941, %v4940
    %v5046 = vpack.c.b16 %v4943, %v4942
    %v5047 = vpack.c.b16 %v4945, %v4944
    %v5048 = vpack.c.b16 %v4947, %v4946
    %v5049 = vpack.c.b16 %v4949, %v4948
    %v5050 = vpack.c.b16 %v4951, %v4950
    %v5051 = vpack.c.b16 %v4953, %v4952
    %v5052 = vpack.c.b16 %v4955, %v4954
    %v5053 = vpack.c.b16 %v4957, %v4956
    %v5054 = vpack.c.b16 %v4959, %v4958
    %v5055 = vpack.c.b16 %v4961, %v4960
    %v5056 = vpack.c.b16 %v4963, %v4962
    %v5057 = vpack.c.b16 %v4965, %v4964
    %v5058 = vpack.c.b16 %v4967, %v4966
    %v5059 = vpack.c.b16 %v4969, %v4968
    %v5060 = vpack.c.b16 %v4971, %v4970
    %v5061 = vpack.c.b16 %v4973, %v4972
    %v5062 = vpack.c.b16 %v4975, %v4974
    %v5063 = vpack.c.b16 %v4977, %v4976
    %v5064 = vpack.c.b16 %v4979, %v4978
    %v5065 = vpack.c.b16 %v4981, %v4980
    %v5066 = vpack.c.b16 %v4983, %v4982
    %v5067 = vpack.c.b16 %v4985, %v4984
    %v5068 = vpack.c.b16 %v4987, %v4986
    %v5069 = vpack.c.b16 %v4989, %v4988
    %v5070 = vpack.c.b16 %v4991, %v4990
    %v5071 = vpack.c.b16 %v4993, %v4992
    %v5072 = vpack.c.b16 %v4995, %v4994
    %v5073 = vpack.c.b16 %v4997, %v4996
    %v5074 = vpack.c.b16 %v4999, %v4998
    %v5075 = vpack.c.b16 %v5001, %v5000
    %v5076 = vpack.c.b16 %v5003, %v5002
    %v5077 = vpack.c.b16 %v5005, %v5004
    %v5078 = vpack.c.b16 %v5007, %v5006
    %v5079 = vpack.c.b16 %v5009, %v5008
    %v5080 = vpack.c.b16 %v5011, %v5010
    %v5081 = vpack.c.b16 %v5013, %v5012
    %v5082 = vpack.c.b16 %v5015, %v5014
    %v5083 = vpack.c.b16 %v5017, %v5016
    %v5084 = vpack.c.b16 %v5019, %v5018
    %v5085 = vpack.c.b16 %v5021, %v5020
    %5150 = vmatprep.subr.bf16.mxu0 0
    %5151 = vmatpush1.bf16.msra.mxu0 %v5022
    %5152 = vmatprep.subr.bf16.mxu0 0
    %5153 = vmatpush1.bf16.msra.mxu0 %v5023
    %5154 = vmatprep.subr.bf16.mxu0 0
    %5155 = vmatpush1.bf16.msra.mxu0 %v5024
    %5156 = vmatprep.subr.bf16.mxu0 0
    %5157 = vmatpush1.bf16.msra.mxu0 %v5025
    %5158 = vmatprep.subr.bf16.mxu0 0
    %5159 = vmatpush1.bf16.msra.mxu0 %v5026
    %5160 = vmatprep.subr.bf16.mxu0 0
    %5161 = vmatpush1.bf16.msra.mxu0 %v5027
    %5162 = vmatprep.subr.bf16.mxu0 0
    %5163 = vmatpush1.bf16.msra.mxu0 %v5028
    %5164 = vmatprep.subr.bf16.mxu0 0
    %5165 = vmatpush1.bf16.msra.mxu0 %v5029
    %5166 = vmatprep.subr.bf16.mxu0 0
    %5167 = vmatpush1.bf16.msra.mxu0 %v5030
    %5168 = vmatprep.subr.bf16.mxu0 0
    %5169 = vmatpush1.bf16.msra.mxu0 %v5031
    %5170 = vmatprep.subr.bf16.mxu0 0
    %5171 = vmatpush1.bf16.msra.mxu0 %v5032
    %5172 = vmatprep.subr.bf16.mxu0 0
    %5173 = vmatpush1.bf16.msra.mxu0 %v5033
    %5174 = vmatprep.subr.bf16.mxu0 0
    %5175 = vmatpush1.bf16.msra.mxu0 %v5034
    %5176 = vmatprep.subr.bf16.mxu0 0
    %5177 = vmatpush1.bf16.msra.mxu0 %v5035
    %5178 = vmatprep.subr.bf16.mxu0 0
    %5179 = vmatpush1.bf16.msra.mxu0 %v5036
    %5180 = vmatprep.subr.bf16.mxu0 0
    %5181 = vmatpush1.bf16.msra.mxu0 %v5037
    %5182 = vmatprep.mubr.bf16.mxu0 %v4624
    %5183 = vmatmul.mubr.bf16.gmra.mrb[0].mxu0 %v4623
    %v5184 = vpop.f32.mrb[0].mxu0
    %v5185 = vadd.f32 %v4764, %v5184
    %v5186 = vpop.f32.mrb[0].mxu0
    %v5187 = vpop.f32.mrb[0].mxu0
    %v5188 = vpop.f32.mrb[0].mxu0
    %5189 = vdwg.mxu0
    %5190 = vmatprep.subr.bf16.mxu0 0
    %5191 = vmatpush1.bf16.msra.mxu0 %v5038
    %5192 = vmatprep.subr.bf16.mxu0 0
    %5193 = vmatpush1.bf16.msra.mxu0 %v5039
    %5194 = vmatprep.subr.bf16.mxu0 0
    %5195 = vmatpush1.bf16.msra.mxu0 %v5040
    %5196 = vmatprep.subr.bf16.mxu0 0
    %5197 = vmatpush1.bf16.msra.mxu0 %v5041
    %5198 = vmatprep.subr.bf16.mxu0 0
    %5199 = vmatpush1.bf16.msra.mxu0 %v5042
    %5200 = vmatprep.subr.bf16.mxu0 0
    %5201 = vmatpush1.bf16.msra.mxu0 %v5043
    %5202 = vmatprep.subr.bf16.mxu0 0
    %5203 = vmatpush1.bf16.msra.mxu0 %v5044
    %5204 = vmatprep.subr.bf16.mxu0 0
    %5205 = vmatpush1.bf16.msra.mxu0 %v5045
    %5206 = vmatprep.subr.bf16.mxu0 0
    %5207 = vmatpush1.bf16.msra.mxu0 %v5046
    %5208 = vmatprep.subr.bf16.mxu0 0
    %5209 = vmatpush1.bf16.msra.mxu0 %v5047
    %5210 = vmatprep.subr.bf16.mxu0 0
    %5211 = vmatpush1.bf16.msra.mxu0 %v5048
    %5212 = vmatprep.subr.bf16.mxu0 0
    %5213 = vmatpush1.bf16.msra.mxu0 %v5049
    %5214 = vmatprep.subr.bf16.mxu0 0
    %5215 = vmatpush1.bf16.msra.mxu0 %v5050
    %5216 = vmatprep.subr.bf16.mxu0 0
    %5217 = vmatpush1.bf16.msra.mxu0 %v5051
    %5218 = vmatprep.subr.bf16.mxu0 0
    %5219 = vmatpush1.bf16.msra.mxu0 %v5052
    %5220 = vmatprep.subr.bf16.mxu0 0
    %5221 = vmatpush1.bf16.msra.mxu0 %v5053
    %5222 = vmatprep.mubr.bf16.mxu0 %v4626
    %5223 = vmatmul.mubr.bf16.gmra.mrb[0].mxu0 %v4625
    %v5224 = vpop.f32.mrb[0].mxu0
    %v5225 = vadd.f32 %v5185, %v5224
    %v5226 = vpop.f32.mrb[0].mxu0
    %v5227 = vpop.f32.mrb[0].mxu0
    %v5228 = vpop.f32.mrb[0].mxu0
    %5229 = vdwg.mxu0
    %5230 = vmatprep.subr.bf16.mxu0 0
    %5231 = vmatpush1.bf16.msra.mxu0 %v5054
    %5232 = vmatprep.subr.bf16.mxu0 0
    %5233 = vmatpush1.bf16.msra.mxu0 %v5055
    %5234 = vmatprep.subr.bf16.mxu0 0
    %5235 = vmatpush1.bf16.msra.mxu0 %v5056
    %5236 = vmatprep.subr.bf16.mxu0 0
    %5237 = vmatpush1.bf16.msra.mxu0 %v5057
    %5238 = vmatprep.subr.bf16.mxu0 0
    %5239 = vmatpush1.bf16.msra.mxu0 %v5058
    %5240 = vmatprep.subr.bf16.mxu0 0
    %5241 = vmatpush1.bf16.msra.mxu0 %v5059
    %5242 = vmatprep.subr.bf16.mxu0 0
    %5243 = vmatpush1.bf16.msra.mxu0 %v5060
    %5244 = vmatprep.subr.bf16.mxu0 0
    %5245 = vmatpush1.bf16.msra.mxu0 %v5061
    %5246 = vmatprep.subr.bf16.mxu0 0
    %5247 = vmatpush1.bf16.msra.mxu0 %v5062
    %5248 = vmatprep.subr.bf16.mxu0 0
    %5249 = vmatpush1.bf16.msra.mxu0 %v5063
    %5250 = vmatprep.subr.bf16.mxu0 0
    %5251 = vmatpush1.bf16.msra.mxu0 %v5064
    %5252 = vmatprep.subr.bf16.mxu0 0
    %5253 = vmatpush1.bf16.msra.mxu0 %v5065
    %5254 = vmatprep.subr.bf16.mxu0 0
    %5255 = vmatpush1.bf16.msra.mxu0 %v5066
    %5256 = vmatprep.subr.bf16.mxu0 0
    %5257 = vmatpush1.bf16.msra.mxu0 %v5067
    %5258 = vmatprep.subr.bf16.mxu0 0
    %5259 = vmatpush1.bf16.msra.mxu0 %v5068
    %5260 = vmatprep.subr.bf16.mxu0 0
    %5261 = vmatpush1.bf16.msra.mxu0 %v5069
    %5262 = vmatprep.mubr.bf16.mxu0 %v4628
    %5263 = vmatmul.mubr.bf16.gmra.mrb[0].mxu0 %v4627
    %v5264 = vpop.f32.mrb[0].mxu0
    %v5265 = vadd.f32 %v5225, %v5264
    %v5266 = vpop.f32.mrb[0].mxu0
    %v5267 = vpop.f32.mrb[0].mxu0
    %v5268 = vpop.f32.mrb[0].mxu0
    %5269 = vdwg.mxu0
    %5270 = vmatprep.subr.bf16.mxu0 0
    %5271 = vmatpush1.bf16.msra.mxu0 %v5070
    %5272 = vmatprep.subr.bf16.mxu0 0
    %5273 = vmatpush1.bf16.msra.mxu0 %v5071
    %5274 = vmatprep.subr.bf16.mxu0 0
    %5275 = vmatpush1.bf16.msra.mxu0 %v5072
    %5276 = vmatprep.subr.bf16.mxu0 0
    %5277 = vmatpush1.bf16.msra.mxu0 %v5073
    %5278 = vmatprep.subr.bf16.mxu0 0
    %5279 = vmatpush1.bf16.msra.mxu0 %v5074
    %5280 = vmatprep.subr.bf16.mxu0 0
    %5281 = vmatpush1.bf16.msra.mxu0 %v5075
    %5282 = vmatprep.subr.bf16.mxu0 0
    %5283 = vmatpush1.bf16.msra.mxu0 %v5076
    %5284 = vmatprep.subr.bf16.mxu0 0
    %5285 = vmatpush1.bf16.msra.mxu0 %v5077
    %5286 = vmatprep.subr.bf16.mxu0 0
    %5287 = vmatpush1.bf16.msra.mxu0 %v5078
    %5288 = vmatprep.subr.bf16.mxu0 0
    %5289 = vmatpush1.bf16.msra.mxu0 %v5079
    %5290 = vmatprep.subr.bf16.mxu0 0
    %5291 = vmatpush1.bf16.msra.mxu0 %v5080
    %5292 = vmatprep.subr.bf16.mxu0 0
    %5293 = vmatpush1.bf16.msra.mxu0 %v5081
    %5294 = vmatprep.subr.bf16.mxu0 0
    %5295 = vmatpush1.bf16.msra.mxu0 %v5082
    %5296 = vmatprep.subr.bf16.mxu0 0
    %5297 = vmatpush1.bf16.msra.mxu0 %v5083
    %5298 = vmatprep.subr.bf16.mxu0 0
    %5299 = vmatpush1.bf16.msra.mxu0 %v5084
    %5300 = vmatprep.subr.bf16.mxu0 0
    %5301 = vmatpush1.bf16.msra.mxu0 %v5085
    %5302 = vmatprep.mubr.bf16.mxu0 %v4630
    %5303 = vmatmul.mubr.bf16.gmra.mrb[0].mxu0 %v4629
    %v5304 = vpop.f32.mrb[0].mxu0
    %v5305 = vadd.f32 %v5265, %v5304
    %v5306 = vpop.f32.mrb[0].mxu0
    %v5307 = vpop.f32.mrb[0].mxu0
    %v5308 = vpop.f32.mrb[0].mxu0
    %5309 = vdwg.mxu0
    %v5310 = vld [vmem:[%s22] sm:$0xff]
    %v5312 = vlaneseq
    %v5313 = vshrl.u32 %v5312, 7
    %v5314 = vsub.s32 0, %v5313
    %v5315 = vrot.slane %v5310, %v5314
    %v5316 = vlaneseq
    %v5317 = vshrl.u32 %v5316, 7
    %v5318 = vsub.s32 1, %v5317
    %v5319 = vrot.slane %v5310, %v5318
    %v5320 = vlaneseq
    %v5321 = vshrl.u32 %v5320, 7
    %v5322 = vsub.s32 2, %v5321
    %v5323 = vrot.slane %v5310, %v5322
    %v5324 = vlaneseq
    %v5325 = vshrl.u32 %v5324, 7
    %v5326 = vsub.s32 3, %v5325
    %v5327 = vrot.slane %v5310, %v5326
    %v5328 = vlaneseq
    %v5329 = vshrl.u32 %v5328, 7
    %v5330 = vsub.s32 4, %v5329
    %v5331 = vrot.slane %v5310, %v5330
    %v5332 = vlaneseq
    %v5333 = vshrl.u32 %v5332, 7
    %v5334 = vsub.s32 5, %v5333
    %v5335 = vrot.slane %v5310, %v5334
    %v5336 = vlaneseq
    %v5337 = vshrl.u32 %v5336, 7
    %v5338 = vsub.s32 6, %v5337
    %v5339 = vrot.slane %v5310, %v5338
    %v5340 = vlaneseq
    %v5341 = vshrl.u32 %v5340, 7
    %v5342 = vsub.s32 7, %v5341
    %v5343 = vrot.slane %v5310, %v5342
    %v5352 = vsub.f32 %v5305, %v5315
    %v5353 = vsub.f32 %v5305, %v5319
    %v5354 = vsub.f32 %v5305, %v5323
    %v5355 = vsub.f32 %v5305, %v5327
    %v5356 = vsub.f32 %v5305, %v5331
    %v5357 = vsub.f32 %v5305, %v5335
    %v5358 = vsub.f32 %v5305, %v5339
    %v5359 = vsub.f32 %v5305, %v5343
    %v5360 = vmax.f32 %v5352, 0.0
    %v5361 = vmax.f32 %v5353, 0.0
    %v5362 = vmax.f32 %v5354, 0.0
    %v5363 = vmax.f32 %v5355, 0.0
    %v5364 = vmax.f32 %v5356, 0.0
    %v5365 = vmax.f32 %v5357, 0.0
    %v5366 = vmax.f32 %v5358, 0.0
    %v5367 = vmax.f32 %v5359, 0.0
    %v5368 = vld [vmem:[%s23] sm:$0xff]
    %v5370 = vlaneseq
    %v5371 = vshrl.u32 %v5370, 7
    %v5372 = vsub.s32 0, %v5371
    %v5373 = vrot.slane %v5368, %v5372
    %v5374 = vlaneseq
    %v5375 = vshrl.u32 %v5374, 7
    %v5376 = vsub.s32 1, %v5375
    %v5377 = vrot.slane %v5368, %v5376
    %v5378 = vlaneseq
    %v5379 = vshrl.u32 %v5378, 7
    %v5380 = vsub.s32 2, %v5379
    %v5381 = vrot.slane %v5368, %v5380
    %v5382 = vlaneseq
    %v5383 = vshrl.u32 %v5382, 7
    %v5384 = vsub.s32 3, %v5383
    %v5385 = vrot.slane %v5368, %v5384
    %v5386 = vlaneseq
    %v5387 = vshrl.u32 %v5386, 7
    %v5388 = vsub.s32 4, %v5387
    %v5389 = vrot.slane %v5368, %v5388
    %v5390 = vlaneseq
    %v5391 = vshrl.u32 %v5390, 7
    %v5392 = vsub.s32 5, %v5391
    %v5393 = vrot.slane %v5368, %v5392
    %v5394 = vlaneseq
    %v5395 = vshrl.u32 %v5394, 7
    %v5396 = vsub.s32 6, %v5395
    %v5397 = vrot.slane %v5368, %v5396
    %v5398 = vlaneseq
    %v5399 = vshrl.u32 %v5398, 7
    %v5400 = vsub.s32 7, %v5399
    %v5401 = vrot.slane %v5368, %v5400
    %v5410 = vsub.f32 %v5373, %v5305
    %v5411 = vsub.f32 %v5377, %v5305
    %v5412 = vsub.f32 %v5381, %v5305
    %v5413 = vsub.f32 %v5385, %v5305
    %v5414 = vsub.f32 %v5389, %v5305
    %v5415 = vsub.f32 %v5393, %v5305
    %v5416 = vsub.f32 %v5397, %v5305
    %v5417 = vsub.f32 %v5401, %v5305
    %v5418 = vmax.f32 %v5410, 0.0
    %v5419 = vmax.f32 %v5411, 0.0
    %v5420 = vmax.f32 %v5412, 0.0
    %v5421 = vmax.f32 %v5413, 0.0
    %v5422 = vmax.f32 %v5414, 0.0
    %v5423 = vmax.f32 %v5415, 0.0
    %v5424 = vmax.f32 %v5416, 0.0
    %v5425 = vmax.f32 %v5417, 0.0
    %v5426 = vmul.f32 %v5360, %v5418
    %v5427 = vmul.f32 %v5361, %v5419
    %v5428 = vmul.f32 %v5362, %v5420
    %v5429 = vmul.f32 %v5363, %v5421
    %v5430 = vmul.f32 %v5364, %v5422
    %v5431 = vmul.f32 %v5365, %v5423
    %v5432 = vmul.f32 %v5366, %v5424
    %v5433 = vmul.f32 %v5367, %v5425
    %v5434 = vmul.f32 %v5426, 6.25
    %v5435 = vmul.f32 %v5427, 6.25
    %v5436 = vmul.f32 %v5428, 6.25
    %v5437 = vmul.f32 %v5429, 6.25
    %v5438 = vmul.f32 %v5430, 6.25
    %v5439 = vmul.f32 %v5431, 6.25
    %v5440 = vmul.f32 %v5432, 6.25
    %v5441 = vmul.f32 %v5433, 6.25
    %v5442 = vmul.f32 %v5434, %v5434
    %v5443 = vmul.f32 %v5435, %v5435
    %v5444 = vmul.f32 %v5436, %v5436
    %v5445 = vmul.f32 %v5437, %v5437
    %v5446 = vmul.f32 %v5438, %v5438
    %v5447 = vmul.f32 %v5439, %v5439
    %v5448 = vmul.f32 %v5440, %v5440
    %v5449 = vmul.f32 %v5441, %v5441
    %v5450 = vpack.c.bf16 %v5442, %v5442
    %v5451 = vpack.c.bf16 %v5443, %v5443
    %v5452 = vpack.c.bf16 %v5444, %v5444
    %v5453 = vpack.c.bf16 %v5445, %v5445
    %v5454 = vpack.c.bf16 %v5446, %v5446
    %v5455 = vpack.c.bf16 %v5447, %v5447
    %v5456 = vpack.c.bf16 %v5448, %v5448
    %v5457 = vpack.c.bf16 %v5449, %v5449
    %v5458 = vld [vmem:[%s24] sm:$0xf]
    %v5459 = vld [vmem:[%s24 + $0x4] sm:$0xf]
    %v5460 = vld [vmem:[%s24 + $0x8] sm:$0xf]
    %v5461 = vld [vmem:[%s24 + $0xc] sm:$0xf]
    %v5462 = vld [vmem:[%s24 + $0x10] sm:$0xf]
    %v5463 = vld [vmem:[%s24 + $0x14] sm:$0xf]
    %v5464 = vld [vmem:[%s24 + $0x18] sm:$0xf]
    %v5465 = vld [vmem:[%s24 + $0x1c] sm:$0xf]
    %v5466 = vld [vmem:[%s24 + $0x20] sm:$0xf]
    %v5467 = vld [vmem:[%s24 + $0x24] sm:$0xf]
    %v5468 = vld [vmem:[%s24 + $0x28] sm:$0xf]
    %v5469 = vld [vmem:[%s24 + $0x2c] sm:$0xf]
    %v5470 = vld [vmem:[%s24 + $0x30] sm:$0xf]
    %v5471 = vld [vmem:[%s24 + $0x34] sm:$0xf]
    %v5472 = vld [vmem:[%s24 + $0x38] sm:$0xf]
    %v5473 = vld [vmem:[%s24 + $0x3c] sm:$0xf]
    %v5474 = vld [vmem:[%s24 + $0x40] sm:$0xf]
    %v5475 = vld [vmem:[%s24 + $0x44] sm:$0xf]
    %v5476 = vld [vmem:[%s24 + $0x48] sm:$0xf]
    %v5477 = vld [vmem:[%s24 + $0x4c] sm:$0xf]
    %v5478 = vld [vmem:[%s24 + $0x50] sm:$0xf]
    %v5479 = vld [vmem:[%s24 + $0x54] sm:$0xf]
    %v5480 = vld [vmem:[%s24 + $0x58] sm:$0xf]
    %v5481 = vld [vmem:[%s24 + $0x5c] sm:$0xf]
    %v5482 = vld [vmem:[%s24 + $0x60] sm:$0xf]
    %v5483 = vld [vmem:[%s24 + $0x64] sm:$0xf]
    %v5484 = vld [vmem:[%s24 + $0x68] sm:$0xf]
    %v5485 = vld [vmem:[%s24 + $0x6c] sm:$0xf]
    %v5486 = vld [vmem:[%s24 + $0x70] sm:$0xf]
    %v5487 = vld [vmem:[%s24 + $0x74] sm:$0xf]
    %v5488 = vld [vmem:[%s24 + $0x78] sm:$0xf]
    %v5489 = vld [vmem:[%s24 + $0x7c] sm:$0xf]
    %v5490 = vld [vmem:[%s24 + $0x80] sm:$0xf]
    %v5491 = vld [vmem:[%s24 + $0x84] sm:$0xf]
    %v5492 = vld [vmem:[%s24 + $0x88] sm:$0xf]
    %v5493 = vld [vmem:[%s24 + $0x8c] sm:$0xf]
    %v5494 = vld [vmem:[%s24 + $0x90] sm:$0xf]
    %v5495 = vld [vmem:[%s24 + $0x94] sm:$0xf]
    %v5496 = vld [vmem:[%s24 + $0x98] sm:$0xf]
    %v5497 = vld [vmem:[%s24 + $0x9c] sm:$0xf]
    %v5498 = vld [vmem:[%s24 + $0xa0] sm:$0xf]
    %v5499 = vld [vmem:[%s24 + $0xa4] sm:$0xf]
    %v5500 = vld [vmem:[%s24 + $0xa8] sm:$0xf]
    %v5501 = vld [vmem:[%s24 + $0xac] sm:$0xf]
    %v5502 = vld [vmem:[%s24 + $0xb0] sm:$0xf]
    %v5503 = vld [vmem:[%s24 + $0xb4] sm:$0xf]
    %v5504 = vld [vmem:[%s24 + $0xb8] sm:$0xf]
    %v5505 = vld [vmem:[%s24 + $0xbc] sm:$0xf]
    %v5506 = vld [vmem:[%s24 + $0xc0] sm:$0xf]
    %v5507 = vld [vmem:[%s24 + $0xc4] sm:$0xf]
    %v5508 = vld [vmem:[%s24 + $0xc8] sm:$0xf]
    %v5509 = vld [vmem:[%s24 + $0xcc] sm:$0xf]
    %v5510 = vld [vmem:[%s24 + $0xd0] sm:$0xf]
    %v5511 = vld [vmem:[%s24 + $0xd4] sm:$0xf]
    %v5512 = vld [vmem:[%s24 + $0xd8] sm:$0xf]
    %v5513 = vld [vmem:[%s24 + $0xdc] sm:$0xf]
    %v5514 = vld [vmem:[%s24 + $0xe0] sm:$0xf]
    %v5515 = vld [vmem:[%s24 + $0xe4] sm:$0xf]
    %v5516 = vld [vmem:[%s24 + $0xe8] sm:$0xf]
    %v5517 = vld [vmem:[%s24 + $0xec] sm:$0xf]
    %v5518 = vld [vmem:[%s24 + $0xf0] sm:$0xf]
    %v5519 = vld [vmem:[%s24 + $0xf4] sm:$0xf]
    %v5520 = vld [vmem:[%s24 + $0xf8] sm:$0xf]
    %v5521 = vld [vmem:[%s24 + $0xfc] sm:$0xf]
    %v5522 = vld [vmem:[%s24 + $0x100] sm:$0xf]
    %v5523 = vld [vmem:[%s24 + $0x104] sm:$0xf]
    %v5524 = vld [vmem:[%s24 + $0x108] sm:$0xf]
    %v5525 = vld [vmem:[%s24 + $0x10c] sm:$0xf]
    %v5526 = vld [vmem:[%s24 + $0x110] sm:$0xf]
    %v5527 = vld [vmem:[%s24 + $0x114] sm:$0xf]
    %v5528 = vld [vmem:[%s24 + $0x118] sm:$0xf]
    %v5529 = vld [vmem:[%s24 + $0x11c] sm:$0xf]
    %v5530 = vld [vmem:[%s24 + $0x120] sm:$0xf]
    %v5531 = vld [vmem:[%s24 + $0x124] sm:$0xf]
    %v5532 = vld [vmem:[%s24 + $0x128] sm:$0xf]
    %v5533 = vld [vmem:[%s24 + $0x12c] sm:$0xf]
    %v5534 = vld [vmem:[%s24 + $0x130] sm:$0xf]
    %v5535 = vld [vmem:[%s24 + $0x134] sm:$0xf]
    %v5536 = vld [vmem:[%s24 + $0x138] sm:$0xf]
    %v5537 = vld [vmem:[%s24 + $0x13c] sm:$0xf]
    %v5538 = vld [vmem:[%s24 + $0x140] sm:$0xf]
    %v5539 = vld [vmem:[%s24 + $0x144] sm:$0xf]
    %v5540 = vld [vmem:[%s24 + $0x148] sm:$0xf]
    %v5541 = vld [vmem:[%s24 + $0x14c] sm:$0xf]
    %v5542 = vld [vmem:[%s24 + $0x150] sm:$0xf]
    %v5543 = vld [vmem:[%s24 + $0x154] sm:$0xf]
    %v5544 = vld [vmem:[%s24 + $0x158] sm:$0xf]
    %v5545 = vld [vmem:[%s24 + $0x15c] sm:$0xf]
    %v5546 = vld [vmem:[%s24 + $0x160] sm:$0xf]
    %v5547 = vld [vmem:[%s24 + $0x164] sm:$0xf]
    %v5548 = vld [vmem:[%s24 + $0x168] sm:$0xf]
    %v5549 = vld [vmem:[%s24 + $0x16c] sm:$0xf]
    %v5550 = vld [vmem:[%s24 + $0x170] sm:$0xf]
    %v5551 = vld [vmem:[%s24 + $0x174] sm:$0xf]
    %v5552 = vld [vmem:[%s24 + $0x178] sm:$0xf]
    %v5553 = vld [vmem:[%s24 + $0x17c] sm:$0xf]
    %v5554 = vld [vmem:[%s24 + $0x180] sm:$0xf]
    %v5555 = vld [vmem:[%s24 + $0x184] sm:$0xf]
    %v5556 = vld [vmem:[%s24 + $0x188] sm:$0xf]
    %v5557 = vld [vmem:[%s24 + $0x18c] sm:$0xf]
    %v5558 = vld [vmem:[%s24 + $0x190] sm:$0xf]
    %v5559 = vld [vmem:[%s24 + $0x194] sm:$0xf]
    %v5560 = vld [vmem:[%s24 + $0x198] sm:$0xf]
    %v5561 = vld [vmem:[%s24 + $0x19c] sm:$0xf]
    %v5562 = vld [vmem:[%s24 + $0x1a0] sm:$0xf]
    %v5563 = vld [vmem:[%s24 + $0x1a4] sm:$0xf]
    %v5564 = vld [vmem:[%s24 + $0x1a8] sm:$0xf]
    %v5565 = vld [vmem:[%s24 + $0x1ac] sm:$0xf]
    %v5566 = vld [vmem:[%s24 + $0x1b0] sm:$0xf]
    %v5567 = vld [vmem:[%s24 + $0x1b4] sm:$0xf]
    %v5568 = vld [vmem:[%s24 + $0x1b8] sm:$0xf]
    %v5569 = vld [vmem:[%s24 + $0x1bc] sm:$0xf]
    %v5570 = vld [vmem:[%s24 + $0x1c0] sm:$0xf]
    %v5571 = vld [vmem:[%s24 + $0x1c4] sm:$0xf]
    %v5572 = vld [vmem:[%s24 + $0x1c8] sm:$0xf]
    %v5573 = vld [vmem:[%s24 + $0x1cc] sm:$0xf]
    %v5574 = vld [vmem:[%s24 + $0x1d0] sm:$0xf]
    %v5575 = vld [vmem:[%s24 + $0x1d4] sm:$0xf]
    %v5576 = vld [vmem:[%s24 + $0x1d8] sm:$0xf]
    %v5577 = vld [vmem:[%s24 + $0x1dc] sm:$0xf]
    %v5578 = vld [vmem:[%s24 + $0x1e0] sm:$0xf]
    %v5579 = vld [vmem:[%s24 + $0x1e4] sm:$0xf]
    %v5580 = vld [vmem:[%s24 + $0x1e8] sm:$0xf]
    %v5581 = vld [vmem:[%s24 + $0x1ec] sm:$0xf]
    %v5582 = vld [vmem:[%s24 + $0x1f0] sm:$0xf]
    %v5583 = vld [vmem:[%s24 + $0x1f4] sm:$0xf]
    %v5584 = vld [vmem:[%s24 + $0x1f8] sm:$0xf]
    %v5585 = vld [vmem:[%s24 + $0x1fc] sm:$0xf]
    %v5586 = vld [vmem:[%s25] sm:$0x1]
    %v5588 = vlaneseq
    %v5589 = vshrl.u32 %v5588, 7
    %v5590 = vsub.s32 0, %v5589
    %v5591 = vrot.slane %v5586, %v5590
    %v5721 = vunpack.c.l.b16 %v5458
    %v5722 = vunpack.c.l.b16 %v5459
    %v5723 = vunpack.c.l.b16 %v5460
    %v5724 = vunpack.c.l.b16 %v5461
    %v5725 = vunpack.c.l.b16 %v5462
    %v5726 = vunpack.c.l.b16 %v5463
    %v5727 = vunpack.c.l.b16 %v5464
    %v5728 = vunpack.c.l.b16 %v5465
    %v5729 = vunpack.c.l.b16 %v5466
    %v5730 = vunpack.c.l.b16 %v5467
    %v5731 = vunpack.c.l.b16 %v5468
    %v5732 = vunpack.c.l.b16 %v5469
    %v5733 = vunpack.c.l.b16 %v5470
    %v5734 = vunpack.c.l.b16 %v5471
    %v5735 = vunpack.c.l.b16 %v5472
    %v5736 = vunpack.c.l.b16 %v5473
    %v5737 = vunpack.c.l.b16 %v5474
    %v5738 = vunpack.c.l.b16 %v5475
    %v5739 = vunpack.c.l.b16 %v5476
    %v5740 = vunpack.c.l.b16 %v5477
    %v5741 = vunpack.c.l.b16 %v5478
    %v5742 = vunpack.c.l.b16 %v5479
    %v5743 = vunpack.c.l.b16 %v5480
    %v5744 = vunpack.c.l.b16 %v5481
    %v5745 = vunpack.c.l.b16 %v5482
    %v5746 = vunpack.c.l.b16 %v5483
    %v5747 = vunpack.c.l.b16 %v5484
    %v5748 = vunpack.c.l.b16 %v5485
    %v5749 = vunpack.c.l.b16 %v5486
    %v5750 = vunpack.c.l.b16 %v5487
    %v5751 = vunpack.c.l.b16 %v5488
    %v5752 = vunpack.c.l.b16 %v5489
    %v5753 = vunpack.c.l.b16 %v5490
    %v5754 = vunpack.c.l.b16 %v5491
    %v5755 = vunpack.c.l.b16 %v5492
    %v5756 = vunpack.c.l.b16 %v5493
    %v5757 = vunpack.c.l.b16 %v5494
    %v5758 = vunpack.c.l.b16 %v5495
    %v5759 = vunpack.c.l.b16 %v5496
    %v5760 = vunpack.c.l.b16 %v5497
    %v5761 = vunpack.c.l.b16 %v5498
    %v5762 = vunpack.c.l.b16 %v5499
    %v5763 = vunpack.c.l.b16 %v5500
    %v5764 = vunpack.c.l.b16 %v5501
    %v5765 = vunpack.c.l.b16 %v5502
    %v5766 = vunpack.c.l.b16 %v5503
    %v5767 = vunpack.c.l.b16 %v5504
    %v5768 = vunpack.c.l.b16 %v5505
    %v5769 = vunpack.c.l.b16 %v5506
    %v5770 = vunpack.c.l.b16 %v5507
    %v5771 = vunpack.c.l.b16 %v5508
    %v5772 = vunpack.c.l.b16 %v5509
    %v5773 = vunpack.c.l.b16 %v5510
    %v5774 = vunpack.c.l.b16 %v5511
    %v5775 = vunpack.c.l.b16 %v5512
    %v5776 = vunpack.c.l.b16 %v5513
    %v5777 = vunpack.c.l.b16 %v5514
    %v5778 = vunpack.c.l.b16 %v5515
    %v5779 = vunpack.c.l.b16 %v5516
    %v5780 = vunpack.c.l.b16 %v5517
    %v5781 = vunpack.c.l.b16 %v5518
    %v5782 = vunpack.c.l.b16 %v5519
    %v5783 = vunpack.c.l.b16 %v5520
    %v5784 = vunpack.c.l.b16 %v5521
    %v5785 = vunpack.c.l.b16 %v5522
    %v5786 = vunpack.c.l.b16 %v5523
    %v5787 = vunpack.c.l.b16 %v5524
    %v5788 = vunpack.c.l.b16 %v5525
    %v5789 = vunpack.c.l.b16 %v5526
    %v5790 = vunpack.c.l.b16 %v5527
    %v5791 = vunpack.c.l.b16 %v5528
    %v5792 = vunpack.c.l.b16 %v5529
    %v5793 = vunpack.c.l.b16 %v5530
    %v5794 = vunpack.c.l.b16 %v5531
    %v5795 = vunpack.c.l.b16 %v5532
    %v5796 = vunpack.c.l.b16 %v5533
    %v5797 = vunpack.c.l.b16 %v5534
    %v5798 = vunpack.c.l.b16 %v5535
    %v5799 = vunpack.c.l.b16 %v5536
    %v5800 = vunpack.c.l.b16 %v5537
    %v5801 = vunpack.c.l.b16 %v5538
    %v5802 = vunpack.c.l.b16 %v5539
    %v5803 = vunpack.c.l.b16 %v5540
    %v5804 = vunpack.c.l.b16 %v5541
    %v5805 = vunpack.c.l.b16 %v5542
    %v5806 = vunpack.c.l.b16 %v5543
    %v5807 = vunpack.c.l.b16 %v5544
    %v5808 = vunpack.c.l.b16 %v5545
    %v5809 = vunpack.c.l.b16 %v5546
    %v5810 = vunpack.c.l.b16 %v5547
    %v5811 = vunpack.c.l.b16 %v5548
    %v5812 = vunpack.c.l.b16 %v5549
    %v5813 = vunpack.c.l.b16 %v5550
    %v5814 = vunpack.c.l.b16 %v5551
    %v5815 = vunpack.c.l.b16 %v5552
    %v5816 = vunpack.c.l.b16 %v5553
    %v5817 = vunpack.c.l.b16 %v5554
    %v5818 = vunpack.c.l.b16 %v5555
    %v5819 = vunpack.c.l.b16 %v5556
    %v5820 = vunpack.c.l.b16 %v5557
    %v5821 = vunpack.c.l.b16 %v5558
    %v5822 = vunpack.c.l.b16 %v5559
    %v5823 = vunpack.c.l.b16 %v5560
    %v5824 = vunpack.c.l.b16 %v5561
    %v5825 = vunpack.c.l.b16 %v5562
    %v5826 = vunpack.c.l.b16 %v5563
    %v5827 = vunpack.c.l.b16 %v5564
    %v5828 = vunpack.c.l.b16 %v5565
    %v5829 = vunpack.c.l.b16 %v5566
    %v5830 = vunpack.c.l.b16 %v5567
    %v5831 = vunpack.c.l.b16 %v5568
    %v5832 = vunpack.c.l.b16 %v5569
    %v5833 = vunpack.c.l.b16 %v5570
    %v5834 = vunpack.c.l.b16 %v5571
    %v5835 = vunpack.c.l.b16 %v5572
    %v5836 = vunpack.c.l.b16 %v5573
    %v5837 = vunpack.c.l.b16 %v5574
    %v5838 = vunpack.c.l.b16 %v5575
    %v5839 = vunpack.c.l.b16 %v5576
    %v5840 = vunpack.c.l.b16 %v5577
    %v5841 = vunpack.c.l.b16 %v5578
    %v5842 = vunpack.c.l.b16 %v5579
    %v5843 = vunpack.c.l.b16 %v5580
    %v5844 = vunpack.c.l.b16 %v5581
    %v5845 = vunpack.c.l.b16 %v5582
    %v5846 = vunpack.c.l.b16 %v5583
    %v5847 = vunpack.c.l.b16 %v5584
    %v5848 = vunpack.c.l.b16 %v5585
    %v5849 = vpack.c.b16 %v5722, %v5721
    %v5850 = vpack.c.b16 %v5724, %v5723
    %v5851 = vpack.c.b16 %v5726, %v5725
    %v5852 = vpack.c.b16 %v5728, %v5727
    %v5853 = vpack.c.b16 %v5730, %v5729
    %v5854 = vpack.c.b16 %v5732, %v5731
    %v5855 = vpack.c.b16 %v5734, %v5733
    %v5856 = vpack.c.b16 %v5736, %v5735
    %v5857 = vpack.c.b16 %v5738, %v5737
    %v5858 = vpack.c.b16 %v5740, %v5739
    %v5859 = vpack.c.b16 %v5742, %v5741
    %v5860 = vpack.c.b16 %v5744, %v5743
    %v5861 = vpack.c.b16 %v5746, %v5745
    %v5862 = vpack.c.b16 %v5748, %v5747
    %v5863 = vpack.c.b16 %v5750, %v5749
    %v5864 = vpack.c.b16 %v5752, %v5751
    %v5865 = vpack.c.b16 %v5754, %v5753
    %v5866 = vpack.c.b16 %v5756, %v5755
    %v5867 = vpack.c.b16 %v5758, %v5757
    %v5868 = vpack.c.b16 %v5760, %v5759
    %v5869 = vpack.c.b16 %v5762, %v5761
    %v5870 = vpack.c.b16 %v5764, %v5763
    %v5871 = vpack.c.b16 %v5766, %v5765
    %v5872 = vpack.c.b16 %v5768, %v5767
    %v5873 = vpack.c.b16 %v5770, %v5769
    %v5874 = vpack.c.b16 %v5772, %v5771
    %v5875 = vpack.c.b16 %v5774, %v5773
    %v5876 = vpack.c.b16 %v5776, %v5775
    %v5877 = vpack.c.b16 %v5778, %v5777
    %v5878 = vpack.c.b16 %v5780, %v5779
    %v5879 = vpack.c.b16 %v5782, %v5781
    %v5880 = vpack.c.b16 %v5784, %v5783
    %v5881 = vpack.c.b16 %v5786, %v5785
    %v5882 = vpack.c.b16 %v5788, %v5787
    %v5883 = vpack.c.b16 %v5790, %v5789
    %v5884 = vpack.c.b16 %v5792, %v5791
    %v5885 = vpack.c.b16 %v5794, %v5793
    %v5886 = vpack.c.b16 %v5796, %v5795
    %v5887 = vpack.c.b16 %v5798, %v5797
    %v5888 = vpack.c.b16 %v5800, %v5799
    %v5889 = vpack.c.b16 %v5802, %v5801
    %v5890 = vpack.c.b16 %v5804, %v5803
    %v5891 = vpack.c.b16 %v5806, %v5805
    %v5892 = vpack.c.b16 %v5808, %v5807
    %v5893 = vpack.c.b16 %v5810, %v5809
    %v5894 = vpack.c.b16 %v5812, %v5811
    %v5895 = vpack.c.b16 %v5814, %v5813
    %v5896 = vpack.c.b16 %v5816, %v5815
    %v5897 = vpack.c.b16 %v5818, %v5817
    %v5898 = vpack.c.b16 %v5820, %v5819
    %v5899 = vpack.c.b16 %v5822, %v5821
    %v5900 = vpack.c.b16 %v5824, %v5823
    %v5901 = vpack.c.b16 %v5826, %v5825
    %v5902 = vpack.c.b16 %v5828, %v5827
    %v5903 = vpack.c.b16 %v5830, %v5829
    %v5904 = vpack.c.b16 %v5832, %v5831
    %v5905 = vpack.c.b16 %v5834, %v5833
    %v5906 = vpack.c.b16 %v5836, %v5835
    %v5907 = vpack.c.b16 %v5838, %v5837
    %v5908 = vpack.c.b16 %v5840, %v5839
    %v5909 = vpack.c.b16 %v5842, %v5841
    %v5910 = vpack.c.b16 %v5844, %v5843
    %v5911 = vpack.c.b16 %v5846, %v5845
    %v5912 = vpack.c.b16 %v5848, %v5847
    %5977 = vmatprep.subr.bf16.mxu0 0
    %5978 = vmatpush1.bf16.msra.mxu0 %v5849
    %5979 = vmatprep.subr.bf16.mxu0 0
    %5980 = vmatpush1.bf16.msra.mxu0 %v5850
    %5981 = vmatprep.subr.bf16.mxu0 0
    %5982 = vmatpush1.bf16.msra.mxu0 %v5851
    %5983 = vmatprep.subr.bf16.mxu0 0
    %5984 = vmatpush1.bf16.msra.mxu0 %v5852
    %5985 = vmatprep.subr.bf16.mxu0 0
    %5986 = vmatpush1.bf16.msra.mxu0 %v5853
    %5987 = vmatprep.subr.bf16.mxu0 0
    %5988 = vmatpush1.bf16.msra.mxu0 %v5854
    %5989 = vmatprep.subr.bf16.mxu0 0
    %5990 = vmatpush1.bf16.msra.mxu0 %v5855
    %5991 = vmatprep.subr.bf16.mxu0 0
    %5992 = vmatpush1.bf16.msra.mxu0 %v5856
    %5993 = vmatprep.subr.bf16.mxu0 0
    %5994 = vmatpush1.bf16.msra.mxu0 %v5857
    %5995 = vmatprep.subr.bf16.mxu0 0
    %5996 = vmatpush1.bf16.msra.mxu0 %v5858
    %5997 = vmatprep.subr.bf16.mxu0 0
    %5998 = vmatpush1.bf16.msra.mxu0 %v5859
    %5999 = vmatprep.subr.bf16.mxu0 0
    %6000 = vmatpush1.bf16.msra.mxu0 %v5860
    %6001 = vmatprep.subr.bf16.mxu0 0
    %6002 = vmatpush1.bf16.msra.mxu0 %v5861
    %6003 = vmatprep.subr.bf16.mxu0 0
    %6004 = vmatpush1.bf16.msra.mxu0 %v5862
    %6005 = vmatprep.subr.bf16.mxu0 0
    %6006 = vmatpush1.bf16.msra.mxu0 %v5863
    %6007 = vmatprep.subr.bf16.mxu0 0
    %6008 = vmatpush1.bf16.msra.mxu0 %v5864
    %6009 = vmatprep.mubr.bf16.mxu0 %v5451
    %6010 = vmatmul.mubr.bf16.gmra.mrb[0].mxu0 %v5450
    %v6011 = vpop.f32.mrb[0].mxu0
    %v6012 = vadd.f32 %v5591, %v6011
    %v6013 = vpop.f32.mrb[0].mxu0
    %v6014 = vpop.f32.mrb[0].mxu0
    %v6015 = vpop.f32.mrb[0].mxu0
    %6016 = vdwg.mxu0
    %6017 = vmatprep.subr.bf16.mxu0 0
    %6018 = vmatpush1.bf16.msra.mxu0 %v5865
    %6019 = vmatprep.subr.bf16.mxu0 0
    %6020 = vmatpush1.bf16.msra.mxu0 %v5866
    %6021 = vmatprep.subr.bf16.mxu0 0
    %6022 = vmatpush1.bf16.msra.mxu0 %v5867
    %6023 = vmatprep.subr.bf16.mxu0 0
    %6024 = vmatpush1.bf16.msra.mxu0 %v5868
    %6025 = vmatprep.subr.bf16.mxu0 0
    %6026 = vmatpush1.bf16.msra.mxu0 %v5869
    %6027 = vmatprep.subr.bf16.mxu0 0
    %6028 = vmatpush1.bf16.msra.mxu0 %v5870
    %6029 = vmatprep.subr.bf16.mxu0 0
    %6030 = vmatpush1.bf16.msra.mxu0 %v5871
    %6031 = vmatprep.subr.bf16.mxu0 0
    %6032 = vmatpush1.bf16.msra.mxu0 %v5872
    %6033 = vmatprep.subr.bf16.mxu0 0
    %6034 = vmatpush1.bf16.msra.mxu0 %v5873
    %6035 = vmatprep.subr.bf16.mxu0 0
    %6036 = vmatpush1.bf16.msra.mxu0 %v5874
    %6037 = vmatprep.subr.bf16.mxu0 0
    %6038 = vmatpush1.bf16.msra.mxu0 %v5875
    %6039 = vmatprep.subr.bf16.mxu0 0
    %6040 = vmatpush1.bf16.msra.mxu0 %v5876
    %6041 = vmatprep.subr.bf16.mxu0 0
    %6042 = vmatpush1.bf16.msra.mxu0 %v5877
    %6043 = vmatprep.subr.bf16.mxu0 0
    %6044 = vmatpush1.bf16.msra.mxu0 %v5878
    %6045 = vmatprep.subr.bf16.mxu0 0
    %6046 = vmatpush1.bf16.msra.mxu0 %v5879
    %6047 = vmatprep.subr.bf16.mxu0 0
    %6048 = vmatpush1.bf16.msra.mxu0 %v5880
    %6049 = vmatprep.mubr.bf16.mxu0 %v5453
    %6050 = vmatmul.mubr.bf16.gmra.mrb[0].mxu0 %v5452
    %v6051 = vpop.f32.mrb[0].mxu0
    %v6052 = vadd.f32 %v6012, %v6051
    %v6053 = vpop.f32.mrb[0].mxu0
    %v6054 = vpop.f32.mrb[0].mxu0
    %v6055 = vpop.f32.mrb[0].mxu0
    %6056 = vdwg.mxu0
    %6057 = vmatprep.subr.bf16.mxu0 0
    %6058 = vmatpush1.bf16.msra.mxu0 %v5881
    %6059 = vmatprep.subr.bf16.mxu0 0
    %6060 = vmatpush1.bf16.msra.mxu0 %v5882
    %6061 = vmatprep.subr.bf16.mxu0 0
    %6062 = vmatpush1.bf16.msra.mxu0 %v5883
    %6063 = vmatprep.subr.bf16.mxu0 0
    %6064 = vmatpush1.bf16.msra.mxu0 %v5884
    %6065 = vmatprep.subr.bf16.mxu0 0
    %6066 = vmatpush1.bf16.msra.mxu0 %v5885
    %6067 = vmatprep.subr.bf16.mxu0 0
    %6068 = vmatpush1.bf16.msra.mxu0 %v5886
    %6069 = vmatprep.subr.bf16.mxu0 0
    %6070 = vmatpush1.bf16.msra.mxu0 %v5887
    %6071 = vmatprep.subr.bf16.mxu0 0
    %6072 = vmatpush1.bf16.msra.mxu0 %v5888
    %6073 = vmatprep.subr.bf16.mxu0 0
    %6074 = vmatpush1.bf16.msra.mxu0 %v5889
    %6075 = vmatprep.subr.bf16.mxu0 0
    %6076 = vmatpush1.bf16.msra.mxu0 %v5890
    %6077 = vmatprep.subr.bf16.mxu0 0
    %6078 = vmatpush1.bf16.msra.mxu0 %v5891
    %6079 = vmatprep.subr.bf16.mxu0 0
    %6080 = vmatpush1.bf16.msra.mxu0 %v5892
    %6081 = vmatprep.subr.bf16.mxu0 0
    %6082 = vmatpush1.bf16.msra.mxu0 %v5893
    %6083 = vmatprep.subr.bf16.mxu0 0
    %6084 = vmatpush1.bf16.msra.mxu0 %v5894
    %6085 = vmatprep.subr.bf16.mxu0 0
    %6086 = vmatpush1.bf16.msra.mxu0 %v5895
    %6087 = vmatprep.subr.bf16.mxu0 0
    %6088 = vmatpush1.bf16.msra.mxu0 %v5896
    %6089 = vmatprep.mubr.bf16.mxu0 %v5455
    %6090 = vmatmul.mubr.bf16.gmra.mrb[0].mxu0 %v5454
    %v6091 = vpop.f32.mrb[0].mxu0
    %v6092 = vadd.f32 %v6052, %v6091
    %v6093 = vpop.f32.mrb[0].mxu0
    %v6094 = vpop.f32.mrb[0].mxu0
    %v6095 = vpop.f32.mrb[0].mxu0
    %6096 = vdwg.mxu0
    %6097 = vmatprep.subr.bf16.mxu0 0
    %6098 = vmatpush1.bf16.msra.mxu0 %v5897
    %6099 = vmatprep.subr.bf16.mxu0 0
    %6100 = vmatpush1.bf16.msra.mxu0 %v5898
    %6101 = vmatprep.subr.bf16.mxu0 0
    %6102 = vmatpush1.bf16.msra.mxu0 %v5899
    %6103 = vmatprep.subr.bf16.mxu0 0
    %6104 = vmatpush1.bf16.msra.mxu0 %v5900
    %6105 = vmatprep.subr.bf16.mxu0 0
    %6106 = vmatpush1.bf16.msra.mxu0 %v5901
    %6107 = vmatprep.subr.bf16.mxu0 0
    %6108 = vmatpush1.bf16.msra.mxu0 %v5902
    %6109 = vmatprep.subr.bf16.mxu0 0
    %6110 = vmatpush1.bf16.msra.mxu0 %v5903
    %6111 = vmatprep.subr.bf16.mxu0 0
    %6112 = vmatpush1.bf16.msra.mxu0 %v5904
    %6113 = vmatprep.subr.bf16.mxu0 0
    %6114 = vmatpush1.bf16.msra.mxu0 %v5905
    %6115 = vmatprep.subr.bf16.mxu0 0
    %6116 = vmatpush1.bf16.msra.mxu0 %v5906
    %6117 = vmatprep.subr.bf16.mxu0 0
    %6118 = vmatpush1.bf16.msra.mxu0 %v5907
    %6119 = vmatprep.subr.bf16.mxu0 0
    %6120 = vmatpush1.bf16.msra.mxu0 %v5908
    %6121 = vmatprep.subr.bf16.mxu0 0
    %6122 = vmatpush1.bf16.msra.mxu0 %v5909
    %6123 = vmatprep.subr.bf16.mxu0 0
    %6124 = vmatpush1.bf16.msra.mxu0 %v5910
    %6125 = vmatprep.subr.bf16.mxu0 0
    %6126 = vmatpush1.bf16.msra.mxu0 %v5911
    %6127 = vmatprep.subr.bf16.mxu0 0
    %6128 = vmatpush1.bf16.msra.mxu0 %v5912
    %6129 = vmatprep.mubr.bf16.mxu0 %v5457
    %6130 = vmatmul.mubr.bf16.gmra.mrb[0].mxu0 %v5456
    %v6131 = vpop.f32.mrb[0].mxu0
    %v6132 = vadd.f32 %v6092, %v6131
    %v6133 = vpop.f32.mrb[0].mxu0
    %v6134 = vpop.f32.mrb[0].mxu0
    %v6135 = vpop.f32.mrb[0].mxu0
    %6136 = vdwg.mxu0
    %vm6137 = vcmask 9216
    %6138 = vst.msk [vmem:[#allocation25] sm:$0x3] %vm6137, %v6132
    // Predicated region
    $region162: #{forward.1} parent=1 // pred_check
      _
    $region163: #{forward.1} parent=1 // pred_check_branch
      %6140 = sbr.rel (0) target = $region165
    $region164: #{forward.1} parent=1 // pred_region
      %s6142 = ssub.s32 32, 32
      %6143 = vsyncadd [#allocation4], %s6142
      %s6145 = sshll.u32 [#allocation25], 4
      %s6146 = int_to_ptr.vmem [resolvable:$true] %s6145
      %6148 = dma.vmem_to_hbm [thread:$0]  %s6146, 32, %s26, [#allocation4]
    $region165: #{forward.1} parent=1 // pred_fallthru
      _
    // Predicated region
    $region166: #{forward.1} parent=1 // pred_check
      _
    $region167: #{forward.1} parent=1 // pred_check_branch
      %6150 = sbr.rel (0) target = $region169
    $region168: #{forward.1} parent=1 // pred_region
      %6151 = dma.done [#allocation4], 32
    $region169: #{forward.1} parent=1 // pred_fallthru
      _
    %6152 = vsyncpa [#allocation3], 1
    %6153 = vsyncpa [#allocation6], 1
    %6154 = vsyncpa [#allocation9], 1
    %6155 = vsyncpa [#allocation12], 1
    %6156 = vsyncpa [#allocation15], 1
    %6157 = vsyncpa [#allocation18], 1
    %6158 = vsyncpa [#allocation21], 1
    %6159 = vsyncpa [#allocation24], 1
    %6160 = vsyncpa [#allocation4], 1

</llo_original>
